<compile_context>
chip_gen: v7x
topology: tpu7x:2x2x1
jax: 0.10.0
libtpu: 0.0.40
codegen_flags: <defaults>
</compile_context>

<pallas_src>
import jax
import jax.numpy as jnp
from jax.experimental import pallas as pl
from jax.experimental.pallas import tpu as pltpu


def _round_up(x, m):
    return ((x + m - 1) // m) * m


def _pick_chunk(total, max_chunk):
    """Largest divisor of `total` that is <= max_chunk (so the grid tiles evenly)."""
    for c in range(max(1, min(total, max_chunk)), 0, -1):
        if total % c == 0:
            return c
    return 1


# --------------------------- fused BiLSTM kernel -----------------------------

def _bilstm_kernel(x_ref, wih_ref, whh_ref, b_ref, out_ref,
                   h_sc, c_sc, g_sc, o_sc):
    """One (direction, time-chunk) grid step of the bidirectional LSTM.

    Row layout: row = local_t * Bp + b  (time-major, batch padded to Bp).

    x_ref:   (Tt*Bp, E)   bf16  input chunk
    wih_ref: (E, 4H)      bf16  input->gates weights for this direction
    whh_ref: (H, 4H)      bf16  hidden->gates weights for this direction
    b_ref:   (1, 4H)      f32   combined bias (b_ih + b_hh) for this direction
    out_ref: (Tt*Bp, H)   bf16  hidden states for this chunk
    h_sc/c_sc: (Bp, H)    f32   recurrence carry (persists across time chunks)
    g_sc:    (Tt*Bp, 4H)  f32   hoisted input-projection gates for the chunk
    o_sc:    (Tt*Bp, H)   f32   output staging slab (one dense store per chunk)
    """
    d = pl.program_id(0)      # 0 = forward, 1 = backward
    tc = pl.program_id(1)     # time-chunk index
    Bp, H = h_sc.shape
    Tt = x_ref.shape[0] // Bp

    @pl.when(tc == 0)
    def _():
        h_sc[...] = jnp.zeros_like(h_sc)
        c_sc[...] = jnp.zeros_like(c_sc)

    # Hoisted input projection: one big GEMM per chunk instead of T tiny matmuls.
    g_sc[...] = (
        jnp.dot(x_ref[...], wih_ref[...], preferred_element_type=jnp.float32)
        + b_ref[...]
    )

    def step(s, carry):
        # forward: local time s ; backward: local time Tt - 1 - s (reverse in-kernel)
        t = s + d * (Tt - 1 - 2 * s)
        base = pl.multiple_of(t * Bp, Bp)
        gates = g_sc[pl.ds(base, Bp), :] + jnp.dot(
            h_sc[...].astype(whh_ref.dtype), whh_ref[...],
            preferred_element_type=jnp.float32)            # (Bp, 4H) f32
        # PyTorch gate ordering: i, f, g, o (H lane-aligned -> cheap slices).
        i_g = jax.nn.sigmoid(gates[:, 0 * H:1 * H])
        f_g = jax.nn.sigmoid(gates[:, 1 * H:2 * H])
        g_g = jnp.tanh(gates[:, 2 * H:3 * H])
        o_g = jax.nn.sigmoid(gates[:, 3 * H:4 * H])
        c_new = f_g * c_sc[...] + i_g * g_g
        h_new = o_g * jnp.tanh(c_new)
        c_sc[...] = c_new
        h_sc[...] = h_new
        o_sc[pl.ds(base, Bp), :] = h_new
        return carry

    # Unrolled so the LLO scheduler can overlap MXU pushes with gate EUP/VPU math.
    jax.lax.fori_loop(0, Tt, step, 0, unroll=True)

    # Single dense store for the whole chunk instead of T tiny stores.
    out_ref[...] = o_sc[...].astype(out_ref.dtype)


def _bilstm_call(x_flat, wih, whh, bias, *, Bp, Tt):
    """x_flat: (T*Bp, E) bf16 -> (2, T*Bp, H) bf16 ([0]=forward, [1]=backward)."""
    TB, E = x_flat.shape
    T = TB // Bp
    H = whh.shape[1]
    nT = T // Tt
    rows = Tt * Bp

    def x_map(d, c):
        # forward walks chunks 0..nT-1; backward walks nT-1..0
        return (c + d * (nT - 1 - 2 * c), 0)

    def out_map(d, c):
        return (d, c + d * (nT - 1 - 2 * c), 0)

    return pl.pallas_call(
        _bilstm_kernel,
        grid=(2, nT),
        in_specs=[
            pl.BlockSpec((rows, E), x_map),
            pl.BlockSpec((None, E, 4 * H), lambda d, c: (d, 0, 0)),   # resident
            pl.BlockSpec((None, H, 4 * H), lambda d, c: (d, 0, 0)),   # resident
            pl.BlockSpec((None, 1, 4 * H), lambda d, c: (d, 0, 0)),   # resident
        ],
        out_specs=pl.BlockSpec((None, rows, H), out_map),
        out_shape=jax.ShapeDtypeStruct((2, TB, H), jnp.bfloat16),
        scratch_shapes=[
            pltpu.VMEM((Bp, H), jnp.float32),          # h carry
            pltpu.VMEM((Bp, H), jnp.float32),          # c carry
            pltpu.VMEM((rows, 4 * H), jnp.float32),    # hoisted input gates
            pltpu.VMEM((rows, H), jnp.float32),        # output staging slab
        ],
        compiler_params=pltpu.CompilerParams(
            dimension_semantics=("parallel", "arbitrary"),
            vmem_limit_bytes=32 * 1024 * 1024,
        ),
    )(x_flat, wih, whh, bias)


# ------------------------------ fused FC kernel ------------------------------

def _fc_kernel(h_ref, w_ref, b_ref, o_ref):
    """h_ref: (2, rows, H) bf16; w_ref: (2, H, Op) bf16; b_ref: (1, Op) f32;
    o_ref: (rows, Op) f32.  logits = h_fwd @ W0 + h_bwd @ W1 + b (no concat)."""
    acc = jnp.dot(h_ref[0], w_ref[0], preferred_element_type=jnp.float32)
    acc = acc + jnp.dot(h_ref[1], w_ref[1], preferred_element_type=jnp.float32)
    o_ref[...] = acc + b_ref[...]


def _fc_call(h_all, wf, bias, *, rows_per_tile):
    _, TB, H = h_all.shape
    Op = wf.shape[-1]
    return pl.pallas_call(
        _fc_kernel,
        grid=(TB // rows_per_tile,),
        in_specs=[
            pl.BlockSpec((2, rows_per_tile, H), lambda c: (0, c, 0)),
            pl.BlockSpec((2, H, Op), lambda c: (0, 0, 0)),
            pl.BlockSpec((1, Op), lambda c: (0, 0)),
        ],
        out_specs=pl.BlockSpec((rows_per_tile, Op), lambda c: (c, 0)),
        out_shape=jax.ShapeDtypeStruct((TB, Op), jnp.float32),
        compiler_params=pltpu.CompilerParams(
            dimension_semantics=("parallel",)),
    )(h_all, wf, bias)


# ------------------------------- full forward --------------------------------

@jax.jit
def bilstm_forward(token_ids, params):
    """token_ids: (B, T) int32 -> logits (B, T, output_dim) f32 (batch_first)."""
    B, T = token_ids.shape
    emb_table = params["embedding"]
    E = emb_table.shape[1]
    H = params["w_hh_f"].shape[1]
    O = params["w_fc"].shape[0]

    Bp = max(8, _round_up(B, 8))                      # pad batch to full sublanes
    Tt = _pick_chunk(T, max(1, 128 // Bp))            # LSTM time-chunk (~128 GEMM rows)
    Tc = _pick_chunk(T, max(1, 512 // Bp))            # FC row-tile (~256-512 rows)

    # Embedding gather directly time-major, batch padded (no extra transpose pass).
    ids_p = jnp.zeros((Bp, T), jnp.int32).at[:B, :].set(token_ids)
    x = jnp.take(emb_table, ids_p.T, axis=0).astype(jnp.bfloat16)   # (T, Bp, E)
    x = x.reshape(T * Bp, E)                                         # row = t*Bp + b

    # Stacked per-direction LSTM weights (torch (4H,in) layout -> (in,4H)), bf16.
    wih = jnp.stack([params["w_ih_f"].T, params["w_ih_r"].T]).astype(jnp.bfloat16)
    whh = jnp.stack([params["w_hh_f"].T, params["w_hh_r"].T]).astype(jnp.bfloat16)
    bias = jnp.stack([
        (params["b_ih_f"] + params["b_hh_f"]).reshape(1, -1),
        (params["b_ih_r"] + params["b_hh_r"]).reshape(1, -1),
    ]).astype(jnp.float32)                                           # (2, 1, 4H)

    h_all = _bilstm_call(x, wih, whh, bias, Bp=Bp, Tt=Tt)            # (2, T*Bp, H)

    # Fused bidirectional FC: lane-dense 128-padded output, sliced back afterwards.
    Op = _round_up(O, 128)
    wf_t = jnp.zeros((2 * H, Op), jnp.float32).at[:, :O].set(params["w_fc"].T)
    wf = wf_t.reshape(2, H, Op).astype(jnp.bfloat16)                 # [0]=fwd, [1]=bwd
    bf = jnp.zeros((1, Op), jnp.float32).at[:, :O].set(params["b_fc"])

    logits_p = _fc_call(h_all, wf, bf, rows_per_tile=Tc * Bp)        # (T*Bp, Op)

    logits = logits_p.reshape(T, Bp, Op)[:, :B, :O]                  # (T, B, O)
    return jnp.transpose(logits, (1, 0, 2))                          # (B, T, O)


# -------------------------------- param init ---------------------------------

def init_params(key, vocab_size, embedding_dim, hidden_dim, output_dim):
    ks = jax.random.split(key, 12)
    H = hidden_dim
    u = 1.0 / jnp.sqrt(jnp.float32(H))

    def uni(k, shape):
        return jax.random.uniform(k, shape, jnp.float32, -u, u)

    return {
        "embedding": jax.random.normal(ks[0], (vocab_size, embedding_dim), jnp.float32),
        # forward direction (torch layout: (4H, E) / (4H, H) / (4H,))
        "w_ih_f": uni(ks[1], (4 * H, embedding_dim)),
        "w_hh_f": uni(ks[2], (4 * H, H)),
        "b_ih_f": uni(ks[3], (4 * H,)),
        "b_hh_f": uni(ks[4], (4 * H,)),
        # reverse direction
        "w_ih_r": uni(ks[5], (4 * H, embedding_dim)),
        "w_hh_r": uni(ks[6], (4 * H, H)),
        "b_ih_r": uni(ks[7], (4 * H,)),
        "b_hh_r": uni(ks[8], (4 * H,)),
        # fc: (O, 2H), (O,)
        "w_fc": uni(ks[9], (output_dim, 2 * H)),
        "b_fc": uni(ks[10], (output_dim,)),
    }


if __name__ == "__main__":
    # Small shapes consistent with the module (hidden_dim=128 as in the spec;
    # embedding_dim rounded to the lane-aligned 128; tiny vocab / output classes).
    batch = 2
    seq_len = 32          # 2 time chunks -> exercises the chunked grid + reversal
    vocab_size = 20       # len(word_to_index) + 1 (synthetic)
    embedding_dim = 128
    hidden_dim = 128
    output_dim = 5        # len(label_encoder.classes_) (synthetic)

    key = jax.random.PRNGKey(0)
    k_params, k_ids = jax.random.split(key)
    params = init_params(k_params, vocab_size, embedding_dim, hidden_dim, output_dim)
    token_ids = jax.random.randint(k_ids, (batch, seq_len), 0, vocab_size, jnp.int32)

    out = bilstm_forward(token_ids, params)
    jax.block_until_ready(out)
    assert out.shape == (batch, seq_len, output_dim)
    print("KERNEL_OK")
</pallas_src>

<mosaic_0001>
module attributes {stable_mosaic.version = 11 : i64} {
  func.func @_fc_kernel(%arg0: i32, %arg1: memref<2x256x128xbf16, #tpu.memory_space<vmem>>, %arg2: memref<2x128x128xbf16, #tpu.memory_space<vmem>>, %arg3: memref<1x128xf32, #tpu.memory_space<vmem>>, %arg4: memref<256x128xf32, #tpu.memory_space<vmem>>) attributes {dimension_semantics = [#tpu.dimension_semantics<parallel>], iteration_bounds = array<i64: 1>, scalar_prefetch = 0 : i64, scratch_operands = 0 : i64, tpu.core_type = #tpu.core_type<tc>, window_params = [{transform_indices = @transform_0, window_bounds = array<i64: 2, 256, 128>}, {pipeline_mode = #tpu.pipeline_mode<synchronous>, transform_indices = @transform_1, window_bounds = array<i64: 2, 128, 128>}, {pipeline_mode = #tpu.pipeline_mode<synchronous>, transform_indices = @transform_2, window_bounds = array<i64: 1, 128>}, {transform_indices = @transform_3, window_bounds = array<i64: 256, 128>}]} {
    %c0 = arith.constant 0 : index
    %c0_0 = arith.constant 0 : index
    %c0_1 = arith.constant 0 : index
    %0 = vector.load %arg1[%c0, %c0_0, %c0_1] : memref<2x256x128xbf16, #tpu.memory_space<vmem>>, vector<1x256x128xbf16>
    %1 = vector.shape_cast %0 : vector<1x256x128xbf16> to vector<256x128xbf16>
    %c0_2 = arith.constant 0 : index
    %c0_3 = arith.constant 0 : index
    %c0_4 = arith.constant 0 : index
    %2 = vector.load %arg2[%c0_2, %c0_3, %c0_4] : memref<2x128x128xbf16, #tpu.memory_space<vmem>>, vector<1x128x128xbf16>
    %3 = vector.shape_cast %2 : vector<1x128x128xbf16> to vector<128x128xbf16>
    %cst = arith.constant dense<0.000000e+00> : vector<256x128xf32>
    %4 = tpu.matmul %1, %3, %cst {dimension_numbers = #tpu.dot_dimension_numbers<[1], [0], [0], [1], [0, 0, 1, 1], [], []>} : vector<256x128xbf16>, vector<128x128xbf16>, vector<256x128xf32> -> vector<256x128xf32>
    %c1 = arith.constant 1 : index
    %c0_5 = arith.constant 0 : index
    %c0_6 = arith.constant 0 : index
    %5 = vector.load %arg1[%c1, %c0_5, %c0_6] : memref<2x256x128xbf16, #tpu.memory_space<vmem>>, vector<1x256x128xbf16>
    %6 = vector.shape_cast %5 : vector<1x256x128xbf16> to vector<256x128xbf16>
    %c1_7 = arith.constant 1 : index
    %c0_8 = arith.constant 0 : index
    %c0_9 = arith.constant 0 : index
    %7 = vector.load %arg2[%c1_7, %c0_8, %c0_9] : memref<2x128x128xbf16, #tpu.memory_space<vmem>>, vector<1x128x128xbf16>
    %8 = vector.shape_cast %7 : vector<1x128x128xbf16> to vector<128x128xbf16>
    %cst_10 = arith.constant dense<0.000000e+00> : vector<256x128xf32>
    %9 = tpu.matmul %6, %8, %cst_10 {dimension_numbers = #tpu.dot_dimension_numbers<[1], [0], [0], [1], [0, 0, 1, 1], [], []>} : vector<256x128xbf16>, vector<128x128xbf16>, vector<256x128xf32> -> vector<256x128xf32>
    %10 = arith.addf %4, %9 : vector<256x128xf32>
    %c0_11 = arith.constant 0 : index
    %c0_12 = arith.constant 0 : index
    %11 = vector.load %arg3[%c0_11, %c0_12] : memref<1x128xf32, #tpu.memory_space<vmem>>, vector<1x128xf32>
    %12 = vector.broadcast %11 : vector<1x128xf32> to vector<256x128xf32>
    %13 = arith.addf %10, %12 : vector<256x128xf32>
    %c0_13 = arith.constant 0 : index
    %c0_14 = arith.constant 0 : index
    %14 = vector.load %arg4[%c0_13, %c0_14] : memref<256x128xf32, #tpu.memory_space<vmem>>, vector<256x128xf32>
    tpu.vector_store %arg4[%c0_13, %c0_14], %13 {strides = array<i32>} : memref<256x128xf32, #tpu.memory_space<vmem>>, vector<256x128xf32>,
    return
  }
  func.func @transform_0(%arg0: i32) -> (i32, i32, i32) {
    %c0_i32 = arith.constant 0 : i32
    %c0_i32_0 = arith.constant 0 : i32
    %c0_i32_1 = arith.constant 0 : i32
    return %c0_i32, %arg0, %c0_i32_0 : i32, i32, i32
  }
  func.func @transform_1(%arg0: i32) -> (i32, i32, i32) {
    %c0_i32 = arith.constant 0 : i32
    %c0_i32_0 = arith.constant 0 : i32
    %c0_i32_1 = arith.constant 0 : i32
    %c0_i32_2 = arith.constant 0 : i32
    return %c0_i32, %c0_i32_0, %c0_i32_1 : i32, i32, i32
  }
  func.func @transform_2(%arg0: i32) -> (i32, i32) {
    %c0_i32 = arith.constant 0 : i32
    %c0_i32_0 = arith.constant 0 : i32
    %c0_i32_1 = arith.constant 0 : i32
    return %c0_i32, %c0_i32_0 : i32, i32
  }
  func.func @transform_3(%arg0: i32) -> (i32, i32) {
    %c0_i32 = arith.constant 0 : i32
    %c0_i32_0 = arith.constant 0 : i32
    return %arg0, %c0_i32 : i32, i32
  }
}

module attributes {stable_mosaic.version = 11 : i64} {
  func.func @_bilstm_kernel(%arg0: i32, %arg1: i32, %arg2: memref<128x128xbf16, #tpu.memory_space<vmem>>, %arg3: memref<1x128x512xbf16, #tpu.memory_space<vmem>>, %arg4: memref<1x128x512xbf16, #tpu.memory_space<vmem>>, %arg5: memref<1x1x512xf32, #tpu.memory_space<vmem>>, %arg6: memref<1x128x128xbf16, #tpu.memory_space<vmem>>, %arg7: memref<8x128xf32, #tpu.memory_space<vmem>>, %arg8: memref<8x128xf32, #tpu.memory_space<vmem>>, %arg9: memref<128x512xf32, #tpu.memory_space<vmem>>, %arg10: memref<128x128xf32, #tpu.memory_space<vmem>>) attributes {dimension_semantics = [#tpu.dimension_semantics<parallel>, #tpu.dimension_semantics<arbitrary>], iteration_bounds = array<i64: 2, 2>, scalar_prefetch = 0 : i64, scratch_operands = 4 : i64, tpu.core_type = #tpu.core_type<tc>, window_params = [{transform_indices = @transform_0, window_bounds = array<i64: 128, 128>}, {transform_indices = @transform_1, window_bounds = array<i64: 1, 128, 512>}, {transform_indices = @transform_2, window_bounds = array<i64: 1, 128, 512>}, {transform_indices = @transform_3, window_bounds = array<i64: 1, 1, 512>}, {transform_indices = @transform_4, window_bounds = array<i64: 1, 128, 128>}]} {
    %c0_i32 = arith.constant 0 : i32
    %0 = arith.cmpi eq, %arg1, %c0_i32 : i32
    %1 = arith.extui %0 : i1 to i32
    %c0_i32_0 = arith.constant 0 : i32
    %2 = arith.cmpi ne, %1, %c0_i32_0 : i32
    scf.if %2 {
      %cst_336 = arith.constant 0.000000e+00 : f32
      %721 = vector.broadcast %cst_336 : f32 to vector<8x128xf32>
      %c0_337 = arith.constant 0 : index
      %c0_338 = arith.constant 0 : index
      %722 = vector.load %arg7[%c0_337, %c0_338] : memref<8x128xf32, #tpu.memory_space<vmem>>, vector<8x128xf32>
      tpu.vector_store %arg7[%c0_337, %c0_338], %721 {strides = array<i32>} : memref<8x128xf32, #tpu.memory_space<vmem>>, vector<8x128xf32>,
      %cst_339 = arith.constant 0.000000e+00 : f32
      %723 = vector.broadcast %cst_339 : f32 to vector<8x128xf32>
      %c0_340 = arith.constant 0 : index
      %c0_341 = arith.constant 0 : index
      %724 = vector.load %arg8[%c0_340, %c0_341] : memref<8x128xf32, #tpu.memory_space<vmem>>, vector<8x128xf32>
      tpu.vector_store %arg8[%c0_340, %c0_341], %723 {strides = array<i32>} : memref<8x128xf32, #tpu.memory_space<vmem>>, vector<8x128xf32>,
    } else {
    }
    %c0 = arith.constant 0 : index
    %c0_1 = arith.constant 0 : index
    %3 = vector.load %arg2[%c0, %c0_1] : memref<128x128xbf16, #tpu.memory_space<vmem>>, vector<128x128xbf16>
    %c0_2 = arith.constant 0 : index
    %c0_3 = arith.constant 0 : index
    %c0_4 = arith.constant 0 : index
    %4 = vector.load %arg3[%c0_2, %c0_3, %c0_4] : memref<1x128x512xbf16, #tpu.memory_space<vmem>>, vector<1x128x512xbf16>
    %5 = vector.shape_cast %4 : vector<1x128x512xbf16> to vector<128x512xbf16>
    %cst = arith.constant dense<0.000000e+00> : vector<128x512xf32>
    %6 = tpu.matmul %3, %5, %cst {dimension_numbers = #tpu.dot_dimension_numbers<[1], [0], [0], [1], [0, 0, 1, 1], [], []>} : vector<128x128xbf16>, vector<128x512xbf16>, vector<128x512xf32> -> vector<128x512xf32>
    %c0_5 = arith.constant 0 : index
    %c0_6 = arith.constant 0 : index
    %c0_7 = arith.constant 0 : index
    %7 = vector.load %arg5[%c0_5, %c0_6, %c0_7] : memref<1x1x512xf32, #tpu.memory_space<vmem>>, vector<1x1x512xf32>
    %8 = vector.shape_cast %7 : vector<1x1x512xf32> to vector<1x512xf32>
    %9 = vector.broadcast %8 : vector<1x512xf32> to vector<128x512xf32>
    %10 = arith.addf %6, %9 : vector<128x512xf32>
    %c0_8 = arith.constant 0 : index
    %c0_9 = arith.constant 0 : index
    %11 = vector.load %arg9[%c0_8, %c0_9] : memref<128x512xf32, #tpu.memory_space<vmem>>, vector<128x512xf32>
    tpu.vector_store %arg9[%c0_8, %c0_9], %10 {strides = array<i32>} : memref<128x512xf32, #tpu.memory_space<vmem>>, vector<128x512xf32>,
    %c0_i32_10 = arith.constant 0 : i32
    %c2_i32 = arith.constant 2 : i32
    %12 = arith.muli %c2_i32, %c0_i32_10 : i32
    %c15_i32 = arith.constant 15 : i32
    %13 = arith.subi %c15_i32, %12 : i32
    %14 = arith.muli %arg0, %13 : i32
    %15 = arith.addi %c0_i32_10, %14 : i32
    %c8_i32 = arith.constant 8 : i32
    %16 = arith.muli %15, %c8_i32 : i32
    %17 = tpu.assume_multiple %16, 8 : i32
    %18 = arith.index_cast %17 : i32 to index
    %c0_11 = arith.constant 0 : index
    %19 = vector.load %arg9[%18, %c0_11] : memref<128x512xf32, #tpu.memory_space<vmem>>, vector<8x512xf32>
    %c0_12 = arith.constant 0 : index
    %c0_13 = arith.constant 0 : index
    %20 = vector.load %arg7[%c0_12, %c0_13] : memref<8x128xf32, #tpu.memory_space<vmem>>, vector<8x128xf32>
    %21 = arith.truncf %20 : vector<8x128xf32> to vector<8x128xbf16>
    %c0_14 = arith.constant 0 : index
    %c0_15 = arith.constant 0 : index
    %c0_16 = arith.constant 0 : index
    %22 = vector.load %arg4[%c0_14, %c0_15, %c0_16] : memref<1x128x512xbf16, #tpu.memory_space<vmem>>, vector<1x128x512xbf16>
    %23 = vector.shape_cast %22 : vector<1x128x512xbf16> to vector<128x512xbf16>
    %cst_17 = arith.constant dense<0.000000e+00> : vector<8x512xf32>
    %24 = tpu.matmul %21, %23, %cst_17 {dimension_numbers = #tpu.dot_dimension_numbers<[1], [0], [0], [1], [0, 0, 1, 1], [], []>} : vector<8x128xbf16>, vector<128x512xbf16>, vector<8x512xf32> -> vector<8x512xf32>
    %25 = arith.addf %19, %24 : vector<8x512xf32>
    %26 = vector.extract_strided_slice %25 {offsets = [0, 0], sizes = [8, 128], strides = [1, 1]} : vector<8x512xf32> to vector<8x128xf32>
    %27 = arith.negf %26 : vector<8x128xf32>
    %28 = math.exp %27 : vector<8x128xf32>
    %cst_18 = arith.constant 1.000000e+00 : f32
    %29 = vector.broadcast %cst_18 : f32 to vector<8x128xf32>
    %30 = arith.addf %29, %28 : vector<8x128xf32>
    %31 = arith.divf %29, %30 : vector<8x128xf32>
    %32 = vector.extract_strided_slice %25 {offsets = [0, 128], sizes = [8, 128], strides = [1, 1]} : vector<8x512xf32> to vector<8x128xf32>
    %33 = arith.negf %32 : vector<8x128xf32>
    %34 = math.exp %33 : vector<8x128xf32>
    %cst_19 = arith.constant 1.000000e+00 : f32
    %35 = vector.broadcast %cst_19 : f32 to vector<8x128xf32>
    %36 = arith.addf %35, %34 : vector<8x128xf32>
    %37 = arith.divf %35, %36 : vector<8x128xf32>
    %38 = vector.extract_strided_slice %25 {offsets = [0, 256], sizes = [8, 128], strides = [1, 1]} : vector<8x512xf32> to vector<8x128xf32>
    %39 = math.tanh %38 : vector<8x128xf32>
    %40 = vector.extract_strided_slice %25 {offsets = [0, 384], sizes = [8, 128], strides = [1, 1]} : vector<8x512xf32> to vector<8x128xf32>
    %41 = arith.negf %40 : vector<8x128xf32>
    %42 = math.exp %41 : vector<8x128xf32>
    %cst_20 = arith.constant 1.000000e+00 : f32
    %43 = vector.broadcast %cst_20 : f32 to vector<8x128xf32>
    %44 = arith.addf %43, %42 : vector<8x128xf32>
    %45 = arith.divf %43, %44 : vector<8x128xf32>
    %c0_21 = arith.constant 0 : index
    %c0_22 = arith.constant 0 : index
    %46 = vector.load %arg8[%c0_21, %c0_22] : memref<8x128xf32, #tpu.memory_space<vmem>>, vector<8x128xf32>
    %47 = arith.mulf %37, %46 : vector<8x128xf32>
    %48 = arith.mulf %31, %39 : vector<8x128xf32>
    %49 = arith.addf %47, %48 : vector<8x128xf32>
    %50 = math.tanh %49 : vector<8x128xf32>
    %51 = arith.mulf %45, %50 : vector<8x128xf32>
    %c0_23 = arith.constant 0 : index
    %c0_24 = arith.constant 0 : index
    %52 = vector.load %arg8[%c0_23, %c0_24] : memref<8x128xf32, #tpu.memory_space<vmem>>, vector<8x128xf32>
    tpu.vector_store %arg8[%c0_23, %c0_24], %49 {strides = array<i32>} : memref<8x128xf32, #tpu.memory_space<vmem>>, vector<8x128xf32>,
    %c0_25 = arith.constant 0 : index
    %c0_26 = arith.constant 0 : index
    %53 = vector.load %arg7[%c0_25, %c0_26] : memref<8x128xf32, #tpu.memory_space<vmem>>, vector<8x128xf32>
    tpu.vector_store %arg7[%c0_25, %c0_26], %51 {strides = array<i32>} : memref<8x128xf32, #tpu.memory_space<vmem>>, vector<8x128xf32>,
    %54 = arith.index_cast %17 : i32 to index
    %c0_27 = arith.constant 0 : index
    %55 = vector.load %arg10[%54, %c0_27] : memref<128x128xf32, #tpu.memory_space<vmem>>, vector<8x128xf32>
    tpu.vector_store %arg10[%54, %c0_27], %51 {strides = array<i32>} : memref<128x128xf32, #tpu.memory_space<vmem>>, vector<8x128xf32>,
    %c1_i32 = arith.constant 1 : i32
    %c2_i32_28 = arith.constant 2 : i32
    %56 = arith.muli %c2_i32_28, %c1_i32 : i32
    %c15_i32_29 = arith.constant 15 : i32
    %57 = arith.subi %c15_i32_29, %56 : i32
    %58 = arith.muli %arg0, %57 : i32
    %59 = arith.addi %c1_i32, %58 : i32
    %c8_i32_30 = arith.constant 8 : i32
    %60 = arith.muli %59, %c8_i32_30 : i32
    %61 = tpu.assume_multiple %60, 8 : i32
    %62 = arith.index_cast %61 : i32 to index
    %c0_31 = arith.constant 0 : index
    %63 = vector.load %arg9[%62, %c0_31] : memref<128x512xf32, #tpu.memory_space<vmem>>, vector<8x512xf32>
    %c0_32 = arith.constant 0 : index
    %c0_33 = arith.constant 0 : index
    %64 = vector.load %arg7[%c0_32, %c0_33] : memref<8x128xf32, #tpu.memory_space<vmem>>, vector<8x128xf32>
    %65 = arith.truncf %64 : vector<8x128xf32> to vector<8x128xbf16>
    %c0_34 = arith.constant 0 : index
    %c0_35 = arith.constant 0 : index
    %c0_36 = arith.constant 0 : index
    %66 = vector.load %arg4[%c0_34, %c0_35, %c0_36] : memref<1x128x512xbf16, #tpu.memory_space<vmem>>, vector<1x128x512xbf16>
    %67 = vector.shape_cast %66 : vector<1x128x512xbf16> to vector<128x512xbf16>
    %cst_37 = arith.constant dense<0.000000e+00> : vector<8x512xf32>
    %68 = tpu.matmul %65, %67, %cst_37 {dimension_numbers = #tpu.dot_dimension_numbers<[1], [0], [0], [1], [0, 0, 1, 1], [], []>} : vector<8x128xbf16>, vector<128x512xbf16>, vector<8x512xf32> -> vector<8x512xf32>
    %69 = arith.addf %63, %68 : vector<8x512xf32>
    %70 = vector.extract_strided_slice %69 {offsets = [0, 0], sizes = [8, 128], strides = [1, 1]} : vector<8x512xf32> to vector<8x128xf32>
    %71 = arith.negf %70 : vector<8x128xf32>
    %72 = math.exp %71 : vector<8x128xf32>
    %cst_38 = arith.constant 1.000000e+00 : f32
    %73 = vector.broadcast %cst_38 : f32 to vector<8x128xf32>
    %74 = arith.addf %73, %72 : vector<8x128xf32>
    %75 = arith.divf %73, %74 : vector<8x128xf32>
    %76 = vector.extract_strided_slice %69 {offsets = [0, 128], sizes = [8, 128], strides = [1, 1]} : vector<8x512xf32> to vector<8x128xf32>
    %77 = arith.negf %76 : vector<8x128xf32>
    %78 = math.exp %77 : vector<8x128xf32>
    %cst_39 = arith.constant 1.000000e+00 : f32
    %79 = vector.broadcast %cst_39 : f32 to vector<8x128xf32>
    %80 = arith.addf %79, %78 : vector<8x128xf32>
    %81 = arith.divf %79, %80 : vector<8x128xf32>
    %82 = vector.extract_strided_slice %69 {offsets = [0, 256], sizes = [8, 128], strides = [1, 1]} : vector<8x512xf32> to vector<8x128xf32>
    %83 = math.tanh %82 : vector<8x128xf32>
    %84 = vector.extract_strided_slice %69 {offsets = [0, 384], sizes = [8, 128], strides = [1, 1]} : vector<8x512xf32> to vector<8x128xf32>
    %85 = arith.negf %84 : vector<8x128xf32>
    %86 = math.exp %85 : vector<8x128xf32>
    %cst_40 = arith.constant 1.000000e+00 : f32
    %87 = vector.broadcast %cst_40 : f32 to vector<8x128xf32>
    %88 = arith.addf %87, %86 : vector<8x128xf32>
    %89 = arith.divf %87, %88 : vector<8x128xf32>
    %c0_41 = arith.constant 0 : index
    %c0_42 = arith.constant 0 : index
    %90 = vector.load %arg8[%c0_41, %c0_42] : memref<8x128xf32, #tpu.memory_space<vmem>>, vector<8x128xf32>
    %91 = arith.mulf %81, %90 : vector<8x128xf32>
    %92 = arith.mulf %75, %83 : vector<8x128xf32>
    %93 = arith.addf %91, %92 : vector<8x128xf32>
    %94 = math.tanh %93 : vector<8x128xf32>
    %95 = arith.mulf %89, %94 : vector<8x128xf32>
    %c0_43 = arith.constant 0 : index
    %c0_44 = arith.constant 0 : index
    %96 = vector.load %arg8[%c0_43, %c0_44] : memref<8x128xf32, #tpu.memory_space<vmem>>, vector<8x128xf32>
    tpu.vector_store %arg8[%c0_43, %c0_44], %93 {strides = array<i32>} : memref<8x128xf32, #tpu.memory_space<vmem>>, vector<8x128xf32>,
    %c0_45 = arith.constant 0 : index
    %c0_46 = arith.constant 0 : index
    %97 = vector.load %arg7[%c0_45, %c0_46] : memref<8x128xf32, #tpu.memory_space<vmem>>, vector<8x128xf32>
    tpu.vector_store %arg7[%c0_45, %c0_46], %95 {strides = array<i32>} : memref<8x128xf32, #tpu.memory_space<vmem>>, vector<8x128xf32>,
    %98 = arith.index_cast %61 : i32 to index
    %c0_47 = arith.constant 0 : index
    %99 = vector.load %arg10[%98, %c0_47] : memref<128x128xf32, #tpu.memory_space<vmem>>, vector<8x128xf32>
    tpu.vector_store %arg10[%98, %c0_47], %95 {strides = array<i32>} : memref<128x128xf32, #tpu.memory_space<vmem>>, vector<8x128xf32>,
    %c2_i32_48 = arith.constant 2 : i32
    %c2_i32_49 = arith.constant 2 : i32
    %100 = arith.muli %c2_i32_49, %c2_i32_48 : i32
    %c15_i32_50 = arith.constant 15 : i32
    %101 = arith.subi %c15_i32_50, %100 : i32
    %102 = arith.muli %arg0, %101 : i32
    %103 = arith.addi %c2_i32_48, %102 : i32
    %c8_i32_51 = arith.constant 8 : i32
    %104 = arith.muli %103, %c8_i32_51 : i32
    %105 = tpu.assume_multiple %104, 8 : i32
    %106 = arith.index_cast %105 : i32 to index
    %c0_52 = arith.constant 0 : index
    %107 = vector.load %arg9[%106, %c0_52] : memref<128x512xf32, #tpu.memory_space<vmem>>, vector<8x512xf32>
    %c0_53 = arith.constant 0 : index
    %c0_54 = arith.constant 0 : index
    %108 = vector.load %arg7[%c0_53, %c0_54] : memref<8x128xf32, #tpu.memory_space<vmem>>, vector<8x128xf32>
    %109 = arith.truncf %108 : vector<8x128xf32> to vector<8x128xbf16>
    %c0_55 = arith.constant 0 : index
    %c0_56 = arith.constant 0 : index
    %c0_57 = arith.constant 0 : index
    %110 = vector.load %arg4[%c0_55, %c0_56, %c0_57] : memref<1x128x512xbf16, #tpu.memory_space<vmem>>, vector<1x128x512xbf16>
    %111 = vector.shape_cast %110 : vector<1x128x512xbf16> to vector<128x512xbf16>
    %cst_58 = arith.constant dense<0.000000e+00> : vector<8x512xf32>
    %112 = tpu.matmul %109, %111, %cst_58 {dimension_numbers = #tpu.dot_dimension_numbers<[1], [0], [0], [1], [0, 0, 1, 1], [], []>} : vector<8x128xbf16>, vector<128x512xbf16>, vector<8x512xf32> -> vector<8x512xf32>
    %113 = arith.addf %107, %112 : vector<8x512xf32>
    %114 = vector.extract_strided_slice %113 {offsets = [0, 0], sizes = [8, 128], strides = [1, 1]} : vector<8x512xf32> to vector<8x128xf32>
    %115 = arith.negf %114 : vector<8x128xf32>
    %116 = math.exp %115 : vector<8x128xf32>
    %cst_59 = arith.constant 1.000000e+00 : f32
    %117 = vector.broadcast %cst_59 : f32 to vector<8x128xf32>
    %118 = arith.addf %117, %116 : vector<8x128xf32>
    %119 = arith.divf %117, %118 : vector<8x128xf32>
    %120 = vector.extract_strided_slice %113 {offsets = [0, 128], sizes = [8, 128], strides = [1, 1]} : vector<8x512xf32> to vector<8x128xf32>
    %121 = arith.negf %120 : vector<8x128xf32>
    %122 = math.exp %121 : vector<8x128xf32>
    %cst_60 = arith.constant 1.000000e+00 : f32
    %123 = vector.broadcast %cst_60 : f32 to vector<8x128xf32>
    %124 = arith.addf %123, %122 : vector<8x128xf32>
    %125 = arith.divf %123, %124 : vector<8x128xf32>
    %126 = vector.extract_strided_slice %113 {offsets = [0, 256], sizes = [8, 128], strides = [1, 1]} : vector<8x512xf32> to vector<8x128xf32>
    %127 = math.tanh %126 : vector<8x128xf32>
    %128 = vector.extract_strided_slice %113 {offsets = [0, 384], sizes = [8, 128], strides = [1, 1]} : vector<8x512xf32> to vector<8x128xf32>
    %129 = arith.negf %128 : vector<8x128xf32>
    %130 = math.exp %129 : vector<8x128xf32>
    %cst_61 = arith.constant 1.000000e+00 : f32
    %131 = vector.broadcast %cst_61 : f32 to vector<8x128xf32>
    %132 = arith.addf %131, %130 : vector<8x128xf32>
    %133 = arith.divf %131, %132 : vector<8x128xf32>
    %c0_62 = arith.constant 0 : index
    %c0_63 = arith.constant 0 : index
    %134 = vector.load %arg8[%c0_62, %c0_63] : memref<8x128xf32, #tpu.memory_space<vmem>>, vector<8x128xf32>
    %135 = arith.mulf %125, %134 : vector<8x128xf32>
    %136 = arith.mulf %119, %127 : vector<8x128xf32>
    %137 = arith.addf %135, %136 : vector<8x128xf32>
    %138 = math.tanh %137 : vector<8x128xf32>
    %139 = arith.mulf %133, %138 : vector<8x128xf32>
    %c0_64 = arith.constant 0 : index
    %c0_65 = arith.constant 0 : index
    %140 = vector.load %arg8[%c0_64, %c0_65] : memref<8x128xf32, #tpu.memory_space<vmem>>, vector<8x128xf32>
    tpu.vector_store %arg8[%c0_64, %c0_65], %137 {strides = array<i32>} : memref<8x128xf32, #tpu.memory_space<vmem>>, vector<8x128xf32>,
    %c0_66 = arith.constant 0 : index
    %c0_67 = arith.constant 0 : index
    %141 = vector.load %arg7[%c0_66, %c0_67] : memref<8x128xf32, #tpu.memory_space<vmem>>, vector<8x128xf32>
    tpu.vector_store %arg7[%c0_66, %c0_67], %139 {strides = array<i32>} : memref<8x128xf32, #tpu.memory_space<vmem>>, vector<8x128xf32>,
    %142 = arith.index_cast %105 : i32 to index
    %c0_68 = arith.constant 0 : index
    %143 = vector.load %arg10[%142, %c0_68] : memref<128x128xf32, #tpu.memory_space<vmem>>, vector<8x128xf32>
    tpu.vector_store %arg10[%142, %c0_68], %139 {strides = array<i32>} : memref<128x128xf32, #tpu.memory_space<vmem>>, vector<8x128xf32>,
    %c3_i32 = arith.constant 3 : i32
    %c2_i32_69 = arith.constant 2 : i32
    %144 = arith.muli %c2_i32_69, %c3_i32 : i32
    %c15_i32_70 = arith.constant 15 : i32
    %145 = arith.subi %c15_i32_70, %144 : i32
    %146 = arith.muli %arg0, %145 : i32
    %147 = arith.addi %c3_i32, %146 : i32
    %c8_i32_71 = arith.constant 8 : i32
    %148 = arith.muli %147, %c8_i32_71 : i32
    %149 = tpu.assume_multiple %148, 8 : i32
    %150 = arith.index_cast %149 : i32 to index
    %c0_72 = arith.constant 0 : index
    %151 = vector.load %arg9[%150, %c0_72] : memref<128x512xf32, #tpu.memory_space<vmem>>, vector<8x512xf32>
    %c0_73 = arith.constant 0 : index
    %c0_74 = arith.constant 0 : index
    %152 = vector.load %arg7[%c0_73, %c0_74] : memref<8x128xf32, #tpu.memory_space<vmem>>, vector<8x128xf32>
    %153 = arith.truncf %152 : vector<8x128xf32> to vector<8x128xbf16>
    %c0_75 = arith.constant 0 : index
    %c0_76 = arith.constant 0 : index
    %c0_77 = arith.constant 0 : index
    %154 = vector.load %arg4[%c0_75, %c0_76, %c0_77] : memref<1x128x512xbf16, #tpu.memory_space<vmem>>, vector<1x128x512xbf16>
    %155 = vector.shape_cast %154 : vector<1x128x512xbf16> to vector<128x512xbf16>
    %cst_78 = arith.constant dense<0.000000e+00> : vector<8x512xf32>
    %156 = tpu.matmul %153, %155, %cst_78 {dimension_numbers = #tpu.dot_dimension_numbers<[1], [0], [0], [1], [0, 0, 1, 1], [], []>} : vector<8x128xbf16>, vector<128x512xbf16>, vector<8x512xf32> -> vector<8x512xf32>
    %157 = arith.addf %151, %156 : vector<8x512xf32>
    %158 = vector.extract_strided_slice %157 {offsets = [0, 0], sizes = [8, 128], strides = [1, 1]} : vector<8x512xf32> to vector<8x128xf32>
    %159 = arith.negf %158 : vector<8x128xf32>
    %160 = math.exp %159 : vector<8x128xf32>
    %cst_79 = arith.constant 1.000000e+00 : f32
    %161 = vector.broadcast %cst_79 : f32 to vector<8x128xf32>
    %162 = arith.addf %161, %160 : vector<8x128xf32>
    %163 = arith.divf %161, %162 : vector<8x128xf32>
    %164 = vector.extract_strided_slice %157 {offsets = [0, 128], sizes = [8, 128], strides = [1, 1]} : vector<8x512xf32> to vector<8x128xf32>
    %165 = arith.negf %164 : vector<8x128xf32>
    %166 = math.exp %165 : vector<8x128xf32>
    %cst_80 = arith.constant 1.000000e+00 : f32
    %167 = vector.broadcast %cst_80 : f32 to vector<8x128xf32>
    %168 = arith.addf %167, %166 : vector<8x128xf32>
    %169 = arith.divf %167, %168 : vector<8x128xf32>
    %170 = vector.extract_strided_slice %157 {offsets = [0, 256], sizes = [8, 128], strides = [1, 1]} : vector<8x512xf32> to vector<8x128xf32>
    %171 = math.tanh %170 : vector<8x128xf32>
    %172 = vector.extract_strided_slice %157 {offsets = [0, 384], sizes = [8, 128], strides = [1, 1]} : vector<8x512xf32> to vector<8x128xf32>
    %173 = arith.negf %172 : vector<8x128xf32>
    %174 = math.exp %173 : vector<8x128xf32>
    %cst_81 = arith.constant 1.000000e+00 : f32
    %175 = vector.broadcast %cst_81 : f32 to vector<8x128xf32>
    %176 = arith.addf %175, %174 : vector<8x128xf32>
    %177 = arith.divf %175, %176 : vector<8x128xf32>
    %c0_82 = arith.constant 0 : index
    %c0_83 = arith.constant 0 : index
    %178 = vector.load %arg8[%c0_82, %c0_83] : memref<8x128xf32, #tpu.memory_space<vmem>>, vector<8x128xf32>
    %179 = arith.mulf %169, %178 : vector<8x128xf32>
    %180 = arith.mulf %163, %171 : vector<8x128xf32>
    %181 = arith.addf %179, %180 : vector<8x128xf32>
    %182 = math.tanh %181 : vector<8x128xf32>
    %183 = arith.mulf %177, %182 : vector<8x128xf32>
    %c0_84 = arith.constant 0 : index
    %c0_85 = arith.constant 0 : index
    %184 = vector.load %arg8[%c0_84, %c0_85] : memref<8x128xf32, #tpu.memory_space<vmem>>, vector<8x128xf32>
    tpu.vector_store %arg8[%c0_84, %c0_85], %181 {strides = array<i32>} : memref<8x128xf32, #tpu.memory_space<vmem>>, vector<8x128xf32>,
    %c0_86 = arith.constant 0 : index
    %c0_87 = arith.constant 0 : index
    %185 = vector.load %arg7[%c0_86, %c0_87] : memref<8x128xf32, #tpu.memory_space<vmem>>, vector<8x128xf32>
    tpu.vector_store %arg7[%c0_86, %c0_87], %183 {strides = array<i32>} : memref<8x128xf32, #tpu.memory_space<vmem>>, vector<8x128xf32>,
    %186 = arith.index_cast %149 : i32 to index
    %c0_88 = arith.constant 0 : index
    %187 = vector.load %arg10[%186, %c0_88] : memref<128x128xf32, #tpu.memory_space<vmem>>, vector<8x128xf32>
    tpu.vector_store %arg10[%186, %c0_88], %183 {strides = array<i32>} : memref<128x128xf32, #tpu.memory_space<vmem>>, vector<8x128xf32>,
    %c4_i32 = arith.constant 4 : i32
    %c2_i32_89 = arith.constant 2 : i32
    %188 = arith.muli %c2_i32_89, %c4_i32 : i32
    %c15_i32_90 = arith.constant 15 : i32
    %189 = arith.subi %c15_i32_90, %188 : i32
    %190 = arith.muli %arg0, %189 : i32
    %191 = arith.addi %c4_i32, %190 : i32
    %c8_i32_91 = arith.constant 8 : i32
    %192 = arith.muli %191, %c8_i32_91 : i32
    %193 = tpu.assume_multiple %192, 8 : i32
    %194 = arith.index_cast %193 : i32 to index
    %c0_92 = arith.constant 0 : index
    %195 = vector.load %arg9[%194, %c0_92] : memref<128x512xf32, #tpu.memory_space<vmem>>, vector<8x512xf32>
    %c0_93 = arith.constant 0 : index
    %c0_94 = arith.constant 0 : index
    %196 = vector.load %arg7[%c0_93, %c0_94] : memref<8x128xf32, #tpu.memory_space<vmem>>, vector<8x128xf32>
    %197 = arith.truncf %196 : vector<8x128xf32> to vector<8x128xbf16>
    %c0_95 = arith.constant 0 : index
    %c0_96 = arith.constant 0 : index
    %c0_97 = arith.constant 0 : index
    %198 = vector.load %arg4[%c0_95, %c0_96, %c0_97] : memref<1x128x512xbf16, #tpu.memory_space<vmem>>, vector<1x128x512xbf16>
    %199 = vector.shape_cast %198 : vector<1x128x512xbf16> to vector<128x512xbf16>
    %cst_98 = arith.constant dense<0.000000e+00> : vector<8x512xf32>
    %200 = tpu.matmul %197, %199, %cst_98 {dimension_numbers = #tpu.dot_dimension_numbers<[1], [0], [0], [1], [0, 0, 1, 1], [], []>} : vector<8x128xbf16>, vector<128x512xbf16>, vector<8x512xf32> -> vector<8x512xf32>
    %201 = arith.addf %195, %200 : vector<8x512xf32>
    %202 = vector.extract_strided_slice %201 {offsets = [0, 0], sizes = [8, 128], strides = [1, 1]} : vector<8x512xf32> to vector<8x128xf32>
    %203 = arith.negf %202 : vector<8x128xf32>
    %204 = math.exp %203 : vector<8x128xf32>
    %cst_99 = arith.constant 1.000000e+00 : f32
    %205 = vector.broadcast %cst_99 : f32 to vector<8x128xf32>
    %206 = arith.addf %205, %204 : vector<8x128xf32>
    %207 = arith.divf %205, %206 : vector<8x128xf32>
    %208 = vector.extract_strided_slice %201 {offsets = [0, 128], sizes = [8, 128], strides = [1, 1]} : vector<8x512xf32> to vector<8x128xf32>
    %209 = arith.negf %208 : vector<8x128xf32>
    %210 = math.exp %209 : vector<8x128xf32>
    %cst_100 = arith.constant 1.000000e+00 : f32
    %211 = vector.broadcast %cst_100 : f32 to vector<8x128xf32>
    %212 = arith.addf %211, %210 : vector<8x128xf32>
    %213 = arith.divf %211, %212 : vector<8x128xf32>
    %214 = vector.extract_strided_slice %201 {offsets = [0, 256], sizes = [8, 128], strides = [1, 1]} : vector<8x512xf32> to vector<8x128xf32>
    %215 = math.tanh %214 : vector<8x128xf32>
    %216 = vector.extract_strided_slice %201 {offsets = [0, 384], sizes = [8, 128], strides = [1, 1]} : vector<8x512xf32> to vector<8x128xf32>
    %217 = arith.negf %216 : vector<8x128xf32>
    %218 = math.exp %217 : vector<8x128xf32>
    %cst_101 = arith.constant 1.000000e+00 : f32
    %219 = vector.broadcast %cst_101 : f32 to vector<8x128xf32>
    %220 = arith.addf %219, %218 : vector<8x128xf32>
    %221 = arith.divf %219, %220 : vector<8x128xf32>
    %c0_102 = arith.constant 0 : index
    %c0_103 = arith.constant 0 : index
    %222 = vector.load %arg8[%c0_102, %c0_103] : memref<8x128xf32, #tpu.memory_space<vmem>>, vector<8x128xf32>
    %223 = arith.mulf %213, %222 : vector<8x128xf32>
    %224 = arith.mulf %207, %215 : vector<8x128xf32>
    %225 = arith.addf %223, %224 : vector<8x128xf32>
    %226 = math.tanh %225 : vector<8x128xf32>
    %227 = arith.mulf %221, %226 : vector<8x128xf32>
    %c0_104 = arith.constant 0 : index
    %c0_105 = arith.constant 0 : index
    %228 = vector.load %arg8[%c0_104, %c0_105] : memref<8x128xf32, #tpu.memory_space<vmem>>, vector<8x128xf32>
    tpu.vector_store %arg8[%c0_104, %c0_105], %225 {strides = array<i32>} : memref<8x128xf32, #tpu.memory_space<vmem>>, vector<8x128xf32>,
    %c0_106 = arith.constant 0 : index
    %c0_107 = arith.constant 0 : index
    %229 = vector.load %arg7[%c0_106, %c0_107] : memref<8x128xf32, #tpu.memory_space<vmem>>, vector<8x128xf32>
    tpu.vector_store %arg7[%c0_106, %c0_107], %227 {strides = array<i32>} : memref<8x128xf32, #tpu.memory_space<vmem>>, vector<8x128xf32>,
    %230 = arith.index_cast %193 : i32 to index
    %c0_108 = arith.constant 0 : index
    %231 = vector.load %arg10[%230, %c0_108] : memref<128x128xf32, #tpu.memory_space<vmem>>, vector<8x128xf32>
    tpu.vector_store %arg10[%230, %c0_108], %227 {strides = array<i32>} : memref<128x128xf32, #tpu.memory_space<vmem>>, vector<8x128xf32>,
    %c5_i32 = arith.constant 5 : i32
    %c2_i32_109 = arith.constant 2 : i32
    %232 = arith.muli %c2_i32_109, %c5_i32 : i32
    %c15_i32_110 = arith.constant 15 : i32
    %233 = arith.subi %c15_i32_110, %232 : i32
    %234 = arith.muli %arg0, %233 : i32
    %235 = arith.addi %c5_i32, %234 : i32
    %c8_i32_111 = arith.constant 8 : i32
    %236 = arith.muli %235, %c8_i32_111 : i32
    %237 = tpu.assume_multiple %236, 8 : i32
    %238 = arith.index_cast %237 : i32 to index
    %c0_112 = arith.constant 0 : index
    %239 = vector.load %arg9[%238, %c0_112] : memref<128x512xf32, #tpu.memory_space<vmem>>, vector<8x512xf32>
    %c0_113 = arith.constant 0 : index
    %c0_114 = arith.constant 0 : index
    %240 = vector.load %arg7[%c0_113, %c0_114] : memref<8x128xf32, #tpu.memory_space<vmem>>, vector<8x128xf32>
    %241 = arith.truncf %240 : vector<8x128xf32> to vector<8x128xbf16>
    %c0_115 = arith.constant 0 : index
    %c0_116 = arith.constant 0 : index
    %c0_117 = arith.constant 0 : index
    %242 = vector.load %arg4[%c0_115, %c0_116, %c0_117] : memref<1x128x512xbf16, #tpu.memory_space<vmem>>, vector<1x128x512xbf16>
    %243 = vector.shape_cast %242 : vector<1x128x512xbf16> to vector<128x512xbf16>
    %cst_118 = arith.constant dense<0.000000e+00> : vector<8x512xf32>
    %244 = tpu.matmul %241, %243, %cst_118 {dimension_numbers = #tpu.dot_dimension_numbers<[1], [0], [0], [1], [0, 0, 1, 1], [], []>} : vector<8x128xbf16>, vector<128x512xbf16>, vector<8x512xf32> -> vector<8x512xf32>
    %245 = arith.addf %239, %244 : vector<8x512xf32>
    %246 = vector.extract_strided_slice %245 {offsets = [0, 0], sizes = [8, 128], strides = [1, 1]} : vector<8x512xf32> to vector<8x128xf32>
    %247 = arith.negf %246 : vector<8x128xf32>
    %248 = math.exp %247 : vector<8x128xf32>
    %cst_119 = arith.constant 1.000000e+00 : f32
    %249 = vector.broadcast %cst_119 : f32 to vector<8x128xf32>
    %250 = arith.addf %249, %248 : vector<8x128xf32>
    %251 = arith.divf %249, %250 : vector<8x128xf32>
    %252 = vector.extract_strided_slice %245 {offsets = [0, 128], sizes = [8, 128], strides = [1, 1]} : vector<8x512xf32> to vector<8x128xf32>
    %253 = arith.negf %252 : vector<8x128xf32>
    %254 = math.exp %253 : vector<8x128xf32>
    %cst_120 = arith.constant 1.000000e+00 : f32
    %255 = vector.broadcast %cst_120 : f32 to vector<8x128xf32>
    %256 = arith.addf %255, %254 : vector<8x128xf32>
    %257 = arith.divf %255, %256 : vector<8x128xf32>
    %258 = vector.extract_strided_slice %245 {offsets = [0, 256], sizes = [8, 128], strides = [1, 1]} : vector<8x512xf32> to vector<8x128xf32>
    %259 = math.tanh %258 : vector<8x128xf32>
    %260 = vector.extract_strided_slice %245 {offsets = [0, 384], sizes = [8, 128], strides = [1, 1]} : vector<8x512xf32> to vector<8x128xf32>
    %261 = arith.negf %260 : vector<8x128xf32>
    %262 = math.exp %261 : vector<8x128xf32>
    %cst_121 = arith.constant 1.000000e+00 : f32
    %263 = vector.broadcast %cst_121 : f32 to vector<8x128xf32>
    %264 = arith.addf %263, %262 : vector<8x128xf32>
    %265 = arith.divf %263, %264 : vector<8x128xf32>
    %c0_122 = arith.constant 0 : index
    %c0_123 = arith.constant 0 : index
    %266 = vector.load %arg8[%c0_122, %c0_123] : memref<8x128xf32, #tpu.memory_space<vmem>>, vector<8x128xf32>
    %267 = arith.mulf %257, %266 : vector<8x128xf32>
    %268 = arith.mulf %251, %259 : vector<8x128xf32>
    %269 = arith.addf %267, %268 : vector<8x128xf32>
    %270 = math.tanh %269 : vector<8x128xf32>
    %271 = arith.mulf %265, %270 : vector<8x128xf32>
    %c0_124 = arith.constant 0 : index
    %c0_125 = arith.constant 0 : index
    %272 = vector.load %arg8[%c0_124, %c0_125] : memref<8x128xf32, #tpu.memory_space<vmem>>, vector<8x128xf32>
    tpu.vector_store %arg8[%c0_124, %c0_125], %269 {strides = array<i32>} : memref<8x128xf32, #tpu.memory_space<vmem>>, vector<8x128xf32>,
    %c0_126 = arith.constant 0 : index
    %c0_127 = arith.constant 0 : index
    %273 = vector.load %arg7[%c0_126, %c0_127] : memref<8x128xf32, #tpu.memory_space<vmem>>, vector<8x128xf32>
    tpu.vector_store %arg7[%c0_126, %c0_127], %271 {strides = array<i32>} : memref<8x128xf32, #tpu.memory_space<vmem>>, vector<8x128xf32>,
    %274 = arith.index_cast %237 : i32 to index
    %c0_128 = arith.constant 0 : index
    %275 = vector.load %arg10[%274, %c0_128] : memref<128x128xf32, #tpu.memory_space<vmem>>, vector<8x128xf32>
    tpu.vector_store %arg10[%274, %c0_128], %271 {strides = array<i32>} : memref<128x128xf32, #tpu.memory_space<vmem>>, vector<8x128xf32>,
    %c6_i32 = arith.constant 6 : i32
    %c2_i32_129 = arith.constant 2 : i32
    %276 = arith.muli %c2_i32_129, %c6_i32 : i32
    %c15_i32_130 = arith.constant 15 : i32
    %277 = arith.subi %c15_i32_130, %276 : i32
    %278 = arith.muli %arg0, %277 : i32
    %279 = arith.addi %c6_i32, %278 : i32
    %c8_i32_131 = arith.constant 8 : i32
    %280 = arith.muli %279, %c8_i32_131 : i32
    %281 = tpu.assume_multiple %280, 8 : i32
    %282 = arith.index_cast %281 : i32 to index
    %c0_132 = arith.constant 0 : index
    %283 = vector.load %arg9[%282, %c0_132] : memref<128x512xf32, #tpu.memory_space<vmem>>, vector<8x512xf32>
    %c0_133 = arith.constant 0 : index
    %c0_134 = arith.constant 0 : index
    %284 = vector.load %arg7[%c0_133, %c0_134] : memref<8x128xf32, #tpu.memory_space<vmem>>, vector<8x128xf32>
    %285 = arith.truncf %284 : vector<8x128xf32> to vector<8x128xbf16>
    %c0_135 = arith.constant 0 : index
    %c0_136 = arith.constant 0 : index
    %c0_137 = arith.constant 0 : index
    %286 = vector.load %arg4[%c0_135, %c0_136, %c0_137] : memref<1x128x512xbf16, #tpu.memory_space<vmem>>, vector<1x128x512xbf16>
    %287 = vector.shape_cast %286 : vector<1x128x512xbf16> to vector<128x512xbf16>
    %cst_138 = arith.constant dense<0.000000e+00> : vector<8x512xf32>
    %288 = tpu.matmul %285, %287, %cst_138 {dimension_numbers = #tpu.dot_dimension_numbers<[1], [0], [0], [1], [0, 0, 1, 1], [], []>} : vector<8x128xbf16>, vector<128x512xbf16>, vector<8x512xf32> -> vector<8x512xf32>
    %289 = arith.addf %283, %288 : vector<8x512xf32>
    %290 = vector.extract_strided_slice %289 {offsets = [0, 0], sizes = [8, 128], strides = [1, 1]} : vector<8x512xf32> to vector<8x128xf32>
    %291 = arith.negf %290 : vector<8x128xf32>
    %292 = math.exp %291 : vector<8x128xf32>
    %cst_139 = arith.constant 1.000000e+00 : f32
    %293 = vector.broadcast %cst_139 : f32 to vector<8x128xf32>
    %294 = arith.addf %293, %292 : vector<8x128xf32>
    %295 = arith.divf %293, %294 : vector<8x128xf32>
    %296 = vector.extract_strided_slice %289 {offsets = [0, 128], sizes = [8, 128], strides = [1, 1]} : vector<8x512xf32> to vector<8x128xf32>
    %297 = arith.negf %296 : vector<8x128xf32>
    %298 = math.exp %297 : vector<8x128xf32>
    %cst_140 = arith.constant 1.000000e+00 : f32
    %299 = vector.broadcast %cst_140 : f32 to vector<8x128xf32>
    %300 = arith.addf %299, %298 : vector<8x128xf32>
    %301 = arith.divf %299, %300 : vector<8x128xf32>
    %302 = vector.extract_strided_slice %289 {offsets = [0, 256], sizes = [8, 128], strides = [1, 1]} : vector<8x512xf32> to vector<8x128xf32>
    %303 = math.tanh %302 : vector<8x128xf32>
    %304 = vector.extract_strided_slice %289 {offsets = [0, 384], sizes = [8, 128], strides = [1, 1]} : vector<8x512xf32> to vector<8x128xf32>
    %305 = arith.negf %304 : vector<8x128xf32>
    %306 = math.exp %305 : vector<8x128xf32>
    %cst_141 = arith.constant 1.000000e+00 : f32
    %307 = vector.broadcast %cst_141 : f32 to vector<8x128xf32>
    %308 = arith.addf %307, %306 : vector<8x128xf32>
    %309 = arith.divf %307, %308 : vector<8x128xf32>
    %c0_142 = arith.constant 0 : index
    %c0_143 = arith.constant 0 : index
    %310 = vector.load %arg8[%c0_142, %c0_143] : memref<8x128xf32, #tpu.memory_space<vmem>>, vector<8x128xf32>
    %311 = arith.mulf %301, %310 : vector<8x128xf32>
    %312 = arith.mulf %295, %303 : vector<8x128xf32>
    %313 = arith.addf %311, %312 : vector<8x128xf32>
    %314 = math.tanh %313 : vector<8x128xf32>
    %315 = arith.mulf %309, %314 : vector<8x128xf32>
    %c0_144 = arith.constant 0 : index
    %c0_145 = arith.constant 0 : index
    %316 = vector.load %arg8[%c0_144, %c0_145] : memref<8x128xf32, #tpu.memory_space<vmem>>, vector<8x128xf32>
    tpu.vector_store %arg8[%c0_144, %c0_145], %313 {strides = array<i32>} : memref<8x128xf32, #tpu.memory_space<vmem>>, vector<8x128xf32>,
    %c0_146 = arith.constant 0 : index
    %c0_147 = arith.constant 0 : index
    %317 = vector.load %arg7[%c0_146, %c0_147] : memref<8x128xf32, #tpu.memory_space<vmem>>, vector<8x128xf32>
    tpu.vector_store %arg7[%c0_146, %c0_147], %315 {strides = array<i32>} : memref<8x128xf32, #tpu.memory_space<vmem>>, vector<8x128xf32>,
    %318 = arith.index_cast %281 : i32 to index
    %c0_148 = arith.constant 0 : index
    %319 = vector.load %arg10[%318, %c0_148] : memref<128x128xf32, #tpu.memory_space<vmem>>, vector<8x128xf32>
    tpu.vector_store %arg10[%318, %c0_148], %315 {strides = array<i32>} : memref<128x128xf32, #tpu.memory_space<vmem>>, vector<8x128xf32>,
    %c7_i32 = arith.constant 7 : i32
    %c2_i32_149 = arith.constant 2 : i32
    %320 = arith.muli %c2_i32_149, %c7_i32 : i32
    %c15_i32_150 = arith.constant 15 : i32
    %321 = arith.subi %c15_i32_150, %320 : i32
    %322 = arith.muli %arg0, %321 : i32
    %323 = arith.addi %c7_i32, %322 : i32
    %c8_i32_151 = arith.constant 8 : i32
    %324 = arith.muli %323, %c8_i32_151 : i32
    %325 = tpu.assume_multiple %324, 8 : i32
    %326 = arith.index_cast %325 : i32 to index
    %c0_152 = arith.constant 0 : index
    %327 = vector.load %arg9[%326, %c0_152] : memref<128x512xf32, #tpu.memory_space<vmem>>, vector<8x512xf32>
    %c0_153 = arith.constant 0 : index
    %c0_154 = arith.constant 0 : index
    %328 = vector.load %arg7[%c0_153, %c0_154] : memref<8x128xf32, #tpu.memory_space<vmem>>, vector<8x128xf32>
    %329 = arith.truncf %328 : vector<8x128xf32> to vector<8x128xbf16>
    %c0_155 = arith.constant 0 : index
    %c0_156 = arith.constant 0 : index
    %c0_157 = arith.constant 0 : index
    %330 = vector.load %arg4[%c0_155, %c0_156, %c0_157] : memref<1x128x512xbf16, #tpu.memory_space<vmem>>, vector<1x128x512xbf16>
    %331 = vector.shape_cast %330 : vector<1x128x512xbf16> to vector<128x512xbf16>
    %cst_158 = arith.constant dense<0.000000e+00> : vector<8x512xf32>
    %332 = tpu.matmul %329, %331, %cst_158 {dimension_numbers = #tpu.dot_dimension_numbers<[1], [0], [0], [1], [0, 0, 1, 1], [], []>} : vector<8x128xbf16>, vector<128x512xbf16>, vector<8x512xf32> -> vector<8x512xf32>
    %333 = arith.addf %327, %332 : vector<8x512xf32>
    %334 = vector.extract_strided_slice %333 {offsets = [0, 0], sizes = [8, 128], strides = [1, 1]} : vector<8x512xf32> to vector<8x128xf32>
    %335 = arith.negf %334 : vector<8x128xf32>
    %336 = math.exp %335 : vector<8x128xf32>
    %cst_159 = arith.constant 1.000000e+00 : f32
    %337 = vector.broadcast %cst_159 : f32 to vector<8x128xf32>
    %338 = arith.addf %337, %336 : vector<8x128xf32>
    %339 = arith.divf %337, %338 : vector<8x128xf32>
    %340 = vector.extract_strided_slice %333 {offsets = [0, 128], sizes = [8, 128], strides = [1, 1]} : vector<8x512xf32> to vector<8x128xf32>
    %341 = arith.negf %340 : vector<8x128xf32>
    %342 = math.exp %341 : vector<8x128xf32>
    %cst_160 = arith.constant 1.000000e+00 : f32
    %343 = vector.broadcast %cst_160 : f32 to vector<8x128xf32>
    %344 = arith.addf %343, %342 : vector<8x128xf32>
    %345 = arith.divf %343, %344 : vector<8x128xf32>
    %346 = vector.extract_strided_slice %333 {offsets = [0, 256], sizes = [8, 128], strides = [1, 1]} : vector<8x512xf32> to vector<8x128xf32>
    %347 = math.tanh %346 : vector<8x128xf32>
    %348 = vector.extract_strided_slice %333 {offsets = [0, 384], sizes = [8, 128], strides = [1, 1]} : vector<8x512xf32> to vector<8x128xf32>
    %349 = arith.negf %348 : vector<8x128xf32>
    %350 = math.exp %349 : vector<8x128xf32>
    %cst_161 = arith.constant 1.000000e+00 : f32
    %351 = vector.broadcast %cst_161 : f32 to vector<8x128xf32>
    %352 = arith.addf %351, %350 : vector<8x128xf32>
    %353 = arith.divf %351, %352 : vector<8x128xf32>
    %c0_162 = arith.constant 0 : index
    %c0_163 = arith.constant 0 : index
    %354 = vector.load %arg8[%c0_162, %c0_163] : memref<8x128xf32, #tpu.memory_space<vmem>>, vector<8x128xf32>
    %355 = arith.mulf %345, %354 : vector<8x128xf32>
    %356 = arith.mulf %339, %347 : vector<8x128xf32>
    %357 = arith.addf %355, %356 : vector<8x128xf32>
    %358 = math.tanh %357 : vector<8x128xf32>
    %359 = arith.mulf %353, %358 : vector<8x128xf32>
    %c0_164 = arith.constant 0 : index
    %c0_165 = arith.constant 0 : index
    %360 = vector.load %arg8[%c0_164, %c0_165] : memref<8x128xf32, #tpu.memory_space<vmem>>, vector<8x128xf32>
    tpu.vector_store %arg8[%c0_164, %c0_165], %357 {strides = array<i32>} : memref<8x128xf32, #tpu.memory_space<vmem>>, vector<8x128xf32>,
    %c0_166 = arith.constant 0 : index
    %c0_167 = arith.constant 0 : index
    %361 = vector.load %arg7[%c0_166, %c0_167] : memref<8x128xf32, #tpu.memory_space<vmem>>, vector<8x128xf32>
    tpu.vector_store %arg7[%c0_166, %c0_167], %359 {strides = array<i32>} : memref<8x128xf32, #tpu.memory_space<vmem>>, vector<8x128xf32>,
    %362 = arith.index_cast %325 : i32 to index
    %c0_168 = arith.constant 0 : index
    %363 = vector.load %arg10[%362, %c0_168] : memref<128x128xf32, #tpu.memory_space<vmem>>, vector<8x128xf32>
    tpu.vector_store %arg10[%362, %c0_168], %359 {strides = array<i32>} : memref<128x128xf32, #tpu.memory_space<vmem>>, vector<8x128xf32>,
    %c8_i32_169 = arith.constant 8 : i32
    %c2_i32_170 = arith.constant 2 : i32
    %364 = arith.muli %c2_i32_170, %c8_i32_169 : i32
    %c15_i32_171 = arith.constant 15 : i32
    %365 = arith.subi %c15_i32_171, %364 : i32
    %366 = arith.muli %arg0, %365 : i32
    %367 = arith.addi %c8_i32_169, %366 : i32
    %c8_i32_172 = arith.constant 8 : i32
    %368 = arith.muli %367, %c8_i32_172 : i32
    %369 = tpu.assume_multiple %368, 8 : i32
    %370 = arith.index_cast %369 : i32 to index
    %c0_173 = arith.constant 0 : index
    %371 = vector.load %arg9[%370, %c0_173] : memref<128x512xf32, #tpu.memory_space<vmem>>, vector<8x512xf32>
    %c0_174 = arith.constant 0 : index
    %c0_175 = arith.constant 0 : index
    %372 = vector.load %arg7[%c0_174, %c0_175] : memref<8x128xf32, #tpu.memory_space<vmem>>, vector<8x128xf32>
    %373 = arith.truncf %372 : vector<8x128xf32> to vector<8x128xbf16>
    %c0_176 = arith.constant 0 : index
    %c0_177 = arith.constant 0 : index
    %c0_178 = arith.constant 0 : index
    %374 = vector.load %arg4[%c0_176, %c0_177, %c0_178] : memref<1x128x512xbf16, #tpu.memory_space<vmem>>, vector<1x128x512xbf16>
    %375 = vector.shape_cast %374 : vector<1x128x512xbf16> to vector<128x512xbf16>
    %cst_179 = arith.constant dense<0.000000e+00> : vector<8x512xf32>
    %376 = tpu.matmul %373, %375, %cst_179 {dimension_numbers = #tpu.dot_dimension_numbers<[1], [0], [0], [1], [0, 0, 1, 1], [], []>} : vector<8x128xbf16>, vector<128x512xbf16>, vector<8x512xf32> -> vector<8x512xf32>
    %377 = arith.addf %371, %376 : vector<8x512xf32>
    %378 = vector.extract_strided_slice %377 {offsets = [0, 0], sizes = [8, 128], strides = [1, 1]} : vector<8x512xf32> to vector<8x128xf32>
    %379 = arith.negf %378 : vector<8x128xf32>
    %380 = math.exp %379 : vector<8x128xf32>
    %cst_180 = arith.constant 1.000000e+00 : f32
    %381 = vector.broadcast %cst_180 : f32 to vector<8x128xf32>
    %382 = arith.addf %381, %380 : vector<8x128xf32>
    %383 = arith.divf %381, %382 : vector<8x128xf32>
    %384 = vector.extract_strided_slice %377 {offsets = [0, 128], sizes = [8, 128], strides = [1, 1]} : vector<8x512xf32> to vector<8x128xf32>
    %385 = arith.negf %384 : vector<8x128xf32>
    %386 = math.exp %385 : vector<8x128xf32>
    %cst_181 = arith.constant 1.000000e+00 : f32
    %387 = vector.broadcast %cst_181 : f32 to vector<8x128xf32>
    %388 = arith.addf %387, %386 : vector<8x128xf32>
    %389 = arith.divf %387, %388 : vector<8x128xf32>
    %390 = vector.extract_strided_slice %377 {offsets = [0, 256], sizes = [8, 128], strides = [1, 1]} : vector<8x512xf32> to vector<8x128xf32>
    %391 = math.tanh %390 : vector<8x128xf32>
    %392 = vector.extract_strided_slice %377 {offsets = [0, 384], sizes = [8, 128], strides = [1, 1]} : vector<8x512xf32> to vector<8x128xf32>
    %393 = arith.negf %392 : vector<8x128xf32>
    %394 = math.exp %393 : vector<8x128xf32>
    %cst_182 = arith.constant 1.000000e+00 : f32
    %395 = vector.broadcast %cst_182 : f32 to vector<8x128xf32>
    %396 = arith.addf %395, %394 : vector<8x128xf32>
    %397 = arith.divf %395, %396 : vector<8x128xf32>
    %c0_183 = arith.constant 0 : index
    %c0_184 = arith.constant 0 : index
    %398 = vector.load %arg8[%c0_183, %c0_184] : memref<8x128xf32, #tpu.memory_space<vmem>>, vector<8x128xf32>
    %399 = arith.mulf %389, %398 : vector<8x128xf32>
    %400 = arith.mulf %383, %391 : vector<8x128xf32>
    %401 = arith.addf %399, %400 : vector<8x128xf32>
    %402 = math.tanh %401 : vector<8x128xf32>
    %403 = arith.mulf %397, %402 : vector<8x128xf32>
    %c0_185 = arith.constant 0 : index
    %c0_186 = arith.constant 0 : index
    %404 = vector.load %arg8[%c0_185, %c0_186] : memref<8x128xf32, #tpu.memory_space<vmem>>, vector<8x128xf32>
    tpu.vector_store %arg8[%c0_185, %c0_186], %401 {strides = array<i32>} : memref<8x128xf32, #tpu.memory_space<vmem>>, vector<8x128xf32>,
    %c0_187 = arith.constant 0 : index
    %c0_188 = arith.constant 0 : index
    %405 = vector.load %arg7[%c0_187, %c0_188] : memref<8x128xf32, #tpu.memory_space<vmem>>, vector<8x128xf32>
    tpu.vector_store %arg7[%c0_187, %c0_188], %403 {strides = array<i32>} : memref<8x128xf32, #tpu.memory_space<vmem>>, vector<8x128xf32>,
    %406 = arith.index_cast %369 : i32 to index
    %c0_189 = arith.constant 0 : index
    %407 = vector.load %arg10[%406, %c0_189] : memref<128x128xf32, #tpu.memory_space<vmem>>, vector<8x128xf32>
    tpu.vector_store %arg10[%406, %c0_189], %403 {strides = array<i32>} : memref<128x128xf32, #tpu.memory_space<vmem>>, vector<8x128xf32>,
    %c9_i32 = arith.constant 9 : i32
    %c2_i32_190 = arith.constant 2 : i32
    %408 = arith.muli %c2_i32_190, %c9_i32 : i32
    %c15_i32_191 = arith.constant 15 : i32
    %409 = arith.subi %c15_i32_191, %408 : i32
    %410 = arith.muli %arg0, %409 : i32
    %411 = arith.addi %c9_i32, %410 : i32
    %c8_i32_192 = arith.constant 8 : i32
    %412 = arith.muli %411, %c8_i32_192 : i32
    %413 = tpu.assume_multiple %412, 8 : i32
    %414 = arith.index_cast %413 : i32 to index
    %c0_193 = arith.constant 0 : index
    %415 = vector.load %arg9[%414, %c0_193] : memref<128x512xf32, #tpu.memory_space<vmem>>, vector<8x512xf32>
    %c0_194 = arith.constant 0 : index
    %c0_195 = arith.constant 0 : index
    %416 = vector.load %arg7[%c0_194, %c0_195] : memref<8x128xf32, #tpu.memory_space<vmem>>, vector<8x128xf32>
    %417 = arith.truncf %416 : vector<8x128xf32> to vector<8x128xbf16>
    %c0_196 = arith.constant 0 : index
    %c0_197 = arith.constant 0 : index
    %c0_198 = arith.constant 0 : index
    %418 = vector.load %arg4[%c0_196, %c0_197, %c0_198] : memref<1x128x512xbf16, #tpu.memory_space<vmem>>, vector<1x128x512xbf16>
    %419 = vector.shape_cast %418 : vector<1x128x512xbf16> to vector<128x512xbf16>
    %cst_199 = arith.constant dense<0.000000e+00> : vector<8x512xf32>
    %420 = tpu.matmul %417, %419, %cst_199 {dimension_numbers = #tpu.dot_dimension_numbers<[1], [0], [0], [1], [0, 0, 1, 1], [], []>} : vector<8x128xbf16>, vector<128x512xbf16>, vector<8x512xf32> -> vector<8x512xf32>
    %421 = arith.addf %415, %420 : vector<8x512xf32>
    %422 = vector.extract_strided_slice %421 {offsets = [0, 0], sizes = [8, 128], strides = [1, 1]} : vector<8x512xf32> to vector<8x128xf32>
    %423 = arith.negf %422 : vector<8x128xf32>
    %424 = math.exp %423 : vector<8x128xf32>
    %cst_200 = arith.constant 1.000000e+00 : f32
    %425 = vector.broadcast %cst_200 : f32 to vector<8x128xf32>
    %426 = arith.addf %425, %424 : vector<8x128xf32>
    %427 = arith.divf %425, %426 : vector<8x128xf32>
    %428 = vector.extract_strided_slice %421 {offsets = [0, 128], sizes = [8, 128], strides = [1, 1]} : vector<8x512xf32> to vector<8x128xf32>
    %429 = arith.negf %428 : vector<8x128xf32>
    %430 = math.exp %429 : vector<8x128xf32>
    %cst_201 = arith.constant 1.000000e+00 : f32
    %431 = vector.broadcast %cst_201 : f32 to vector<8x128xf32>
    %432 = arith.addf %431, %430 : vector<8x128xf32>
    %433 = arith.divf %431, %432 : vector<8x128xf32>
    %434 = vector.extract_strided_slice %421 {offsets = [0, 256], sizes = [8, 128], strides = [1, 1]} : vector<8x512xf32> to vector<8x128xf32>
    %435 = math.tanh %434 : vector<8x128xf32>
    %436 = vector.extract_strided_slice %421 {offsets = [0, 384], sizes = [8, 128], strides = [1, 1]} : vector<8x512xf32> to vector<8x128xf32>
    %437 = arith.negf %436 : vector<8x128xf32>
    %438 = math.exp %437 : vector<8x128xf32>
    %cst_202 = arith.constant 1.000000e+00 : f32
    %439 = vector.broadcast %cst_202 : f32 to vector<8x128xf32>
    %440 = arith.addf %439, %438 : vector<8x128xf32>
    %441 = arith.divf %439, %440 : vector<8x128xf32>
    %c0_203 = arith.constant 0 : index
    %c0_204 = arith.constant 0 : index
    %442 = vector.load %arg8[%c0_203, %c0_204] : memref<8x128xf32, #tpu.memory_space<vmem>>, vector<8x128xf32>
    %443 = arith.mulf %433, %442 : vector<8x128xf32>
    %444 = arith.mulf %427, %435 : vector<8x128xf32>
    %445 = arith.addf %443, %444 : vector<8x128xf32>
    %446 = math.tanh %445 : vector<8x128xf32>
    %447 = arith.mulf %441, %446 : vector<8x128xf32>
    %c0_205 = arith.constant 0 : index
    %c0_206 = arith.constant 0 : index
    %448 = vector.load %arg8[%c0_205, %c0_206] : memref<8x128xf32, #tpu.memory_space<vmem>>, vector<8x128xf32>
    tpu.vector_store %arg8[%c0_205, %c0_206], %445 {strides = array<i32>} : memref<8x128xf32, #tpu.memory_space<vmem>>, vector<8x128xf32>,
    %c0_207 = arith.constant 0 : index
    %c0_208 = arith.constant 0 : index
    %449 = vector.load %arg7[%c0_207, %c0_208] : memref<8x128xf32, #tpu.memory_space<vmem>>, vector<8x128xf32>
    tpu.vector_store %arg7[%c0_207, %c0_208], %447 {strides = array<i32>} : memref<8x128xf32, #tpu.memory_space<vmem>>, vector<8x128xf32>,
    %450 = arith.index_cast %413 : i32 to index
    %c0_209 = arith.constant 0 : index
    %451 = vector.load %arg10[%450, %c0_209] : memref<128x128xf32, #tpu.memory_space<vmem>>, vector<8x128xf32>
    tpu.vector_store %arg10[%450, %c0_209], %447 {strides = array<i32>} : memref<128x128xf32, #tpu.memory_space<vmem>>, vector<8x128xf32>,
    %c10_i32 = arith.constant 10 : i32
    %c2_i32_210 = arith.constant 2 : i32
    %452 = arith.muli %c2_i32_210, %c10_i32 : i32
    %c15_i32_211 = arith.constant 15 : i32
    %453 = arith.subi %c15_i32_211, %452 : i32
    %454 = arith.muli %arg0, %453 : i32
    %455 = arith.addi %c10_i32, %454 : i32
    %c8_i32_212 = arith.constant 8 : i32
    %456 = arith.muli %455, %c8_i32_212 : i32
    %457 = tpu.assume_multiple %456, 8 : i32
    %458 = arith.index_cast %457 : i32 to index
    %c0_213 = arith.constant 0 : index
    %459 = vector.load %arg9[%458, %c0_213] : memref<128x512xf32, #tpu.memory_space<vmem>>, vector<8x512xf32>
    %c0_214 = arith.constant 0 : index
    %c0_215 = arith.constant 0 : index
    %460 = vector.load %arg7[%c0_214, %c0_215] : memref<8x128xf32, #tpu.memory_space<vmem>>, vector<8x128xf32>
    %461 = arith.truncf %460 : vector<8x128xf32> to vector<8x128xbf16>
    %c0_216 = arith.constant 0 : index
    %c0_217 = arith.constant 0 : index
    %c0_218 = arith.constant 0 : index
    %462 = vector.load %arg4[%c0_216, %c0_217, %c0_218] : memref<1x128x512xbf16, #tpu.memory_space<vmem>>, vector<1x128x512xbf16>
    %463 = vector.shape_cast %462 : vector<1x128x512xbf16> to vector<128x512xbf16>
    %cst_219 = arith.constant dense<0.000000e+00> : vector<8x512xf32>
    %464 = tpu.matmul %461, %463, %cst_219 {dimension_numbers = #tpu.dot_dimension_numbers<[1], [0], [0], [1], [0, 0, 1, 1], [], []>} : vector<8x128xbf16>, vector<128x512xbf16>, vector<8x512xf32> -> vector<8x512xf32>
    %465 = arith.addf %459, %464 : vector<8x512xf32>
    %466 = vector.extract_strided_slice %465 {offsets = [0, 0], sizes = [8, 128], strides = [1, 1]} : vector<8x512xf32> to vector<8x128xf32>
    %467 = arith.negf %466 : vector<8x128xf32>
    %468 = math.exp %467 : vector<8x128xf32>
    %cst_220 = arith.constant 1.000000e+00 : f32
    %469 = vector.broadcast %cst_220 : f32 to vector<8x128xf32>
    %470 = arith.addf %469, %468 : vector<8x128xf32>
    %471 = arith.divf %469, %470 : vector<8x128xf32>
    %472 = vector.extract_strided_slice %465 {offsets = [0, 128], sizes = [8, 128], strides = [1, 1]} : vector<8x512xf32> to vector<8x128xf32>
    %473 = arith.negf %472 : vector<8x128xf32>
    %474 = math.exp %473 : vector<8x128xf32>
    %cst_221 = arith.constant 1.000000e+00 : f32
    %475 = vector.broadcast %cst_221 : f32 to vector<8x128xf32>
    %476 = arith.addf %475, %474 : vector<8x128xf32>
    %477 = arith.divf %475, %476 : vector<8x128xf32>
    %478 = vector.extract_strided_slice %465 {offsets = [0, 256], sizes = [8, 128], strides = [1, 1]} : vector<8x512xf32> to vector<8x128xf32>
    %479 = math.tanh %478 : vector<8x128xf32>
    %480 = vector.extract_strided_slice %465 {offsets = [0, 384], sizes = [8, 128], strides = [1, 1]} : vector<8x512xf32> to vector<8x128xf32>
    %481 = arith.negf %480 : vector<8x128xf32>
    %482 = math.exp %481 : vector<8x128xf32>
    %cst_222 = arith.constant 1.000000e+00 : f32
    %483 = vector.broadcast %cst_222 : f32 to vector<8x128xf32>
    %484 = arith.addf %483, %482 : vector<8x128xf32>
    %485 = arith.divf %483, %484 : vector<8x128xf32>
    %c0_223 = arith.constant 0 : index
    %c0_224 = arith.constant 0 : index
    %486 = vector.load %arg8[%c0_223, %c0_224] : memref<8x128xf32, #tpu.memory_space<vmem>>, vector<8x128xf32>
    %487 = arith.mulf %477, %486 : vector<8x128xf32>
    %488 = arith.mulf %471, %479 : vector<8x128xf32>
    %489 = arith.addf %487, %488 : vector<8x128xf32>
    %490 = math.tanh %489 : vector<8x128xf32>
    %491 = arith.mulf %485, %490 : vector<8x128xf32>
    %c0_225 = arith.constant 0 : index
    %c0_226 = arith.constant 0 : index
    %492 = vector.load %arg8[%c0_225, %c0_226] : memref<8x128xf32, #tpu.memory_space<vmem>>, vector<8x128xf32>
    tpu.vector_store %arg8[%c0_225, %c0_226], %489 {strides = array<i32>} : memref<8x128xf32, #tpu.memory_space<vmem>>, vector<8x128xf32>,
    %c0_227 = arith.constant 0 : index
    %c0_228 = arith.constant 0 : index
    %493 = vector.load %arg7[%c0_227, %c0_228] : memref<8x128xf32, #tpu.memory_space<vmem>>, vector<8x128xf32>
    tpu.vector_store %arg7[%c0_227, %c0_228], %491 {strides = array<i32>} : memref<8x128xf32, #tpu.memory_space<vmem>>, vector<8x128xf32>,
    %494 = arith.index_cast %457 : i32 to index
    %c0_229 = arith.constant 0 : index
    %495 = vector.load %arg10[%494, %c0_229] : memref<128x128xf32, #tpu.memory_space<vmem>>, vector<8x128xf32>
    tpu.vector_store %arg10[%494, %c0_229], %491 {strides = array<i32>} : memref<128x128xf32, #tpu.memory_space<vmem>>, vector<8x128xf32>,
    %c11_i32 = arith.constant 11 : i32
    %c2_i32_230 = arith.constant 2 : i32
    %496 = arith.muli %c2_i32_230, %c11_i32 : i32
    %c15_i32_231 = arith.constant 15 : i32
    %497 = arith.subi %c15_i32_231, %496 : i32
    %498 = arith.muli %arg0, %497 : i32
    %499 = arith.addi %c11_i32, %498 : i32
    %c8_i32_232 = arith.constant 8 : i32
    %500 = arith.muli %499, %c8_i32_232 : i32
    %501 = tpu.assume_multiple %500, 8 : i32
    %502 = arith.index_cast %501 : i32 to index
    %c0_233 = arith.constant 0 : index
    %503 = vector.load %arg9[%502, %c0_233] : memref<128x512xf32, #tpu.memory_space<vmem>>, vector<8x512xf32>
    %c0_234 = arith.constant 0 : index
    %c0_235 = arith.constant 0 : index
    %504 = vector.load %arg7[%c0_234, %c0_235] : memref<8x128xf32, #tpu.memory_space<vmem>>, vector<8x128xf32>
    %505 = arith.truncf %504 : vector<8x128xf32> to vector<8x128xbf16>
    %c0_236 = arith.constant 0 : index
    %c0_237 = arith.constant 0 : index
    %c0_238 = arith.constant 0 : index
    %506 = vector.load %arg4[%c0_236, %c0_237, %c0_238] : memref<1x128x512xbf16, #tpu.memory_space<vmem>>, vector<1x128x512xbf16>
    %507 = vector.shape_cast %506 : vector<1x128x512xbf16> to vector<128x512xbf16>
    %cst_239 = arith.constant dense<0.000000e+00> : vector<8x512xf32>
    %508 = tpu.matmul %505, %507, %cst_239 {dimension_numbers = #tpu.dot_dimension_numbers<[1], [0], [0], [1], [0, 0, 1, 1], [], []>} : vector<8x128xbf16>, vector<128x512xbf16>, vector<8x512xf32> -> vector<8x512xf32>
    %509 = arith.addf %503, %508 : vector<8x512xf32>
    %510 = vector.extract_strided_slice %509 {offsets = [0, 0], sizes = [8, 128], strides = [1, 1]} : vector<8x512xf32> to vector<8x128xf32>
    %511 = arith.negf %510 : vector<8x128xf32>
    %512 = math.exp %511 : vector<8x128xf32>
    %cst_240 = arith.constant 1.000000e+00 : f32
    %513 = vector.broadcast %cst_240 : f32 to vector<8x128xf32>
    %514 = arith.addf %513, %512 : vector<8x128xf32>
    %515 = arith.divf %513, %514 : vector<8x128xf32>
    %516 = vector.extract_strided_slice %509 {offsets = [0, 128], sizes = [8, 128], strides = [1, 1]} : vector<8x512xf32> to vector<8x128xf32>
    %517 = arith.negf %516 : vector<8x128xf32>
    %518 = math.exp %517 : vector<8x128xf32>
    %cst_241 = arith.constant 1.000000e+00 : f32
    %519 = vector.broadcast %cst_241 : f32 to vector<8x128xf32>
    %520 = arith.addf %519, %518 : vector<8x128xf32>
    %521 = arith.divf %519, %520 : vector<8x128xf32>
    %522 = vector.extract_strided_slice %509 {offsets = [0, 256], sizes = [8, 128], strides = [1, 1]} : vector<8x512xf32> to vector<8x128xf32>
    %523 = math.tanh %522 : vector<8x128xf32>
    %524 = vector.extract_strided_slice %509 {offsets = [0, 384], sizes = [8, 128], strides = [1, 1]} : vector<8x512xf32> to vector<8x128xf32>
    %525 = arith.negf %524 : vector<8x128xf32>
    %526 = math.exp %525 : vector<8x128xf32>
    %cst_242 = arith.constant 1.000000e+00 : f32
    %527 = vector.broadcast %cst_242 : f32 to vector<8x128xf32>
    %528 = arith.addf %527, %526 : vector<8x128xf32>
    %529 = arith.divf %527, %528 : vector<8x128xf32>
    %c0_243 = arith.constant 0 : index
    %c0_244 = arith.constant 0 : index
    %530 = vector.load %arg8[%c0_243, %c0_244] : memref<8x128xf32, #tpu.memory_space<vmem>>, vector<8x128xf32>
    %531 = arith.mulf %521, %530 : vector<8x128xf32>
    %532 = arith.mulf %515, %523 : vector<8x128xf32>
    %533 = arith.addf %531, %532 : vector<8x128xf32>
    %534 = math.tanh %533 : vector<8x128xf32>
    %535 = arith.mulf %529, %534 : vector<8x128xf32>
    %c0_245 = arith.constant 0 : index
    %c0_246 = arith.constant 0 : index
    %536 = vector.load %arg8[%c0_245, %c0_246] : memref<8x128xf32, #tpu.memory_space<vmem>>, vector<8x128xf32>
    tpu.vector_store %arg8[%c0_245, %c0_246], %533 {strides = array<i32>} : memref<8x128xf32, #tpu.memory_space<vmem>>, vector<8x128xf32>,
    %c0_247 = arith.constant 0 : index
    %c0_248 = arith.constant 0 : index
    %537 = vector.load %arg7[%c0_247, %c0_248] : memref<8x128xf32, #tpu.memory_space<vmem>>, vector<8x128xf32>
    tpu.vector_store %arg7[%c0_247, %c0_248], %535 {strides = array<i32>} : memref<8x128xf32, #tpu.memory_space<vmem>>, vector<8x128xf32>,
    %538 = arith.index_cast %501 : i32 to index
    %c0_249 = arith.constant 0 : index
    %539 = vector.load %arg10[%538, %c0_249] : memref<128x128xf32, #tpu.memory_space<vmem>>, vector<8x128xf32>
    tpu.vector_store %arg10[%538, %c0_249], %535 {strides = array<i32>} : memref<128x128xf32, #tpu.memory_space<vmem>>, vector<8x128xf32>,
    %c12_i32 = arith.constant 12 : i32
    %c2_i32_250 = arith.constant 2 : i32
    %540 = arith.muli %c2_i32_250, %c12_i32 : i32
    %c15_i32_251 = arith.constant 15 : i32
    %541 = arith.subi %c15_i32_251, %540 : i32
    %542 = arith.muli %arg0, %541 : i32
    %543 = arith.addi %c12_i32, %542 : i32
    %c8_i32_252 = arith.constant 8 : i32
    %544 = arith.muli %543, %c8_i32_252 : i32
    %545 = tpu.assume_multiple %544, 8 : i32
    %546 = arith.index_cast %545 : i32 to index
    %c0_253 = arith.constant 0 : index
    %547 = vector.load %arg9[%546, %c0_253] : memref<128x512xf32, #tpu.memory_space<vmem>>, vector<8x512xf32>
    %c0_254 = arith.constant 0 : index
    %c0_255 = arith.constant 0 : index
    %548 = vector.load %arg7[%c0_254, %c0_255] : memref<8x128xf32, #tpu.memory_space<vmem>>, vector<8x128xf32>
    %549 = arith.truncf %548 : vector<8x128xf32> to vector<8x128xbf16>
    %c0_256 = arith.constant 0 : index
    %c0_257 = arith.constant 0 : index
    %c0_258 = arith.constant 0 : index
    %550 = vector.load %arg4[%c0_256, %c0_257, %c0_258] : memref<1x128x512xbf16, #tpu.memory_space<vmem>>, vector<1x128x512xbf16>
    %551 = vector.shape_cast %550 : vector<1x128x512xbf16> to vector<128x512xbf16>
    %cst_259 = arith.constant dense<0.000000e+00> : vector<8x512xf32>
    %552 = tpu.matmul %549, %551, %cst_259 {dimension_numbers = #tpu.dot_dimension_numbers<[1], [0], [0], [1], [0, 0, 1, 1], [], []>} : vector<8x128xbf16>, vector<128x512xbf16>, vector<8x512xf32> -> vector<8x512xf32>
    %553 = arith.addf %547, %552 : vector<8x512xf32>
    %554 = vector.extract_strided_slice %553 {offsets = [0, 0], sizes = [8, 128], strides = [1, 1]} : vector<8x512xf32> to vector<8x128xf32>
    %555 = arith.negf %554 : vector<8x128xf32>
    %556 = math.exp %555 : vector<8x128xf32>
    %cst_260 = arith.constant 1.000000e+00 : f32
    %557 = vector.broadcast %cst_260 : f32 to vector<8x128xf32>
    %558 = arith.addf %557, %556 : vector<8x128xf32>
    %559 = arith.divf %557, %558 : vector<8x128xf32>
    %560 = vector.extract_strided_slice %553 {offsets = [0, 128], sizes = [8, 128], strides = [1, 1]} : vector<8x512xf32> to vector<8x128xf32>
    %561 = arith.negf %560 : vector<8x128xf32>
    %562 = math.exp %561 : vector<8x128xf32>
    %cst_261 = arith.constant 1.000000e+00 : f32
    %563 = vector.broadcast %cst_261 : f32 to vector<8x128xf32>
    %564 = arith.addf %563, %562 : vector<8x128xf32>
    %565 = arith.divf %563, %564 : vector<8x128xf32>
    %566 = vector.extract_strided_slice %553 {offsets = [0, 256], sizes = [8, 128], strides = [1, 1]} : vector<8x512xf32> to vector<8x128xf32>
    %567 = math.tanh %566 : vector<8x128xf32>
    %568 = vector.extract_strided_slice %553 {offsets = [0, 384], sizes = [8, 128], strides = [1, 1]} : vector<8x512xf32> to vector<8x128xf32>
    %569 = arith.negf %568 : vector<8x128xf32>
    %570 = math.exp %569 : vector<8x128xf32>
    %cst_262 = arith.constant 1.000000e+00 : f32
    %571 = vector.broadcast %cst_262 : f32 to vector<8x128xf32>
    %572 = arith.addf %571, %570 : vector<8x128xf32>
    %573 = arith.divf %571, %572 : vector<8x128xf32>
    %c0_263 = arith.constant 0 : index
    %c0_264 = arith.constant 0 : index
    %574 = vector.load %arg8[%c0_263, %c0_264] : memref<8x128xf32, #tpu.memory_space<vmem>>, vector<8x128xf32>
    %575 = arith.mulf %565, %574 : vector<8x128xf32>
    %576 = arith.mulf %559, %567 : vector<8x128xf32>
    %577 = arith.addf %575, %576 : vector<8x128xf32>
    %578 = math.tanh %577 : vector<8x128xf32>
    %579 = arith.mulf %573, %578 : vector<8x128xf32>
    %c0_265 = arith.constant 0 : index
    %c0_266 = arith.constant 0 : index
    %580 = vector.load %arg8[%c0_265, %c0_266] : memref<8x128xf32, #tpu.memory_space<vmem>>, vector<8x128xf32>
    tpu.vector_store %arg8[%c0_265, %c0_266], %577 {strides = array<i32>} : memref<8x128xf32, #tpu.memory_space<vmem>>, vector<8x128xf32>,
    %c0_267 = arith.constant 0 : index
    %c0_268 = arith.constant 0 : index
    %581 = vector.load %arg7[%c0_267, %c0_268] : memref<8x128xf32, #tpu.memory_space<vmem>>, vector<8x128xf32>
    tpu.vector_store %arg7[%c0_267, %c0_268], %579 {strides = array<i32>} : memref<8x128xf32, #tpu.memory_space<vmem>>, vector<8x128xf32>,
    %582 = arith.index_cast %545 : i32 to index
    %c0_269 = arith.constant 0 : index
    %583 = vector.load %arg10[%582, %c0_269] : memref<128x128xf32, #tpu.memory_space<vmem>>, vector<8x128xf32>
    tpu.vector_store %arg10[%582, %c0_269], %579 {strides = array<i32>} : memref<128x128xf32, #tpu.memory_space<vmem>>, vector<8x128xf32>,
    %c13_i32 = arith.constant 13 : i32
    %c2_i32_270 = arith.constant 2 : i32
    %584 = arith.muli %c2_i32_270, %c13_i32 : i32
    %c15_i32_271 = arith.constant 15 : i32
    %585 = arith.subi %c15_i32_271, %584 : i32
    %586 = arith.muli %arg0, %585 : i32
    %587 = arith.addi %c13_i32, %586 : i32
    %c8_i32_272 = arith.constant 8 : i32
    %588 = arith.muli %587, %c8_i32_272 : i32
    %589 = tpu.assume_multiple %588, 8 : i32
    %590 = arith.index_cast %589 : i32 to index
    %c0_273 = arith.constant 0 : index
    %591 = vector.load %arg9[%590, %c0_273] : memref<128x512xf32, #tpu.memory_space<vmem>>, vector<8x512xf32>
    %c0_274 = arith.constant 0 : index
    %c0_275 = arith.constant 0 : index
    %592 = vector.load %arg7[%c0_274, %c0_275] : memref<8x128xf32, #tpu.memory_space<vmem>>, vector<8x128xf32>
    %593 = arith.truncf %592 : vector<8x128xf32> to vector<8x128xbf16>
    %c0_276 = arith.constant 0 : index
    %c0_277 = arith.constant 0 : index
    %c0_278 = arith.constant 0 : index
    %594 = vector.load %arg4[%c0_276, %c0_277, %c0_278] : memref<1x128x512xbf16, #tpu.memory_space<vmem>>, vector<1x128x512xbf16>
    %595 = vector.shape_cast %594 : vector<1x128x512xbf16> to vector<128x512xbf16>
    %cst_279 = arith.constant dense<0.000000e+00> : vector<8x512xf32>
    %596 = tpu.matmul %593, %595, %cst_279 {dimension_numbers = #tpu.dot_dimension_numbers<[1], [0], [0], [1], [0, 0, 1, 1], [], []>} : vector<8x128xbf16>, vector<128x512xbf16>, vector<8x512xf32> -> vector<8x512xf32>
    %597 = arith.addf %591, %596 : vector<8x512xf32>
    %598 = vector.extract_strided_slice %597 {offsets = [0, 0], sizes = [8, 128], strides = [1, 1]} : vector<8x512xf32> to vector<8x128xf32>
    %599 = arith.negf %598 : vector<8x128xf32>
    %600 = math.exp %599 : vector<8x128xf32>
    %cst_280 = arith.constant 1.000000e+00 : f32
    %601 = vector.broadcast %cst_280 : f32 to vector<8x128xf32>
    %602 = arith.addf %601, %600 : vector<8x128xf32>
    %603 = arith.divf %601, %602 : vector<8x128xf32>
    %604 = vector.extract_strided_slice %597 {offsets = [0, 128], sizes = [8, 128], strides = [1, 1]} : vector<8x512xf32> to vector<8x128xf32>
    %605 = arith.negf %604 : vector<8x128xf32>
    %606 = math.exp %605 : vector<8x128xf32>
    %cst_281 = arith.constant 1.000000e+00 : f32
    %607 = vector.broadcast %cst_281 : f32 to vector<8x128xf32>
    %608 = arith.addf %607, %606 : vector<8x128xf32>
    %609 = arith.divf %607, %608 : vector<8x128xf32>
    %610 = vector.extract_strided_slice %597 {offsets = [0, 256], sizes = [8, 128], strides = [1, 1]} : vector<8x512xf32> to vector<8x128xf32>
    %611 = math.tanh %610 : vector<8x128xf32>
    %612 = vector.extract_strided_slice %597 {offsets = [0, 384], sizes = [8, 128], strides = [1, 1]} : vector<8x512xf32> to vector<8x128xf32>
    %613 = arith.negf %612 : vector<8x128xf32>
    %614 = math.exp %613 : vector<8x128xf32>
    %cst_282 = arith.constant 1.000000e+00 : f32
    %615 = vector.broadcast %cst_282 : f32 to vector<8x128xf32>
    %616 = arith.addf %615, %614 : vector<8x128xf32>
    %617 = arith.divf %615, %616 : vector<8x128xf32>
    %c0_283 = arith.constant 0 : index
    %c0_284 = arith.constant 0 : index
    %618 = vector.load %arg8[%c0_283, %c0_284] : memref<8x128xf32, #tpu.memory_space<vmem>>, vector<8x128xf32>
    %619 = arith.mulf %609, %618 : vector<8x128xf32>
    %620 = arith.mulf %603, %611 : vector<8x128xf32>
    %621 = arith.addf %619, %620 : vector<8x128xf32>
    %622 = math.tanh %621 : vector<8x128xf32>
    %623 = arith.mulf %617, %622 : vector<8x128xf32>
    %c0_285 = arith.constant 0 : index
    %c0_286 = arith.constant 0 : index
    %624 = vector.load %arg8[%c0_285, %c0_286] : memref<8x128xf32, #tpu.memory_space<vmem>>, vector<8x128xf32>
    tpu.vector_store %arg8[%c0_285, %c0_286], %621 {strides = array<i32>} : memref<8x128xf32, #tpu.memory_space<vmem>>, vector<8x128xf32>,
    %c0_287 = arith.constant 0 : index
    %c0_288 = arith.constant 0 : index
    %625 = vector.load %arg7[%c0_287, %c0_288] : memref<8x128xf32, #tpu.memory_space<vmem>>, vector<8x128xf32>
    tpu.vector_store %arg7[%c0_287, %c0_288], %623 {strides = array<i32>} : memref<8x128xf32, #tpu.memory_space<vmem>>, vector<8x128xf32>,
    %626 = arith.index_cast %589 : i32 to index
    %c0_289 = arith.constant 0 : index
    %627 = vector.load %arg10[%626, %c0_289] : memref<128x128xf32, #tpu.memory_space<vmem>>, vector<8x128xf32>
    tpu.vector_store %arg10[%626, %c0_289], %623 {strides = array<i32>} : memref<128x128xf32, #tpu.memory_space<vmem>>, vector<8x128xf32>,
    %c14_i32 = arith.constant 14 : i32
    %c2_i32_290 = arith.constant 2 : i32
    %628 = arith.muli %c2_i32_290, %c14_i32 : i32
    %c15_i32_291 = arith.constant 15 : i32
    %629 = arith.subi %c15_i32_291, %628 : i32
    %630 = arith.muli %arg0, %629 : i32
    %631 = arith.addi %c14_i32, %630 : i32
    %c8_i32_292 = arith.constant 8 : i32
    %632 = arith.muli %631, %c8_i32_292 : i32
    %633 = tpu.assume_multiple %632, 8 : i32
    %634 = arith.index_cast %633 : i32 to index
    %c0_293 = arith.constant 0 : index
    %635 = vector.load %arg9[%634, %c0_293] : memref<128x512xf32, #tpu.memory_space<vmem>>, vector<8x512xf32>
    %c0_294 = arith.constant 0 : index
    %c0_295 = arith.constant 0 : index
    %636 = vector.load %arg7[%c0_294, %c0_295] : memref<8x128xf32, #tpu.memory_space<vmem>>, vector<8x128xf32>
    %637 = arith.truncf %636 : vector<8x128xf32> to vector<8x128xbf16>
    %c0_296 = arith.constant 0 : index
    %c0_297 = arith.constant 0 : index
    %c0_298 = arith.constant 0 : index
    %638 = vector.load %arg4[%c0_296, %c0_297, %c0_298] : memref<1x128x512xbf16, #tpu.memory_space<vmem>>, vector<1x128x512xbf16>
    %639 = vector.shape_cast %638 : vector<1x128x512xbf16> to vector<128x512xbf16>
    %cst_299 = arith.constant dense<0.000000e+00> : vector<8x512xf32>
    %640 = tpu.matmul %637, %639, %cst_299 {dimension_numbers = #tpu.dot_dimension_numbers<[1], [0], [0], [1], [0, 0, 1, 1], [], []>} : vector<8x128xbf16>, vector<128x512xbf16>, vector<8x512xf32> -> vector<8x512xf32>
    %641 = arith.addf %635, %640 : vector<8x512xf32>
    %642 = vector.extract_strided_slice %641 {offsets = [0, 0], sizes = [8, 128], strides = [1, 1]} : vector<8x512xf32> to vector<8x128xf32>
    %643 = arith.negf %642 : vector<8x128xf32>
    %644 = math.exp %643 : vector<8x128xf32>
    %cst_300 = arith.constant 1.000000e+00 : f32
    %645 = vector.broadcast %cst_300 : f32 to vector<8x128xf32>
    %646 = arith.addf %645, %644 : vector<8x128xf32>
    %647 = arith.divf %645, %646 : vector<8x128xf32>
    %648 = vector.extract_strided_slice %641 {offsets = [0, 128], sizes = [8, 128], strides = [1, 1]} : vector<8x512xf32> to vector<8x128xf32>
    %649 = arith.negf %648 : vector<8x128xf32>
    %650 = math.exp %649 : vector<8x128xf32>
    %cst_301 = arith.constant 1.000000e+00 : f32
    %651 = vector.broadcast %cst_301 : f32 to vector<8x128xf32>
    %652 = arith.addf %651, %650 : vector<8x128xf32>
    %653 = arith.divf %651, %652 : vector<8x128xf32>
    %654 = vector.extract_strided_slice %641 {offsets = [0, 256], sizes = [8, 128], strides = [1, 1]} : vector<8x512xf32> to vector<8x128xf32>
    %655 = math.tanh %654 : vector<8x128xf32>
    %656 = vector.extract_strided_slice %641 {offsets = [0, 384], sizes = [8, 128], strides = [1, 1]} : vector<8x512xf32> to vector<8x128xf32>
    %657 = arith.negf %656 : vector<8x128xf32>
    %658 = math.exp %657 : vector<8x128xf32>
    %cst_302 = arith.constant 1.000000e+00 : f32
    %659 = vector.broadcast %cst_302 : f32 to vector<8x128xf32>
    %660 = arith.addf %659, %658 : vector<8x128xf32>
    %661 = arith.divf %659, %660 : vector<8x128xf32>
    %c0_303 = arith.constant 0 : index
    %c0_304 = arith.constant 0 : index
    %662 = vector.load %arg8[%c0_303, %c0_304] : memref<8x128xf32, #tpu.memory_space<vmem>>, vector<8x128xf32>
    %663 = arith.mulf %653, %662 : vector<8x128xf32>
    %664 = arith.mulf %647, %655 : vector<8x128xf32>
    %665 = arith.addf %663, %664 : vector<8x128xf32>
    %666 = math.tanh %665 : vector<8x128xf32>
    %667 = arith.mulf %661, %666 : vector<8x128xf32>
    %c0_305 = arith.constant 0 : index
    %c0_306 = arith.constant 0 : index
    %668 = vector.load %arg8[%c0_305, %c0_306] : memref<8x128xf32, #tpu.memory_space<vmem>>, vector<8x128xf32>
    tpu.vector_store %arg8[%c0_305, %c0_306], %665 {strides = array<i32>} : memref<8x128xf32, #tpu.memory_space<vmem>>, vector<8x128xf32>,
    %c0_307 = arith.constant 0 : index
    %c0_308 = arith.constant 0 : index
    %669 = vector.load %arg7[%c0_307, %c0_308] : memref<8x128xf32, #tpu.memory_space<vmem>>, vector<8x128xf32>
    tpu.vector_store %arg7[%c0_307, %c0_308], %667 {strides = array<i32>} : memref<8x128xf32, #tpu.memory_space<vmem>>, vector<8x128xf32>,
    %670 = arith.index_cast %633 : i32 to index
    %c0_309 = arith.constant 0 : index
    %671 = vector.load %arg10[%670, %c0_309] : memref<128x128xf32, #tpu.memory_space<vmem>>, vector<8x128xf32>
    tpu.vector_store %arg10[%670, %c0_309], %667 {strides = array<i32>} : memref<128x128xf32, #tpu.memory_space<vmem>>, vector<8x128xf32>,
    %c15_i32_310 = arith.constant 15 : i32
    %c2_i32_311 = arith.constant 2 : i32
    %672 = arith.muli %c2_i32_311, %c15_i32_310 : i32
    %c15_i32_312 = arith.constant 15 : i32
    %673 = arith.subi %c15_i32_312, %672 : i32
    %674 = arith.muli %arg0, %673 : i32
    %675 = arith.addi %c15_i32_310, %674 : i32
    %c8_i32_313 = arith.constant 8 : i32
    %676 = arith.muli %675, %c8_i32_313 : i32
    %677 = tpu.assume_multiple %676, 8 : i32
    %678 = arith.index_cast %677 : i32 to index
    %c0_314 = arith.constant 0 : index
    %679 = vector.load %arg9[%678, %c0_314] : memref<128x512xf32, #tpu.memory_space<vmem>>, vector<8x512xf32>
    %c0_315 = arith.constant 0 : index
    %c0_316 = arith.constant 0 : index
    %680 = vector.load %arg7[%c0_315, %c0_316] : memref<8x128xf32, #tpu.memory_space<vmem>>, vector<8x128xf32>
    %681 = arith.truncf %680 : vector<8x128xf32> to vector<8x128xbf16>
    %c0_317 = arith.constant 0 : index
    %c0_318 = arith.constant 0 : index
    %c0_319 = arith.constant 0 : index
    %682 = vector.load %arg4[%c0_317, %c0_318, %c0_319] : memref<1x128x512xbf16, #tpu.memory_space<vmem>>, vector<1x128x512xbf16>
    %683 = vector.shape_cast %682 : vector<1x128x512xbf16> to vector<128x512xbf16>
    %cst_320 = arith.constant dense<0.000000e+00> : vector<8x512xf32>
    %684 = tpu.matmul %681, %683, %cst_320 {dimension_numbers = #tpu.dot_dimension_numbers<[1], [0], [0], [1], [0, 0, 1, 1], [], []>} : vector<8x128xbf16>, vector<128x512xbf16>, vector<8x512xf32> -> vector<8x512xf32>
    %685 = arith.addf %679, %684 : vector<8x512xf32>
    %686 = vector.extract_strided_slice %685 {offsets = [0, 0], sizes = [8, 128], strides = [1, 1]} : vector<8x512xf32> to vector<8x128xf32>
    %687 = arith.negf %686 : vector<8x128xf32>
    %688 = math.exp %687 : vector<8x128xf32>
    %cst_321 = arith.constant 1.000000e+00 : f32
    %689 = vector.broadcast %cst_321 : f32 to vector<8x128xf32>
    %690 = arith.addf %689, %688 : vector<8x128xf32>
    %691 = arith.divf %689, %690 : vector<8x128xf32>
    %692 = vector.extract_strided_slice %685 {offsets = [0, 128], sizes = [8, 128], strides = [1, 1]} : vector<8x512xf32> to vector<8x128xf32>
    %693 = arith.negf %692 : vector<8x128xf32>
    %694 = math.exp %693 : vector<8x128xf32>
    %cst_322 = arith.constant 1.000000e+00 : f32
    %695 = vector.broadcast %cst_322 : f32 to vector<8x128xf32>
    %696 = arith.addf %695, %694 : vector<8x128xf32>
    %697 = arith.divf %695, %696 : vector<8x128xf32>
    %698 = vector.extract_strided_slice %685 {offsets = [0, 256], sizes = [8, 128], strides = [1, 1]} : vector<8x512xf32> to vector<8x128xf32>
    %699 = math.tanh %698 : vector<8x128xf32>
    %700 = vector.extract_strided_slice %685 {offsets = [0, 384], sizes = [8, 128], strides = [1, 1]} : vector<8x512xf32> to vector<8x128xf32>
    %701 = arith.negf %700 : vector<8x128xf32>
    %702 = math.exp %701 : vector<8x128xf32>
    %cst_323 = arith.constant 1.000000e+00 : f32
    %703 = vector.broadcast %cst_323 : f32 to vector<8x128xf32>
    %704 = arith.addf %703, %702 : vector<8x128xf32>
    %705 = arith.divf %703, %704 : vector<8x128xf32>
    %c0_324 = arith.constant 0 : index
    %c0_325 = arith.constant 0 : index
    %706 = vector.load %arg8[%c0_324, %c0_325] : memref<8x128xf32, #tpu.memory_space<vmem>>, vector<8x128xf32>
    %707 = arith.mulf %697, %706 : vector<8x128xf32>
    %708 = arith.mulf %691, %699 : vector<8x128xf32>
    %709 = arith.addf %707, %708 : vector<8x128xf32>
    %710 = math.tanh %709 : vector<8x128xf32>
    %711 = arith.mulf %705, %710 : vector<8x128xf32>
    %c0_326 = arith.constant 0 : index
    %c0_327 = arith.constant 0 : index
    %712 = vector.load %arg8[%c0_326, %c0_327] : memref<8x128xf32, #tpu.memory_space<vmem>>, vector<8x128xf32>
    tpu.vector_store %arg8[%c0_326, %c0_327], %709 {strides = array<i32>} : memref<8x128xf32, #tpu.memory_space<vmem>>, vector<8x128xf32>,
    %c0_328 = arith.constant 0 : index
    %c0_329 = arith.constant 0 : index
    %713 = vector.load %arg7[%c0_328, %c0_329] : memref<8x128xf32, #tpu.memory_space<vmem>>, vector<8x128xf32>
    tpu.vector_store %arg7[%c0_328, %c0_329], %711 {strides = array<i32>} : memref<8x128xf32, #tpu.memory_space<vmem>>, vector<8x128xf32>,
    %714 = arith.index_cast %677 : i32 to index
    %c0_330 = arith.constant 0 : index
    %715 = vector.load %arg10[%714, %c0_330] : memref<128x128xf32, #tpu.memory_space<vmem>>, vector<8x128xf32>
    tpu.vector_store %arg10[%714, %c0_330], %711 {strides = array<i32>} : memref<128x128xf32, #tpu.memory_space<vmem>>, vector<8x128xf32>,
    %c16_i32 = arith.constant 16 : i32
    %c0_331 = arith.constant 0 : index
    %c0_332 = arith.constant 0 : index
    %716 = vector.load %arg10[%c0_331, %c0_332] : memref<128x128xf32, #tpu.memory_space<vmem>>, vector<128x128xf32>
    %717 = arith.truncf %716 : vector<128x128xf32> to vector<128x128xbf16>
    %c0_333 = arith.constant 0 : index
    %c0_334 = arith.constant 0 : index
    %c0_335 = arith.constant 0 : index
    %718 = vector.load %arg6[%c0_333, %c0_334, %c0_335] : memref<1x128x128xbf16, #tpu.memory_space<vmem>>, vector<1x128x128xbf16>
    %719 = vector.shape_cast %718 : vector<1x128x128xbf16> to vector<128x128xbf16>
    %720 = vector.shape_cast %717 : vector<128x128xbf16> to vector<1x128x128xbf16>
    tpu.vector_store %arg6[%c0_333, %c0_334, %c0_335], %720 {strides = array<i32>} : memref<1x128x128xbf16, #tpu.memory_space<vmem>>, vector<1x128x128xbf16>,
    return
  }
  func.func @transform_0(%arg0: i32, %arg1: i32) -> (i32, i32) {
    %c2_i32 = arith.constant 2 : i32
    %0 = arith.muli %c2_i32, %arg1 : i32
    %c1_i32 = arith.constant 1 : i32
    %1 = arith.subi %c1_i32, %0 : i32
    %2 = arith.muli %arg0, %1 : i32
    %3 = arith.addi %arg1, %2 : i32
    %c0_i32 = arith.constant 0 : i32
    %c0_i32_0 = arith.constant 0 : i32
    return %3, %c0_i32 : i32, i32
  }
  func.func @transform_1(%arg0: i32, %arg1: i32) -> (i32, i32, i32) {
    %c0_i32 = arith.constant 0 : i32
    %c0_i32_0 = arith.constant 0 : i32
    %c0_i32_1 = arith.constant 0 : i32
    return %arg0, %c0_i32, %c0_i32_0 : i32, i32, i32
  }
  func.func @transform_2(%arg0: i32, %arg1: i32) -> (i32, i32, i32) {
    %c0_i32 = arith.constant 0 : i32
    %c0_i32_0 = arith.constant 0 : i32
    %c0_i32_1 = arith.constant 0 : i32
    return %arg0, %c0_i32, %c0_i32_0 : i32, i32, i32
  }
  func.func @transform_3(%arg0: i32, %arg1: i32) -> (i32, i32, i32) {
    %c0_i32 = arith.constant 0 : i32
    %c0_i32_0 = arith.constant 0 : i32
    %c0_i32_1 = arith.constant 0 : i32
    return %arg0, %c0_i32, %c0_i32_0 : i32, i32, i32
  }
  func.func @transform_4(%arg0: i32, %arg1: i32) -> (i32, i32, i32) {
    %c2_i32 = arith.constant 2 : i32
    %0 = arith.muli %c2_i32, %arg1 : i32
    %c1_i32 = arith.constant 1 : i32
    %1 = arith.subi %c1_i32, %0 : i32
    %2 = arith.muli %arg0, %1 : i32
    %3 = arith.addi %arg1, %2 : i32
    %c0_i32 = arith.constant 0 : i32
    %c0_i32_0 = arith.constant 0 : i32
    return %arg0, %3, %c0_i32 : i32, i32, i32
  }
}

</mosaic_0001>

<llo_original>
// kernel: bilstm_forward.3
$region0: #{bilstm_forward.3}
  #allocation0 [shape = 'u32[]', space=smem, size = 0x4, offset = 0x4, fixed_abs, tag = 'smem constant byte address 0x4 - core index']
  #allocation1 [shape = 'u32[144,128]{1,0:T(1,128)}', space=vmem, size = 0x12000, scoped, tag = 'internal scratch']
  %s0 = inlined_call_operand.vmem [shape: bf16[2,256,128], index: 0, kind: input, shape index: {}]
  %s1 = inlined_call_operand.vmem [shape: bf16[2,128,128], index: 1, kind: input, shape index: {}]
  %s2 = inlined_call_operand.vmem [shape: f32[1,128], index: 2, kind: input, shape index: {}]
  %s3 = inlined_call_operand.vmem [shape: f32[256,128], index: 3, kind: output, shape index: {}]
  %s4 = sld [smem:[#allocation0]]
  $region22: #{bilstm_forward.3} parent=0
    _
  %s6 = ssub.s32 1, %s4
  %s7 = scalar_select 0, %s6, %s4
  // Predicated region
  $region2: #{bilstm_forward.3} parent=0 // pred_check
    _
  $region3: #{bilstm_forward.3} parent=0 // pred_check_branch
    %9 = sbr.rel (0) target = $region5
  $region4: #{bilstm_forward.3} parent=0 // pred_region
    _
  $region5: #{bilstm_forward.3} parent=0 // pred_fallthru
    _
  // Predicated region
  $region6: #{bilstm_forward.3} parent=0 // pred_check
    _
  $region7: #{bilstm_forward.3} parent=0 // pred_check_branch
    %11 = sbr.rel (0) target = $region9
  $region8: #{bilstm_forward.3} parent=0 // pred_region
    _
  $region9: #{bilstm_forward.3} parent=0 // pred_fallthru
    _
  // Predicated region
  $region10: #{bilstm_forward.3} parent=0 // pred_check
    _
  $region11: #{bilstm_forward.3} parent=0 // pred_check_branch
    %13 = sbr.rel (0) target = $region13
  $region12: #{bilstm_forward.3} parent=0 // pred_region
    _
  $region13: #{bilstm_forward.3} parent=0 // pred_fallthru
    _
  %v15 = vld [vmem:[%s0] sm:$0xf]
  %v16 = vld [vmem:[%s0 + $0x4] sm:$0xf]
  %v17 = vld [vmem:[%s0 + $0x8] sm:$0xf]
  %v18 = vld [vmem:[%s0 + $0xc] sm:$0xf]
  %v19 = vld [vmem:[%s0 + $0x10] sm:$0xf]
  %v20 = vld [vmem:[%s0 + $0x14] sm:$0xf]
  %v21 = vld [vmem:[%s0 + $0x18] sm:$0xf]
  %v22 = vld [vmem:[%s0 + $0x1c] sm:$0xf]
  %v23 = vld [vmem:[%s0 + $0x20] sm:$0xf]
  %v24 = vld [vmem:[%s0 + $0x24] sm:$0xf]
  %v25 = vld [vmem:[%s0 + $0x28] sm:$0xf]
  %v26 = vld [vmem:[%s0 + $0x2c] sm:$0xf]
  %v27 = vld [vmem:[%s0 + $0x30] sm:$0xf]
  %v28 = vld [vmem:[%s0 + $0x34] sm:$0xf]
  %v29 = vld [vmem:[%s0 + $0x38] sm:$0xf]
  %v30 = vld [vmem:[%s0 + $0x3c] sm:$0xf]
  %v31 = vld [vmem:[%s0 + $0x40] sm:$0xf]
  %v32 = vld [vmem:[%s0 + $0x44] sm:$0xf]
  %v33 = vld [vmem:[%s0 + $0x48] sm:$0xf]
  %v34 = vld [vmem:[%s0 + $0x4c] sm:$0xf]
  %v35 = vld [vmem:[%s0 + $0x50] sm:$0xf]
  %v36 = vld [vmem:[%s0 + $0x54] sm:$0xf]
  %v37 = vld [vmem:[%s0 + $0x58] sm:$0xf]
  %v38 = vld [vmem:[%s0 + $0x5c] sm:$0xf]
  %v39 = vld [vmem:[%s0 + $0x60] sm:$0xf]
  %v40 = vld [vmem:[%s0 + $0x64] sm:$0xf]
  %v41 = vld [vmem:[%s0 + $0x68] sm:$0xf]
  %v42 = vld [vmem:[%s0 + $0x6c] sm:$0xf]
  %v43 = vld [vmem:[%s0 + $0x70] sm:$0xf]
  %v44 = vld [vmem:[%s0 + $0x74] sm:$0xf]
  %v45 = vld [vmem:[%s0 + $0x78] sm:$0xf]
  %v46 = vld [vmem:[%s0 + $0x7c] sm:$0xf]
  %v47 = vld [vmem:[%s1] sm:$0xf]
  %v48 = vld [vmem:[%s1 + $0x4] sm:$0xf]
  %v49 = vld [vmem:[%s1 + $0x8] sm:$0xf]
  %v50 = vld [vmem:[%s1 + $0xc] sm:$0xf]
  %v51 = vld [vmem:[%s1 + $0x10] sm:$0xf]
  %v52 = vld [vmem:[%s1 + $0x14] sm:$0xf]
  %v53 = vld [vmem:[%s1 + $0x18] sm:$0xf]
  %v54 = vld [vmem:[%s1 + $0x1c] sm:$0xf]
  %v55 = vld [vmem:[%s1 + $0x20] sm:$0xf]
  %v56 = vld [vmem:[%s1 + $0x24] sm:$0xf]
  %v57 = vld [vmem:[%s1 + $0x28] sm:$0xf]
  %v58 = vld [vmem:[%s1 + $0x2c] sm:$0xf]
  %v59 = vld [vmem:[%s1 + $0x30] sm:$0xf]
  %v60 = vld [vmem:[%s1 + $0x34] sm:$0xf]
  %v61 = vld [vmem:[%s1 + $0x38] sm:$0xf]
  %v62 = vld [vmem:[%s1 + $0x3c] sm:$0xf]
  %s63 = scalar_lea.vmem %s0, 128
  %v64 = vld [vmem:[%s63] sm:$0xf]
  %v65 = vld [vmem:[%s63 + $0x4] sm:$0xf]
  %v66 = vld [vmem:[%s63 + $0x8] sm:$0xf]
  %v67 = vld [vmem:[%s63 + $0xc] sm:$0xf]
  %v68 = vld [vmem:[%s63 + $0x10] sm:$0xf]
  %v69 = vld [vmem:[%s63 + $0x14] sm:$0xf]
  %v70 = vld [vmem:[%s63 + $0x18] sm:$0xf]
  %v71 = vld [vmem:[%s63 + $0x1c] sm:$0xf]
  %v72 = vld [vmem:[%s63 + $0x20] sm:$0xf]
  %v73 = vld [vmem:[%s63 + $0x24] sm:$0xf]
  %v74 = vld [vmem:[%s63 + $0x28] sm:$0xf]
  %v75 = vld [vmem:[%s63 + $0x2c] sm:$0xf]
  %v76 = vld [vmem:[%s63 + $0x30] sm:$0xf]
  %v77 = vld [vmem:[%s63 + $0x34] sm:$0xf]
  %v78 = vld [vmem:[%s63 + $0x38] sm:$0xf]
  %v79 = vld [vmem:[%s63 + $0x3c] sm:$0xf]
  %v80 = vld [vmem:[%s63 + $0x40] sm:$0xf]
  %v81 = vld [vmem:[%s63 + $0x44] sm:$0xf]
  %v82 = vld [vmem:[%s63 + $0x48] sm:$0xf]
  %v83 = vld [vmem:[%s63 + $0x4c] sm:$0xf]
  %v84 = vld [vmem:[%s63 + $0x50] sm:$0xf]
  %v85 = vld [vmem:[%s63 + $0x54] sm:$0xf]
  %v86 = vld [vmem:[%s63 + $0x58] sm:$0xf]
  %v87 = vld [vmem:[%s63 + $0x5c] sm:$0xf]
  %v88 = vld [vmem:[%s63 + $0x60] sm:$0xf]
  %v89 = vld [vmem:[%s63 + $0x64] sm:$0xf]
  %v90 = vld [vmem:[%s63 + $0x68] sm:$0xf]
  %v91 = vld [vmem:[%s63 + $0x6c] sm:$0xf]
  %v92 = vld [vmem:[%s63 + $0x70] sm:$0xf]
  %v93 = vld [vmem:[%s63 + $0x74] sm:$0xf]
  %v94 = vld [vmem:[%s63 + $0x78] sm:$0xf]
  %v95 = vld [vmem:[%s63 + $0x7c] sm:$0xf]
  %s96 = scalar_lea.vmem %s1, 64
  %v97 = vld [vmem:[%s96] sm:$0xf]
  %v98 = vld [vmem:[%s96 + $0x4] sm:$0xf]
  %v99 = vld [vmem:[%s96 + $0x8] sm:$0xf]
  %v100 = vld [vmem:[%s96 + $0xc] sm:$0xf]
  %v101 = vld [vmem:[%s96 + $0x10] sm:$0xf]
  %v102 = vld [vmem:[%s96 + $0x14] sm:$0xf]
  %v103 = vld [vmem:[%s96 + $0x18] sm:$0xf]
  %v104 = vld [vmem:[%s96 + $0x1c] sm:$0xf]
  %v105 = vld [vmem:[%s96 + $0x20] sm:$0xf]
  %v106 = vld [vmem:[%s96 + $0x24] sm:$0xf]
  %v107 = vld [vmem:[%s96 + $0x28] sm:$0xf]
  %v108 = vld [vmem:[%s96 + $0x2c] sm:$0xf]
  %v109 = vld [vmem:[%s96 + $0x30] sm:$0xf]
  %v110 = vld [vmem:[%s96 + $0x34] sm:$0xf]
  %v111 = vld [vmem:[%s96 + $0x38] sm:$0xf]
  %v112 = vld [vmem:[%s96 + $0x3c] sm:$0xf]
  %v145 = vunpack.c.l.b16 %v64
  %v146 = vunpack.c.l.b16 %v65
  %v147 = vunpack.c.l.b16 %v66
  %v148 = vunpack.c.l.b16 %v67
  %v149 = vunpack.c.l.b16 %v68
  %v150 = vunpack.c.l.b16 %v69
  %v151 = vunpack.c.l.b16 %v70
  %v152 = vunpack.c.l.b16 %v71
  %v153 = vunpack.c.l.b16 %v72
  %v154 = vunpack.c.l.b16 %v73
  %v155 = vunpack.c.l.b16 %v74
  %v156 = vunpack.c.l.b16 %v75
  %v157 = vunpack.c.l.b16 %v76
  %v158 = vunpack.c.l.b16 %v77
  %v159 = vunpack.c.l.b16 %v78
  %v160 = vunpack.c.l.b16 %v79
  %v161 = vunpack.c.l.b16 %v80
  %v162 = vunpack.c.l.b16 %v81
  %v163 = vunpack.c.l.b16 %v82
  %v164 = vunpack.c.l.b16 %v83
  %v165 = vunpack.c.l.b16 %v84
  %v166 = vunpack.c.l.b16 %v85
  %v167 = vunpack.c.l.b16 %v86
  %v168 = vunpack.c.l.b16 %v87
  %v169 = vunpack.c.l.b16 %v88
  %v170 = vunpack.c.l.b16 %v89
  %v171 = vunpack.c.l.b16 %v90
  %v172 = vunpack.c.l.b16 %v91
  %v173 = vunpack.c.l.b16 %v92
  %v174 = vunpack.c.l.b16 %v93
  %v175 = vunpack.c.l.b16 %v94
  %v176 = vunpack.c.l.b16 %v95
  %v177 = vpack.c.b16 %v146, %v145
  %v178 = vpack.c.b16 %v148, %v147
  %v179 = vpack.c.b16 %v150, %v149
  %v180 = vpack.c.b16 %v152, %v151
  %v181 = vpack.c.b16 %v154, %v153
  %v182 = vpack.c.b16 %v156, %v155
  %v183 = vpack.c.b16 %v158, %v157
  %v184 = vpack.c.b16 %v160, %v159
  %v185 = vpack.c.b16 %v162, %v161
  %v186 = vpack.c.b16 %v164, %v163
  %v187 = vpack.c.b16 %v166, %v165
  %v188 = vpack.c.b16 %v168, %v167
  %v189 = vpack.c.b16 %v170, %v169
  %v190 = vpack.c.b16 %v172, %v171
  %v191 = vpack.c.b16 %v174, %v173
  %v192 = vpack.c.b16 %v176, %v175
  %v225 = vunpack.c.l.b16 %v97
  %v226 = vunpack.c.l.b16 %v98
  %v227 = vunpack.c.l.b16 %v99
  %v228 = vunpack.c.l.b16 %v100
  %v229 = vunpack.c.l.b16 %v101
  %v230 = vunpack.c.l.b16 %v102
  %v231 = vunpack.c.l.b16 %v103
  %v232 = vunpack.c.l.b16 %v104
  %v233 = vunpack.c.l.b16 %v105
  %v234 = vunpack.c.l.b16 %v106
  %v235 = vunpack.c.l.b16 %v107
  %v236 = vunpack.c.l.b16 %v108
  %v237 = vunpack.c.l.b16 %v109
  %v238 = vunpack.c.l.b16 %v110
  %v239 = vunpack.c.l.b16 %v111
  %v240 = vunpack.c.l.b16 %v112
  %v241 = vpack.c.b16 %v226, %v225
  %v242 = vpack.c.b16 %v228, %v227
  %v243 = vpack.c.b16 %v230, %v229
  %v244 = vpack.c.b16 %v232, %v231
  %v245 = vpack.c.b16 %v234, %v233
  %v246 = vpack.c.b16 %v236, %v235
  %v247 = vpack.c.b16 %v238, %v237
  %v248 = vpack.c.b16 %v240, %v239
  %257 = vmatprep.subr.bf16.mxu0 0
  %258 = vmatpush1.bf16.msra.mxu0 %v241
  %259 = vmatprep.subr.bf16.mxu0 0
  %260 = vmatpush1.bf16.msra.mxu0 %v242
  %261 = vmatprep.subr.bf16.mxu0 0
  %262 = vmatpush1.bf16.msra.mxu0 %v243
  %263 = vmatprep.subr.bf16.mxu0 0
  %264 = vmatpush1.bf16.msra.mxu0 %v244
  %265 = vmatprep.subr.bf16.mxu0 0
  %266 = vmatpush1.bf16.msra.mxu0 %v245
  %267 = vmatprep.subr.bf16.mxu0 0
  %268 = vmatpush1.bf16.msra.mxu0 %v246
  %269 = vmatprep.subr.bf16.mxu0 0
  %270 = vmatpush1.bf16.msra.mxu0 %v247
  %271 = vmatprep.subr.bf16.mxu0 0
  %272 = vmatpush1.bf16.msra.mxu0 %v248
  %273 = vmatprep.subr.bf16.mxu0 0
  %274 = vmatpush1.bf16.msra.mxu0 0
  %275 = vmatprep.subr.bf16.mxu0 0
  %276 = vmatpush1.bf16.msra.mxu0 0
  %277 = vmatprep.subr.bf16.mxu0 0
  %278 = vmatpush1.bf16.msra.mxu0 0
  %279 = vmatprep.subr.bf16.mxu0 0
  %280 = vmatpush1.bf16.msra.mxu0 0
  %281 = vmatprep.subr.bf16.mxu0 0
  %282 = vmatpush1.bf16.msra.mxu0 0
  %283 = vmatprep.subr.bf16.mxu0 0
  %284 = vmatpush1.bf16.msra.mxu0 0
  %285 = vmatprep.subr.bf16.mxu0 0
  %286 = vmatpush1.bf16.msra.mxu0 0
  %287 = vmatprep.subr.bf16.mxu0 0
  %288 = vmatpush1.bf16.msra.mxu0 0
  %289 = vmatprep.mubr.bf16.mxu0 0
  %290 = vmatmul.mubr.bf16.gmra.mrb[0].mxu0 %v177
  %v291 = vpop.f32.mrb[0].mxu0
  %v292 = vadd.f32 0.0, %v291
  %v293 = vpop.f32.mrb[0].mxu0
  %v294 = vpop.f32.mrb[0].mxu0
  %v295 = vadd.f32 0.0, %v294
  %v296 = vpop.f32.mrb[0].mxu0
  %297 = vmatprep.mubr.bf16.mxu0 0
  %298 = vmatmul.mubr.bf16.gmra.mrb[0].mxu0 %v178
  %v299 = vpop.f32.mrb[0].mxu0
  %v300 = vadd.f32 0.0, %v299
  %v301 = vpop.f32.mrb[0].mxu0
  %v302 = vpop.f32.mrb[0].mxu0
  %v303 = vadd.f32 0.0, %v302
  %v304 = vpop.f32.mrb[0].mxu0
  %305 = vmatprep.mubr.bf16.mxu0 0
  %306 = vmatmul.mubr.bf16.gmra.mrb[0].mxu0 %v179
  %v307 = vpop.f32.mrb[0].mxu0
  %v308 = vadd.f32 0.0, %v307
  %v309 = vpop.f32.mrb[0].mxu0
  %v310 = vpop.f32.mrb[0].mxu0
  %v311 = vadd.f32 0.0, %v310
  %v312 = vpop.f32.mrb[0].mxu0
  %313 = vmatprep.mubr.bf16.mxu0 0
  %314 = vmatmul.mubr.bf16.gmra.mrb[0].mxu0 %v180
  %v315 = vpop.f32.mrb[0].mxu0
  %v316 = vadd.f32 0.0, %v315
  %v317 = vpop.f32.mrb[0].mxu0
  %v318 = vpop.f32.mrb[0].mxu0
  %v319 = vadd.f32 0.0, %v318
  %v320 = vpop.f32.mrb[0].mxu0
  %321 = vmatprep.mubr.bf16.mxu0 0
  %322 = vmatmul.mubr.bf16.gmra.mrb[0].mxu0 %v181
  %v323 = vpop.f32.mrb[0].mxu0
  %v324 = vadd.f32 0.0, %v323
  %v325 = vpop.f32.mrb[0].mxu0
  %v326 = vpop.f32.mrb[0].mxu0
  %v327 = vadd.f32 0.0, %v326
  %v328 = vpop.f32.mrb[0].mxu0
  %329 = vmatprep.mubr.bf16.mxu0 0
  %330 = vmatmul.mubr.bf16.gmra.mrb[0].mxu0 %v182
  %v331 = vpop.f32.mrb[0].mxu0
  %v332 = vadd.f32 0.0, %v331
  %v333 = vpop.f32.mrb[0].mxu0
  %v334 = vpop.f32.mrb[0].mxu0
  %v335 = vadd.f32 0.0, %v334
  %v336 = vpop.f32.mrb[0].mxu0
  %337 = vmatprep.mubr.bf16.mxu0 0
  %338 = vmatmul.mubr.bf16.gmra.mrb[0].mxu0 %v183
  %v339 = vpop.f32.mrb[0].mxu0
  %v340 = vadd.f32 0.0, %v339
  %v341 = vpop.f32.mrb[0].mxu0
  %v342 = vpop.f32.mrb[0].mxu0
  %v343 = vadd.f32 0.0, %v342
  %v344 = vpop.f32.mrb[0].mxu0
  %345 = vmatprep.mubr.bf16.mxu0 0
  %346 = vmatmul.mubr.bf16.gmra.mrb[0].mxu0 %v184
  %v347 = vpop.f32.mrb[0].mxu0
  %v348 = vadd.f32 0.0, %v347
  %v349 = vpop.f32.mrb[0].mxu0
  %v350 = vpop.f32.mrb[0].mxu0
  %v351 = vadd.f32 0.0, %v350
  %v352 = vpop.f32.mrb[0].mxu0
  %353 = vmatprep.mubr.bf16.mxu0 0
  %354 = vmatmul.mubr.bf16.gmra.mrb[0].mxu0 %v185
  %v355 = vpop.f32.mrb[0].mxu0
  %v356 = vadd.f32 0.0, %v355
  %v357 = vpop.f32.mrb[0].mxu0
  %v358 = vpop.f32.mrb[0].mxu0
  %v359 = vadd.f32 0.0, %v358
  %v360 = vpop.f32.mrb[0].mxu0
  %361 = vmatprep.mubr.bf16.mxu0 0
  %362 = vmatmul.mubr.bf16.gmra.mrb[0].mxu0 %v186
  %v363 = vpop.f32.mrb[0].mxu0
  %v364 = vadd.f32 0.0, %v363
  %v365 = vpop.f32.mrb[0].mxu0
  %v366 = vpop.f32.mrb[0].mxu0
  %v367 = vadd.f32 0.0, %v366
  %v368 = vpop.f32.mrb[0].mxu0
  %369 = vmatprep.mubr.bf16.mxu0 0
  %370 = vmatmul.mubr.bf16.gmra.mrb[0].mxu0 %v187
  %v371 = vpop.f32.mrb[0].mxu0
  %v372 = vadd.f32 0.0, %v371
  %v373 = vpop.f32.mrb[0].mxu0
  %v374 = vpop.f32.mrb[0].mxu0
  %v375 = vadd.f32 0.0, %v374
  %v376 = vpop.f32.mrb[0].mxu0
  %377 = vmatprep.mubr.bf16.mxu0 0
  %378 = vmatmul.mubr.bf16.gmra.mrb[0].mxu0 %v188
  %v379 = vpop.f32.mrb[0].mxu0
  %v380 = vadd.f32 0.0, %v379
  %v381 = vpop.f32.mrb[0].mxu0
  %v382 = vpop.f32.mrb[0].mxu0
  %v383 = vadd.f32 0.0, %v382
  %v384 = vpop.f32.mrb[0].mxu0
  %385 = vmatprep.mubr.bf16.mxu0 0
  %386 = vmatmul.mubr.bf16.gmra.mrb[0].mxu0 %v189
  %v387 = vpop.f32.mrb[0].mxu0
  %v388 = vadd.f32 0.0, %v387
  %v389 = vpop.f32.mrb[0].mxu0
  %v390 = vpop.f32.mrb[0].mxu0
  %v391 = vadd.f32 0.0, %v390
  %v392 = vpop.f32.mrb[0].mxu0
  %393 = vmatprep.mubr.bf16.mxu0 0
  %394 = vmatmul.mubr.bf16.gmra.mrb[0].mxu0 %v190
  %v395 = vpop.f32.mrb[0].mxu0
  %v396 = vadd.f32 0.0, %v395
  %v397 = vpop.f32.mrb[0].mxu0
  %v398 = vpop.f32.mrb[0].mxu0
  %v399 = vadd.f32 0.0, %v398
  %v400 = vpop.f32.mrb[0].mxu0
  %401 = vmatprep.mubr.bf16.mxu0 0
  %402 = vmatmul.mubr.bf16.gmra.mrb[0].mxu0 %v191
  %v403 = vpop.f32.mrb[0].mxu0
  %v404 = vadd.f32 0.0, %v403
  %v405 = vpop.f32.mrb[0].mxu0
  %v406 = vpop.f32.mrb[0].mxu0
  %v407 = vadd.f32 0.0, %v406
  %v408 = vpop.f32.mrb[0].mxu0
  %409 = vmatprep.mubr.bf16.mxu0 0
  %410 = vmatmul.mubr.bf16.gmra.mrb[0].mxu0 %v192
  %v411 = vpop.f32.mrb[0].mxu0
  %v412 = vadd.f32 0.0, %v411
  %v413 = vpop.f32.mrb[0].mxu0
  %v414 = vpop.f32.mrb[0].mxu0
  %v415 = vadd.f32 0.0, %v414
  %v416 = vpop.f32.mrb[0].mxu0
  %417 = vdwg.mxu0
  %v450 = vunpack.c.l.b16 %v15
  %v451 = vunpack.c.l.b16 %v16
  %v452 = vunpack.c.l.b16 %v17
  %v453 = vunpack.c.l.b16 %v18
  %v454 = vunpack.c.l.b16 %v19
  %v455 = vunpack.c.l.b16 %v20
  %v456 = vunpack.c.l.b16 %v21
  %v457 = vunpack.c.l.b16 %v22
  %v458 = vunpack.c.l.b16 %v23
  %v459 = vunpack.c.l.b16 %v24
  %v460 = vunpack.c.l.b16 %v25
  %v461 = vunpack.c.l.b16 %v26
  %v462 = vunpack.c.l.b16 %v27
  %v463 = vunpack.c.l.b16 %v28
  %v464 = vunpack.c.l.b16 %v29
  %v465 = vunpack.c.l.b16 %v30
  %v466 = vunpack.c.l.b16 %v31
  %v467 = vunpack.c.l.b16 %v32
  %v468 = vunpack.c.l.b16 %v33
  %v469 = vunpack.c.l.b16 %v34
  %v470 = vunpack.c.l.b16 %v35
  %v471 = vunpack.c.l.b16 %v36
  %v472 = vunpack.c.l.b16 %v37
  %v473 = vunpack.c.l.b16 %v38
  %v474 = vunpack.c.l.b16 %v39
  %v475 = vunpack.c.l.b16 %v40
  %v476 = vunpack.c.l.b16 %v41
  %v477 = vunpack.c.l.b16 %v42
  %v478 = vunpack.c.l.b16 %v43
  %v479 = vunpack.c.l.b16 %v44
  %v480 = vunpack.c.l.b16 %v45
  %v481 = vunpack.c.l.b16 %v46
  %v482 = vpack.c.b16 %v451, %v450
  %v483 = vpack.c.b16 %v453, %v452
  %v484 = vpack.c.b16 %v455, %v454
  %v485 = vpack.c.b16 %v457, %v456
  %v486 = vpack.c.b16 %v459, %v458
  %v487 = vpack.c.b16 %v461, %v460
  %v488 = vpack.c.b16 %v463, %v462
  %v489 = vpack.c.b16 %v465, %v464
  %v490 = vpack.c.b16 %v467, %v466
  %v491 = vpack.c.b16 %v469, %v468
  %v492 = vpack.c.b16 %v471, %v470
  %v493 = vpack.c.b16 %v473, %v472
  %v494 = vpack.c.b16 %v475, %v474
  %v495 = vpack.c.b16 %v477, %v476
  %v496 = vpack.c.b16 %v479, %v478
  %v497 = vpack.c.b16 %v481, %v480
  %v530 = vunpack.c.l.b16 %v47
  %v531 = vunpack.c.l.b16 %v48
  %v532 = vunpack.c.l.b16 %v49
  %v533 = vunpack.c.l.b16 %v50
  %v534 = vunpack.c.l.b16 %v51
  %v535 = vunpack.c.l.b16 %v52
  %v536 = vunpack.c.l.b16 %v53
  %v537 = vunpack.c.l.b16 %v54
  %v538 = vunpack.c.l.b16 %v55
  %v539 = vunpack.c.l.b16 %v56
  %v540 = vunpack.c.l.b16 %v57
  %v541 = vunpack.c.l.b16 %v58
  %v542 = vunpack.c.l.b16 %v59
  %v543 = vunpack.c.l.b16 %v60
  %v544 = vunpack.c.l.b16 %v61
  %v545 = vunpack.c.l.b16 %v62
  %v546 = vpack.c.b16 %v531, %v530
  %v547 = vpack.c.b16 %v533, %v532
  %v548 = vpack.c.b16 %v535, %v534
  %v549 = vpack.c.b16 %v537, %v536
  %v550 = vpack.c.b16 %v539, %v538
  %v551 = vpack.c.b16 %v541, %v540
  %v552 = vpack.c.b16 %v543, %v542
  %v553 = vpack.c.b16 %v545, %v544
  %562 = vmatprep.subr.bf16.mxu0 0
  %563 = vmatpush1.bf16.msra.mxu0 %v546
  %564 = vmatprep.subr.bf16.mxu0 0
  %565 = vmatpush1.bf16.msra.mxu0 %v547
  %566 = vmatprep.subr.bf16.mxu0 0
  %567 = vmatpush1.bf16.msra.mxu0 %v548
  %568 = vmatprep.subr.bf16.mxu0 0
  %569 = vmatpush1.bf16.msra.mxu0 %v549
  %570 = vmatprep.subr.bf16.mxu0 0
  %571 = vmatpush1.bf16.msra.mxu0 %v550
  %572 = vmatprep.subr.bf16.mxu0 0
  %573 = vmatpush1.bf16.msra.mxu0 %v551
  %574 = vmatprep.subr.bf16.mxu0 0
  %575 = vmatpush1.bf16.msra.mxu0 %v552
  %576 = vmatprep.subr.bf16.mxu0 0
  %577 = vmatpush1.bf16.msra.mxu0 %v553
  %578 = vmatprep.subr.bf16.mxu0 0
  %579 = vmatpush1.bf16.msra.mxu0 0
  %580 = vmatprep.subr.bf16.mxu0 0
  %581 = vmatpush1.bf16.msra.mxu0 0
  %582 = vmatprep.subr.bf16.mxu0 0
  %583 = vmatpush1.bf16.msra.mxu0 0
  %584 = vmatprep.subr.bf16.mxu0 0
  %585 = vmatpush1.bf16.msra.mxu0 0
  %586 = vmatprep.subr.bf16.mxu0 0
  %587 = vmatpush1.bf16.msra.mxu0 0
  %588 = vmatprep.subr.bf16.mxu0 0
  %589 = vmatpush1.bf16.msra.mxu0 0
  %590 = vmatprep.subr.bf16.mxu0 0
  %591 = vmatpush1.bf16.msra.mxu0 0
  %592 = vmatprep.subr.bf16.mxu0 0
  %593 = vmatpush1.bf16.msra.mxu0 0
  %594 = vmatprep.mubr.bf16.mxu0 0
  %595 = vmatmul.mubr.bf16.gmra.mrb[0].mxu0 %v482
  %v596 = vpop.f32.mrb[0].mxu0
  %v597 = vadd.f32 %v292, %v596
  %v598 = vpop.f32.mrb[0].mxu0
  %v599 = vpop.f32.mrb[0].mxu0
  %v600 = vadd.f32 %v295, %v599
  %v601 = vpop.f32.mrb[0].mxu0
  %602 = vmatprep.mubr.bf16.mxu0 0
  %603 = vmatmul.mubr.bf16.gmra.mrb[0].mxu0 %v483
  %v604 = vpop.f32.mrb[0].mxu0
  %v605 = vadd.f32 %v300, %v604
  %v606 = vpop.f32.mrb[0].mxu0
  %v607 = vpop.f32.mrb[0].mxu0
  %v608 = vadd.f32 %v303, %v607
  %v609 = vpop.f32.mrb[0].mxu0
  %610 = vmatprep.mubr.bf16.mxu0 0
  %611 = vmatmul.mubr.bf16.gmra.mrb[0].mxu0 %v484
  %v612 = vpop.f32.mrb[0].mxu0
  %v613 = vadd.f32 %v308, %v612
  %v614 = vpop.f32.mrb[0].mxu0
  %v615 = vpop.f32.mrb[0].mxu0
  %v616 = vadd.f32 %v311, %v615
  %v617 = vpop.f32.mrb[0].mxu0
  %618 = vmatprep.mubr.bf16.mxu0 0
  %619 = vmatmul.mubr.bf16.gmra.mrb[0].mxu0 %v485
  %v620 = vpop.f32.mrb[0].mxu0
  %v621 = vadd.f32 %v316, %v620
  %v622 = vpop.f32.mrb[0].mxu0
  %v623 = vpop.f32.mrb[0].mxu0
  %v624 = vadd.f32 %v319, %v623
  %v625 = vpop.f32.mrb[0].mxu0
  %626 = vmatprep.mubr.bf16.mxu0 0
  %627 = vmatmul.mubr.bf16.gmra.mrb[0].mxu0 %v486
  %v628 = vpop.f32.mrb[0].mxu0
  %v629 = vadd.f32 %v324, %v628
  %v630 = vpop.f32.mrb[0].mxu0
  %v631 = vpop.f32.mrb[0].mxu0
  %v632 = vadd.f32 %v327, %v631
  %v633 = vpop.f32.mrb[0].mxu0
  %634 = vmatprep.mubr.bf16.mxu0 0
  %635 = vmatmul.mubr.bf16.gmra.mrb[0].mxu0 %v487
  %v636 = vpop.f32.mrb[0].mxu0
  %v637 = vadd.f32 %v332, %v636
  %v638 = vpop.f32.mrb[0].mxu0
  %v639 = vpop.f32.mrb[0].mxu0
  %v640 = vadd.f32 %v335, %v639
  %v641 = vpop.f32.mrb[0].mxu0
  %642 = vmatprep.mubr.bf16.mxu0 0
  %643 = vmatmul.mubr.bf16.gmra.mrb[0].mxu0 %v488
  %v644 = vpop.f32.mrb[0].mxu0
  %v645 = vadd.f32 %v340, %v644
  %v646 = vpop.f32.mrb[0].mxu0
  %v647 = vpop.f32.mrb[0].mxu0
  %v648 = vadd.f32 %v343, %v647
  %v649 = vpop.f32.mrb[0].mxu0
  %650 = vmatprep.mubr.bf16.mxu0 0
  %651 = vmatmul.mubr.bf16.gmra.mrb[0].mxu0 %v489
  %v652 = vpop.f32.mrb[0].mxu0
  %v653 = vadd.f32 %v348, %v652
  %v654 = vpop.f32.mrb[0].mxu0
  %v655 = vpop.f32.mrb[0].mxu0
  %v656 = vadd.f32 %v351, %v655
  %v657 = vpop.f32.mrb[0].mxu0
  %658 = vmatprep.mubr.bf16.mxu0 0
  %659 = vmatmul.mubr.bf16.gmra.mrb[0].mxu0 %v490
  %v660 = vpop.f32.mrb[0].mxu0
  %v661 = vadd.f32 %v356, %v660
  %v662 = vpop.f32.mrb[0].mxu0
  %v663 = vpop.f32.mrb[0].mxu0
  %v664 = vadd.f32 %v359, %v663
  %v665 = vpop.f32.mrb[0].mxu0
  %666 = vmatprep.mubr.bf16.mxu0 0
  %667 = vmatmul.mubr.bf16.gmra.mrb[0].mxu0 %v491
  %v668 = vpop.f32.mrb[0].mxu0
  %v669 = vadd.f32 %v364, %v668
  %v670 = vpop.f32.mrb[0].mxu0
  %v671 = vpop.f32.mrb[0].mxu0
  %v672 = vadd.f32 %v367, %v671
  %v673 = vpop.f32.mrb[0].mxu0
  %674 = vmatprep.mubr.bf16.mxu0 0
  %675 = vmatmul.mubr.bf16.gmra.mrb[0].mxu0 %v492
  %v676 = vpop.f32.mrb[0].mxu0
  %v677 = vadd.f32 %v372, %v676
  %v678 = vpop.f32.mrb[0].mxu0
  %v679 = vpop.f32.mrb[0].mxu0
  %v680 = vadd.f32 %v375, %v679
  %v681 = vpop.f32.mrb[0].mxu0
  %682 = vmatprep.mubr.bf16.mxu0 0
  %683 = vmatmul.mubr.bf16.gmra.mrb[0].mxu0 %v493
  %v684 = vpop.f32.mrb[0].mxu0
  %v685 = vadd.f32 %v380, %v684
  %v686 = vpop.f32.mrb[0].mxu0
  %v687 = vpop.f32.mrb[0].mxu0
  %v688 = vadd.f32 %v383, %v687
  %v689 = vpop.f32.mrb[0].mxu0
  %690 = vmatprep.mubr.bf16.mxu0 0
  %691 = vmatmul.mubr.bf16.gmra.mrb[0].mxu0 %v494
  %v692 = vpop.f32.mrb[0].mxu0
  %v693 = vadd.f32 %v388, %v692
  %v694 = vpop.f32.mrb[0].mxu0
  %v695 = vpop.f32.mrb[0].mxu0
  %v696 = vadd.f32 %v391, %v695
  %v697 = vpop.f32.mrb[0].mxu0
  %698 = vmatprep.mubr.bf16.mxu0 0
  %699 = vmatmul.mubr.bf16.gmra.mrb[0].mxu0 %v495
  %v700 = vpop.f32.mrb[0].mxu0
  %v701 = vadd.f32 %v396, %v700
  %v702 = vpop.f32.mrb[0].mxu0
  %v703 = vpop.f32.mrb[0].mxu0
  %v704 = vadd.f32 %v399, %v703
  %v705 = vpop.f32.mrb[0].mxu0
  %706 = vmatprep.mubr.bf16.mxu0 0
  %707 = vmatmul.mubr.bf16.gmra.mrb[0].mxu0 %v496
  %v708 = vpop.f32.mrb[0].mxu0
  %v709 = vadd.f32 %v404, %v708
  %v710 = vpop.f32.mrb[0].mxu0
  %v711 = vpop.f32.mrb[0].mxu0
  %v712 = vadd.f32 %v407, %v711
  %v713 = vpop.f32.mrb[0].mxu0
  %714 = vmatprep.mubr.bf16.mxu0 0
  %715 = vmatmul.mubr.bf16.gmra.mrb[0].mxu0 %v497
  %v716 = vpop.f32.mrb[0].mxu0
  %v717 = vadd.f32 %v412, %v716
  %v718 = vpop.f32.mrb[0].mxu0
  %v719 = vpop.f32.mrb[0].mxu0
  %v720 = vadd.f32 %v415, %v719
  %v721 = vpop.f32.mrb[0].mxu0
  %722 = vdwg.mxu0
  %v723 = vld [vmem:[%s2] sm:$0x1]
  %v725 = vlaneseq
  %v726 = vshrl.u32 %v725, 7
  %v727 = vsub.s32 0, %v726
  %v728 = vrot.slane %v723, %v727
  %v730 = vadd.f32 %v597, %v728
  %v731 = vadd.f32 %v600, %v728
  %v732 = vadd.f32 %v605, %v728
  %v733 = vadd.f32 %v608, %v728
  %v734 = vadd.f32 %v613, %v728
  %v735 = vadd.f32 %v616, %v728
  %v736 = vadd.f32 %v621, %v728
  %v737 = vadd.f32 %v624, %v728
  %v738 = vadd.f32 %v629, %v728
  %v739 = vadd.f32 %v632, %v728
  %v740 = vadd.f32 %v637, %v728
  %v741 = vadd.f32 %v640, %v728
  %v742 = vadd.f32 %v645, %v728
  %v743 = vadd.f32 %v648, %v728
  %v744 = vadd.f32 %v653, %v728
  %v745 = vadd.f32 %v656, %v728
  %v746 = vadd.f32 %v661, %v728
  %v747 = vadd.f32 %v664, %v728
  %v748 = vadd.f32 %v669, %v728
  %v749 = vadd.f32 %v672, %v728
  %v750 = vadd.f32 %v677, %v728
  %v751 = vadd.f32 %v680, %v728
  %v752 = vadd.f32 %v685, %v728
  %v753 = vadd.f32 %v688, %v728
  %v754 = vadd.f32 %v693, %v728
  %v755 = vadd.f32 %v696, %v728
  %v756 = vadd.f32 %v701, %v728
  %v757 = vadd.f32 %v704, %v728
  %v758 = vadd.f32 %v709, %v728
  %v759 = vadd.f32 %v712, %v728
  %v760 = vadd.f32 %v717, %v728
  %v761 = vadd.f32 %v720, %v728
  %762 = vst [vmem:[%s3] sm:$0xff] %v730
  %763 = vst [vmem:[%s3 + $0x8] sm:$0xff] %v731
  %764 = vst [vmem:[%s3 + $0x10] sm:$0xff] %v732
  %765 = vst [vmem:[%s3 + $0x18] sm:$0xff] %v733
  %766 = vst [vmem:[%s3 + $0x20] sm:$0xff] %v734
  %767 = vst [vmem:[%s3 + $0x28] sm:$0xff] %v735
  %768 = vst [vmem:[%s3 + $0x30] sm:$0xff] %v736
  %769 = vst [vmem:[%s3 + $0x38] sm:$0xff] %v737
  %770 = vst [vmem:[%s3 + $0x40] sm:$0xff] %v738
  %771 = vst [vmem:[%s3 + $0x48] sm:$0xff] %v739
  %772 = vst [vmem:[%s3 + $0x50] sm:$0xff] %v740
  %773 = vst [vmem:[%s3 + $0x58] sm:$0xff] %v741
  %774 = vst [vmem:[%s3 + $0x60] sm:$0xff] %v742
  %775 = vst [vmem:[%s3 + $0x68] sm:$0xff] %v743
  %776 = vst [vmem:[%s3 + $0x70] sm:$0xff] %v744
  %777 = vst [vmem:[%s3 + $0x78] sm:$0xff] %v745
  %778 = vst [vmem:[%s3 + $0x80] sm:$0xff] %v746
  %779 = vst [vmem:[%s3 + $0x88] sm:$0xff] %v747
  %780 = vst [vmem:[%s3 + $0x90] sm:$0xff] %v748
  %781 = vst [vmem:[%s3 + $0x98] sm:$0xff] %v749
  %782 = vst [vmem:[%s3 + $0xa0] sm:$0xff] %v750
  %783 = vst [vmem:[%s3 + $0xa8] sm:$0xff] %v751
  %784 = vst [vmem:[%s3 + $0xb0] sm:$0xff] %v752
  %785 = vst [vmem:[%s3 + $0xb8] sm:$0xff] %v753
  %786 = vst [vmem:[%s3 + $0xc0] sm:$0xff] %v754
  %787 = vst [vmem:[%s3 + $0xc8] sm:$0xff] %v755
  %788 = vst [vmem:[%s3 + $0xd0] sm:$0xff] %v756
  %789 = vst [vmem:[%s3 + $0xd8] sm:$0xff] %v757
  %790 = vst [vmem:[%s3 + $0xe0] sm:$0xff] %v758
  %791 = vst [vmem:[%s3 + $0xe8] sm:$0xff] %v759
  %792 = vst [vmem:[%s3 + $0xf0] sm:$0xff] %v760
  %793 = vst [vmem:[%s3 + $0xf8] sm:$0xff] %v761
  // Predicated region
  $region14: #{bilstm_forward.3} parent=0 // pred_check
    _
  $region15: #{bilstm_forward.3} parent=0 // pred_check_branch
    %795 = sbr.rel (0) target = $region17
  $region16: #{bilstm_forward.3} parent=0 // pred_region
    _
  $region17: #{bilstm_forward.3} parent=0 // pred_fallthru
    _
  // Predicated region
  $region18: #{bilstm_forward.3} parent=0 // pred_check
    _
  $region19: #{bilstm_forward.3} parent=0 // pred_check_branch
    %797 = sbr.rel (0) target = $region21
  $region20: #{bilstm_forward.3} parent=0 // pred_region
    _
  $region21: #{bilstm_forward.3} parent=0 // pred_fallthru
    _

// kernel: bilstm_forward.2
$region0: #{bilstm_forward.2}
  #allocation0 [shape = 'u32[]', space=smem, size = 0x4, offset = 0x4, fixed_abs, tag = 'smem constant byte address 0x4 - core index']
  #allocation1 [shape = 'u32[144,128]{1,0:T(1,128)}', space=vmem, size = 0x12000, scoped, tag = 'internal scratch']
  #allocation2 [shape = 'f32[8,128]{1,0:T(8,128)}', space=vmem, size = 0x1000, scoped, tag = 'scratch operand']
  #allocation3 [shape = 'f32[8,128]{1,0:T(8,128)}', space=vmem, size = 0x1000, scoped, tag = 'scratch operand']
  #allocation4 [shape = 'f32[128,512]{1,0:T(8,128)}', space=vmem, size = 0x40000, scoped, tag = 'scratch operand']
  #allocation5 [shape = 'f32[128,128]{1,0:T(8,128)}', space=vmem, size = 0x10000, scoped, tag = 'scratch operand']
  %s0 = inlined_call_operand.vmem [shape: bf16[256,128], index: 0, kind: input, shape index: {}]
  %s1 = inlined_call_operand.vmem [shape: bf16[2,128,512], index: 1, kind: input, shape index: {}]
  %s2 = inlined_call_operand.vmem [shape: bf16[2,128,512], index: 2, kind: input, shape index: {}]
  %s3 = inlined_call_operand.vmem [shape: f32[2,1,512], index: 3, kind: input, shape index: {}]
  %s4 = inlined_call_operand.vmem [shape: bf16[2,256,128], index: 4, kind: output, shape index: {}]
  %s5 = sld [smem:[#allocation0]]
  $region53: #{bilstm_forward.2} parent=0
    _
  %s7 = ssub.s32 1, %s5
  %s8 = scalar_select 0, %s7, %s5
  loop: start=0, step=1, limit=6
  $region2: #{bilstm_forward.2} parent=0 // loop_pre_header
    _
  $region3: #{bilstm_forward.2} parent=0 // loop_header
    %s10 = sphi 0, %s14
    %p11 = scmp.ge.s32.totalorder %s10, 6
    %s17 = sphi 0, %s29
    %s18 = sphi 0, %s25
    %s19 = sphi 0, %s17
    %s20 = sphi 0, %s18
    %s21 = sphi 0, %s19
    %s22 = sphi 0, %s20
    %s40 = sphi 0, %s42
    %s43 = sphi 0, %s40
    %s44 = sphi 0, %s43
    %s60 = sphi 0, %s44
    %s66 = sphi 0, %s68
    %s69 = sphi 0, %s66
    %s70 = sphi 0, %s69
    %s86 = sphi 0, %s70
    %s92 = sphi 0, %s94
    %s95 = sphi 0, %s92
    %s96 = sphi 0, %s95
    %s112 = sphi 0, %s96
    %s118 = sphi 0, %s120
    %s121 = sphi 0, %s118
    %s122 = sphi 0, %s121
    %s138 = sphi 0, %s122
    %s154 = sphi 0, %s156
    %s157 = sphi 0, %s154
    %s158 = sphi 0, %s157
    %s174 = sphi 0, %s158
  $region4: #{bilstm_forward.2} parent=0 // loop_header_branch
    %13 = sbr.rel (%p11) target = $region8
  $region5: #{bilstm_forward.2} parent=0 // loop_body
    %s15 = ssub.s32 %s10, 1
    %s16 = ssub.s32 %s10, 2
    %s23 = sadd.s32 1, %s18
    %p24 = scmp.ge.s32.totalorder %s23, 2
    %s25 = scalar_select %p24, 0, %s23
    %s26 = sadd.s32 1, %s17
    %s27 = scalar_select %p24, %s26, %s17
    %p28 = scmp.ge.s32.totalorder %s27, 2
    %s29 = scalar_select %p28, 0, %s27
    %s30 = smul.u32 %s18, 2
    %s31 = ssub.s32 1, %s30
    %s32 = smul.u32 %s17, %s31
    %s33 = sadd.s32 %s18, %s32
    %s34 = smul.u32 %s25, 2
    %s35 = ssub.s32 1, %s34
    %s36 = smul.u32 %s29, %s35
    %s37 = sadd.s32 %s25, %s36
    %s38 = ssub.s32 %s33, %s37
    %p39 = scmp.eq.s32.totalorder %s38, 0
    %s41 = sadd.s32 %s40, 1
    %s42 = scalar_select %p39, %s40, %s41
    %p45 = pneg %p39
    %p46 = scmp.eq.s32.totalorder %s10, 3
    %p47 = por %p45, %p46
    %p48 = scmp.ne.s32.totalorder %s40, %s43
    %p49 = scmp.eq.s32.totalorder %s10, 0
    %p50 = por %p48, %p49
    %p51 = scmp.ne.s32.totalorder %s40, %s43
    %p52 = scmp.eq.s32.totalorder %s15, 3
    %p53 = por %p51, %p52
    %p54 = scmp.ne.s32.totalorder %s43, %s44
    %p55 = scmp.eq.s32.totalorder %s15, 0
    %p56 = por %p54, %p55
    %p57 = scmp.ne.s32.totalorder %s43, %s44
    %p58 = scmp.eq.s32.totalorder %s16, 3
    %p59 = por %p57, %p58
    %p61 = scmp.ne.s32.totalorder %s44, %s60
    %p62 = scmp.eq.s32.totalorder %s16, 0
    %p63 = por %p61, %p62
    %s64 = ssub.s32 %s17, %s29
    %p65 = scmp.eq.s32.totalorder %s64, 0
    %s67 = sadd.s32 %s66, 1
    %s68 = scalar_select %p65, %s66, %s67
    %p71 = pneg %p65
    %p72 = scmp.eq.s32.totalorder %s10, 3
    %p73 = por %p71, %p72
    %p74 = scmp.ne.s32.totalorder %s66, %s69
    %p75 = scmp.eq.s32.totalorder %s10, 0
    %p76 = por %p74, %p75
    %p77 = scmp.ne.s32.totalorder %s66, %s69
    %p78 = scmp.eq.s32.totalorder %s15, 3
    %p79 = por %p77, %p78
    %p80 = scmp.ne.s32.totalorder %s69, %s70
    %p81 = scmp.eq.s32.totalorder %s15, 0
    %p82 = por %p80, %p81
    %p83 = scmp.ne.s32.totalorder %s69, %s70
    %p84 = scmp.eq.s32.totalorder %s16, 3
    %p85 = por %p83, %p84
    %p87 = scmp.ne.s32.totalorder %s70, %s86
    %p88 = scmp.eq.s32.totalorder %s16, 0
    %p89 = por %p87, %p88
    %s90 = ssub.s32 %s17, %s29
    %p91 = scmp.eq.s32.totalorder %s90, 0
    %s93 = sadd.s32 %s92, 1
    %s94 = scalar_select %p91, %s92, %s93
    %p97 = pneg %p91
    %p98 = scmp.eq.s32.totalorder %s10, 3
    %p99 = por %p97, %p98
    %p100 = scmp.ne.s32.totalorder %s92, %s95
    %p101 = scmp.eq.s32.totalorder %s10, 0
    %p102 = por %p100, %p101
    %p103 = scmp.ne.s32.totalorder %s92, %s95
    %p104 = scmp.eq.s32.totalorder %s15, 3
    %p105 = por %p103, %p104
    %p106 = scmp.ne.s32.totalorder %s95, %s96
    %p107 = scmp.eq.s32.totalorder %s15, 0
    %p108 = por %p106, %p107
    %p109 = scmp.ne.s32.totalorder %s95, %s96
    %p110 = scmp.eq.s32.totalorder %s16, 3
    %p111 = por %p109, %p110
    %p113 = scmp.ne.s32.totalorder %s96, %s112
    %p114 = scmp.eq.s32.totalorder %s16, 0
    %p115 = por %p113, %p114
    %s116 = ssub.s32 %s17, %s29
    %p117 = scmp.eq.s32.totalorder %s116, 0
    %s119 = sadd.s32 %s118, 1
    %s120 = scalar_select %p117, %s118, %s119
    %p123 = pneg %p117
    %p124 = scmp.eq.s32.totalorder %s10, 3
    %p125 = por %p123, %p124
    %p126 = scmp.ne.s32.totalorder %s118, %s121
    %p127 = scmp.eq.s32.totalorder %s10, 0
    %p128 = por %p126, %p127
    %p129 = scmp.ne.s32.totalorder %s118, %s121
    %p130 = scmp.eq.s32.totalorder %s15, 3
    %p131 = por %p129, %p130
    %p132 = scmp.ne.s32.totalorder %s121, %s122
    %p133 = scmp.eq.s32.totalorder %s15, 0
    %p134 = por %p132, %p133
    %p135 = scmp.ne.s32.totalorder %s121, %s122
    %p136 = scmp.eq.s32.totalorder %s16, 3
    %p137 = por %p135, %p136
    %p139 = scmp.ne.s32.totalorder %s122, %s138
    %p140 = scmp.eq.s32.totalorder %s16, 0
    %p141 = por %p139, %p140
    %s142 = smul.u32 %s18, 2
    %s143 = ssub.s32 1, %s142
    %s144 = smul.u32 %s17, %s143
    %s145 = sadd.s32 %s18, %s144
    %s146 = smul.u32 %s25, 2
    %s147 = ssub.s32 1, %s146
    %s148 = smul.u32 %s29, %s147
    %s149 = sadd.s32 %s25, %s148
    %s150 = ssub.s32 %s17, %s29
    %s151 = ssub.s32 %s145, %s149
    %s152 = sor.u32 %s150, %s151
    %p153 = scmp.eq.s32.totalorder %s152, 0
    %s155 = sadd.s32 %s154, 1
    %s156 = scalar_select %p153, %s154, %s155
    %p159 = pneg %p153
    %p160 = scmp.eq.s32.totalorder %s10, 3
    %p161 = por %p159, %p160
    %p162 = scmp.ne.s32.totalorder %s154, %s157
    %p163 = scmp.eq.s32.totalorder %s10, 0
    %p164 = por %p162, %p163
    %p165 = scmp.ne.s32.totalorder %s154, %s157
    %p166 = scmp.eq.s32.totalorder %s15, 3
    %p167 = por %p165, %p166
    %p168 = scmp.ne.s32.totalorder %s157, %s158
    %p169 = scmp.eq.s32.totalorder %s15, 0
    %p170 = por %p168, %p169
    %p171 = scmp.ne.s32.totalorder %s157, %s158
    %p172 = scmp.eq.s32.totalorder %s16, 3
    %p173 = por %p171, %p172
    %p175 = scmp.ne.s32.totalorder %s158, %s174
    %p176 = scmp.eq.s32.totalorder %s16, 0
    %p177 = por %p175, %p176
    %p178 = scmp.le.s32.totalorder 1, %s10
    %p179 = scmp.lt.s32.totalorder %s10, 5
    %p180 = pnand %p178, %p179
    %p181 = pneg %p180
    // Predicated region
    $region9: #{bilstm_forward.2} parent=5 // pred_check
      _
    $region10: #{bilstm_forward.2} parent=5 // pred_check_branch
      %183 = sbr.rel (%p180) target = $region12
    $region11: #{bilstm_forward.2} parent=5 // pred_region
      %s184 = ssub.s32 %s10, 1
    $region12: #{bilstm_forward.2} parent=5 // pred_fallthru
      _
    %p185 = scmp.lt.s32.totalorder %s10, 4
    // Predicated region
    $region13: #{bilstm_forward.2} parent=5 // pred_check
      %p186 = pneg %p185
    $region14: #{bilstm_forward.2} parent=5 // pred_check_branch
      %188 = sbr.rel (%p186) target = $region16
    $region15: #{bilstm_forward.2} parent=5 // pred_region
      // Predicated region
      $region17: #{bilstm_forward.2} parent=15 // pred_check
        %p189 = pneg %p50
      $region18: #{bilstm_forward.2} parent=15 // pred_check_branch
        %191 = sbr.rel (%p189) target = $region20
      $region19: #{bilstm_forward.2} parent=15 // pred_region
        %s192 = smul.u32 %s18, 2
        %s193 = ssub.s32 1, %s192
        %s194 = smul.u32 %s17, %s193
        %s195 = sadd.s32 %s18, %s194
        %s196 = smul.u32 16, %s195
        %p197 = scmp.lt.s32.totalorder %s196, 31
        %s198 = scalar_select %p197, %s196, 31
        %s199 = smul.addr %s198, 4
        %s200 = scalar_lea.vmem %s0, %s199
        %s201 = smul.u32 %s18, 2
        %s202 = ssub.s32 1, %s201
        %s203 = smul.u32 %s17, %s202
        %s204 = sadd.s32 %s18, %s203
        %s205 = smul.u32 16, %s204
      $region20: #{bilstm_forward.2} parent=15 // pred_fallthru
        _
      // Predicated region
      $region21: #{bilstm_forward.2} parent=15 // pred_check
        %p206 = pneg %p76
      $region22: #{bilstm_forward.2} parent=15 // pred_check_branch
        %208 = sbr.rel (%p206) target = $region24
      $region23: #{bilstm_forward.2} parent=15 // pred_region
        %p209 = scmp.lt.s32.totalorder %s17, 1
        %s210 = scalar_select %p209, %s17, 1
        %s211 = smul.addr %s210, 64
        %s212 = smul.addr %s211, 4
        %s213 = scalar_lea.vmem %s1, %s212
      $region24: #{bilstm_forward.2} parent=15 // pred_fallthru
        _
      // Predicated region
      $region25: #{bilstm_forward.2} parent=15 // pred_check
        %p214 = pneg %p102
      $region26: #{bilstm_forward.2} parent=15 // pred_check_branch
        %216 = sbr.rel (%p214) target = $region28
      $region27: #{bilstm_forward.2} parent=15 // pred_region
        %p217 = scmp.lt.s32.totalorder %s17, 1
        %s218 = scalar_select %p217, %s17, 1
        %s219 = smul.addr %s218, 64
        %s220 = smul.addr %s219, 4
        %s221 = scalar_lea.vmem %s2, %s220
      $region28: #{bilstm_forward.2} parent=15 // pred_fallthru
        _
      // Predicated region
      $region29: #{bilstm_forward.2} parent=15 // pred_check
        %p222 = pneg %p128
      $region30: #{bilstm_forward.2} parent=15 // pred_check_branch
        %224 = sbr.rel (%p222) target = $region32
      $region31: #{bilstm_forward.2} parent=15 // pred_region
        %p225 = scmp.lt.s32.totalorder %s17, 1
        %s226 = scalar_select %p225, %s17, 1
        %s227 = smul.addr %s226, 4
        %s228 = scalar_lea.vmem %s3, %s227
      $region32: #{bilstm_forward.2} parent=15 // pred_fallthru
        _
    $region16: #{bilstm_forward.2} parent=5 // pred_fallthru
      _
    %p229 = scmp.le.s32.totalorder 1, %s10
    %p230 = scmp.lt.s32.totalorder %s10, 5
    %p231 = pnand %p229, %p230
    %p232 = pneg %p231
    // Predicated region
    $region33: #{bilstm_forward.2} parent=5 // pred_check
      _
    $region34: #{bilstm_forward.2} parent=5 // pred_check_branch
      %234 = sbr.rel (%p231) target = $region36
    $region35: #{bilstm_forward.2} parent=5 // pred_region
      %s235 = ssub.s32 %s10, 1
      %s236 = smul.u32 %s20, 2
      %s237 = ssub.s32 1, %s236
      %s238 = smul.u32 %s19, %s237
      %s239 = sadd.s32 %s20, %s238
      %s240 = smul.u32 16, %s239
      %p241 = scmp.lt.s32.totalorder %s240, 31
      %s242 = scalar_select %p241, %s240, 31
      %s243 = smul.addr %s242, 4
      %s244 = scalar_lea.vmem %s0, %s243
      %p245 = pneg %p56
      %p246 = pneg %p53
      %p247 = scmp.lt.s32.totalorder %s19, 1
      %s248 = scalar_select %p247, %s19, 1
      %s249 = smul.addr %s248, 64
      %s250 = smul.addr %s249, 4
      %s251 = scalar_lea.vmem %s1, %s250
      %p252 = pneg %p82
      %p253 = pneg %p79
      %p254 = scmp.lt.s32.totalorder %s19, 1
      %s255 = scalar_select %p254, %s19, 1
      %s256 = smul.addr %s255, 64
      %s257 = smul.addr %s256, 4
      %s258 = scalar_lea.vmem %s2, %s257
      %p259 = pneg %p108
      %p260 = pneg %p105
      %p261 = scmp.lt.s32.totalorder %s19, 1
      %s262 = scalar_select %p261, %s19, 1
      %s263 = smul.addr %s262, 4
      %s264 = scalar_lea.vmem %s3, %s263
      %p265 = pneg %p134
      %p266 = pneg %p131
      %p267 = pneg %p170
      %p268 = pneg %p167
      %s269 = smul.u32 %s20, 2
      %s270 = ssub.s32 1, %s269
      %s271 = smul.u32 %s19, %s270
      %s272 = sadd.s32 %s20, %s271
      %s273 = smul.u32 16, %s272
      %p274 = scmp.lt.s32.totalorder %s19, 1
      %s275 = scalar_select %p274, %s19, 1
      %p276 = scmp.lt.s32.totalorder %s273, 31
      %s277 = scalar_select %p276, %s273, 31
      %s278 = smul.addr %s275, 32
      %s279 = sadd.s32 %s277, %s278
      %s280 = smul.addr %s279, 4
      %s281 = scalar_lea.vmem %s4, %s280
      %s282 = smul.u32 %s20, 2
      %s283 = ssub.s32 1, %s282
      %s284 = smul.u32 %s19, %s283
      %s285 = sadd.s32 %s20, %s284
      %s286 = smul.u32 16, %s285
      %p287 = scmp.lt.s32.totalorder %s286, 31
      %s288 = scalar_select %p287, %s286, 31
      %s289 = smul.addr %s288, 4
      %s290 = scalar_lea.vmem %s0, %s289
      %s291 = smul.u32 %s20, 2
      %s292 = ssub.s32 1, %s291
      %s293 = smul.u32 %s19, %s292
      %s294 = sadd.s32 %s20, %s293
      %s295 = smul.u32 16, %s294
      %p296 = scmp.lt.s32.totalorder %s19, 1
      %s297 = scalar_select %p296, %s19, 1
      %s298 = smul.addr %s297, 64
      %s299 = smul.addr %s298, 4
      %s300 = scalar_lea.vmem %s1, %s299
      %p301 = scmp.lt.s32.totalorder %s19, 1
      %s302 = scalar_select %p301, %s19, 1
      %s303 = smul.addr %s302, 64
      %s304 = smul.addr %s303, 4
      %s305 = scalar_lea.vmem %s2, %s304
      %p306 = scmp.lt.s32.totalorder %s19, 1
      %s307 = scalar_select %p306, %s19, 1
      %s308 = smul.addr %s307, 4
      %s309 = scalar_lea.vmem %s3, %s308
      %s310 = smul.u32 %s20, 2
      %s311 = ssub.s32 1, %s310
      %s312 = smul.u32 %s19, %s311
      %s313 = sadd.s32 %s20, %s312
      %s314 = smul.u32 16, %s313
      %p315 = scmp.lt.s32.totalorder %s19, 1
      %s316 = scalar_select %p315, %s19, 1
      %p317 = scmp.lt.s32.totalorder %s314, 31
      %s318 = scalar_select %p317, %s314, 31
      %s319 = smul.addr %s316, 32
      %s320 = sadd.s32 %s318, %s319
      %s321 = smul.addr %s320, 4
      %s322 = scalar_lea.vmem %s4, %s321
      %s323 = smul.u32 %s20, 2
      %s324 = ssub.s32 1, %s323
      %s325 = smul.u32 %s19, %s324
      %s326 = sadd.s32 %s20, %s325
      %s327 = smul.u32 16, %s326
      %p329 = scmp.eq.s32.totalorder %s20, 0
      // Predicated region
      $region37: #{bilstm_forward.2} parent=35 // pred_check
        %p330 = pneg %p329
      $region38: #{bilstm_forward.2} parent=35 // pred_check_branch
        %332 = sbr.rel (%p330) target = $region40
      $region39: #{bilstm_forward.2} parent=35 // pred_region
        %333 = vst [vmem:[#allocation2] sm:$0xff] 0.0
        %334 = vst [vmem:[#allocation3] sm:$0xff] 0.0
      $region40: #{bilstm_forward.2} parent=35 // pred_fallthru
        _
      %v335 = vld [vmem:[%s290] sm:$0xf]
      %v336 = vld [vmem:[%s290 + $0x4] sm:$0xf]
      %v337 = vld [vmem:[%s290 + $0x8] sm:$0xf]
      %v338 = vld [vmem:[%s290 + $0xc] sm:$0xf]
      %v339 = vld [vmem:[%s290 + $0x10] sm:$0xf]
      %v340 = vld [vmem:[%s290 + $0x14] sm:$0xf]
      %v341 = vld [vmem:[%s290 + $0x18] sm:$0xf]
      %v342 = vld [vmem:[%s290 + $0x1c] sm:$0xf]
      %v343 = vld [vmem:[%s290 + $0x20] sm:$0xf]
      %v344 = vld [vmem:[%s290 + $0x24] sm:$0xf]
      %v345 = vld [vmem:[%s290 + $0x28] sm:$0xf]
      %v346 = vld [vmem:[%s290 + $0x2c] sm:$0xf]
      %v347 = vld [vmem:[%s290 + $0x30] sm:$0xf]
      %v348 = vld [vmem:[%s290 + $0x34] sm:$0xf]
      %v349 = vld [vmem:[%s290 + $0x38] sm:$0xf]
      %v350 = vld [vmem:[%s290 + $0x3c] sm:$0xf]
      %v351 = vld [vmem:[%s300] sm:$0xff]
      %v352 = vld [vmem:[%s300 + $0x8] sm:$0xff]
      %v353 = vld [vmem:[%s300 + $0x10] sm:$0xff]
      %v354 = vld [vmem:[%s300 + $0x18] sm:$0xff]
      %v355 = vld [vmem:[%s300 + $0x20] sm:$0xff]
      %v356 = vld [vmem:[%s300 + $0x28] sm:$0xff]
      %v357 = vld [vmem:[%s300 + $0x30] sm:$0xff]
      %v358 = vld [vmem:[%s300 + $0x38] sm:$0xff]
      %v359 = vld [vmem:[%s300 + $0x40] sm:$0xff]
      %v360 = vld [vmem:[%s300 + $0x48] sm:$0xff]
      %v361 = vld [vmem:[%s300 + $0x50] sm:$0xff]
      %v362 = vld [vmem:[%s300 + $0x58] sm:$0xff]
      %v363 = vld [vmem:[%s300 + $0x60] sm:$0xff]
      %v364 = vld [vmem:[%s300 + $0x68] sm:$0xff]
      %v365 = vld [vmem:[%s300 + $0x70] sm:$0xff]
      %v366 = vld [vmem:[%s300 + $0x78] sm:$0xff]
      %v367 = vld [vmem:[%s300 + $0x80] sm:$0xff]
      %v368 = vld [vmem:[%s300 + $0x88] sm:$0xff]
      %v369 = vld [vmem:[%s300 + $0x90] sm:$0xff]
      %v370 = vld [vmem:[%s300 + $0x98] sm:$0xff]
      %v371 = vld [vmem:[%s300 + $0xa0] sm:$0xff]
      %v372 = vld [vmem:[%s300 + $0xa8] sm:$0xff]
      %v373 = vld [vmem:[%s300 + $0xb0] sm:$0xff]
      %v374 = vld [vmem:[%s300 + $0xb8] sm:$0xff]
      %v375 = vld [vmem:[%s300 + $0xc0] sm:$0xff]
      %v376 = vld [vmem:[%s300 + $0xc8] sm:$0xff]
      %v377 = vld [vmem:[%s300 + $0xd0] sm:$0xff]
      %v378 = vld [vmem:[%s300 + $0xd8] sm:$0xff]
      %v379 = vld [vmem:[%s300 + $0xe0] sm:$0xff]
      %v380 = vld [vmem:[%s300 + $0xe8] sm:$0xff]
      %v381 = vld [vmem:[%s300 + $0xf0] sm:$0xff]
      %v382 = vld [vmem:[%s300 + $0xf8] sm:$0xff]
      %v383 = vld [vmem:[%s309] sm:$0xf]
      %v385 = vlaneseq
      %v386 = vshrl.u32 %v385, 7
      %v387 = vsub.s32 0, %v386
      %v388 = vrot.slane %v383, %v387
      %v389 = vlaneseq
      %v390 = vshrl.u32 %v389, 7
      %v391 = vsub.s32 1, %v390
      %v392 = vrot.slane %v383, %v391
      %v393 = vlaneseq
      %v394 = vshrl.u32 %v393, 7
      %v395 = vsub.s32 2, %v394
      %v396 = vrot.slane %v383, %v395
      %v397 = vlaneseq
      %v398 = vshrl.u32 %v397, 7
      %v399 = vsub.s32 3, %v398
      %v400 = vrot.slane %v383, %v399
      %v421 = vunpack.c.l.b16 %v335
      %v422 = vunpack.c.l.b16 %v336
      %v423 = vunpack.c.l.b16 %v337
      %v424 = vunpack.c.l.b16 %v338
      %v425 = vunpack.c.l.b16 %v339
      %v426 = vunpack.c.l.b16 %v340
      %v427 = vunpack.c.l.b16 %v341
      %v428 = vunpack.c.l.b16 %v342
      %v429 = vunpack.c.l.b16 %v343
      %v430 = vunpack.c.l.b16 %v344
      %v431 = vunpack.c.l.b16 %v345
      %v432 = vunpack.c.l.b16 %v346
      %v433 = vunpack.c.l.b16 %v347
      %v434 = vunpack.c.l.b16 %v348
      %v435 = vunpack.c.l.b16 %v349
      %v436 = vunpack.c.l.b16 %v350
      %v437 = vpack.c.b16 %v422, %v421
      %v438 = vpack.c.b16 %v424, %v423
      %v439 = vpack.c.b16 %v426, %v425
      %v440 = vpack.c.b16 %v428, %v427
      %v441 = vpack.c.b16 %v430, %v429
      %v442 = vpack.c.b16 %v432, %v431
      %v443 = vpack.c.b16 %v434, %v433
      %v444 = vpack.c.b16 %v436, %v435
      %v485 = vunpack.c.l.b16 %v351
      %v486 = vunpack.c.h.b16 %v351
      %v487 = vunpack.c.l.b16 %v352
      %v488 = vunpack.c.h.b16 %v352
      %v489 = vunpack.c.l.b16 %v353
      %v490 = vunpack.c.h.b16 %v353
      %v491 = vunpack.c.l.b16 %v354
      %v492 = vunpack.c.h.b16 %v354
      %v493 = vunpack.c.l.b16 %v355
      %v494 = vunpack.c.h.b16 %v355
      %v495 = vunpack.c.l.b16 %v356
      %v496 = vunpack.c.h.b16 %v356
      %v497 = vunpack.c.l.b16 %v357
      %v498 = vunpack.c.h.b16 %v357
      %v499 = vunpack.c.l.b16 %v358
      %v500 = vunpack.c.h.b16 %v358
      %v501 = vunpack.c.l.b16 %v359
      %v502 = vunpack.c.h.b16 %v359
      %v503 = vunpack.c.l.b16 %v360
      %v504 = vunpack.c.h.b16 %v360
      %v505 = vunpack.c.l.b16 %v361
      %v506 = vunpack.c.h.b16 %v361
      %v507 = vunpack.c.l.b16 %v362
      %v508 = vunpack.c.h.b16 %v362
      %v509 = vunpack.c.l.b16 %v363
      %v510 = vunpack.c.h.b16 %v363
      %v511 = vunpack.c.l.b16 %v364
      %v512 = vunpack.c.h.b16 %v364
      %v513 = vunpack.c.l.b16 %v365
      %v514 = vunpack.c.h.b16 %v365
      %v515 = vunpack.c.l.b16 %v366
      %v516 = vunpack.c.h.b16 %v366
      %v517 = vunpack.c.l.b16 %v367
      %v518 = vunpack.c.h.b16 %v367
      %v519 = vunpack.c.l.b16 %v368
      %v520 = vunpack.c.h.b16 %v368
      %v521 = vunpack.c.l.b16 %v369
      %v522 = vunpack.c.h.b16 %v369
      %v523 = vunpack.c.l.b16 %v370
      %v524 = vunpack.c.h.b16 %v370
      %v525 = vunpack.c.l.b16 %v371
      %v526 = vunpack.c.h.b16 %v371
      %v527 = vunpack.c.l.b16 %v372
      %v528 = vunpack.c.h.b16 %v372
      %v529 = vunpack.c.l.b16 %v373
      %v530 = vunpack.c.h.b16 %v373
      %v531 = vunpack.c.l.b16 %v374
      %v532 = vunpack.c.h.b16 %v374
      %v533 = vunpack.c.l.b16 %v375
      %v534 = vunpack.c.h.b16 %v375
      %v535 = vunpack.c.l.b16 %v376
      %v536 = vunpack.c.h.b16 %v376
      %v537 = vunpack.c.l.b16 %v377
      %v538 = vunpack.c.h.b16 %v377
      %v539 = vunpack.c.l.b16 %v378
      %v540 = vunpack.c.h.b16 %v378
      %v541 = vunpack.c.l.b16 %v379
      %v542 = vunpack.c.h.b16 %v379
      %v543 = vunpack.c.l.b16 %v380
      %v544 = vunpack.c.h.b16 %v380
      %v545 = vunpack.c.l.b16 %v381
      %v546 = vunpack.c.h.b16 %v381
      %v547 = vunpack.c.l.b16 %v382
      %v548 = vunpack.c.h.b16 %v382
      %v549 = vpack.c.b16 %v489, %v485
      %v550 = vpack.c.b16 %v490, %v486
      %v551 = vpack.c.b16 %v491, %v487
      %v552 = vpack.c.b16 %v492, %v488
      %v553 = vpack.c.b16 %v497, %v493
      %v554 = vpack.c.b16 %v498, %v494
      %v555 = vpack.c.b16 %v499, %v495
      %v556 = vpack.c.b16 %v500, %v496
      %v557 = vpack.c.b16 %v505, %v501
      %v558 = vpack.c.b16 %v506, %v502
      %v559 = vpack.c.b16 %v507, %v503
      %v560 = vpack.c.b16 %v508, %v504
      %v561 = vpack.c.b16 %v513, %v509
      %v562 = vpack.c.b16 %v514, %v510
      %v563 = vpack.c.b16 %v515, %v511
      %v564 = vpack.c.b16 %v516, %v512
      %v565 = vpack.c.b16 %v521, %v517
      %v566 = vpack.c.b16 %v522, %v518
      %v567 = vpack.c.b16 %v523, %v519
      %v568 = vpack.c.b16 %v524, %v520
      %v569 = vpack.c.b16 %v529, %v525
      %v570 = vpack.c.b16 %v530, %v526
      %v571 = vpack.c.b16 %v531, %v527
      %v572 = vpack.c.b16 %v532, %v528
      %v573 = vpack.c.b16 %v537, %v533
      %v574 = vpack.c.b16 %v538, %v534
      %v575 = vpack.c.b16 %v539, %v535
      %v576 = vpack.c.b16 %v540, %v536
      %v577 = vpack.c.b16 %v545, %v541
      %v578 = vpack.c.b16 %v546, %v542
      %v579 = vpack.c.b16 %v547, %v543
      %v580 = vpack.c.b16 %v548, %v544
      %613 = vmatprep.subr.bf16.mxu0 %v550
      %614 = vmatpush1.bf16.msra.mxu0 %v549
      %615 = vmatprep.subr.bf16.mxu0 %v554
      %616 = vmatpush1.bf16.msra.mxu0 %v553
      %617 = vmatprep.subr.bf16.mxu0 %v558
      %618 = vmatpush1.bf16.msra.mxu0 %v557
      %619 = vmatprep.subr.bf16.mxu0 %v562
      %620 = vmatpush1.bf16.msra.mxu0 %v561
      %621 = vmatprep.subr.bf16.mxu0 %v566
      %622 = vmatpush1.bf16.msra.mxu0 %v565
      %623 = vmatprep.subr.bf16.mxu0 %v570
      %624 = vmatpush1.bf16.msra.mxu0 %v569
      %625 = vmatprep.subr.bf16.mxu0 %v574
      %626 = vmatpush1.bf16.msra.mxu0 %v573
      %627 = vmatprep.subr.bf16.mxu0 %v578
      %628 = vmatpush1.bf16.msra.mxu0 %v577
      %629 = vmatprep.subr.bf16.mxu0 0
      %630 = vmatpush1.bf16.msra.mxu0 0
      %631 = vmatprep.subr.bf16.mxu0 0
      %632 = vmatpush1.bf16.msra.mxu0 0
      %633 = vmatprep.subr.bf16.mxu0 0
      %634 = vmatpush1.bf16.msra.mxu0 0
      %635 = vmatprep.subr.bf16.mxu0 0
      %636 = vmatpush1.bf16.msra.mxu0 0
      %637 = vmatprep.subr.bf16.mxu0 0
      %638 = vmatpush1.bf16.msra.mxu0 0
      %639 = vmatprep.subr.bf16.mxu0 0
      %640 = vmatpush1.bf16.msra.mxu0 0
      %641 = vmatprep.subr.bf16.mxu0 0
      %642 = vmatpush1.bf16.msra.mxu0 0
      %643 = vmatprep.subr.bf16.mxu0 0
      %644 = vmatpush1.bf16.msra.mxu0 0
      %645 = vmatprep.mubr.bf16.mxu0 0
      %646 = vmatmul.mubr.bf16.gmra.mrb[0].mxu0 %v437
      %v647 = vpop.f32.mrb[0].mxu0
      %v648 = vadd.f32 %v388, %v647
      %v649 = vpop.f32.mrb[0].mxu0
      %v650 = vadd.f32 %v392, %v649
      %v651 = vpop.f32.mrb[0].mxu0
      %v652 = vadd.f32 %v388, %v651
      %v653 = vpop.f32.mrb[0].mxu0
      %v654 = vadd.f32 %v392, %v653
      %655 = vmatprep.mubr.bf16.mxu0 0
      %656 = vmatmul.mubr.bf16.gmra.mrb[0].mxu0 %v438
      %v657 = vpop.f32.mrb[0].mxu0
      %v658 = vadd.f32 %v388, %v657
      %v659 = vpop.f32.mrb[0].mxu0
      %v660 = vadd.f32 %v392, %v659
      %v661 = vpop.f32.mrb[0].mxu0
      %v662 = vadd.f32 %v388, %v661
      %v663 = vpop.f32.mrb[0].mxu0
      %v664 = vadd.f32 %v392, %v663
      %665 = vmatprep.mubr.bf16.mxu0 0
      %666 = vmatmul.mubr.bf16.gmra.mrb[0].mxu0 %v439
      %v667 = vpop.f32.mrb[0].mxu0
      %v668 = vadd.f32 %v388, %v667
      %v669 = vpop.f32.mrb[0].mxu0
      %v670 = vadd.f32 %v392, %v669
      %v671 = vpop.f32.mrb[0].mxu0
      %v672 = vadd.f32 %v388, %v671
      %v673 = vpop.f32.mrb[0].mxu0
      %v674 = vadd.f32 %v392, %v673
      %675 = vmatprep.mubr.bf16.mxu0 0
      %676 = vmatmul.mubr.bf16.gmra.mrb[0].mxu0 %v440
      %v677 = vpop.f32.mrb[0].mxu0
      %v678 = vadd.f32 %v388, %v677
      %v679 = vpop.f32.mrb[0].mxu0
      %v680 = vadd.f32 %v392, %v679
      %v681 = vpop.f32.mrb[0].mxu0
      %v682 = vadd.f32 %v388, %v681
      %v683 = vpop.f32.mrb[0].mxu0
      %v684 = vadd.f32 %v392, %v683
      %685 = vmatprep.mubr.bf16.mxu0 0
      %686 = vmatmul.mubr.bf16.gmra.mrb[0].mxu0 %v441
      %v687 = vpop.f32.mrb[0].mxu0
      %v688 = vadd.f32 %v388, %v687
      %v689 = vpop.f32.mrb[0].mxu0
      %v690 = vadd.f32 %v392, %v689
      %v691 = vpop.f32.mrb[0].mxu0
      %v692 = vadd.f32 %v388, %v691
      %v693 = vpop.f32.mrb[0].mxu0
      %v694 = vadd.f32 %v392, %v693
      %695 = vmatprep.mubr.bf16.mxu0 0
      %696 = vmatmul.mubr.bf16.gmra.mrb[0].mxu0 %v442
      %v697 = vpop.f32.mrb[0].mxu0
      %v698 = vadd.f32 %v388, %v697
      %v699 = vpop.f32.mrb[0].mxu0
      %v700 = vadd.f32 %v392, %v699
      %v701 = vpop.f32.mrb[0].mxu0
      %v702 = vadd.f32 %v388, %v701
      %v703 = vpop.f32.mrb[0].mxu0
      %v704 = vadd.f32 %v392, %v703
      %705 = vmatprep.mubr.bf16.mxu0 0
      %706 = vmatmul.mubr.bf16.gmra.mrb[0].mxu0 %v443
      %v707 = vpop.f32.mrb[0].mxu0
      %v708 = vadd.f32 %v388, %v707
      %v709 = vpop.f32.mrb[0].mxu0
      %v710 = vadd.f32 %v392, %v709
      %v711 = vpop.f32.mrb[0].mxu0
      %v712 = vadd.f32 %v388, %v711
      %v713 = vpop.f32.mrb[0].mxu0
      %v714 = vadd.f32 %v392, %v713
      %715 = vmatprep.mubr.bf16.mxu0 0
      %716 = vmatmul.mubr.bf16.gmra.mrb[0].mxu0 %v444
      %v717 = vpop.f32.mrb[0].mxu0
      %v718 = vadd.f32 %v388, %v717
      %v719 = vpop.f32.mrb[0].mxu0
      %v720 = vadd.f32 %v392, %v719
      %v721 = vpop.f32.mrb[0].mxu0
      %v722 = vadd.f32 %v388, %v721
      %v723 = vpop.f32.mrb[0].mxu0
      %v724 = vadd.f32 %v392, %v723
      %725 = vdwg.mxu0
      %726 = vmatprep.subr.bf16.mxu0 %v552
      %727 = vmatpush1.bf16.msra.mxu0 %v551
      %728 = vmatprep.subr.bf16.mxu0 %v556
      %729 = vmatpush1.bf16.msra.mxu0 %v555
      %730 = vmatprep.subr.bf16.mxu0 %v560
      %731 = vmatpush1.bf16.msra.mxu0 %v559
      %732 = vmatprep.subr.bf16.mxu0 %v564
      %733 = vmatpush1.bf16.msra.mxu0 %v563
      %734 = vmatprep.subr.bf16.mxu0 %v568
      %735 = vmatpush1.bf16.msra.mxu0 %v567
      %736 = vmatprep.subr.bf16.mxu0 %v572
      %737 = vmatpush1.bf16.msra.mxu0 %v571
      %738 = vmatprep.subr.bf16.mxu0 %v576
      %739 = vmatpush1.bf16.msra.mxu0 %v575
      %740 = vmatprep.subr.bf16.mxu0 %v580
      %741 = vmatpush1.bf16.msra.mxu0 %v579
      %742 = vmatprep.subr.bf16.mxu0 0
      %743 = vmatpush1.bf16.msra.mxu0 0
      %744 = vmatprep.subr.bf16.mxu0 0
      %745 = vmatpush1.bf16.msra.mxu0 0
      %746 = vmatprep.subr.bf16.mxu0 0
      %747 = vmatpush1.bf16.msra.mxu0 0
      %748 = vmatprep.subr.bf16.mxu0 0
      %749 = vmatpush1.bf16.msra.mxu0 0
      %750 = vmatprep.subr.bf16.mxu0 0
      %751 = vmatpush1.bf16.msra.mxu0 0
      %752 = vmatprep.subr.bf16.mxu0 0
      %753 = vmatpush1.bf16.msra.mxu0 0
      %754 = vmatprep.subr.bf16.mxu0 0
      %755 = vmatpush1.bf16.msra.mxu0 0
      %756 = vmatprep.subr.bf16.mxu0 0
      %757 = vmatpush1.bf16.msra.mxu0 0
      %758 = vmatprep.mubr.bf16.mxu0 0
      %759 = vmatmul.mubr.bf16.gmra.mrb[0].mxu0 %v437
      %v760 = vpop.f32.mrb[0].mxu0
      %v761 = vadd.f32 %v396, %v760
      %v762 = vpop.f32.mrb[0].mxu0
      %v763 = vadd.f32 %v400, %v762
      %v764 = vpop.f32.mrb[0].mxu0
      %v765 = vadd.f32 %v396, %v764
      %v766 = vpop.f32.mrb[0].mxu0
      %v767 = vadd.f32 %v400, %v766
      %768 = vmatprep.mubr.bf16.mxu0 0
      %769 = vmatmul.mubr.bf16.gmra.mrb[0].mxu0 %v438
      %v770 = vpop.f32.mrb[0].mxu0
      %v771 = vadd.f32 %v396, %v770
      %v772 = vpop.f32.mrb[0].mxu0
      %v773 = vadd.f32 %v400, %v772
      %v774 = vpop.f32.mrb[0].mxu0
      %v775 = vadd.f32 %v396, %v774
      %v776 = vpop.f32.mrb[0].mxu0
      %v777 = vadd.f32 %v400, %v776
      %778 = vmatprep.mubr.bf16.mxu0 0
      %779 = vmatmul.mubr.bf16.gmra.mrb[0].mxu0 %v439
      %v780 = vpop.f32.mrb[0].mxu0
      %v781 = vadd.f32 %v396, %v780
      %v782 = vpop.f32.mrb[0].mxu0
      %v783 = vadd.f32 %v400, %v782
      %v784 = vpop.f32.mrb[0].mxu0
      %v785 = vadd.f32 %v396, %v784
      %v786 = vpop.f32.mrb[0].mxu0
      %v787 = vadd.f32 %v400, %v786
      %788 = vmatprep.mubr.bf16.mxu0 0
      %789 = vmatmul.mubr.bf16.gmra.mrb[0].mxu0 %v440
      %v790 = vpop.f32.mrb[0].mxu0
      %v791 = vadd.f32 %v396, %v790
      %v792 = vpop.f32.mrb[0].mxu0
      %v793 = vadd.f32 %v400, %v792
      %v794 = vpop.f32.mrb[0].mxu0
      %v795 = vadd.f32 %v396, %v794
      %v796 = vpop.f32.mrb[0].mxu0
      %v797 = vadd.f32 %v400, %v796
      %798 = vmatprep.mubr.bf16.mxu0 0
      %799 = vmatmul.mubr.bf16.gmra.mrb[0].mxu0 %v441
      %v800 = vpop.f32.mrb[0].mxu0
      %v801 = vadd.f32 %v396, %v800
      %v802 = vpop.f32.mrb[0].mxu0
      %v803 = vadd.f32 %v400, %v802
      %v804 = vpop.f32.mrb[0].mxu0
      %v805 = vadd.f32 %v396, %v804
      %v806 = vpop.f32.mrb[0].mxu0
      %v807 = vadd.f32 %v400, %v806
      %808 = vmatprep.mubr.bf16.mxu0 0
      %809 = vmatmul.mubr.bf16.gmra.mrb[0].mxu0 %v442
      %v810 = vpop.f32.mrb[0].mxu0
      %v811 = vadd.f32 %v396, %v810
      %v812 = vpop.f32.mrb[0].mxu0
      %v813 = vadd.f32 %v400, %v812
      %v814 = vpop.f32.mrb[0].mxu0
      %v815 = vadd.f32 %v396, %v814
      %v816 = vpop.f32.mrb[0].mxu0
      %v817 = vadd.f32 %v400, %v816
      %818 = vmatprep.mubr.bf16.mxu0 0
      %819 = vmatmul.mubr.bf16.gmra.mrb[0].mxu0 %v443
      %v820 = vpop.f32.mrb[0].mxu0
      %v821 = vadd.f32 %v396, %v820
      %v822 = vpop.f32.mrb[0].mxu0
      %v823 = vadd.f32 %v400, %v822
      %v824 = vpop.f32.mrb[0].mxu0
      %v825 = vadd.f32 %v396, %v824
      %v826 = vpop.f32.mrb[0].mxu0
      %v827 = vadd.f32 %v400, %v826
      %828 = vmatprep.mubr.bf16.mxu0 0
      %829 = vmatmul.mubr.bf16.gmra.mrb[0].mxu0 %v444
      %v830 = vpop.f32.mrb[0].mxu0
      %v831 = vadd.f32 %v396, %v830
      %v832 = vpop.f32.mrb[0].mxu0
      %v833 = vadd.f32 %v400, %v832
      %v834 = vpop.f32.mrb[0].mxu0
      %v835 = vadd.f32 %v396, %v834
      %v836 = vpop.f32.mrb[0].mxu0
      %v837 = vadd.f32 %v400, %v836
      %838 = vdwg.mxu0
      %839 = vst [vmem:[#allocation4] sm:$0xff] %v648
      %840 = vst [vmem:[#allocation4 + $0x8] sm:$0xff] %v650
      %841 = vst [vmem:[#allocation4 + $0x10] sm:$0xff] %v761
      %842 = vst [vmem:[#allocation4 + $0x18] sm:$0xff] %v763
      %843 = vst [vmem:[#allocation4 + $0x20] sm:$0xff] %v652
      %844 = vst [vmem:[#allocation4 + $0x28] sm:$0xff] %v654
      %845 = vst [vmem:[#allocation4 + $0x30] sm:$0xff] %v765
      %846 = vst [vmem:[#allocation4 + $0x38] sm:$0xff] %v767
      %847 = vst [vmem:[#allocation4 + $0x40] sm:$0xff] %v658
      %848 = vst [vmem:[#allocation4 + $0x48] sm:$0xff] %v660
      %849 = vst [vmem:[#allocation4 + $0x50] sm:$0xff] %v771
      %850 = vst [vmem:[#allocation4 + $0x58] sm:$0xff] %v773
      %851 = vst [vmem:[#allocation4 + $0x60] sm:$0xff] %v662
      %852 = vst [vmem:[#allocation4 + $0x68] sm:$0xff] %v664
      %853 = vst [vmem:[#allocation4 + $0x70] sm:$0xff] %v775
      %854 = vst [vmem:[#allocation4 + $0x78] sm:$0xff] %v777
      %855 = vst [vmem:[#allocation4 + $0x80] sm:$0xff] %v668
      %856 = vst [vmem:[#allocation4 + $0x88] sm:$0xff] %v670
      %857 = vst [vmem:[#allocation4 + $0x90] sm:$0xff] %v781
      %858 = vst [vmem:[#allocation4 + $0x98] sm:$0xff] %v783
      %859 = vst [vmem:[#allocation4 + $0xa0] sm:$0xff] %v672
      %860 = vst [vmem:[#allocation4 + $0xa8] sm:$0xff] %v674
      %861 = vst [vmem:[#allocation4 + $0xb0] sm:$0xff] %v785
      %862 = vst [vmem:[#allocation4 + $0xb8] sm:$0xff] %v787
      %863 = vst [vmem:[#allocation4 + $0xc0] sm:$0xff] %v678
      %864 = vst [vmem:[#allocation4 + $0xc8] sm:$0xff] %v680
      %865 = vst [vmem:[#allocation4 + $0xd0] sm:$0xff] %v791
      %866 = vst [vmem:[#allocation4 + $0xd8] sm:$0xff] %v793
      %867 = vst [vmem:[#allocation4 + $0xe0] sm:$0xff] %v682
      %868 = vst [vmem:[#allocation4 + $0xe8] sm:$0xff] %v684
      %869 = vst [vmem:[#allocation4 + $0xf0] sm:$0xff] %v795
      %870 = vst [vmem:[#allocation4 + $0xf8] sm:$0xff] %v797
      %871 = vst [vmem:[#allocation4 + $0x100] sm:$0xff] %v688
      %872 = vst [vmem:[#allocation4 + $0x108] sm:$0xff] %v690
      %873 = vst [vmem:[#allocation4 + $0x110] sm:$0xff] %v801
      %874 = vst [vmem:[#allocation4 + $0x118] sm:$0xff] %v803
      %875 = vst [vmem:[#allocation4 + $0x120] sm:$0xff] %v692
      %876 = vst [vmem:[#allocation4 + $0x128] sm:$0xff] %v694
      %877 = vst [vmem:[#allocation4 + $0x130] sm:$0xff] %v805
      %878 = vst [vmem:[#allocation4 + $0x138] sm:$0xff] %v807
      %879 = vst [vmem:[#allocation4 + $0x140] sm:$0xff] %v698
      %880 = vst [vmem:[#allocation4 + $0x148] sm:$0xff] %v700
      %881 = vst [vmem:[#allocation4 + $0x150] sm:$0xff] %v811
      %882 = vst [vmem:[#allocation4 + $0x158] sm:$0xff] %v813
      %883 = vst [vmem:[#allocation4 + $0x160] sm:$0xff] %v702
      %884 = vst [vmem:[#allocation4 + $0x168] sm:$0xff] %v704
      %885 = vst [vmem:[#allocation4 + $0x170] sm:$0xff] %v815
      %886 = vst [vmem:[#allocation4 + $0x178] sm:$0xff] %v817
      %887 = vst [vmem:[#allocation4 + $0x180] sm:$0xff] %v708
      %888 = vst [vmem:[#allocation4 + $0x188] sm:$0xff] %v710
      %889 = vst [vmem:[#allocation4 + $0x190] sm:$0xff] %v821
      %890 = vst [vmem:[#allocation4 + $0x198] sm:$0xff] %v823
      %891 = vst [vmem:[#allocation4 + $0x1a0] sm:$0xff] %v712
      %892 = vst [vmem:[#allocation4 + $0x1a8] sm:$0xff] %v714
      %893 = vst [vmem:[#allocation4 + $0x1b0] sm:$0xff] %v825
      %894 = vst [vmem:[#allocation4 + $0x1b8] sm:$0xff] %v827
      %895 = vst [vmem:[#allocation4 + $0x1c0] sm:$0xff] %v718
      %896 = vst [vmem:[#allocation4 + $0x1c8] sm:$0xff] %v720
      %897 = vst [vmem:[#allocation4 + $0x1d0] sm:$0xff] %v831
      %898 = vst [vmem:[#allocation4 + $0x1d8] sm:$0xff] %v833
      %899 = vst [vmem:[#allocation4 + $0x1e0] sm:$0xff] %v722
      %900 = vst [vmem:[#allocation4 + $0x1e8] sm:$0xff] %v724
      %901 = vst [vmem:[#allocation4 + $0x1f0] sm:$0xff] %v835
      %902 = vst [vmem:[#allocation4 + $0x1f8] sm:$0xff] %v837
      %s903 = smul.u32 %s19, 120
      %s904 = sshra.s32 %s903, 3
      %s905 = sand.u32 %s903, 7
      %s906 = smul.u32 %s904, 4
      %s907 = smul.addr %s906, 8
      %s908 = scalar_lea.vmem [#allocation4], %s907
      %v909 = vld [vmem:[%s908] sm:$0xff]
      %v910 = vld [vmem:[%s908 + $0x8] sm:$0xff]
      %v911 = vld [vmem:[%s908 + $0x10] sm:$0xff]
      %v912 = vld [vmem:[%s908 + $0x18] sm:$0xff]
      %v913 = vld [vmem:[#allocation2] sm:$0xff]
      %v914 = vpack.c.bf16 %v913, %v913
      %v915 = vld [vmem:[%s305] sm:$0xff]
      %v916 = vld [vmem:[%s305 + $0x8] sm:$0xff]
      %v917 = vld [vmem:[%s305 + $0x10] sm:$0xff]
      %v918 = vld [vmem:[%s305 + $0x18] sm:$0xff]
      %v919 = vld [vmem:[%s305 + $0x20] sm:$0xff]
      %v920 = vld [vmem:[%s305 + $0x28] sm:$0xff]
      %v921 = vld [vmem:[%s305 + $0x30] sm:$0xff]
      %v922 = vld [vmem:[%s305 + $0x38] sm:$0xff]
      %v923 = vld [vmem:[%s305 + $0x40] sm:$0xff]
      %v924 = vld [vmem:[%s305 + $0x48] sm:$0xff]
      %v925 = vld [vmem:[%s305 + $0x50] sm:$0xff]
      %v926 = vld [vmem:[%s305 + $0x58] sm:$0xff]
      %v927 = vld [vmem:[%s305 + $0x60] sm:$0xff]
      %v928 = vld [vmem:[%s305 + $0x68] sm:$0xff]
      %v929 = vld [vmem:[%s305 + $0x70] sm:$0xff]
      %v930 = vld [vmem:[%s305 + $0x78] sm:$0xff]
      %v931 = vld [vmem:[%s305 + $0x80] sm:$0xff]
      %v932 = vld [vmem:[%s305 + $0x88] sm:$0xff]
      %v933 = vld [vmem:[%s305 + $0x90] sm:$0xff]
      %v934 = vld [vmem:[%s305 + $0x98] sm:$0xff]
      %v935 = vld [vmem:[%s305 + $0xa0] sm:$0xff]
      %v936 = vld [vmem:[%s305 + $0xa8] sm:$0xff]
      %v937 = vld [vmem:[%s305 + $0xb0] sm:$0xff]
      %v938 = vld [vmem:[%s305 + $0xb8] sm:$0xff]
      %v939 = vld [vmem:[%s305 + $0xc0] sm:$0xff]
      %v940 = vld [vmem:[%s305 + $0xc8] sm:$0xff]
      %v941 = vld [vmem:[%s305 + $0xd0] sm:$0xff]
      %v942 = vld [vmem:[%s305 + $0xd8] sm:$0xff]
      %v943 = vld [vmem:[%s305 + $0xe0] sm:$0xff]
      %v944 = vld [vmem:[%s305 + $0xe8] sm:$0xff]
      %v945 = vld [vmem:[%s305 + $0xf0] sm:$0xff]
      %v946 = vld [vmem:[%s305 + $0xf8] sm:$0xff]
      %v979 = vunpack.c.l.b16 %v915
      %v980 = vunpack.c.h.b16 %v915
      %v981 = vunpack.c.l.b16 %v916
      %v982 = vunpack.c.h.b16 %v916
      %v983 = vunpack.c.l.b16 %v917
      %v984 = vunpack.c.h.b16 %v917
      %v985 = vunpack.c.l.b16 %v918
      %v986 = vunpack.c.h.b16 %v918
      %v987 = vunpack.c.l.b16 %v919
      %v988 = vunpack.c.h.b16 %v919
      %v989 = vunpack.c.l.b16 %v920
      %v990 = vunpack.c.h.b16 %v920
      %v991 = vunpack.c.l.b16 %v921
      %v992 = vunpack.c.h.b16 %v921
      %v993 = vunpack.c.l.b16 %v922
      %v994 = vunpack.c.h.b16 %v922
      %v995 = vunpack.c.l.b16 %v923
      %v996 = vunpack.c.h.b16 %v923
      %v997 = vunpack.c.l.b16 %v924
      %v998 = vunpack.c.h.b16 %v924
      %v999 = vunpack.c.l.b16 %v925
      %v1000 = vunpack.c.h.b16 %v925
      %v1001 = vunpack.c.l.b16 %v926
      %v1002 = vunpack.c.h.b16 %v926
      %v1003 = vunpack.c.l.b16 %v927
      %v1004 = vunpack.c.h.b16 %v927
      %v1005 = vunpack.c.l.b16 %v928
      %v1006 = vunpack.c.h.b16 %v928
      %v1007 = vunpack.c.l.b16 %v929
      %v1008 = vunpack.c.h.b16 %v929
      %v1009 = vunpack.c.l.b16 %v930
      %v1010 = vunpack.c.h.b16 %v930
      %v1011 = vunpack.c.l.b16 %v931
      %v1012 = vunpack.c.h.b16 %v931
      %v1013 = vunpack.c.l.b16 %v932
      %v1014 = vunpack.c.h.b16 %v932
      %v1015 = vunpack.c.l.b16 %v933
      %v1016 = vunpack.c.h.b16 %v933
      %v1017 = vunpack.c.l.b16 %v934
      %v1018 = vunpack.c.h.b16 %v934
      %v1019 = vunpack.c.l.b16 %v935
      %v1020 = vunpack.c.h.b16 %v935
      %v1021 = vunpack.c.l.b16 %v936
      %v1022 = vunpack.c.h.b16 %v936
      %v1023 = vunpack.c.l.b16 %v937
      %v1024 = vunpack.c.h.b16 %v937
      %v1025 = vunpack.c.l.b16 %v938
      %v1026 = vunpack.c.h.b16 %v938
      %v1027 = vunpack.c.l.b16 %v939
      %v1028 = vunpack.c.h.b16 %v939
      %v1029 = vunpack.c.l.b16 %v940
      %v1030 = vunpack.c.h.b16 %v940
      %v1031 = vunpack.c.l.b16 %v941
      %v1032 = vunpack.c.h.b16 %v941
      %v1033 = vunpack.c.l.b16 %v942
      %v1034 = vunpack.c.h.b16 %v942
      %v1035 = vunpack.c.l.b16 %v943
      %v1036 = vunpack.c.h.b16 %v943
      %v1037 = vunpack.c.l.b16 %v944
      %v1038 = vunpack.c.h.b16 %v944
      %v1039 = vunpack.c.l.b16 %v945
      %v1040 = vunpack.c.h.b16 %v945
      %v1041 = vunpack.c.l.b16 %v946
      %v1042 = vunpack.c.h.b16 %v946
      %v1043 = vpack.c.b16 %v983, %v979
      %v1044 = vpack.c.b16 %v984, %v980
      %v1045 = vpack.c.b16 %v985, %v981
      %v1046 = vpack.c.b16 %v986, %v982
      %v1047 = vpack.c.b16 %v991, %v987
      %v1048 = vpack.c.b16 %v992, %v988
      %v1049 = vpack.c.b16 %v993, %v989
      %v1050 = vpack.c.b16 %v994, %v990
      %v1051 = vpack.c.b16 %v999, %v995
      %v1052 = vpack.c.b16 %v1000, %v996
      %v1053 = vpack.c.b16 %v1001, %v997
      %v1054 = vpack.c.b16 %v1002, %v998
      %v1055 = vpack.c.b16 %v1007, %v1003
      %v1056 = vpack.c.b16 %v1008, %v1004
      %v1057 = vpack.c.b16 %v1009, %v1005
      %v1058 = vpack.c.b16 %v1010, %v1006
      %v1059 = vpack.c.b16 %v1015, %v1011
      %v1060 = vpack.c.b16 %v1016, %v1012
      %v1061 = vpack.c.b16 %v1017, %v1013
      %v1062 = vpack.c.b16 %v1018, %v1014
      %v1063 = vpack.c.b16 %v1023, %v1019
      %v1064 = vpack.c.b16 %v1024, %v1020
      %v1065 = vpack.c.b16 %v1025, %v1021
      %v1066 = vpack.c.b16 %v1026, %v1022
      %v1067 = vpack.c.b16 %v1031, %v1027
      %v1068 = vpack.c.b16 %v1032, %v1028
      %v1069 = vpack.c.b16 %v1033, %v1029
      %v1070 = vpack.c.b16 %v1034, %v1030
      %v1071 = vpack.c.b16 %v1039, %v1035
      %v1072 = vpack.c.b16 %v1040, %v1036
      %v1073 = vpack.c.b16 %v1041, %v1037
      %v1074 = vpack.c.b16 %v1042, %v1038
      %1107 = vmatprep.subr.bf16.mxu0 %v1044
      %1108 = vmatpush1.bf16.msra.mxu0 %v1043
      %1109 = vmatprep.subr.bf16.mxu0 %v1048
      %1110 = vmatpush1.bf16.msra.mxu0 %v1047
      %1111 = vmatprep.subr.bf16.mxu0 %v1052
      %1112 = vmatpush1.bf16.msra.mxu0 %v1051
      %1113 = vmatprep.subr.bf16.mxu0 %v1056
      %1114 = vmatpush1.bf16.msra.mxu0 %v1055
      %1115 = vmatprep.subr.bf16.mxu0 %v1060
      %1116 = vmatpush1.bf16.msra.mxu0 %v1059
      %1117 = vmatprep.subr.bf16.mxu0 %v1064
      %1118 = vmatpush1.bf16.msra.mxu0 %v1063
      %1119 = vmatprep.subr.bf16.mxu0 %v1068
      %1120 = vmatpush1.bf16.msra.mxu0 %v1067
      %1121 = vmatprep.subr.bf16.mxu0 %v1072
      %1122 = vmatpush1.bf16.msra.mxu0 %v1071
      %1123 = vmatprep.subr.bf16.mxu0 0
      %1124 = vmatpush1.bf16.msra.mxu0 0
      %1125 = vmatprep.subr.bf16.mxu0 0
      %1126 = vmatpush1.bf16.msra.mxu0 0
      %1127 = vmatprep.subr.bf16.mxu0 0
      %1128 = vmatpush1.bf16.msra.mxu0 0
      %1129 = vmatprep.subr.bf16.mxu0 0
      %1130 = vmatpush1.bf16.msra.mxu0 0
      %1131 = vmatprep.subr.bf16.mxu0 0
      %1132 = vmatpush1.bf16.msra.mxu0 0
      %1133 = vmatprep.subr.bf16.mxu0 0
      %1134 = vmatpush1.bf16.msra.mxu0 0
      %1135 = vmatprep.subr.bf16.mxu0 0
      %1136 = vmatpush1.bf16.msra.mxu0 0
      %1137 = vmatprep.subr.bf16.mxu0 0
      %1138 = vmatpush1.bf16.msra.mxu0 0
      %1139 = vmatprep.mubr.bf16.mxu0 0
      %1140 = vmatmul.mubr.bf16.gmra.mrb[0].mxu0 %v914
      %v1141 = vpop.f32.mrb[0].mxu0
      %v1142 = vadd.f32 0.0, %v1141
      %v1143 = vpop.f32.mrb[0].mxu0
      %v1144 = vadd.f32 0.0, %v1143
      %v1145 = vpop.f32.mrb[0].mxu0
      %v1146 = vpop.f32.mrb[0].mxu0
      %1147 = vdwg.mxu0
      %1148 = vmatprep.subr.bf16.mxu0 %v1046
      %1149 = vmatpush1.bf16.msra.mxu0 %v1045
      %1150 = vmatprep.subr.bf16.mxu0 %v1050
      %1151 = vmatpush1.bf16.msra.mxu0 %v1049
      %1152 = vmatprep.subr.bf16.mxu0 %v1054
      %1153 = vmatpush1.bf16.msra.mxu0 %v1053
      %1154 = vmatprep.subr.bf16.mxu0 %v1058
      %1155 = vmatpush1.bf16.msra.mxu0 %v1057
      %1156 = vmatprep.subr.bf16.mxu0 %v1062
      %1157 = vmatpush1.bf16.msra.mxu0 %v1061
      %1158 = vmatprep.subr.bf16.mxu0 %v1066
      %1159 = vmatpush1.bf16.msra.mxu0 %v1065
      %1160 = vmatprep.subr.bf16.mxu0 %v1070
      %1161 = vmatpush1.bf16.msra.mxu0 %v1069
      %1162 = vmatprep.subr.bf16.mxu0 %v1074
      %1163 = vmatpush1.bf16.msra.mxu0 %v1073
      %1164 = vmatprep.subr.bf16.mxu0 0
      %1165 = vmatpush1.bf16.msra.mxu0 0
      %1166 = vmatprep.subr.bf16.mxu0 0
      %1167 = vmatpush1.bf16.msra.mxu0 0
      %1168 = vmatprep.subr.bf16.mxu0 0
      %1169 = vmatpush1.bf16.msra.mxu0 0
      %1170 = vmatprep.subr.bf16.mxu0 0
      %1171 = vmatpush1.bf16.msra.mxu0 0
      %1172 = vmatprep.subr.bf16.mxu0 0
      %1173 = vmatpush1.bf16.msra.mxu0 0
      %1174 = vmatprep.subr.bf16.mxu0 0
      %1175 = vmatpush1.bf16.msra.mxu0 0
      %1176 = vmatprep.subr.bf16.mxu0 0
      %1177 = vmatpush1.bf16.msra.mxu0 0
      %1178 = vmatprep.subr.bf16.mxu0 0
      %1179 = vmatpush1.bf16.msra.mxu0 0
      %1180 = vmatprep.mubr.bf16.mxu0 0
      %1181 = vmatmul.mubr.bf16.gmra.mrb[0].mxu0 %v914
      %v1182 = vpop.f32.mrb[0].mxu0
      %v1183 = vadd.f32 0.0, %v1182
      %v1184 = vpop.f32.mrb[0].mxu0
      %v1185 = vadd.f32 0.0, %v1184
      %v1186 = vpop.f32.mrb[0].mxu0
      %v1187 = vpop.f32.mrb[0].mxu0
      %1188 = vdwg.mxu0
      %v1189 = vadd.f32 %v909, %v1142
      %v1190 = vadd.f32 %v910, %v1144
      %v1191 = vadd.f32 %v911, %v1183
      %v1192 = vadd.f32 %v912, %v1185
      %v1193 = vxor.u32 %v1189, 2147483648
      %v1194 = vmul.f32 %v1193, 1.442695
      %v1195 = vpow.pop %v1194
      %v1196 = vadd.f32 %v1195, 1.0
      %v1197 = vrcp.pop %v1196
      %v1198 = vmul.f32 1.0, %v1197
      %v1199 = vxor.u32 %v1190, 2147483648
      %v1200 = vmul.f32 %v1199, 1.442695
      %v1201 = vpow.pop %v1200
      %v1202 = vadd.f32 %v1201, 1.0
      %v1203 = vrcp.pop %v1202
      %v1204 = vmul.f32 1.0, %v1203
      %v1205 = vtanh.pop %v1191
      %v1206 = vxor.u32 %v1192, 2147483648
      %v1207 = vmul.f32 %v1206, 1.442695
      %v1208 = vpow.pop %v1207
      %v1209 = vadd.f32 %v1208, 1.0
      %v1210 = vrcp.pop %v1209
      %v1211 = vmul.f32 1.0, %v1210
      %v1212 = vld [vmem:[#allocation3] sm:$0xff]
      %v1213 = vmul.f32 %v1204, %v1212
      %v1214 = vmul.f32 %v1198, %v1205
      %v1215 = vadd.f32 %v1213, %v1214
      %v1216 = vtanh.pop %v1215
      %v1217 = vmul.f32 %v1211, %v1216
      %1218 = vst [vmem:[#allocation3] sm:$0xff] %v1215
      %1219 = vst [vmem:[#allocation2] sm:$0xff] %v1217
      %s1220 = scalar_lea.vmem [#allocation5], %s903
      %1221 = vst [vmem:[%s1220] sm:$0xff] %v1217
      %s1222 = smul.u32 %s19, 13
      %s1223 = sadd.s32 %s1222, 1
      %s1224 = smul.u32 %s1223, 8
      %s1225 = sshra.s32 %s1224, 3
      %s1226 = sand.u32 %s1224, 7
      %s1227 = smul.u32 %s1225, 4
      %s1228 = smul.addr %s1227, 8
      %s1229 = scalar_lea.vmem [#allocation4], %s1228
      %v1230 = vld [vmem:[%s1229] sm:$0xff]
      %v1231 = vld [vmem:[%s1229 + $0x8] sm:$0xff]
      %v1232 = vld [vmem:[%s1229 + $0x10] sm:$0xff]
      %v1233 = vld [vmem:[%s1229 + $0x18] sm:$0xff]
      %v1234 = vld [vmem:[#allocation2] sm:$0xff]
      %v1235 = vpack.c.bf16 %v1234, %v1234
      %v1236 = vld [vmem:[%s305] sm:$0xff]
      %v1237 = vld [vmem:[%s305 + $0x8] sm:$0xff]
      %v1238 = vld [vmem:[%s305 + $0x10] sm:$0xff]
      %v1239 = vld [vmem:[%s305 + $0x18] sm:$0xff]
      %v1240 = vld [vmem:[%s305 + $0x20] sm:$0xff]
      %v1241 = vld [vmem:[%s305 + $0x28] sm:$0xff]
      %v1242 = vld [vmem:[%s305 + $0x30] sm:$0xff]
      %v1243 = vld [vmem:[%s305 + $0x38] sm:$0xff]
      %v1244 = vld [vmem:[%s305 + $0x40] sm:$0xff]
      %v1245 = vld [vmem:[%s305 + $0x48] sm:$0xff]
      %v1246 = vld [vmem:[%s305 + $0x50] sm:$0xff]
      %v1247 = vld [vmem:[%s305 + $0x58] sm:$0xff]
      %v1248 = vld [vmem:[%s305 + $0x60] sm:$0xff]
      %v1249 = vld [vmem:[%s305 + $0x68] sm:$0xff]
      %v1250 = vld [vmem:[%s305 + $0x70] sm:$0xff]
      %v1251 = vld [vmem:[%s305 + $0x78] sm:$0xff]
      %v1252 = vld [vmem:[%s305 + $0x80] sm:$0xff]
      %v1253 = vld [vmem:[%s305 + $0x88] sm:$0xff]
      %v1254 = vld [vmem:[%s305 + $0x90] sm:$0xff]
      %v1255 = vld [vmem:[%s305 + $0x98] sm:$0xff]
      %v1256 = vld [vmem:[%s305 + $0xa0] sm:$0xff]
      %v1257 = vld [vmem:[%s305 + $0xa8] sm:$0xff]
      %v1258 = vld [vmem:[%s305 + $0xb0] sm:$0xff]
      %v1259 = vld [vmem:[%s305 + $0xb8] sm:$0xff]
      %v1260 = vld [vmem:[%s305 + $0xc0] sm:$0xff]
      %v1261 = vld [vmem:[%s305 + $0xc8] sm:$0xff]
      %v1262 = vld [vmem:[%s305 + $0xd0] sm:$0xff]
      %v1263 = vld [vmem:[%s305 + $0xd8] sm:$0xff]
      %v1264 = vld [vmem:[%s305 + $0xe0] sm:$0xff]
      %v1265 = vld [vmem:[%s305 + $0xe8] sm:$0xff]
      %v1266 = vld [vmem:[%s305 + $0xf0] sm:$0xff]
      %v1267 = vld [vmem:[%s305 + $0xf8] sm:$0xff]
      %v1300 = vunpack.c.l.b16 %v1236
      %v1301 = vunpack.c.h.b16 %v1236
      %v1302 = vunpack.c.l.b16 %v1237
      %v1303 = vunpack.c.h.b16 %v1237
      %v1304 = vunpack.c.l.b16 %v1238
      %v1305 = vunpack.c.h.b16 %v1238
      %v1306 = vunpack.c.l.b16 %v1239
      %v1307 = vunpack.c.h.b16 %v1239
      %v1308 = vunpack.c.l.b16 %v1240
      %v1309 = vunpack.c.h.b16 %v1240
      %v1310 = vunpack.c.l.b16 %v1241
      %v1311 = vunpack.c.h.b16 %v1241
      %v1312 = vunpack.c.l.b16 %v1242
      %v1313 = vunpack.c.h.b16 %v1242
      %v1314 = vunpack.c.l.b16 %v1243
      %v1315 = vunpack.c.h.b16 %v1243
      %v1316 = vunpack.c.l.b16 %v1244
      %v1317 = vunpack.c.h.b16 %v1244
      %v1318 = vunpack.c.l.b16 %v1245
      %v1319 = vunpack.c.h.b16 %v1245
      %v1320 = vunpack.c.l.b16 %v1246
      %v1321 = vunpack.c.h.b16 %v1246
      %v1322 = vunpack.c.l.b16 %v1247
      %v1323 = vunpack.c.h.b16 %v1247
      %v1324 = vunpack.c.l.b16 %v1248
      %v1325 = vunpack.c.h.b16 %v1248
      %v1326 = vunpack.c.l.b16 %v1249
      %v1327 = vunpack.c.h.b16 %v1249
      %v1328 = vunpack.c.l.b16 %v1250
      %v1329 = vunpack.c.h.b16 %v1250
      %v1330 = vunpack.c.l.b16 %v1251
      %v1331 = vunpack.c.h.b16 %v1251
      %v1332 = vunpack.c.l.b16 %v1252
      %v1333 = vunpack.c.h.b16 %v1252
      %v1334 = vunpack.c.l.b16 %v1253
      %v1335 = vunpack.c.h.b16 %v1253
      %v1336 = vunpack.c.l.b16 %v1254
      %v1337 = vunpack.c.h.b16 %v1254
      %v1338 = vunpack.c.l.b16 %v1255
      %v1339 = vunpack.c.h.b16 %v1255
      %v1340 = vunpack.c.l.b16 %v1256
      %v1341 = vunpack.c.h.b16 %v1256
      %v1342 = vunpack.c.l.b16 %v1257
      %v1343 = vunpack.c.h.b16 %v1257
      %v1344 = vunpack.c.l.b16 %v1258
      %v1345 = vunpack.c.h.b16 %v1258
      %v1346 = vunpack.c.l.b16 %v1259
      %v1347 = vunpack.c.h.b16 %v1259
      %v1348 = vunpack.c.l.b16 %v1260
      %v1349 = vunpack.c.h.b16 %v1260
      %v1350 = vunpack.c.l.b16 %v1261
      %v1351 = vunpack.c.h.b16 %v1261
      %v1352 = vunpack.c.l.b16 %v1262
      %v1353 = vunpack.c.h.b16 %v1262
      %v1354 = vunpack.c.l.b16 %v1263
      %v1355 = vunpack.c.h.b16 %v1263
      %v1356 = vunpack.c.l.b16 %v1264
      %v1357 = vunpack.c.h.b16 %v1264
      %v1358 = vunpack.c.l.b16 %v1265
      %v1359 = vunpack.c.h.b16 %v1265
      %v1360 = vunpack.c.l.b16 %v1266
      %v1361 = vunpack.c.h.b16 %v1266
      %v1362 = vunpack.c.l.b16 %v1267
      %v1363 = vunpack.c.h.b16 %v1267
      %v1364 = vpack.c.b16 %v1304, %v1300
      %v1365 = vpack.c.b16 %v1305, %v1301
      %v1366 = vpack.c.b16 %v1306, %v1302
      %v1367 = vpack.c.b16 %v1307, %v1303
      %v1368 = vpack.c.b16 %v1312, %v1308
      %v1369 = vpack.c.b16 %v1313, %v1309
      %v1370 = vpack.c.b16 %v1314, %v1310
      %v1371 = vpack.c.b16 %v1315, %v1311
      %v1372 = vpack.c.b16 %v1320, %v1316
      %v1373 = vpack.c.b16 %v1321, %v1317
      %v1374 = vpack.c.b16 %v1322, %v1318
      %v1375 = vpack.c.b16 %v1323, %v1319
      %v1376 = vpack.c.b16 %v1328, %v1324
      %v1377 = vpack.c.b16 %v1329, %v1325
      %v1378 = vpack.c.b16 %v1330, %v1326
      %v1379 = vpack.c.b16 %v1331, %v1327
      %v1380 = vpack.c.b16 %v1336, %v1332
      %v1381 = vpack.c.b16 %v1337, %v1333
      %v1382 = vpack.c.b16 %v1338, %v1334
      %v1383 = vpack.c.b16 %v1339, %v1335
      %v1384 = vpack.c.b16 %v1344, %v1340
      %v1385 = vpack.c.b16 %v1345, %v1341
      %v1386 = vpack.c.b16 %v1346, %v1342
      %v1387 = vpack.c.b16 %v1347, %v1343
      %v1388 = vpack.c.b16 %v1352, %v1348
      %v1389 = vpack.c.b16 %v1353, %v1349
      %v1390 = vpack.c.b16 %v1354, %v1350
      %v1391 = vpack.c.b16 %v1355, %v1351
      %v1392 = vpack.c.b16 %v1360, %v1356
      %v1393 = vpack.c.b16 %v1361, %v1357
      %v1394 = vpack.c.b16 %v1362, %v1358
      %v1395 = vpack.c.b16 %v1363, %v1359
      %1428 = vmatprep.subr.bf16.mxu0 %v1365
      %1429 = vmatpush1.bf16.msra.mxu0 %v1364
      %1430 = vmatprep.subr.bf16.mxu0 %v1369
      %1431 = vmatpush1.bf16.msra.mxu0 %v1368
      %1432 = vmatprep.subr.bf16.mxu0 %v1373
      %1433 = vmatpush1.bf16.msra.mxu0 %v1372
      %1434 = vmatprep.subr.bf16.mxu0 %v1377
      %1435 = vmatpush1.bf16.msra.mxu0 %v1376
      %1436 = vmatprep.subr.bf16.mxu0 %v1381
      %1437 = vmatpush1.bf16.msra.mxu0 %v1380
      %1438 = vmatprep.subr.bf16.mxu0 %v1385
      %1439 = vmatpush1.bf16.msra.mxu0 %v1384
      %1440 = vmatprep.subr.bf16.mxu0 %v1389
      %1441 = vmatpush1.bf16.msra.mxu0 %v1388
      %1442 = vmatprep.subr.bf16.mxu0 %v1393
      %1443 = vmatpush1.bf16.msra.mxu0 %v1392
      %1444 = vmatprep.subr.bf16.mxu0 0
      %1445 = vmatpush1.bf16.msra.mxu0 0
      %1446 = vmatprep.subr.bf16.mxu0 0
      %1447 = vmatpush1.bf16.msra.mxu0 0
      %1448 = vmatprep.subr.bf16.mxu0 0
      %1449 = vmatpush1.bf16.msra.mxu0 0
      %1450 = vmatprep.subr.bf16.mxu0 0
      %1451 = vmatpush1.bf16.msra.mxu0 0
      %1452 = vmatprep.subr.bf16.mxu0 0
      %1453 = vmatpush1.bf16.msra.mxu0 0
      %1454 = vmatprep.subr.bf16.mxu0 0
      %1455 = vmatpush1.bf16.msra.mxu0 0
      %1456 = vmatprep.subr.bf16.mxu0 0
      %1457 = vmatpush1.bf16.msra.mxu0 0
      %1458 = vmatprep.subr.bf16.mxu0 0
      %1459 = vmatpush1.bf16.msra.mxu0 0
      %1460 = vmatprep.mubr.bf16.mxu0 0
      %1461 = vmatmul.mubr.bf16.gmra.mrb[0].mxu0 %v1235
      %v1462 = vpop.f32.mrb[0].mxu0
      %v1463 = vadd.f32 0.0, %v1462
      %v1464 = vpop.f32.mrb[0].mxu0
      %v1465 = vadd.f32 0.0, %v1464
      %v1466 = vpop.f32.mrb[0].mxu0
      %v1467 = vpop.f32.mrb[0].mxu0
      %1468 = vdwg.mxu0
      %1469 = vmatprep.subr.bf16.mxu0 %v1367
      %1470 = vmatpush1.bf16.msra.mxu0 %v1366
      %1471 = vmatprep.subr.bf16.mxu0 %v1371
      %1472 = vmatpush1.bf16.msra.mxu0 %v1370
      %1473 = vmatprep.subr.bf16.mxu0 %v1375
      %1474 = vmatpush1.bf16.msra.mxu0 %v1374
      %1475 = vmatprep.subr.bf16.mxu0 %v1379
      %1476 = vmatpush1.bf16.msra.mxu0 %v1378
      %1477 = vmatprep.subr.bf16.mxu0 %v1383
      %1478 = vmatpush1.bf16.msra.mxu0 %v1382
      %1479 = vmatprep.subr.bf16.mxu0 %v1387
      %1480 = vmatpush1.bf16.msra.mxu0 %v1386
      %1481 = vmatprep.subr.bf16.mxu0 %v1391
      %1482 = vmatpush1.bf16.msra.mxu0 %v1390
      %1483 = vmatprep.subr.bf16.mxu0 %v1395
      %1484 = vmatpush1.bf16.msra.mxu0 %v1394
      %1485 = vmatprep.subr.bf16.mxu0 0
      %1486 = vmatpush1.bf16.msra.mxu0 0
      %1487 = vmatprep.subr.bf16.mxu0 0
      %1488 = vmatpush1.bf16.msra.mxu0 0
      %1489 = vmatprep.subr.bf16.mxu0 0
      %1490 = vmatpush1.bf16.msra.mxu0 0
      %1491 = vmatprep.subr.bf16.mxu0 0
      %1492 = vmatpush1.bf16.msra.mxu0 0
      %1493 = vmatprep.subr.bf16.mxu0 0
      %1494 = vmatpush1.bf16.msra.mxu0 0
      %1495 = vmatprep.subr.bf16.mxu0 0
      %1496 = vmatpush1.bf16.msra.mxu0 0
      %1497 = vmatprep.subr.bf16.mxu0 0
      %1498 = vmatpush1.bf16.msra.mxu0 0
      %1499 = vmatprep.subr.bf16.mxu0 0
      %1500 = vmatpush1.bf16.msra.mxu0 0
      %1501 = vmatprep.mubr.bf16.mxu0 0
      %1502 = vmatmul.mubr.bf16.gmra.mrb[0].mxu0 %v1235
      %v1503 = vpop.f32.mrb[0].mxu0
      %v1504 = vadd.f32 0.0, %v1503
      %v1505 = vpop.f32.mrb[0].mxu0
      %v1506 = vadd.f32 0.0, %v1505
      %v1507 = vpop.f32.mrb[0].mxu0
      %v1508 = vpop.f32.mrb[0].mxu0
      %1509 = vdwg.mxu0
      %v1510 = vadd.f32 %v1230, %v1463
      %v1511 = vadd.f32 %v1231, %v1465
      %v1512 = vadd.f32 %v1232, %v1504
      %v1513 = vadd.f32 %v1233, %v1506
      %v1514 = vxor.u32 %v1510, 2147483648
      %v1515 = vmul.f32 %v1514, 1.442695
      %v1516 = vpow.pop %v1515
      %v1517 = vadd.f32 %v1516, 1.0
      %v1518 = vrcp.pop %v1517
      %v1519 = vmul.f32 1.0, %v1518
      %v1520 = vxor.u32 %v1511, 2147483648
      %v1521 = vmul.f32 %v1520, 1.442695
      %v1522 = vpow.pop %v1521
      %v1523 = vadd.f32 %v1522, 1.0
      %v1524 = vrcp.pop %v1523
      %v1525 = vmul.f32 1.0, %v1524
      %v1526 = vtanh.pop %v1512
      %v1527 = vxor.u32 %v1513, 2147483648
      %v1528 = vmul.f32 %v1527, 1.442695
      %v1529 = vpow.pop %v1528
      %v1530 = vadd.f32 %v1529, 1.0
      %v1531 = vrcp.pop %v1530
      %v1532 = vmul.f32 1.0, %v1531
      %v1533 = vld [vmem:[#allocation3] sm:$0xff]
      %v1534 = vmul.f32 %v1525, %v1533
      %v1535 = vmul.f32 %v1519, %v1526
      %v1536 = vadd.f32 %v1534, %v1535
      %v1537 = vtanh.pop %v1536
      %v1538 = vmul.f32 %v1532, %v1537
      %1539 = vst [vmem:[#allocation3] sm:$0xff] %v1536
      %1540 = vst [vmem:[#allocation2] sm:$0xff] %v1538
      %s1541 = scalar_lea.vmem [#allocation5], %s1224
      %1542 = vst [vmem:[%s1541] sm:$0xff] %v1538
      %s1543 = smul.u32 %s19, 11
      %s1544 = sadd.s32 %s1543, 2
      %s1545 = smul.u32 %s1544, 8
      %s1546 = sshra.s32 %s1545, 3
      %s1547 = sand.u32 %s1545, 7
      %s1548 = smul.u32 %s1546, 4
      %s1549 = smul.addr %s1548, 8
      %s1550 = scalar_lea.vmem [#allocation4], %s1549
      %v1551 = vld [vmem:[%s1550] sm:$0xff]
      %v1552 = vld [vmem:[%s1550 + $0x8] sm:$0xff]
      %v1553 = vld [vmem:[%s1550 + $0x10] sm:$0xff]
      %v1554 = vld [vmem:[%s1550 + $0x18] sm:$0xff]
      %v1555 = vld [vmem:[#allocation2] sm:$0xff]
      %v1556 = vpack.c.bf16 %v1555, %v1555
      %v1557 = vld [vmem:[%s305] sm:$0xff]
      %v1558 = vld [vmem:[%s305 + $0x8] sm:$0xff]
      %v1559 = vld [vmem:[%s305 + $0x10] sm:$0xff]
      %v1560 = vld [vmem:[%s305 + $0x18] sm:$0xff]
      %v1561 = vld [vmem:[%s305 + $0x20] sm:$0xff]
      %v1562 = vld [vmem:[%s305 + $0x28] sm:$0xff]
      %v1563 = vld [vmem:[%s305 + $0x30] sm:$0xff]
      %v1564 = vld [vmem:[%s305 + $0x38] sm:$0xff]
      %v1565 = vld [vmem:[%s305 + $0x40] sm:$0xff]
      %v1566 = vld [vmem:[%s305 + $0x48] sm:$0xff]
      %v1567 = vld [vmem:[%s305 + $0x50] sm:$0xff]
      %v1568 = vld [vmem:[%s305 + $0x58] sm:$0xff]
      %v1569 = vld [vmem:[%s305 + $0x60] sm:$0xff]
      %v1570 = vld [vmem:[%s305 + $0x68] sm:$0xff]
      %v1571 = vld [vmem:[%s305 + $0x70] sm:$0xff]
      %v1572 = vld [vmem:[%s305 + $0x78] sm:$0xff]
      %v1573 = vld [vmem:[%s305 + $0x80] sm:$0xff]
      %v1574 = vld [vmem:[%s305 + $0x88] sm:$0xff]
      %v1575 = vld [vmem:[%s305 + $0x90] sm:$0xff]
      %v1576 = vld [vmem:[%s305 + $0x98] sm:$0xff]
      %v1577 = vld [vmem:[%s305 + $0xa0] sm:$0xff]
      %v1578 = vld [vmem:[%s305 + $0xa8] sm:$0xff]
      %v1579 = vld [vmem:[%s305 + $0xb0] sm:$0xff]
      %v1580 = vld [vmem:[%s305 + $0xb8] sm:$0xff]
      %v1581 = vld [vmem:[%s305 + $0xc0] sm:$0xff]
      %v1582 = vld [vmem:[%s305 + $0xc8] sm:$0xff]
      %v1583 = vld [vmem:[%s305 + $0xd0] sm:$0xff]
      %v1584 = vld [vmem:[%s305 + $0xd8] sm:$0xff]
      %v1585 = vld [vmem:[%s305 + $0xe0] sm:$0xff]
      %v1586 = vld [vmem:[%s305 + $0xe8] sm:$0xff]
      %v1587 = vld [vmem:[%s305 + $0xf0] sm:$0xff]
      %v1588 = vld [vmem:[%s305 + $0xf8] sm:$0xff]
      %v1621 = vunpack.c.l.b16 %v1557
      %v1622 = vunpack.c.h.b16 %v1557
      %v1623 = vunpack.c.l.b16 %v1558
      %v1624 = vunpack.c.h.b16 %v1558
      %v1625 = vunpack.c.l.b16 %v1559
      %v1626 = vunpack.c.h.b16 %v1559
      %v1627 = vunpack.c.l.b16 %v1560
      %v1628 = vunpack.c.h.b16 %v1560
      %v1629 = vunpack.c.l.b16 %v1561
      %v1630 = vunpack.c.h.b16 %v1561
      %v1631 = vunpack.c.l.b16 %v1562
      %v1632 = vunpack.c.h.b16 %v1562
      %v1633 = vunpack.c.l.b16 %v1563
      %v1634 = vunpack.c.h.b16 %v1563
      %v1635 = vunpack.c.l.b16 %v1564
      %v1636 = vunpack.c.h.b16 %v1564
      %v1637 = vunpack.c.l.b16 %v1565
      %v1638 = vunpack.c.h.b16 %v1565
      %v1639 = vunpack.c.l.b16 %v1566
      %v1640 = vunpack.c.h.b16 %v1566
      %v1641 = vunpack.c.l.b16 %v1567
      %v1642 = vunpack.c.h.b16 %v1567
      %v1643 = vunpack.c.l.b16 %v1568
      %v1644 = vunpack.c.h.b16 %v1568
      %v1645 = vunpack.c.l.b16 %v1569
      %v1646 = vunpack.c.h.b16 %v1569
      %v1647 = vunpack.c.l.b16 %v1570
      %v1648 = vunpack.c.h.b16 %v1570
      %v1649 = vunpack.c.l.b16 %v1571
      %v1650 = vunpack.c.h.b16 %v1571
      %v1651 = vunpack.c.l.b16 %v1572
      %v1652 = vunpack.c.h.b16 %v1572
      %v1653 = vunpack.c.l.b16 %v1573
      %v1654 = vunpack.c.h.b16 %v1573
      %v1655 = vunpack.c.l.b16 %v1574
      %v1656 = vunpack.c.h.b16 %v1574
      %v1657 = vunpack.c.l.b16 %v1575
      %v1658 = vunpack.c.h.b16 %v1575
      %v1659 = vunpack.c.l.b16 %v1576
      %v1660 = vunpack.c.h.b16 %v1576
      %v1661 = vunpack.c.l.b16 %v1577
      %v1662 = vunpack.c.h.b16 %v1577
      %v1663 = vunpack.c.l.b16 %v1578
      %v1664 = vunpack.c.h.b16 %v1578
      %v1665 = vunpack.c.l.b16 %v1579
      %v1666 = vunpack.c.h.b16 %v1579
      %v1667 = vunpack.c.l.b16 %v1580
      %v1668 = vunpack.c.h.b16 %v1580
      %v1669 = vunpack.c.l.b16 %v1581
      %v1670 = vunpack.c.h.b16 %v1581
      %v1671 = vunpack.c.l.b16 %v1582
      %v1672 = vunpack.c.h.b16 %v1582
      %v1673 = vunpack.c.l.b16 %v1583
      %v1674 = vunpack.c.h.b16 %v1583
      %v1675 = vunpack.c.l.b16 %v1584
      %v1676 = vunpack.c.h.b16 %v1584
      %v1677 = vunpack.c.l.b16 %v1585
      %v1678 = vunpack.c.h.b16 %v1585
      %v1679 = vunpack.c.l.b16 %v1586
      %v1680 = vunpack.c.h.b16 %v1586
      %v1681 = vunpack.c.l.b16 %v1587
      %v1682 = vunpack.c.h.b16 %v1587
      %v1683 = vunpack.c.l.b16 %v1588
      %v1684 = vunpack.c.h.b16 %v1588
      %v1685 = vpack.c.b16 %v1625, %v1621
      %v1686 = vpack.c.b16 %v1626, %v1622
      %v1687 = vpack.c.b16 %v1627, %v1623
      %v1688 = vpack.c.b16 %v1628, %v1624
      %v1689 = vpack.c.b16 %v1633, %v1629
      %v1690 = vpack.c.b16 %v1634, %v1630
      %v1691 = vpack.c.b16 %v1635, %v1631
      %v1692 = vpack.c.b16 %v1636, %v1632
      %v1693 = vpack.c.b16 %v1641, %v1637
      %v1694 = vpack.c.b16 %v1642, %v1638
      %v1695 = vpack.c.b16 %v1643, %v1639
      %v1696 = vpack.c.b16 %v1644, %v1640
      %v1697 = vpack.c.b16 %v1649, %v1645
      %v1698 = vpack.c.b16 %v1650, %v1646
      %v1699 = vpack.c.b16 %v1651, %v1647
      %v1700 = vpack.c.b16 %v1652, %v1648
      %v1701 = vpack.c.b16 %v1657, %v1653
      %v1702 = vpack.c.b16 %v1658, %v1654
      %v1703 = vpack.c.b16 %v1659, %v1655
      %v1704 = vpack.c.b16 %v1660, %v1656
      %v1705 = vpack.c.b16 %v1665, %v1661
      %v1706 = vpack.c.b16 %v1666, %v1662
      %v1707 = vpack.c.b16 %v1667, %v1663
      %v1708 = vpack.c.b16 %v1668, %v1664
      %v1709 = vpack.c.b16 %v1673, %v1669
      %v1710 = vpack.c.b16 %v1674, %v1670
      %v1711 = vpack.c.b16 %v1675, %v1671
      %v1712 = vpack.c.b16 %v1676, %v1672
      %v1713 = vpack.c.b16 %v1681, %v1677
      %v1714 = vpack.c.b16 %v1682, %v1678
      %v1715 = vpack.c.b16 %v1683, %v1679
      %v1716 = vpack.c.b16 %v1684, %v1680
      %1749 = vmatprep.subr.bf16.mxu0 %v1686
      %1750 = vmatpush1.bf16.msra.mxu0 %v1685
      %1751 = vmatprep.subr.bf16.mxu0 %v1690
      %1752 = vmatpush1.bf16.msra.mxu0 %v1689
      %1753 = vmatprep.subr.bf16.mxu0 %v1694
      %1754 = vmatpush1.bf16.msra.mxu0 %v1693
      %1755 = vmatprep.subr.bf16.mxu0 %v1698
      %1756 = vmatpush1.bf16.msra.mxu0 %v1697
      %1757 = vmatprep.subr.bf16.mxu0 %v1702
      %1758 = vmatpush1.bf16.msra.mxu0 %v1701
      %1759 = vmatprep.subr.bf16.mxu0 %v1706
      %1760 = vmatpush1.bf16.msra.mxu0 %v1705
      %1761 = vmatprep.subr.bf16.mxu0 %v1710
      %1762 = vmatpush1.bf16.msra.mxu0 %v1709
      %1763 = vmatprep.subr.bf16.mxu0 %v1714
      %1764 = vmatpush1.bf16.msra.mxu0 %v1713
      %1765 = vmatprep.subr.bf16.mxu0 0
      %1766 = vmatpush1.bf16.msra.mxu0 0
      %1767 = vmatprep.subr.bf16.mxu0 0
      %1768 = vmatpush1.bf16.msra.mxu0 0
      %1769 = vmatprep.subr.bf16.mxu0 0
      %1770 = vmatpush1.bf16.msra.mxu0 0
      %1771 = vmatprep.subr.bf16.mxu0 0
      %1772 = vmatpush1.bf16.msra.mxu0 0
      %1773 = vmatprep.subr.bf16.mxu0 0
      %1774 = vmatpush1.bf16.msra.mxu0 0
      %1775 = vmatprep.subr.bf16.mxu0 0
      %1776 = vmatpush1.bf16.msra.mxu0 0
      %1777 = vmatprep.subr.bf16.mxu0 0
      %1778 = vmatpush1.bf16.msra.mxu0 0
      %1779 = vmatprep.subr.bf16.mxu0 0
      %1780 = vmatpush1.bf16.msra.mxu0 0
      %1781 = vmatprep.mubr.bf16.mxu0 0
      %1782 = vmatmul.mubr.bf16.gmra.mrb[0].mxu0 %v1556
      %v1783 = vpop.f32.mrb[0].mxu0
      %v1784 = vadd.f32 0.0, %v1783
      %v1785 = vpop.f32.mrb[0].mxu0
      %v1786 = vadd.f32 0.0, %v1785
      %v1787 = vpop.f32.mrb[0].mxu0
      %v1788 = vpop.f32.mrb[0].mxu0
      %1789 = vdwg.mxu0
      %1790 = vmatprep.subr.bf16.mxu0 %v1688
      %1791 = vmatpush1.bf16.msra.mxu0 %v1687
      %1792 = vmatprep.subr.bf16.mxu0 %v1692
      %1793 = vmatpush1.bf16.msra.mxu0 %v1691
      %1794 = vmatprep.subr.bf16.mxu0 %v1696
      %1795 = vmatpush1.bf16.msra.mxu0 %v1695
      %1796 = vmatprep.subr.bf16.mxu0 %v1700
      %1797 = vmatpush1.bf16.msra.mxu0 %v1699
      %1798 = vmatprep.subr.bf16.mxu0 %v1704
      %1799 = vmatpush1.bf16.msra.mxu0 %v1703
      %1800 = vmatprep.subr.bf16.mxu0 %v1708
      %1801 = vmatpush1.bf16.msra.mxu0 %v1707
      %1802 = vmatprep.subr.bf16.mxu0 %v1712
      %1803 = vmatpush1.bf16.msra.mxu0 %v1711
      %1804 = vmatprep.subr.bf16.mxu0 %v1716
      %1805 = vmatpush1.bf16.msra.mxu0 %v1715
      %1806 = vmatprep.subr.bf16.mxu0 0
      %1807 = vmatpush1.bf16.msra.mxu0 0
      %1808 = vmatprep.subr.bf16.mxu0 0
      %1809 = vmatpush1.bf16.msra.mxu0 0
      %1810 = vmatprep.subr.bf16.mxu0 0
      %1811 = vmatpush1.bf16.msra.mxu0 0
      %1812 = vmatprep.subr.bf16.mxu0 0
      %1813 = vmatpush1.bf16.msra.mxu0 0
      %1814 = vmatprep.subr.bf16.mxu0 0
      %1815 = vmatpush1.bf16.msra.mxu0 0
      %1816 = vmatprep.subr.bf16.mxu0 0
      %1817 = vmatpush1.bf16.msra.mxu0 0
      %1818 = vmatprep.subr.bf16.mxu0 0
      %1819 = vmatpush1.bf16.msra.mxu0 0
      %1820 = vmatprep.subr.bf16.mxu0 0
      %1821 = vmatpush1.bf16.msra.mxu0 0
      %1822 = vmatprep.mubr.bf16.mxu0 0
      %1823 = vmatmul.mubr.bf16.gmra.mrb[0].mxu0 %v1556
      %v1824 = vpop.f32.mrb[0].mxu0
      %v1825 = vadd.f32 0.0, %v1824
      %v1826 = vpop.f32.mrb[0].mxu0
      %v1827 = vadd.f32 0.0, %v1826
      %v1828 = vpop.f32.mrb[0].mxu0
      %v1829 = vpop.f32.mrb[0].mxu0
      %1830 = vdwg.mxu0
      %v1831 = vadd.f32 %v1551, %v1784
      %v1832 = vadd.f32 %v1552, %v1786
      %v1833 = vadd.f32 %v1553, %v1825
      %v1834 = vadd.f32 %v1554, %v1827
      %v1835 = vxor.u32 %v1831, 2147483648
      %v1836 = vmul.f32 %v1835, 1.442695
      %v1837 = vpow.pop %v1836
      %v1838 = vadd.f32 %v1837, 1.0
      %v1839 = vrcp.pop %v1838
      %v1840 = vmul.f32 1.0, %v1839
      %v1841 = vxor.u32 %v1832, 2147483648
      %v1842 = vmul.f32 %v1841, 1.442695
      %v1843 = vpow.pop %v1842
      %v1844 = vadd.f32 %v1843, 1.0
      %v1845 = vrcp.pop %v1844
      %v1846 = vmul.f32 1.0, %v1845
      %v1847 = vtanh.pop %v1833
      %v1848 = vxor.u32 %v1834, 2147483648
      %v1849 = vmul.f32 %v1848, 1.442695
      %v1850 = vpow.pop %v1849
      %v1851 = vadd.f32 %v1850, 1.0
      %v1852 = vrcp.pop %v1851
      %v1853 = vmul.f32 1.0, %v1852
      %v1854 = vld [vmem:[#allocation3] sm:$0xff]
      %v1855 = vmul.f32 %v1846, %v1854
      %v1856 = vmul.f32 %v1840, %v1847
      %v1857 = vadd.f32 %v1855, %v1856
      %v1858 = vtanh.pop %v1857
      %v1859 = vmul.f32 %v1853, %v1858
      %1860 = vst [vmem:[#allocation3] sm:$0xff] %v1857
      %1861 = vst [vmem:[#allocation2] sm:$0xff] %v1859
      %s1862 = scalar_lea.vmem [#allocation5], %s1545
      %1863 = vst [vmem:[%s1862] sm:$0xff] %v1859
      %s1864 = smul.u32 %s19, 9
      %s1865 = sadd.s32 %s1864, 3
      %s1866 = smul.u32 %s1865, 8
      %s1867 = sshra.s32 %s1866, 3
      %s1868 = sand.u32 %s1866, 7
      %s1869 = smul.u32 %s1867, 4
      %s1870 = smul.addr %s1869, 8
      %s1871 = scalar_lea.vmem [#allocation4], %s1870
      %v1872 = vld [vmem:[%s1871] sm:$0xff]
      %v1873 = vld [vmem:[%s1871 + $0x8] sm:$0xff]
      %v1874 = vld [vmem:[%s1871 + $0x10] sm:$0xff]
      %v1875 = vld [vmem:[%s1871 + $0x18] sm:$0xff]
      %v1876 = vld [vmem:[#allocation2] sm:$0xff]
      %v1877 = vpack.c.bf16 %v1876, %v1876
      %v1878 = vld [vmem:[%s305] sm:$0xff]
      %v1879 = vld [vmem:[%s305 + $0x8] sm:$0xff]
      %v1880 = vld [vmem:[%s305 + $0x10] sm:$0xff]
      %v1881 = vld [vmem:[%s305 + $0x18] sm:$0xff]
      %v1882 = vld [vmem:[%s305 + $0x20] sm:$0xff]
      %v1883 = vld [vmem:[%s305 + $0x28] sm:$0xff]
      %v1884 = vld [vmem:[%s305 + $0x30] sm:$0xff]
      %v1885 = vld [vmem:[%s305 + $0x38] sm:$0xff]
      %v1886 = vld [vmem:[%s305 + $0x40] sm:$0xff]
      %v1887 = vld [vmem:[%s305 + $0x48] sm:$0xff]
      %v1888 = vld [vmem:[%s305 + $0x50] sm:$0xff]
      %v1889 = vld [vmem:[%s305 + $0x58] sm:$0xff]
      %v1890 = vld [vmem:[%s305 + $0x60] sm:$0xff]
      %v1891 = vld [vmem:[%s305 + $0x68] sm:$0xff]
      %v1892 = vld [vmem:[%s305 + $0x70] sm:$0xff]
      %v1893 = vld [vmem:[%s305 + $0x78] sm:$0xff]
      %v1894 = vld [vmem:[%s305 + $0x80] sm:$0xff]
      %v1895 = vld [vmem:[%s305 + $0x88] sm:$0xff]
      %v1896 = vld [vmem:[%s305 + $0x90] sm:$0xff]
      %v1897 = vld [vmem:[%s305 + $0x98] sm:$0xff]
      %v1898 = vld [vmem:[%s305 + $0xa0] sm:$0xff]
      %v1899 = vld [vmem:[%s305 + $0xa8] sm:$0xff]
      %v1900 = vld [vmem:[%s305 + $0xb0] sm:$0xff]
      %v1901 = vld [vmem:[%s305 + $0xb8] sm:$0xff]
      %v1902 = vld [vmem:[%s305 + $0xc0] sm:$0xff]
      %v1903 = vld [vmem:[%s305 + $0xc8] sm:$0xff]
      %v1904 = vld [vmem:[%s305 + $0xd0] sm:$0xff]
      %v1905 = vld [vmem:[%s305 + $0xd8] sm:$0xff]
      %v1906 = vld [vmem:[%s305 + $0xe0] sm:$0xff]
      %v1907 = vld [vmem:[%s305 + $0xe8] sm:$0xff]
      %v1908 = vld [vmem:[%s305 + $0xf0] sm:$0xff]
      %v1909 = vld [vmem:[%s305 + $0xf8] sm:$0xff]
      %v1942 = vunpack.c.l.b16 %v1878
      %v1943 = vunpack.c.h.b16 %v1878
      %v1944 = vunpack.c.l.b16 %v1879
      %v1945 = vunpack.c.h.b16 %v1879
      %v1946 = vunpack.c.l.b16 %v1880
      %v1947 = vunpack.c.h.b16 %v1880
      %v1948 = vunpack.c.l.b16 %v1881
      %v1949 = vunpack.c.h.b16 %v1881
      %v1950 = vunpack.c.l.b16 %v1882
      %v1951 = vunpack.c.h.b16 %v1882
      %v1952 = vunpack.c.l.b16 %v1883
      %v1953 = vunpack.c.h.b16 %v1883
      %v1954 = vunpack.c.l.b16 %v1884
      %v1955 = vunpack.c.h.b16 %v1884
      %v1956 = vunpack.c.l.b16 %v1885
      %v1957 = vunpack.c.h.b16 %v1885
      %v1958 = vunpack.c.l.b16 %v1886
      %v1959 = vunpack.c.h.b16 %v1886
      %v1960 = vunpack.c.l.b16 %v1887
      %v1961 = vunpack.c.h.b16 %v1887
      %v1962 = vunpack.c.l.b16 %v1888
      %v1963 = vunpack.c.h.b16 %v1888
      %v1964 = vunpack.c.l.b16 %v1889
      %v1965 = vunpack.c.h.b16 %v1889
      %v1966 = vunpack.c.l.b16 %v1890
      %v1967 = vunpack.c.h.b16 %v1890
      %v1968 = vunpack.c.l.b16 %v1891
      %v1969 = vunpack.c.h.b16 %v1891
      %v1970 = vunpack.c.l.b16 %v1892
      %v1971 = vunpack.c.h.b16 %v1892
      %v1972 = vunpack.c.l.b16 %v1893
      %v1973 = vunpack.c.h.b16 %v1893
      %v1974 = vunpack.c.l.b16 %v1894
      %v1975 = vunpack.c.h.b16 %v1894
      %v1976 = vunpack.c.l.b16 %v1895
      %v1977 = vunpack.c.h.b16 %v1895
      %v1978 = vunpack.c.l.b16 %v1896
      %v1979 = vunpack.c.h.b16 %v1896
      %v1980 = vunpack.c.l.b16 %v1897
      %v1981 = vunpack.c.h.b16 %v1897
      %v1982 = vunpack.c.l.b16 %v1898
      %v1983 = vunpack.c.h.b16 %v1898
      %v1984 = vunpack.c.l.b16 %v1899
      %v1985 = vunpack.c.h.b16 %v1899
      %v1986 = vunpack.c.l.b16 %v1900
      %v1987 = vunpack.c.h.b16 %v1900
      %v1988 = vunpack.c.l.b16 %v1901
      %v1989 = vunpack.c.h.b16 %v1901
      %v1990 = vunpack.c.l.b16 %v1902
      %v1991 = vunpack.c.h.b16 %v1902
      %v1992 = vunpack.c.l.b16 %v1903
      %v1993 = vunpack.c.h.b16 %v1903
      %v1994 = vunpack.c.l.b16 %v1904
      %v1995 = vunpack.c.h.b16 %v1904
      %v1996 = vunpack.c.l.b16 %v1905
      %v1997 = vunpack.c.h.b16 %v1905
      %v1998 = vunpack.c.l.b16 %v1906
      %v1999 = vunpack.c.h.b16 %v1906
      %v2000 = vunpack.c.l.b16 %v1907
      %v2001 = vunpack.c.h.b16 %v1907
      %v2002 = vunpack.c.l.b16 %v1908
      %v2003 = vunpack.c.h.b16 %v1908
      %v2004 = vunpack.c.l.b16 %v1909
      %v2005 = vunpack.c.h.b16 %v1909
      %v2006 = vpack.c.b16 %v1946, %v1942
      %v2007 = vpack.c.b16 %v1947, %v1943
      %v2008 = vpack.c.b16 %v1948, %v1944
      %v2009 = vpack.c.b16 %v1949, %v1945
      %v2010 = vpack.c.b16 %v1954, %v1950
      %v2011 = vpack.c.b16 %v1955, %v1951
      %v2012 = vpack.c.b16 %v1956, %v1952
      %v2013 = vpack.c.b16 %v1957, %v1953
      %v2014 = vpack.c.b16 %v1962, %v1958
      %v2015 = vpack.c.b16 %v1963, %v1959
      %v2016 = vpack.c.b16 %v1964, %v1960
      %v2017 = vpack.c.b16 %v1965, %v1961
      %v2018 = vpack.c.b16 %v1970, %v1966
      %v2019 = vpack.c.b16 %v1971, %v1967
      %v2020 = vpack.c.b16 %v1972, %v1968
      %v2021 = vpack.c.b16 %v1973, %v1969
      %v2022 = vpack.c.b16 %v1978, %v1974
      %v2023 = vpack.c.b16 %v1979, %v1975
      %v2024 = vpack.c.b16 %v1980, %v1976
      %v2025 = vpack.c.b16 %v1981, %v1977
      %v2026 = vpack.c.b16 %v1986, %v1982
      %v2027 = vpack.c.b16 %v1987, %v1983
      %v2028 = vpack.c.b16 %v1988, %v1984
      %v2029 = vpack.c.b16 %v1989, %v1985
      %v2030 = vpack.c.b16 %v1994, %v1990
      %v2031 = vpack.c.b16 %v1995, %v1991
      %v2032 = vpack.c.b16 %v1996, %v1992
      %v2033 = vpack.c.b16 %v1997, %v1993
      %v2034 = vpack.c.b16 %v2002, %v1998
      %v2035 = vpack.c.b16 %v2003, %v1999
      %v2036 = vpack.c.b16 %v2004, %v2000
      %v2037 = vpack.c.b16 %v2005, %v2001
      %2070 = vmatprep.subr.bf16.mxu0 %v2007
      %2071 = vmatpush1.bf16.msra.mxu0 %v2006
      %2072 = vmatprep.subr.bf16.mxu0 %v2011
      %2073 = vmatpush1.bf16.msra.mxu0 %v2010
      %2074 = vmatprep.subr.bf16.mxu0 %v2015
      %2075 = vmatpush1.bf16.msra.mxu0 %v2014
      %2076 = vmatprep.subr.bf16.mxu0 %v2019
      %2077 = vmatpush1.bf16.msra.mxu0 %v2018
      %2078 = vmatprep.subr.bf16.mxu0 %v2023
      %2079 = vmatpush1.bf16.msra.mxu0 %v2022
      %2080 = vmatprep.subr.bf16.mxu0 %v2027
      %2081 = vmatpush1.bf16.msra.mxu0 %v2026
      %2082 = vmatprep.subr.bf16.mxu0 %v2031
      %2083 = vmatpush1.bf16.msra.mxu0 %v2030
      %2084 = vmatprep.subr.bf16.mxu0 %v2035
      %2085 = vmatpush1.bf16.msra.mxu0 %v2034
      %2086 = vmatprep.subr.bf16.mxu0 0
      %2087 = vmatpush1.bf16.msra.mxu0 0
      %2088 = vmatprep.subr.bf16.mxu0 0
      %2089 = vmatpush1.bf16.msra.mxu0 0
      %2090 = vmatprep.subr.bf16.mxu0 0
      %2091 = vmatpush1.bf16.msra.mxu0 0
      %2092 = vmatprep.subr.bf16.mxu0 0
      %2093 = vmatpush1.bf16.msra.mxu0 0
      %2094 = vmatprep.subr.bf16.mxu0 0
      %2095 = vmatpush1.bf16.msra.mxu0 0
      %2096 = vmatprep.subr.bf16.mxu0 0
      %2097 = vmatpush1.bf16.msra.mxu0 0
      %2098 = vmatprep.subr.bf16.mxu0 0
      %2099 = vmatpush1.bf16.msra.mxu0 0
      %2100 = vmatprep.subr.bf16.mxu0 0
      %2101 = vmatpush1.bf16.msra.mxu0 0
      %2102 = vmatprep.mubr.bf16.mxu0 0
      %2103 = vmatmul.mubr.bf16.gmra.mrb[0].mxu0 %v1877
      %v2104 = vpop.f32.mrb[0].mxu0
      %v2105 = vadd.f32 0.0, %v2104
      %v2106 = vpop.f32.mrb[0].mxu0
      %v2107 = vadd.f32 0.0, %v2106
      %v2108 = vpop.f32.mrb[0].mxu0
      %v2109 = vpop.f32.mrb[0].mxu0
      %2110 = vdwg.mxu0
      %2111 = vmatprep.subr.bf16.mxu0 %v2009
      %2112 = vmatpush1.bf16.msra.mxu0 %v2008
      %2113 = vmatprep.subr.bf16.mxu0 %v2013
      %2114 = vmatpush1.bf16.msra.mxu0 %v2012
      %2115 = vmatprep.subr.bf16.mxu0 %v2017
      %2116 = vmatpush1.bf16.msra.mxu0 %v2016
      %2117 = vmatprep.subr.bf16.mxu0 %v2021
      %2118 = vmatpush1.bf16.msra.mxu0 %v2020
      %2119 = vmatprep.subr.bf16.mxu0 %v2025
      %2120 = vmatpush1.bf16.msra.mxu0 %v2024
      %2121 = vmatprep.subr.bf16.mxu0 %v2029
      %2122 = vmatpush1.bf16.msra.mxu0 %v2028
      %2123 = vmatprep.subr.bf16.mxu0 %v2033
      %2124 = vmatpush1.bf16.msra.mxu0 %v2032
      %2125 = vmatprep.subr.bf16.mxu0 %v2037
      %2126 = vmatpush1.bf16.msra.mxu0 %v2036
      %2127 = vmatprep.subr.bf16.mxu0 0
      %2128 = vmatpush1.bf16.msra.mxu0 0
      %2129 = vmatprep.subr.bf16.mxu0 0
      %2130 = vmatpush1.bf16.msra.mxu0 0
      %2131 = vmatprep.subr.bf16.mxu0 0
      %2132 = vmatpush1.bf16.msra.mxu0 0
      %2133 = vmatprep.subr.bf16.mxu0 0
      %2134 = vmatpush1.bf16.msra.mxu0 0
      %2135 = vmatprep.subr.bf16.mxu0 0
      %2136 = vmatpush1.bf16.msra.mxu0 0
      %2137 = vmatprep.subr.bf16.mxu0 0
      %2138 = vmatpush1.bf16.msra.mxu0 0
      %2139 = vmatprep.subr.bf16.mxu0 0
      %2140 = vmatpush1.bf16.msra.mxu0 0
      %2141 = vmatprep.subr.bf16.mxu0 0
      %2142 = vmatpush1.bf16.msra.mxu0 0
      %2143 = vmatprep.mubr.bf16.mxu0 0
      %2144 = vmatmul.mubr.bf16.gmra.mrb[0].mxu0 %v1877
      %v2145 = vpop.f32.mrb[0].mxu0
      %v2146 = vadd.f32 0.0, %v2145
      %v2147 = vpop.f32.mrb[0].mxu0
      %v2148 = vadd.f32 0.0, %v2147
      %v2149 = vpop.f32.mrb[0].mxu0
      %v2150 = vpop.f32.mrb[0].mxu0
      %2151 = vdwg.mxu0
      %v2152 = vadd.f32 %v1872, %v2105
      %v2153 = vadd.f32 %v1873, %v2107
      %v2154 = vadd.f32 %v1874, %v2146
      %v2155 = vadd.f32 %v1875, %v2148
      %v2156 = vxor.u32 %v2152, 2147483648
      %v2157 = vmul.f32 %v2156, 1.442695
      %v2158 = vpow.pop %v2157
      %v2159 = vadd.f32 %v2158, 1.0
      %v2160 = vrcp.pop %v2159
      %v2161 = vmul.f32 1.0, %v2160
      %v2162 = vxor.u32 %v2153, 2147483648
      %v2163 = vmul.f32 %v2162, 1.442695
      %v2164 = vpow.pop %v2163
      %v2165 = vadd.f32 %v2164, 1.0
      %v2166 = vrcp.pop %v2165
      %v2167 = vmul.f32 1.0, %v2166
      %v2168 = vtanh.pop %v2154
      %v2169 = vxor.u32 %v2155, 2147483648
      %v2170 = vmul.f32 %v2169, 1.442695
      %v2171 = vpow.pop %v2170
      %v2172 = vadd.f32 %v2171, 1.0
      %v2173 = vrcp.pop %v2172
      %v2174 = vmul.f32 1.0, %v2173
      %v2175 = vld [vmem:[#allocation3] sm:$0xff]
      %v2176 = vmul.f32 %v2167, %v2175
      %v2177 = vmul.f32 %v2161, %v2168
      %v2178 = vadd.f32 %v2176, %v2177
      %v2179 = vtanh.pop %v2178
      %v2180 = vmul.f32 %v2174, %v2179
      %2181 = vst [vmem:[#allocation3] sm:$0xff] %v2178
      %2182 = vst [vmem:[#allocation2] sm:$0xff] %v2180
      %s2183 = scalar_lea.vmem [#allocation5], %s1866
      %2184 = vst [vmem:[%s2183] sm:$0xff] %v2180
      %s2185 = smul.u32 %s19, 7
      %s2186 = sadd.s32 %s2185, 4
      %s2187 = smul.u32 %s2186, 8
      %s2188 = sshra.s32 %s2187, 3
      %s2189 = sand.u32 %s2187, 7
      %s2190 = smul.u32 %s2188, 4
      %s2191 = smul.addr %s2190, 8
      %s2192 = scalar_lea.vmem [#allocation4], %s2191
      %v2193 = vld [vmem:[%s2192] sm:$0xff]
      %v2194 = vld [vmem:[%s2192 + $0x8] sm:$0xff]
      %v2195 = vld [vmem:[%s2192 + $0x10] sm:$0xff]
      %v2196 = vld [vmem:[%s2192 + $0x18] sm:$0xff]
      %v2197 = vld [vmem:[#allocation2] sm:$0xff]
      %v2198 = vpack.c.bf16 %v2197, %v2197
      %v2199 = vld [vmem:[%s305] sm:$0xff]
      %v2200 = vld [vmem:[%s305 + $0x8] sm:$0xff]
      %v2201 = vld [vmem:[%s305 + $0x10] sm:$0xff]
      %v2202 = vld [vmem:[%s305 + $0x18] sm:$0xff]
      %v2203 = vld [vmem:[%s305 + $0x20] sm:$0xff]
      %v2204 = vld [vmem:[%s305 + $0x28] sm:$0xff]
      %v2205 = vld [vmem:[%s305 + $0x30] sm:$0xff]
      %v2206 = vld [vmem:[%s305 + $0x38] sm:$0xff]
      %v2207 = vld [vmem:[%s305 + $0x40] sm:$0xff]
      %v2208 = vld [vmem:[%s305 + $0x48] sm:$0xff]
      %v2209 = vld [vmem:[%s305 + $0x50] sm:$0xff]
      %v2210 = vld [vmem:[%s305 + $0x58] sm:$0xff]
      %v2211 = vld [vmem:[%s305 + $0x60] sm:$0xff]
      %v2212 = vld [vmem:[%s305 + $0x68] sm:$0xff]
      %v2213 = vld [vmem:[%s305 + $0x70] sm:$0xff]
      %v2214 = vld [vmem:[%s305 + $0x78] sm:$0xff]
      %v2215 = vld [vmem:[%s305 + $0x80] sm:$0xff]
      %v2216 = vld [vmem:[%s305 + $0x88] sm:$0xff]
      %v2217 = vld [vmem:[%s305 + $0x90] sm:$0xff]
      %v2218 = vld [vmem:[%s305 + $0x98] sm:$0xff]
      %v2219 = vld [vmem:[%s305 + $0xa0] sm:$0xff]
      %v2220 = vld [vmem:[%s305 + $0xa8] sm:$0xff]
      %v2221 = vld [vmem:[%s305 + $0xb0] sm:$0xff]
      %v2222 = vld [vmem:[%s305 + $0xb8] sm:$0xff]
      %v2223 = vld [vmem:[%s305 + $0xc0] sm:$0xff]
      %v2224 = vld [vmem:[%s305 + $0xc8] sm:$0xff]
      %v2225 = vld [vmem:[%s305 + $0xd0] sm:$0xff]
      %v2226 = vld [vmem:[%s305 + $0xd8] sm:$0xff]
      %v2227 = vld [vmem:[%s305 + $0xe0] sm:$0xff]
      %v2228 = vld [vmem:[%s305 + $0xe8] sm:$0xff]
      %v2229 = vld [vmem:[%s305 + $0xf0] sm:$0xff]
      %v2230 = vld [vmem:[%s305 + $0xf8] sm:$0xff]
      %v2263 = vunpack.c.l.b16 %v2199
      %v2264 = vunpack.c.h.b16 %v2199
      %v2265 = vunpack.c.l.b16 %v2200
      %v2266 = vunpack.c.h.b16 %v2200
      %v2267 = vunpack.c.l.b16 %v2201
      %v2268 = vunpack.c.h.b16 %v2201
      %v2269 = vunpack.c.l.b16 %v2202
      %v2270 = vunpack.c.h.b16 %v2202
      %v2271 = vunpack.c.l.b16 %v2203
      %v2272 = vunpack.c.h.b16 %v2203
      %v2273 = vunpack.c.l.b16 %v2204
      %v2274 = vunpack.c.h.b16 %v2204
      %v2275 = vunpack.c.l.b16 %v2205
      %v2276 = vunpack.c.h.b16 %v2205
      %v2277 = vunpack.c.l.b16 %v2206
      %v2278 = vunpack.c.h.b16 %v2206
      %v2279 = vunpack.c.l.b16 %v2207
      %v2280 = vunpack.c.h.b16 %v2207
      %v2281 = vunpack.c.l.b16 %v2208
      %v2282 = vunpack.c.h.b16 %v2208
      %v2283 = vunpack.c.l.b16 %v2209
      %v2284 = vunpack.c.h.b16 %v2209
      %v2285 = vunpack.c.l.b16 %v2210
      %v2286 = vunpack.c.h.b16 %v2210
      %v2287 = vunpack.c.l.b16 %v2211
      %v2288 = vunpack.c.h.b16 %v2211
      %v2289 = vunpack.c.l.b16 %v2212
      %v2290 = vunpack.c.h.b16 %v2212
      %v2291 = vunpack.c.l.b16 %v2213
      %v2292 = vunpack.c.h.b16 %v2213
      %v2293 = vunpack.c.l.b16 %v2214
      %v2294 = vunpack.c.h.b16 %v2214
      %v2295 = vunpack.c.l.b16 %v2215
      %v2296 = vunpack.c.h.b16 %v2215
      %v2297 = vunpack.c.l.b16 %v2216
      %v2298 = vunpack.c.h.b16 %v2216
      %v2299 = vunpack.c.l.b16 %v2217
      %v2300 = vunpack.c.h.b16 %v2217
      %v2301 = vunpack.c.l.b16 %v2218
      %v2302 = vunpack.c.h.b16 %v2218
      %v2303 = vunpack.c.l.b16 %v2219
      %v2304 = vunpack.c.h.b16 %v2219
      %v2305 = vunpack.c.l.b16 %v2220
      %v2306 = vunpack.c.h.b16 %v2220
      %v2307 = vunpack.c.l.b16 %v2221
      %v2308 = vunpack.c.h.b16 %v2221
      %v2309 = vunpack.c.l.b16 %v2222
      %v2310 = vunpack.c.h.b16 %v2222
      %v2311 = vunpack.c.l.b16 %v2223
      %v2312 = vunpack.c.h.b16 %v2223
      %v2313 = vunpack.c.l.b16 %v2224
      %v2314 = vunpack.c.h.b16 %v2224
      %v2315 = vunpack.c.l.b16 %v2225
      %v2316 = vunpack.c.h.b16 %v2225
      %v2317 = vunpack.c.l.b16 %v2226
      %v2318 = vunpack.c.h.b16 %v2226
      %v2319 = vunpack.c.l.b16 %v2227
      %v2320 = vunpack.c.h.b16 %v2227
      %v2321 = vunpack.c.l.b16 %v2228
      %v2322 = vunpack.c.h.b16 %v2228
      %v2323 = vunpack.c.l.b16 %v2229
      %v2324 = vunpack.c.h.b16 %v2229
      %v2325 = vunpack.c.l.b16 %v2230
      %v2326 = vunpack.c.h.b16 %v2230
      %v2327 = vpack.c.b16 %v2267, %v2263
      %v2328 = vpack.c.b16 %v2268, %v2264
      %v2329 = vpack.c.b16 %v2269, %v2265
      %v2330 = vpack.c.b16 %v2270, %v2266
      %v2331 = vpack.c.b16 %v2275, %v2271
      %v2332 = vpack.c.b16 %v2276, %v2272
      %v2333 = vpack.c.b16 %v2277, %v2273
      %v2334 = vpack.c.b16 %v2278, %v2274
      %v2335 = vpack.c.b16 %v2283, %v2279
      %v2336 = vpack.c.b16 %v2284, %v2280
      %v2337 = vpack.c.b16 %v2285, %v2281
      %v2338 = vpack.c.b16 %v2286, %v2282
      %v2339 = vpack.c.b16 %v2291, %v2287
      %v2340 = vpack.c.b16 %v2292, %v2288
      %v2341 = vpack.c.b16 %v2293, %v2289
      %v2342 = vpack.c.b16 %v2294, %v2290
      %v2343 = vpack.c.b16 %v2299, %v2295
      %v2344 = vpack.c.b16 %v2300, %v2296
      %v2345 = vpack.c.b16 %v2301, %v2297
      %v2346 = vpack.c.b16 %v2302, %v2298
      %v2347 = vpack.c.b16 %v2307, %v2303
      %v2348 = vpack.c.b16 %v2308, %v2304
      %v2349 = vpack.c.b16 %v2309, %v2305
      %v2350 = vpack.c.b16 %v2310, %v2306
      %v2351 = vpack.c.b16 %v2315, %v2311
      %v2352 = vpack.c.b16 %v2316, %v2312
      %v2353 = vpack.c.b16 %v2317, %v2313
      %v2354 = vpack.c.b16 %v2318, %v2314
      %v2355 = vpack.c.b16 %v2323, %v2319
      %v2356 = vpack.c.b16 %v2324, %v2320
      %v2357 = vpack.c.b16 %v2325, %v2321
      %v2358 = vpack.c.b16 %v2326, %v2322
      %2391 = vmatprep.subr.bf16.mxu0 %v2328
      %2392 = vmatpush1.bf16.msra.mxu0 %v2327
      %2393 = vmatprep.subr.bf16.mxu0 %v2332
      %2394 = vmatpush1.bf16.msra.mxu0 %v2331
      %2395 = vmatprep.subr.bf16.mxu0 %v2336
      %2396 = vmatpush1.bf16.msra.mxu0 %v2335
      %2397 = vmatprep.subr.bf16.mxu0 %v2340
      %2398 = vmatpush1.bf16.msra.mxu0 %v2339
      %2399 = vmatprep.subr.bf16.mxu0 %v2344
      %2400 = vmatpush1.bf16.msra.mxu0 %v2343
      %2401 = vmatprep.subr.bf16.mxu0 %v2348
      %2402 = vmatpush1.bf16.msra.mxu0 %v2347
      %2403 = vmatprep.subr.bf16.mxu0 %v2352
      %2404 = vmatpush1.bf16.msra.mxu0 %v2351
      %2405 = vmatprep.subr.bf16.mxu0 %v2356
      %2406 = vmatpush1.bf16.msra.mxu0 %v2355
      %2407 = vmatprep.subr.bf16.mxu0 0
      %2408 = vmatpush1.bf16.msra.mxu0 0
      %2409 = vmatprep.subr.bf16.mxu0 0
      %2410 = vmatpush1.bf16.msra.mxu0 0
      %2411 = vmatprep.subr.bf16.mxu0 0
      %2412 = vmatpush1.bf16.msra.mxu0 0
      %2413 = vmatprep.subr.bf16.mxu0 0
      %2414 = vmatpush1.bf16.msra.mxu0 0
      %2415 = vmatprep.subr.bf16.mxu0 0
      %2416 = vmatpush1.bf16.msra.mxu0 0
      %2417 = vmatprep.subr.bf16.mxu0 0
      %2418 = vmatpush1.bf16.msra.mxu0 0
      %2419 = vmatprep.subr.bf16.mxu0 0
      %2420 = vmatpush1.bf16.msra.mxu0 0
      %2421 = vmatprep.subr.bf16.mxu0 0
      %2422 = vmatpush1.bf16.msra.mxu0 0
      %2423 = vmatprep.mubr.bf16.mxu0 0
      %2424 = vmatmul.mubr.bf16.gmra.mrb[0].mxu0 %v2198
      %v2425 = vpop.f32.mrb[0].mxu0
      %v2426 = vadd.f32 0.0, %v2425
      %v2427 = vpop.f32.mrb[0].mxu0
      %v2428 = vadd.f32 0.0, %v2427
      %v2429 = vpop.f32.mrb[0].mxu0
      %v2430 = vpop.f32.mrb[0].mxu0
      %2431 = vdwg.mxu0
      %2432 = vmatprep.subr.bf16.mxu0 %v2330
      %2433 = vmatpush1.bf16.msra.mxu0 %v2329
      %2434 = vmatprep.subr.bf16.mxu0 %v2334
      %2435 = vmatpush1.bf16.msra.mxu0 %v2333
      %2436 = vmatprep.subr.bf16.mxu0 %v2338
      %2437 = vmatpush1.bf16.msra.mxu0 %v2337
      %2438 = vmatprep.subr.bf16.mxu0 %v2342
      %2439 = vmatpush1.bf16.msra.mxu0 %v2341
      %2440 = vmatprep.subr.bf16.mxu0 %v2346
      %2441 = vmatpush1.bf16.msra.mxu0 %v2345
      %2442 = vmatprep.subr.bf16.mxu0 %v2350
      %2443 = vmatpush1.bf16.msra.mxu0 %v2349
      %2444 = vmatprep.subr.bf16.mxu0 %v2354
      %2445 = vmatpush1.bf16.msra.mxu0 %v2353
      %2446 = vmatprep.subr.bf16.mxu0 %v2358
      %2447 = vmatpush1.bf16.msra.mxu0 %v2357
      %2448 = vmatprep.subr.bf16.mxu0 0
      %2449 = vmatpush1.bf16.msra.mxu0 0
      %2450 = vmatprep.subr.bf16.mxu0 0
      %2451 = vmatpush1.bf16.msra.mxu0 0
      %2452 = vmatprep.subr.bf16.mxu0 0
      %2453 = vmatpush1.bf16.msra.mxu0 0
      %2454 = vmatprep.subr.bf16.mxu0 0
      %2455 = vmatpush1.bf16.msra.mxu0 0
      %2456 = vmatprep.subr.bf16.mxu0 0
      %2457 = vmatpush1.bf16.msra.mxu0 0
      %2458 = vmatprep.subr.bf16.mxu0 0
      %2459 = vmatpush1.bf16.msra.mxu0 0
      %2460 = vmatprep.subr.bf16.mxu0 0
      %2461 = vmatpush1.bf16.msra.mxu0 0
      %2462 = vmatprep.subr.bf16.mxu0 0
      %2463 = vmatpush1.bf16.msra.mxu0 0
      %2464 = vmatprep.mubr.bf16.mxu0 0
      %2465 = vmatmul.mubr.bf16.gmra.mrb[0].mxu0 %v2198
      %v2466 = vpop.f32.mrb[0].mxu0
      %v2467 = vadd.f32 0.0, %v2466
      %v2468 = vpop.f32.mrb[0].mxu0
      %v2469 = vadd.f32 0.0, %v2468
      %v2470 = vpop.f32.mrb[0].mxu0
      %v2471 = vpop.f32.mrb[0].mxu0
      %2472 = vdwg.mxu0
      %v2473 = vadd.f32 %v2193, %v2426
      %v2474 = vadd.f32 %v2194, %v2428
      %v2475 = vadd.f32 %v2195, %v2467
      %v2476 = vadd.f32 %v2196, %v2469
      %v2477 = vxor.u32 %v2473, 2147483648
      %v2478 = vmul.f32 %v2477, 1.442695
      %v2479 = vpow.pop %v2478
      %v2480 = vadd.f32 %v2479, 1.0
      %v2481 = vrcp.pop %v2480
      %v2482 = vmul.f32 1.0, %v2481
      %v2483 = vxor.u32 %v2474, 2147483648
      %v2484 = vmul.f32 %v2483, 1.442695
      %v2485 = vpow.pop %v2484
      %v2486 = vadd.f32 %v2485, 1.0
      %v2487 = vrcp.pop %v2486
      %v2488 = vmul.f32 1.0, %v2487
      %v2489 = vtanh.pop %v2475
      %v2490 = vxor.u32 %v2476, 2147483648
      %v2491 = vmul.f32 %v2490, 1.442695
      %v2492 = vpow.pop %v2491
      %v2493 = vadd.f32 %v2492, 1.0
      %v2494 = vrcp.pop %v2493
      %v2495 = vmul.f32 1.0, %v2494
      %v2496 = vld [vmem:[#allocation3] sm:$0xff]
      %v2497 = vmul.f32 %v2488, %v2496
      %v2498 = vmul.f32 %v2482, %v2489
      %v2499 = vadd.f32 %v2497, %v2498
      %v2500 = vtanh.pop %v2499
      %v2501 = vmul.f32 %v2495, %v2500
      %2502 = vst [vmem:[#allocation3] sm:$0xff] %v2499
      %2503 = vst [vmem:[#allocation2] sm:$0xff] %v2501
      %s2504 = scalar_lea.vmem [#allocation5], %s2187
      %2505 = vst [vmem:[%s2504] sm:$0xff] %v2501
      %s2506 = smul.u32 %s19, 5
      %s2507 = sadd.s32 %s2506, 5
      %s2508 = smul.u32 %s2507, 8
      %s2509 = sshra.s32 %s2508, 3
      %s2510 = sand.u32 %s2508, 7
      %s2511 = smul.u32 %s2509, 4
      %s2512 = smul.addr %s2511, 8
      %s2513 = scalar_lea.vmem [#allocation4], %s2512
      %v2514 = vld [vmem:[%s2513] sm:$0xff]
      %v2515 = vld [vmem:[%s2513 + $0x8] sm:$0xff]
      %v2516 = vld [vmem:[%s2513 + $0x10] sm:$0xff]
      %v2517 = vld [vmem:[%s2513 + $0x18] sm:$0xff]
      %v2518 = vld [vmem:[#allocation2] sm:$0xff]
      %v2519 = vpack.c.bf16 %v2518, %v2518
      %v2520 = vld [vmem:[%s305] sm:$0xff]
      %v2521 = vld [vmem:[%s305 + $0x8] sm:$0xff]
      %v2522 = vld [vmem:[%s305 + $0x10] sm:$0xff]
      %v2523 = vld [vmem:[%s305 + $0x18] sm:$0xff]
      %v2524 = vld [vmem:[%s305 + $0x20] sm:$0xff]
      %v2525 = vld [vmem:[%s305 + $0x28] sm:$0xff]
      %v2526 = vld [vmem:[%s305 + $0x30] sm:$0xff]
      %v2527 = vld [vmem:[%s305 + $0x38] sm:$0xff]
      %v2528 = vld [vmem:[%s305 + $0x40] sm:$0xff]
      %v2529 = vld [vmem:[%s305 + $0x48] sm:$0xff]
      %v2530 = vld [vmem:[%s305 + $0x50] sm:$0xff]
      %v2531 = vld [vmem:[%s305 + $0x58] sm:$0xff]
      %v2532 = vld [vmem:[%s305 + $0x60] sm:$0xff]
      %v2533 = vld [vmem:[%s305 + $0x68] sm:$0xff]
      %v2534 = vld [vmem:[%s305 + $0x70] sm:$0xff]
      %v2535 = vld [vmem:[%s305 + $0x78] sm:$0xff]
      %v2536 = vld [vmem:[%s305 + $0x80] sm:$0xff]
      %v2537 = vld [vmem:[%s305 + $0x88] sm:$0xff]
      %v2538 = vld [vmem:[%s305 + $0x90] sm:$0xff]
      %v2539 = vld [vmem:[%s305 + $0x98] sm:$0xff]
      %v2540 = vld [vmem:[%s305 + $0xa0] sm:$0xff]
      %v2541 = vld [vmem:[%s305 + $0xa8] sm:$0xff]
      %v2542 = vld [vmem:[%s305 + $0xb0] sm:$0xff]
      %v2543 = vld [vmem:[%s305 + $0xb8] sm:$0xff]
      %v2544 = vld [vmem:[%s305 + $0xc0] sm:$0xff]
      %v2545 = vld [vmem:[%s305 + $0xc8] sm:$0xff]
      %v2546 = vld [vmem:[%s305 + $0xd0] sm:$0xff]
      %v2547 = vld [vmem:[%s305 + $0xd8] sm:$0xff]
      %v2548 = vld [vmem:[%s305 + $0xe0] sm:$0xff]
      %v2549 = vld [vmem:[%s305 + $0xe8] sm:$0xff]
      %v2550 = vld [vmem:[%s305 + $0xf0] sm:$0xff]
      %v2551 = vld [vmem:[%s305 + $0xf8] sm:$0xff]
      %v2584 = vunpack.c.l.b16 %v2520
      %v2585 = vunpack.c.h.b16 %v2520
      %v2586 = vunpack.c.l.b16 %v2521
      %v2587 = vunpack.c.h.b16 %v2521
      %v2588 = vunpack.c.l.b16 %v2522
      %v2589 = vunpack.c.h.b16 %v2522
      %v2590 = vunpack.c.l.b16 %v2523
      %v2591 = vunpack.c.h.b16 %v2523
      %v2592 = vunpack.c.l.b16 %v2524
      %v2593 = vunpack.c.h.b16 %v2524
      %v2594 = vunpack.c.l.b16 %v2525
      %v2595 = vunpack.c.h.b16 %v2525
      %v2596 = vunpack.c.l.b16 %v2526
      %v2597 = vunpack.c.h.b16 %v2526
      %v2598 = vunpack.c.l.b16 %v2527
      %v2599 = vunpack.c.h.b16 %v2527
      %v2600 = vunpack.c.l.b16 %v2528
      %v2601 = vunpack.c.h.b16 %v2528
      %v2602 = vunpack.c.l.b16 %v2529
      %v2603 = vunpack.c.h.b16 %v2529
      %v2604 = vunpack.c.l.b16 %v2530
      %v2605 = vunpack.c.h.b16 %v2530
      %v2606 = vunpack.c.l.b16 %v2531
      %v2607 = vunpack.c.h.b16 %v2531
      %v2608 = vunpack.c.l.b16 %v2532
      %v2609 = vunpack.c.h.b16 %v2532
      %v2610 = vunpack.c.l.b16 %v2533
      %v2611 = vunpack.c.h.b16 %v2533
      %v2612 = vunpack.c.l.b16 %v2534
      %v2613 = vunpack.c.h.b16 %v2534
      %v2614 = vunpack.c.l.b16 %v2535
      %v2615 = vunpack.c.h.b16 %v2535
      %v2616 = vunpack.c.l.b16 %v2536
      %v2617 = vunpack.c.h.b16 %v2536
      %v2618 = vunpack.c.l.b16 %v2537
      %v2619 = vunpack.c.h.b16 %v2537
      %v2620 = vunpack.c.l.b16 %v2538
      %v2621 = vunpack.c.h.b16 %v2538
      %v2622 = vunpack.c.l.b16 %v2539
      %v2623 = vunpack.c.h.b16 %v2539
      %v2624 = vunpack.c.l.b16 %v2540
      %v2625 = vunpack.c.h.b16 %v2540
      %v2626 = vunpack.c.l.b16 %v2541
      %v2627 = vunpack.c.h.b16 %v2541
      %v2628 = vunpack.c.l.b16 %v2542
      %v2629 = vunpack.c.h.b16 %v2542
      %v2630 = vunpack.c.l.b16 %v2543
      %v2631 = vunpack.c.h.b16 %v2543
      %v2632 = vunpack.c.l.b16 %v2544
      %v2633 = vunpack.c.h.b16 %v2544
      %v2634 = vunpack.c.l.b16 %v2545
      %v2635 = vunpack.c.h.b16 %v2545
      %v2636 = vunpack.c.l.b16 %v2546
      %v2637 = vunpack.c.h.b16 %v2546
      %v2638 = vunpack.c.l.b16 %v2547
      %v2639 = vunpack.c.h.b16 %v2547
      %v2640 = vunpack.c.l.b16 %v2548
      %v2641 = vunpack.c.h.b16 %v2548
      %v2642 = vunpack.c.l.b16 %v2549
      %v2643 = vunpack.c.h.b16 %v2549
      %v2644 = vunpack.c.l.b16 %v2550
      %v2645 = vunpack.c.h.b16 %v2550
      %v2646 = vunpack.c.l.b16 %v2551
      %v2647 = vunpack.c.h.b16 %v2551
      %v2648 = vpack.c.b16 %v2588, %v2584
      %v2649 = vpack.c.b16 %v2589, %v2585
      %v2650 = vpack.c.b16 %v2590, %v2586
      %v2651 = vpack.c.b16 %v2591, %v2587
      %v2652 = vpack.c.b16 %v2596, %v2592
      %v2653 = vpack.c.b16 %v2597, %v2593
      %v2654 = vpack.c.b16 %v2598, %v2594
      %v2655 = vpack.c.b16 %v2599, %v2595
      %v2656 = vpack.c.b16 %v2604, %v2600
      %v2657 = vpack.c.b16 %v2605, %v2601
      %v2658 = vpack.c.b16 %v2606, %v2602
      %v2659 = vpack.c.b16 %v2607, %v2603
      %v2660 = vpack.c.b16 %v2612, %v2608
      %v2661 = vpack.c.b16 %v2613, %v2609
      %v2662 = vpack.c.b16 %v2614, %v2610
      %v2663 = vpack.c.b16 %v2615, %v2611
      %v2664 = vpack.c.b16 %v2620, %v2616
      %v2665 = vpack.c.b16 %v2621, %v2617
      %v2666 = vpack.c.b16 %v2622, %v2618
      %v2667 = vpack.c.b16 %v2623, %v2619
      %v2668 = vpack.c.b16 %v2628, %v2624
      %v2669 = vpack.c.b16 %v2629, %v2625
      %v2670 = vpack.c.b16 %v2630, %v2626
      %v2671 = vpack.c.b16 %v2631, %v2627
      %v2672 = vpack.c.b16 %v2636, %v2632
      %v2673 = vpack.c.b16 %v2637, %v2633
      %v2674 = vpack.c.b16 %v2638, %v2634
      %v2675 = vpack.c.b16 %v2639, %v2635
      %v2676 = vpack.c.b16 %v2644, %v2640
      %v2677 = vpack.c.b16 %v2645, %v2641
      %v2678 = vpack.c.b16 %v2646, %v2642
      %v2679 = vpack.c.b16 %v2647, %v2643
      %2712 = vmatprep.subr.bf16.mxu0 %v2649
      %2713 = vmatpush1.bf16.msra.mxu0 %v2648
      %2714 = vmatprep.subr.bf16.mxu0 %v2653
      %2715 = vmatpush1.bf16.msra.mxu0 %v2652
      %2716 = vmatprep.subr.bf16.mxu0 %v2657
      %2717 = vmatpush1.bf16.msra.mxu0 %v2656
      %2718 = vmatprep.subr.bf16.mxu0 %v2661
      %2719 = vmatpush1.bf16.msra.mxu0 %v2660
      %2720 = vmatprep.subr.bf16.mxu0 %v2665
      %2721 = vmatpush1.bf16.msra.mxu0 %v2664
      %2722 = vmatprep.subr.bf16.mxu0 %v2669
      %2723 = vmatpush1.bf16.msra.mxu0 %v2668
      %2724 = vmatprep.subr.bf16.mxu0 %v2673
      %2725 = vmatpush1.bf16.msra.mxu0 %v2672
      %2726 = vmatprep.subr.bf16.mxu0 %v2677
      %2727 = vmatpush1.bf16.msra.mxu0 %v2676
      %2728 = vmatprep.subr.bf16.mxu0 0
      %2729 = vmatpush1.bf16.msra.mxu0 0
      %2730 = vmatprep.subr.bf16.mxu0 0
      %2731 = vmatpush1.bf16.msra.mxu0 0
      %2732 = vmatprep.subr.bf16.mxu0 0
      %2733 = vmatpush1.bf16.msra.mxu0 0
      %2734 = vmatprep.subr.bf16.mxu0 0
      %2735 = vmatpush1.bf16.msra.mxu0 0
      %2736 = vmatprep.subr.bf16.mxu0 0
      %2737 = vmatpush1.bf16.msra.mxu0 0
      %2738 = vmatprep.subr.bf16.mxu0 0
      %2739 = vmatpush1.bf16.msra.mxu0 0
      %2740 = vmatprep.subr.bf16.mxu0 0
      %2741 = vmatpush1.bf16.msra.mxu0 0
      %2742 = vmatprep.subr.bf16.mxu0 0
      %2743 = vmatpush1.bf16.msra.mxu0 0
      %2744 = vmatprep.mubr.bf16.mxu0 0
      %2745 = vmatmul.mubr.bf16.gmra.mrb[0].mxu0 %v2519
      %v2746 = vpop.f32.mrb[0].mxu0
      %v2747 = vadd.f32 0.0, %v2746
      %v2748 = vpop.f32.mrb[0].mxu0
      %v2749 = vadd.f32 0.0, %v2748
      %v2750 = vpop.f32.mrb[0].mxu0
      %v2751 = vpop.f32.mrb[0].mxu0
      %2752 = vdwg.mxu0
      %2753 = vmatprep.subr.bf16.mxu0 %v2651
      %2754 = vmatpush1.bf16.msra.mxu0 %v2650
      %2755 = vmatprep.subr.bf16.mxu0 %v2655
      %2756 = vmatpush1.bf16.msra.mxu0 %v2654
      %2757 = vmatprep.subr.bf16.mxu0 %v2659
      %2758 = vmatpush1.bf16.msra.mxu0 %v2658
      %2759 = vmatprep.subr.bf16.mxu0 %v2663
      %2760 = vmatpush1.bf16.msra.mxu0 %v2662
      %2761 = vmatprep.subr.bf16.mxu0 %v2667
      %2762 = vmatpush1.bf16.msra.mxu0 %v2666
      %2763 = vmatprep.subr.bf16.mxu0 %v2671
      %2764 = vmatpush1.bf16.msra.mxu0 %v2670
      %2765 = vmatprep.subr.bf16.mxu0 %v2675
      %2766 = vmatpush1.bf16.msra.mxu0 %v2674
      %2767 = vmatprep.subr.bf16.mxu0 %v2679
      %2768 = vmatpush1.bf16.msra.mxu0 %v2678
      %2769 = vmatprep.subr.bf16.mxu0 0
      %2770 = vmatpush1.bf16.msra.mxu0 0
      %2771 = vmatprep.subr.bf16.mxu0 0
      %2772 = vmatpush1.bf16.msra.mxu0 0
      %2773 = vmatprep.subr.bf16.mxu0 0
      %2774 = vmatpush1.bf16.msra.mxu0 0
      %2775 = vmatprep.subr.bf16.mxu0 0
      %2776 = vmatpush1.bf16.msra.mxu0 0
      %2777 = vmatprep.subr.bf16.mxu0 0
      %2778 = vmatpush1.bf16.msra.mxu0 0
      %2779 = vmatprep.subr.bf16.mxu0 0
      %2780 = vmatpush1.bf16.msra.mxu0 0
      %2781 = vmatprep.subr.bf16.mxu0 0
      %2782 = vmatpush1.bf16.msra.mxu0 0
      %2783 = vmatprep.subr.bf16.mxu0 0
      %2784 = vmatpush1.bf16.msra.mxu0 0
      %2785 = vmatprep.mubr.bf16.mxu0 0
      %2786 = vmatmul.mubr.bf16.gmra.mrb[0].mxu0 %v2519
      %v2787 = vpop.f32.mrb[0].mxu0
      %v2788 = vadd.f32 0.0, %v2787
      %v2789 = vpop.f32.mrb[0].mxu0
      %v2790 = vadd.f32 0.0, %v2789
      %v2791 = vpop.f32.mrb[0].mxu0
      %v2792 = vpop.f32.mrb[0].mxu0
      %2793 = vdwg.mxu0
      %v2794 = vadd.f32 %v2514, %v2747
      %v2795 = vadd.f32 %v2515, %v2749
      %v2796 = vadd.f32 %v2516, %v2788
      %v2797 = vadd.f32 %v2517, %v2790
      %v2798 = vxor.u32 %v2794, 2147483648
      %v2799 = vmul.f32 %v2798, 1.442695
      %v2800 = vpow.pop %v2799
      %v2801 = vadd.f32 %v2800, 1.0
      %v2802 = vrcp.pop %v2801
      %v2803 = vmul.f32 1.0, %v2802
      %v2804 = vxor.u32 %v2795, 2147483648
      %v2805 = vmul.f32 %v2804, 1.442695
      %v2806 = vpow.pop %v2805
      %v2807 = vadd.f32 %v2806, 1.0
      %v2808 = vrcp.pop %v2807
      %v2809 = vmul.f32 1.0, %v2808
      %v2810 = vtanh.pop %v2796
      %v2811 = vxor.u32 %v2797, 2147483648
      %v2812 = vmul.f32 %v2811, 1.442695
      %v2813 = vpow.pop %v2812
      %v2814 = vadd.f32 %v2813, 1.0
      %v2815 = vrcp.pop %v2814
      %v2816 = vmul.f32 1.0, %v2815
      %v2817 = vld [vmem:[#allocation3] sm:$0xff]
      %v2818 = vmul.f32 %v2809, %v2817
      %v2819 = vmul.f32 %v2803, %v2810
      %v2820 = vadd.f32 %v2818, %v2819
      %v2821 = vtanh.pop %v2820
      %v2822 = vmul.f32 %v2816, %v2821
      %2823 = vst [vmem:[#allocation3] sm:$0xff] %v2820
      %2824 = vst [vmem:[#allocation2] sm:$0xff] %v2822
      %s2825 = scalar_lea.vmem [#allocation5], %s2508
      %2826 = vst [vmem:[%s2825] sm:$0xff] %v2822
      %s2827 = smul.u32 %s19, 3
      %s2828 = sadd.s32 %s2827, 6
      %s2829 = smul.u32 %s2828, 8
      %s2830 = sshra.s32 %s2829, 3
      %s2831 = sand.u32 %s2829, 7
      %s2832 = smul.u32 %s2830, 4
      %s2833 = smul.addr %s2832, 8
      %s2834 = scalar_lea.vmem [#allocation4], %s2833
      %v2835 = vld [vmem:[%s2834] sm:$0xff]
      %v2836 = vld [vmem:[%s2834 + $0x8] sm:$0xff]
      %v2837 = vld [vmem:[%s2834 + $0x10] sm:$0xff]
      %v2838 = vld [vmem:[%s2834 + $0x18] sm:$0xff]
      %v2839 = vld [vmem:[#allocation2] sm:$0xff]
      %v2840 = vpack.c.bf16 %v2839, %v2839
      %v2841 = vld [vmem:[%s305] sm:$0xff]
      %v2842 = vld [vmem:[%s305 + $0x8] sm:$0xff]
      %v2843 = vld [vmem:[%s305 + $0x10] sm:$0xff]
      %v2844 = vld [vmem:[%s305 + $0x18] sm:$0xff]
      %v2845 = vld [vmem:[%s305 + $0x20] sm:$0xff]
      %v2846 = vld [vmem:[%s305 + $0x28] sm:$0xff]
      %v2847 = vld [vmem:[%s305 + $0x30] sm:$0xff]
      %v2848 = vld [vmem:[%s305 + $0x38] sm:$0xff]
      %v2849 = vld [vmem:[%s305 + $0x40] sm:$0xff]
      %v2850 = vld [vmem:[%s305 + $0x48] sm:$0xff]
      %v2851 = vld [vmem:[%s305 + $0x50] sm:$0xff]
      %v2852 = vld [vmem:[%s305 + $0x58] sm:$0xff]
      %v2853 = vld [vmem:[%s305 + $0x60] sm:$0xff]
      %v2854 = vld [vmem:[%s305 + $0x68] sm:$0xff]
      %v2855 = vld [vmem:[%s305 + $0x70] sm:$0xff]
      %v2856 = vld [vmem:[%s305 + $0x78] sm:$0xff]
      %v2857 = vld [vmem:[%s305 + $0x80] sm:$0xff]
      %v2858 = vld [vmem:[%s305 + $0x88] sm:$0xff]
      %v2859 = vld [vmem:[%s305 + $0x90] sm:$0xff]
      %v2860 = vld [vmem:[%s305 + $0x98] sm:$0xff]
      %v2861 = vld [vmem:[%s305 + $0xa0] sm:$0xff]
      %v2862 = vld [vmem:[%s305 + $0xa8] sm:$0xff]
      %v2863 = vld [vmem:[%s305 + $0xb0] sm:$0xff]
      %v2864 = vld [vmem:[%s305 + $0xb8] sm:$0xff]
      %v2865 = vld [vmem:[%s305 + $0xc0] sm:$0xff]
      %v2866 = vld [vmem:[%s305 + $0xc8] sm:$0xff]
      %v2867 = vld [vmem:[%s305 + $0xd0] sm:$0xff]
      %v2868 = vld [vmem:[%s305 + $0xd8] sm:$0xff]
      %v2869 = vld [vmem:[%s305 + $0xe0] sm:$0xff]
      %v2870 = vld [vmem:[%s305 + $0xe8] sm:$0xff]
      %v2871 = vld [vmem:[%s305 + $0xf0] sm:$0xff]
      %v2872 = vld [vmem:[%s305 + $0xf8] sm:$0xff]
      %v2905 = vunpack.c.l.b16 %v2841
      %v2906 = vunpack.c.h.b16 %v2841
      %v2907 = vunpack.c.l.b16 %v2842
      %v2908 = vunpack.c.h.b16 %v2842
      %v2909 = vunpack.c.l.b16 %v2843
      %v2910 = vunpack.c.h.b16 %v2843
      %v2911 = vunpack.c.l.b16 %v2844
      %v2912 = vunpack.c.h.b16 %v2844
      %v2913 = vunpack.c.l.b16 %v2845
      %v2914 = vunpack.c.h.b16 %v2845
      %v2915 = vunpack.c.l.b16 %v2846
      %v2916 = vunpack.c.h.b16 %v2846
      %v2917 = vunpack.c.l.b16 %v2847
      %v2918 = vunpack.c.h.b16 %v2847
      %v2919 = vunpack.c.l.b16 %v2848
      %v2920 = vunpack.c.h.b16 %v2848
      %v2921 = vunpack.c.l.b16 %v2849
      %v2922 = vunpack.c.h.b16 %v2849
      %v2923 = vunpack.c.l.b16 %v2850
      %v2924 = vunpack.c.h.b16 %v2850
      %v2925 = vunpack.c.l.b16 %v2851
      %v2926 = vunpack.c.h.b16 %v2851
      %v2927 = vunpack.c.l.b16 %v2852
      %v2928 = vunpack.c.h.b16 %v2852
      %v2929 = vunpack.c.l.b16 %v2853
      %v2930 = vunpack.c.h.b16 %v2853
      %v2931 = vunpack.c.l.b16 %v2854
      %v2932 = vunpack.c.h.b16 %v2854
      %v2933 = vunpack.c.l.b16 %v2855
      %v2934 = vunpack.c.h.b16 %v2855
      %v2935 = vunpack.c.l.b16 %v2856
      %v2936 = vunpack.c.h.b16 %v2856
      %v2937 = vunpack.c.l.b16 %v2857
      %v2938 = vunpack.c.h.b16 %v2857
      %v2939 = vunpack.c.l.b16 %v2858
      %v2940 = vunpack.c.h.b16 %v2858
      %v2941 = vunpack.c.l.b16 %v2859
      %v2942 = vunpack.c.h.b16 %v2859
      %v2943 = vunpack.c.l.b16 %v2860
      %v2944 = vunpack.c.h.b16 %v2860
      %v2945 = vunpack.c.l.b16 %v2861
      %v2946 = vunpack.c.h.b16 %v2861
      %v2947 = vunpack.c.l.b16 %v2862
      %v2948 = vunpack.c.h.b16 %v2862
      %v2949 = vunpack.c.l.b16 %v2863
      %v2950 = vunpack.c.h.b16 %v2863
      %v2951 = vunpack.c.l.b16 %v2864
      %v2952 = vunpack.c.h.b16 %v2864
      %v2953 = vunpack.c.l.b16 %v2865
      %v2954 = vunpack.c.h.b16 %v2865
      %v2955 = vunpack.c.l.b16 %v2866
      %v2956 = vunpack.c.h.b16 %v2866
      %v2957 = vunpack.c.l.b16 %v2867
      %v2958 = vunpack.c.h.b16 %v2867
      %v2959 = vunpack.c.l.b16 %v2868
      %v2960 = vunpack.c.h.b16 %v2868
      %v2961 = vunpack.c.l.b16 %v2869
      %v2962 = vunpack.c.h.b16 %v2869
      %v2963 = vunpack.c.l.b16 %v2870
      %v2964 = vunpack.c.h.b16 %v2870
      %v2965 = vunpack.c.l.b16 %v2871
      %v2966 = vunpack.c.h.b16 %v2871
      %v2967 = vunpack.c.l.b16 %v2872
      %v2968 = vunpack.c.h.b16 %v2872
      %v2969 = vpack.c.b16 %v2909, %v2905
      %v2970 = vpack.c.b16 %v2910, %v2906
      %v2971 = vpack.c.b16 %v2911, %v2907
      %v2972 = vpack.c.b16 %v2912, %v2908
      %v2973 = vpack.c.b16 %v2917, %v2913
      %v2974 = vpack.c.b16 %v2918, %v2914
      %v2975 = vpack.c.b16 %v2919, %v2915
      %v2976 = vpack.c.b16 %v2920, %v2916
      %v2977 = vpack.c.b16 %v2925, %v2921
      %v2978 = vpack.c.b16 %v2926, %v2922
      %v2979 = vpack.c.b16 %v2927, %v2923
      %v2980 = vpack.c.b16 %v2928, %v2924
      %v2981 = vpack.c.b16 %v2933, %v2929
      %v2982 = vpack.c.b16 %v2934, %v2930
      %v2983 = vpack.c.b16 %v2935, %v2931
      %v2984 = vpack.c.b16 %v2936, %v2932
      %v2985 = vpack.c.b16 %v2941, %v2937
      %v2986 = vpack.c.b16 %v2942, %v2938
      %v2987 = vpack.c.b16 %v2943, %v2939
      %v2988 = vpack.c.b16 %v2944, %v2940
      %v2989 = vpack.c.b16 %v2949, %v2945
      %v2990 = vpack.c.b16 %v2950, %v2946
      %v2991 = vpack.c.b16 %v2951, %v2947
      %v2992 = vpack.c.b16 %v2952, %v2948
      %v2993 = vpack.c.b16 %v2957, %v2953
      %v2994 = vpack.c.b16 %v2958, %v2954
      %v2995 = vpack.c.b16 %v2959, %v2955
      %v2996 = vpack.c.b16 %v2960, %v2956
      %v2997 = vpack.c.b16 %v2965, %v2961
      %v2998 = vpack.c.b16 %v2966, %v2962
      %v2999 = vpack.c.b16 %v2967, %v2963
      %v3000 = vpack.c.b16 %v2968, %v2964
      %3033 = vmatprep.subr.bf16.mxu0 %v2970
      %3034 = vmatpush1.bf16.msra.mxu0 %v2969
      %3035 = vmatprep.subr.bf16.mxu0 %v2974
      %3036 = vmatpush1.bf16.msra.mxu0 %v2973
      %3037 = vmatprep.subr.bf16.mxu0 %v2978
      %3038 = vmatpush1.bf16.msra.mxu0 %v2977
      %3039 = vmatprep.subr.bf16.mxu0 %v2982
      %3040 = vmatpush1.bf16.msra.mxu0 %v2981
      %3041 = vmatprep.subr.bf16.mxu0 %v2986
      %3042 = vmatpush1.bf16.msra.mxu0 %v2985
      %3043 = vmatprep.subr.bf16.mxu0 %v2990
      %3044 = vmatpush1.bf16.msra.mxu0 %v2989
      %3045 = vmatprep.subr.bf16.mxu0 %v2994
      %3046 = vmatpush1.bf16.msra.mxu0 %v2993
      %3047 = vmatprep.subr.bf16.mxu0 %v2998
      %3048 = vmatpush1.bf16.msra.mxu0 %v2997
      %3049 = vmatprep.subr.bf16.mxu0 0
      %3050 = vmatpush1.bf16.msra.mxu0 0
      %3051 = vmatprep.subr.bf16.mxu0 0
      %3052 = vmatpush1.bf16.msra.mxu0 0
      %3053 = vmatprep.subr.bf16.mxu0 0
      %3054 = vmatpush1.bf16.msra.mxu0 0
      %3055 = vmatprep.subr.bf16.mxu0 0
      %3056 = vmatpush1.bf16.msra.mxu0 0
      %3057 = vmatprep.subr.bf16.mxu0 0
      %3058 = vmatpush1.bf16.msra.mxu0 0
      %3059 = vmatprep.subr.bf16.mxu0 0
      %3060 = vmatpush1.bf16.msra.mxu0 0
      %3061 = vmatprep.subr.bf16.mxu0 0
      %3062 = vmatpush1.bf16.msra.mxu0 0
      %3063 = vmatprep.subr.bf16.mxu0 0
      %3064 = vmatpush1.bf16.msra.mxu0 0
      %3065 = vmatprep.mubr.bf16.mxu0 0
      %3066 = vmatmul.mubr.bf16.gmra.mrb[0].mxu0 %v2840
      %v3067 = vpop.f32.mrb[0].mxu0
      %v3068 = vadd.f32 0.0, %v3067
      %v3069 = vpop.f32.mrb[0].mxu0
      %v3070 = vadd.f32 0.0, %v3069
      %v3071 = vpop.f32.mrb[0].mxu0
      %v3072 = vpop.f32.mrb[0].mxu0
      %3073 = vdwg.mxu0
      %3074 = vmatprep.subr.bf16.mxu0 %v2972
      %3075 = vmatpush1.bf16.msra.mxu0 %v2971
      %3076 = vmatprep.subr.bf16.mxu0 %v2976
      %3077 = vmatpush1.bf16.msra.mxu0 %v2975
      %3078 = vmatprep.subr.bf16.mxu0 %v2980
      %3079 = vmatpush1.bf16.msra.mxu0 %v2979
      %3080 = vmatprep.subr.bf16.mxu0 %v2984
      %3081 = vmatpush1.bf16.msra.mxu0 %v2983
      %3082 = vmatprep.subr.bf16.mxu0 %v2988
      %3083 = vmatpush1.bf16.msra.mxu0 %v2987
      %3084 = vmatprep.subr.bf16.mxu0 %v2992
      %3085 = vmatpush1.bf16.msra.mxu0 %v2991
      %3086 = vmatprep.subr.bf16.mxu0 %v2996
      %3087 = vmatpush1.bf16.msra.mxu0 %v2995
      %3088 = vmatprep.subr.bf16.mxu0 %v3000
      %3089 = vmatpush1.bf16.msra.mxu0 %v2999
      %3090 = vmatprep.subr.bf16.mxu0 0
      %3091 = vmatpush1.bf16.msra.mxu0 0
      %3092 = vmatprep.subr.bf16.mxu0 0
      %3093 = vmatpush1.bf16.msra.mxu0 0
      %3094 = vmatprep.subr.bf16.mxu0 0
      %3095 = vmatpush1.bf16.msra.mxu0 0
      %3096 = vmatprep.subr.bf16.mxu0 0
      %3097 = vmatpush1.bf16.msra.mxu0 0
      %3098 = vmatprep.subr.bf16.mxu0 0
      %3099 = vmatpush1.bf16.msra.mxu0 0
      %3100 = vmatprep.subr.bf16.mxu0 0
      %3101 = vmatpush1.bf16.msra.mxu0 0
      %3102 = vmatprep.subr.bf16.mxu0 0
      %3103 = vmatpush1.bf16.msra.mxu0 0
      %3104 = vmatprep.subr.bf16.mxu0 0
      %3105 = vmatpush1.bf16.msra.mxu0 0
      %3106 = vmatprep.mubr.bf16.mxu0 0
      %3107 = vmatmul.mubr.bf16.gmra.mrb[0].mxu0 %v2840
      %v3108 = vpop.f32.mrb[0].mxu0
      %v3109 = vadd.f32 0.0, %v3108
      %v3110 = vpop.f32.mrb[0].mxu0
      %v3111 = vadd.f32 0.0, %v3110
      %v3112 = vpop.f32.mrb[0].mxu0
      %v3113 = vpop.f32.mrb[0].mxu0
      %3114 = vdwg.mxu0
      %v3115 = vadd.f32 %v2835, %v3068
      %v3116 = vadd.f32 %v2836, %v3070
      %v3117 = vadd.f32 %v2837, %v3109
      %v3118 = vadd.f32 %v2838, %v3111
      %v3119 = vxor.u32 %v3115, 2147483648
      %v3120 = vmul.f32 %v3119, 1.442695
      %v3121 = vpow.pop %v3120
      %v3122 = vadd.f32 %v3121, 1.0
      %v3123 = vrcp.pop %v3122
      %v3124 = vmul.f32 1.0, %v3123
      %v3125 = vxor.u32 %v3116, 2147483648
      %v3126 = vmul.f32 %v3125, 1.442695
      %v3127 = vpow.pop %v3126
      %v3128 = vadd.f32 %v3127, 1.0
      %v3129 = vrcp.pop %v3128
      %v3130 = vmul.f32 1.0, %v3129
      %v3131 = vtanh.pop %v3117
      %v3132 = vxor.u32 %v3118, 2147483648
      %v3133 = vmul.f32 %v3132, 1.442695
      %v3134 = vpow.pop %v3133
      %v3135 = vadd.f32 %v3134, 1.0
      %v3136 = vrcp.pop %v3135
      %v3137 = vmul.f32 1.0, %v3136
      %v3138 = vld [vmem:[#allocation3] sm:$0xff]
      %v3139 = vmul.f32 %v3130, %v3138
      %v3140 = vmul.f32 %v3124, %v3131
      %v3141 = vadd.f32 %v3139, %v3140
      %v3142 = vtanh.pop %v3141
      %v3143 = vmul.f32 %v3137, %v3142
      %3144 = vst [vmem:[#allocation3] sm:$0xff] %v3141
      %3145 = vst [vmem:[#allocation2] sm:$0xff] %v3143
      %s3146 = scalar_lea.vmem [#allocation5], %s2829
      %3147 = vst [vmem:[%s3146] sm:$0xff] %v3143
      %s3148 = sadd.s32 %s19, 7
      %s3149 = smul.u32 %s3148, 8
      %s3150 = sshra.s32 %s3149, 3
      %s3151 = sand.u32 %s3149, 7
      %s3152 = smul.u32 %s3150, 4
      %s3153 = smul.addr %s3152, 8
      %s3154 = scalar_lea.vmem [#allocation4], %s3153
      %v3155 = vld [vmem:[%s3154] sm:$0xff]
      %v3156 = vld [vmem:[%s3154 + $0x8] sm:$0xff]
      %v3157 = vld [vmem:[%s3154 + $0x10] sm:$0xff]
      %v3158 = vld [vmem:[%s3154 + $0x18] sm:$0xff]
      %v3159 = vld [vmem:[#allocation2] sm:$0xff]
      %v3160 = vpack.c.bf16 %v3159, %v3159
      %v3161 = vld [vmem:[%s305] sm:$0xff]
      %v3162 = vld [vmem:[%s305 + $0x8] sm:$0xff]
      %v3163 = vld [vmem:[%s305 + $0x10] sm:$0xff]
      %v3164 = vld [vmem:[%s305 + $0x18] sm:$0xff]
      %v3165 = vld [vmem:[%s305 + $0x20] sm:$0xff]
      %v3166 = vld [vmem:[%s305 + $0x28] sm:$0xff]
      %v3167 = vld [vmem:[%s305 + $0x30] sm:$0xff]
      %v3168 = vld [vmem:[%s305 + $0x38] sm:$0xff]
      %v3169 = vld [vmem:[%s305 + $0x40] sm:$0xff]
      %v3170 = vld [vmem:[%s305 + $0x48] sm:$0xff]
      %v3171 = vld [vmem:[%s305 + $0x50] sm:$0xff]
      %v3172 = vld [vmem:[%s305 + $0x58] sm:$0xff]
      %v3173 = vld [vmem:[%s305 + $0x60] sm:$0xff]
      %v3174 = vld [vmem:[%s305 + $0x68] sm:$0xff]
      %v3175 = vld [vmem:[%s305 + $0x70] sm:$0xff]
      %v3176 = vld [vmem:[%s305 + $0x78] sm:$0xff]
      %v3177 = vld [vmem:[%s305 + $0x80] sm:$0xff]
      %v3178 = vld [vmem:[%s305 + $0x88] sm:$0xff]
      %v3179 = vld [vmem:[%s305 + $0x90] sm:$0xff]
      %v3180 = vld [vmem:[%s305 + $0x98] sm:$0xff]
      %v3181 = vld [vmem:[%s305 + $0xa0] sm:$0xff]
      %v3182 = vld [vmem:[%s305 + $0xa8] sm:$0xff]
      %v3183 = vld [vmem:[%s305 + $0xb0] sm:$0xff]
      %v3184 = vld [vmem:[%s305 + $0xb8] sm:$0xff]
      %v3185 = vld [vmem:[%s305 + $0xc0] sm:$0xff]
      %v3186 = vld [vmem:[%s305 + $0xc8] sm:$0xff]
      %v3187 = vld [vmem:[%s305 + $0xd0] sm:$0xff]
      %v3188 = vld [vmem:[%s305 + $0xd8] sm:$0xff]
      %v3189 = vld [vmem:[%s305 + $0xe0] sm:$0xff]
      %v3190 = vld [vmem:[%s305 + $0xe8] sm:$0xff]
      %v3191 = vld [vmem:[%s305 + $0xf0] sm:$0xff]
      %v3192 = vld [vmem:[%s305 + $0xf8] sm:$0xff]
      %v3225 = vunpack.c.l.b16 %v3161
      %v3226 = vunpack.c.h.b16 %v3161
      %v3227 = vunpack.c.l.b16 %v3162
      %v3228 = vunpack.c.h.b16 %v3162
      %v3229 = vunpack.c.l.b16 %v3163
      %v3230 = vunpack.c.h.b16 %v3163
      %v3231 = vunpack.c.l.b16 %v3164
      %v3232 = vunpack.c.h.b16 %v3164
      %v3233 = vunpack.c.l.b16 %v3165
      %v3234 = vunpack.c.h.b16 %v3165
      %v3235 = vunpack.c.l.b16 %v3166
      %v3236 = vunpack.c.h.b16 %v3166
      %v3237 = vunpack.c.l.b16 %v3167
      %v3238 = vunpack.c.h.b16 %v3167
      %v3239 = vunpack.c.l.b16 %v3168
      %v3240 = vunpack.c.h.b16 %v3168
      %v3241 = vunpack.c.l.b16 %v3169
      %v3242 = vunpack.c.h.b16 %v3169
      %v3243 = vunpack.c.l.b16 %v3170
      %v3244 = vunpack.c.h.b16 %v3170
      %v3245 = vunpack.c.l.b16 %v3171
      %v3246 = vunpack.c.h.b16 %v3171
      %v3247 = vunpack.c.l.b16 %v3172
      %v3248 = vunpack.c.h.b16 %v3172
      %v3249 = vunpack.c.l.b16 %v3173
      %v3250 = vunpack.c.h.b16 %v3173
      %v3251 = vunpack.c.l.b16 %v3174
      %v3252 = vunpack.c.h.b16 %v3174
      %v3253 = vunpack.c.l.b16 %v3175
      %v3254 = vunpack.c.h.b16 %v3175
      %v3255 = vunpack.c.l.b16 %v3176
      %v3256 = vunpack.c.h.b16 %v3176
      %v3257 = vunpack.c.l.b16 %v3177
      %v3258 = vunpack.c.h.b16 %v3177
      %v3259 = vunpack.c.l.b16 %v3178
      %v3260 = vunpack.c.h.b16 %v3178
      %v3261 = vunpack.c.l.b16 %v3179
      %v3262 = vunpack.c.h.b16 %v3179
      %v3263 = vunpack.c.l.b16 %v3180
      %v3264 = vunpack.c.h.b16 %v3180
      %v3265 = vunpack.c.l.b16 %v3181
      %v3266 = vunpack.c.h.b16 %v3181
      %v3267 = vunpack.c.l.b16 %v3182
      %v3268 = vunpack.c.h.b16 %v3182
      %v3269 = vunpack.c.l.b16 %v3183
      %v3270 = vunpack.c.h.b16 %v3183
      %v3271 = vunpack.c.l.b16 %v3184
      %v3272 = vunpack.c.h.b16 %v3184
      %v3273 = vunpack.c.l.b16 %v3185
      %v3274 = vunpack.c.h.b16 %v3185
      %v3275 = vunpack.c.l.b16 %v3186
      %v3276 = vunpack.c.h.b16 %v3186
      %v3277 = vunpack.c.l.b16 %v3187
      %v3278 = vunpack.c.h.b16 %v3187
      %v3279 = vunpack.c.l.b16 %v3188
      %v3280 = vunpack.c.h.b16 %v3188
      %v3281 = vunpack.c.l.b16 %v3189
      %v3282 = vunpack.c.h.b16 %v3189
      %v3283 = vunpack.c.l.b16 %v3190
      %v3284 = vunpack.c.h.b16 %v3190
      %v3285 = vunpack.c.l.b16 %v3191
      %v3286 = vunpack.c.h.b16 %v3191
      %v3287 = vunpack.c.l.b16 %v3192
      %v3288 = vunpack.c.h.b16 %v3192
      %v3289 = vpack.c.b16 %v3229, %v3225
      %v3290 = vpack.c.b16 %v3230, %v3226
      %v3291 = vpack.c.b16 %v3231, %v3227
      %v3292 = vpack.c.b16 %v3232, %v3228
      %v3293 = vpack.c.b16 %v3237, %v3233
      %v3294 = vpack.c.b16 %v3238, %v3234
      %v3295 = vpack.c.b16 %v3239, %v3235
      %v3296 = vpack.c.b16 %v3240, %v3236
      %v3297 = vpack.c.b16 %v3245, %v3241
      %v3298 = vpack.c.b16 %v3246, %v3242
      %v3299 = vpack.c.b16 %v3247, %v3243
      %v3300 = vpack.c.b16 %v3248, %v3244
      %v3301 = vpack.c.b16 %v3253, %v3249
      %v3302 = vpack.c.b16 %v3254, %v3250
      %v3303 = vpack.c.b16 %v3255, %v3251
      %v3304 = vpack.c.b16 %v3256, %v3252
      %v3305 = vpack.c.b16 %v3261, %v3257
      %v3306 = vpack.c.b16 %v3262, %v3258
      %v3307 = vpack.c.b16 %v3263, %v3259
      %v3308 = vpack.c.b16 %v3264, %v3260
      %v3309 = vpack.c.b16 %v3269, %v3265
      %v3310 = vpack.c.b16 %v3270, %v3266
      %v3311 = vpack.c.b16 %v3271, %v3267
      %v3312 = vpack.c.b16 %v3272, %v3268
      %v3313 = vpack.c.b16 %v3277, %v3273
      %v3314 = vpack.c.b16 %v3278, %v3274
      %v3315 = vpack.c.b16 %v3279, %v3275
      %v3316 = vpack.c.b16 %v3280, %v3276
      %v3317 = vpack.c.b16 %v3285, %v3281
      %v3318 = vpack.c.b16 %v3286, %v3282
      %v3319 = vpack.c.b16 %v3287, %v3283
      %v3320 = vpack.c.b16 %v3288, %v3284
      %3353 = vmatprep.subr.bf16.mxu0 %v3290
      %3354 = vmatpush1.bf16.msra.mxu0 %v3289
      %3355 = vmatprep.subr.bf16.mxu0 %v3294
      %3356 = vmatpush1.bf16.msra.mxu0 %v3293
      %3357 = vmatprep.subr.bf16.mxu0 %v3298
      %3358 = vmatpush1.bf16.msra.mxu0 %v3297
      %3359 = vmatprep.subr.bf16.mxu0 %v3302
      %3360 = vmatpush1.bf16.msra.mxu0 %v3301
      %3361 = vmatprep.subr.bf16.mxu0 %v3306
      %3362 = vmatpush1.bf16.msra.mxu0 %v3305
      %3363 = vmatprep.subr.bf16.mxu0 %v3310
      %3364 = vmatpush1.bf16.msra.mxu0 %v3309
      %3365 = vmatprep.subr.bf16.mxu0 %v3314
      %3366 = vmatpush1.bf16.msra.mxu0 %v3313
      %3367 = vmatprep.subr.bf16.mxu0 %v3318
      %3368 = vmatpush1.bf16.msra.mxu0 %v3317
      %3369 = vmatprep.subr.bf16.mxu0 0
      %3370 = vmatpush1.bf16.msra.mxu0 0
      %3371 = vmatprep.subr.bf16.mxu0 0
      %3372 = vmatpush1.bf16.msra.mxu0 0
      %3373 = vmatprep.subr.bf16.mxu0 0
      %3374 = vmatpush1.bf16.msra.mxu0 0
      %3375 = vmatprep.subr.bf16.mxu0 0
      %3376 = vmatpush1.bf16.msra.mxu0 0
      %3377 = vmatprep.subr.bf16.mxu0 0
      %3378 = vmatpush1.bf16.msra.mxu0 0
      %3379 = vmatprep.subr.bf16.mxu0 0
      %3380 = vmatpush1.bf16.msra.mxu0 0
      %3381 = vmatprep.subr.bf16.mxu0 0
      %3382 = vmatpush1.bf16.msra.mxu0 0
      %3383 = vmatprep.subr.bf16.mxu0 0
      %3384 = vmatpush1.bf16.msra.mxu0 0
      %3385 = vmatprep.mubr.bf16.mxu0 0
      %3386 = vmatmul.mubr.bf16.gmra.mrb[0].mxu0 %v3160
      %v3387 = vpop.f32.mrb[0].mxu0
      %v3388 = vadd.f32 0.0, %v3387
      %v3389 = vpop.f32.mrb[0].mxu0
      %v3390 = vadd.f32 0.0, %v3389
      %v3391 = vpop.f32.mrb[0].mxu0
      %v3392 = vpop.f32.mrb[0].mxu0
      %3393 = vdwg.mxu0
      %3394 = vmatprep.subr.bf16.mxu0 %v3292
      %3395 = vmatpush1.bf16.msra.mxu0 %v3291
      %3396 = vmatprep.subr.bf16.mxu0 %v3296
      %3397 = vmatpush1.bf16.msra.mxu0 %v3295
      %3398 = vmatprep.subr.bf16.mxu0 %v3300
      %3399 = vmatpush1.bf16.msra.mxu0 %v3299
      %3400 = vmatprep.subr.bf16.mxu0 %v3304
      %3401 = vmatpush1.bf16.msra.mxu0 %v3303
      %3402 = vmatprep.subr.bf16.mxu0 %v3308
      %3403 = vmatpush1.bf16.msra.mxu0 %v3307
      %3404 = vmatprep.subr.bf16.mxu0 %v3312
      %3405 = vmatpush1.bf16.msra.mxu0 %v3311
      %3406 = vmatprep.subr.bf16.mxu0 %v3316
      %3407 = vmatpush1.bf16.msra.mxu0 %v3315
      %3408 = vmatprep.subr.bf16.mxu0 %v3320
      %3409 = vmatpush1.bf16.msra.mxu0 %v3319
      %3410 = vmatprep.subr.bf16.mxu0 0
      %3411 = vmatpush1.bf16.msra.mxu0 0
      %3412 = vmatprep.subr.bf16.mxu0 0
      %3413 = vmatpush1.bf16.msra.mxu0 0
      %3414 = vmatprep.subr.bf16.mxu0 0
      %3415 = vmatpush1.bf16.msra.mxu0 0
      %3416 = vmatprep.subr.bf16.mxu0 0
      %3417 = vmatpush1.bf16.msra.mxu0 0
      %3418 = vmatprep.subr.bf16.mxu0 0
      %3419 = vmatpush1.bf16.msra.mxu0 0
      %3420 = vmatprep.subr.bf16.mxu0 0
      %3421 = vmatpush1.bf16.msra.mxu0 0
      %3422 = vmatprep.subr.bf16.mxu0 0
      %3423 = vmatpush1.bf16.msra.mxu0 0
      %3424 = vmatprep.subr.bf16.mxu0 0
      %3425 = vmatpush1.bf16.msra.mxu0 0
      %3426 = vmatprep.mubr.bf16.mxu0 0
      %3427 = vmatmul.mubr.bf16.gmra.mrb[0].mxu0 %v3160
      %v3428 = vpop.f32.mrb[0].mxu0
      %v3429 = vadd.f32 0.0, %v3428
      %v3430 = vpop.f32.mrb[0].mxu0
      %v3431 = vadd.f32 0.0, %v3430
      %v3432 = vpop.f32.mrb[0].mxu0
      %v3433 = vpop.f32.mrb[0].mxu0
      %3434 = vdwg.mxu0
      %v3435 = vadd.f32 %v3155, %v3388
      %v3436 = vadd.f32 %v3156, %v3390
      %v3437 = vadd.f32 %v3157, %v3429
      %v3438 = vadd.f32 %v3158, %v3431
      %v3439 = vxor.u32 %v3435, 2147483648
      %v3440 = vmul.f32 %v3439, 1.442695
      %v3441 = vpow.pop %v3440
      %v3442 = vadd.f32 %v3441, 1.0
      %v3443 = vrcp.pop %v3442
      %v3444 = vmul.f32 1.0, %v3443
      %v3445 = vxor.u32 %v3436, 2147483648
      %v3446 = vmul.f32 %v3445, 1.442695
      %v3447 = vpow.pop %v3446
      %v3448 = vadd.f32 %v3447, 1.0
      %v3449 = vrcp.pop %v3448
      %v3450 = vmul.f32 1.0, %v3449
      %v3451 = vtanh.pop %v3437
      %v3452 = vxor.u32 %v3438, 2147483648
      %v3453 = vmul.f32 %v3452, 1.442695
      %v3454 = vpow.pop %v3453
      %v3455 = vadd.f32 %v3454, 1.0
      %v3456 = vrcp.pop %v3455
      %v3457 = vmul.f32 1.0, %v3456
      %v3458 = vld [vmem:[#allocation3] sm:$0xff]
      %v3459 = vmul.f32 %v3450, %v3458
      %v3460 = vmul.f32 %v3444, %v3451
      %v3461 = vadd.f32 %v3459, %v3460
      %v3462 = vtanh.pop %v3461
      %v3463 = vmul.f32 %v3457, %v3462
      %3464 = vst [vmem:[#allocation3] sm:$0xff] %v3461
      %3465 = vst [vmem:[#allocation2] sm:$0xff] %v3463
      %s3466 = scalar_lea.vmem [#allocation5], %s3149
      %3467 = vst [vmem:[%s3466] sm:$0xff] %v3463
      %s3468 = ssub.s32 8, %s19
      %s3469 = smul.u32 %s3468, 8
      %s3470 = sshra.s32 %s3469, 3
      %s3471 = sand.u32 %s3469, 7
      %s3472 = smul.u32 %s3470, 4
      %s3473 = smul.addr %s3472, 8
      %s3474 = scalar_lea.vmem [#allocation4], %s3473
      %v3475 = vld [vmem:[%s3474] sm:$0xff]
      %v3476 = vld [vmem:[%s3474 + $0x8] sm:$0xff]
      %v3477 = vld [vmem:[%s3474 + $0x10] sm:$0xff]
      %v3478 = vld [vmem:[%s3474 + $0x18] sm:$0xff]
      %v3479 = vld [vmem:[#allocation2] sm:$0xff]
      %v3480 = vpack.c.bf16 %v3479, %v3479
      %v3481 = vld [vmem:[%s305] sm:$0xff]
      %v3482 = vld [vmem:[%s305 + $0x8] sm:$0xff]
      %v3483 = vld [vmem:[%s305 + $0x10] sm:$0xff]
      %v3484 = vld [vmem:[%s305 + $0x18] sm:$0xff]
      %v3485 = vld [vmem:[%s305 + $0x20] sm:$0xff]
      %v3486 = vld [vmem:[%s305 + $0x28] sm:$0xff]
      %v3487 = vld [vmem:[%s305 + $0x30] sm:$0xff]
      %v3488 = vld [vmem:[%s305 + $0x38] sm:$0xff]
      %v3489 = vld [vmem:[%s305 + $0x40] sm:$0xff]
      %v3490 = vld [vmem:[%s305 + $0x48] sm:$0xff]
      %v3491 = vld [vmem:[%s305 + $0x50] sm:$0xff]
      %v3492 = vld [vmem:[%s305 + $0x58] sm:$0xff]
      %v3493 = vld [vmem:[%s305 + $0x60] sm:$0xff]
      %v3494 = vld [vmem:[%s305 + $0x68] sm:$0xff]
      %v3495 = vld [vmem:[%s305 + $0x70] sm:$0xff]
      %v3496 = vld [vmem:[%s305 + $0x78] sm:$0xff]
      %v3497 = vld [vmem:[%s305 + $0x80] sm:$0xff]
      %v3498 = vld [vmem:[%s305 + $0x88] sm:$0xff]
      %v3499 = vld [vmem:[%s305 + $0x90] sm:$0xff]
      %v3500 = vld [vmem:[%s305 + $0x98] sm:$0xff]
      %v3501 = vld [vmem:[%s305 + $0xa0] sm:$0xff]
      %v3502 = vld [vmem:[%s305 + $0xa8] sm:$0xff]
      %v3503 = vld [vmem:[%s305 + $0xb0] sm:$0xff]
      %v3504 = vld [vmem:[%s305 + $0xb8] sm:$0xff]
      %v3505 = vld [vmem:[%s305 + $0xc0] sm:$0xff]
      %v3506 = vld [vmem:[%s305 + $0xc8] sm:$0xff]
      %v3507 = vld [vmem:[%s305 + $0xd0] sm:$0xff]
      %v3508 = vld [vmem:[%s305 + $0xd8] sm:$0xff]
      %v3509 = vld [vmem:[%s305 + $0xe0] sm:$0xff]
      %v3510 = vld [vmem:[%s305 + $0xe8] sm:$0xff]
      %v3511 = vld [vmem:[%s305 + $0xf0] sm:$0xff]
      %v3512 = vld [vmem:[%s305 + $0xf8] sm:$0xff]
      %v3545 = vunpack.c.l.b16 %v3481
      %v3546 = vunpack.c.h.b16 %v3481
      %v3547 = vunpack.c.l.b16 %v3482
      %v3548 = vunpack.c.h.b16 %v3482
      %v3549 = vunpack.c.l.b16 %v3483
      %v3550 = vunpack.c.h.b16 %v3483
      %v3551 = vunpack.c.l.b16 %v3484
      %v3552 = vunpack.c.h.b16 %v3484
      %v3553 = vunpack.c.l.b16 %v3485
      %v3554 = vunpack.c.h.b16 %v3485
      %v3555 = vunpack.c.l.b16 %v3486
      %v3556 = vunpack.c.h.b16 %v3486
      %v3557 = vunpack.c.l.b16 %v3487
      %v3558 = vunpack.c.h.b16 %v3487
      %v3559 = vunpack.c.l.b16 %v3488
      %v3560 = vunpack.c.h.b16 %v3488
      %v3561 = vunpack.c.l.b16 %v3489
      %v3562 = vunpack.c.h.b16 %v3489
      %v3563 = vunpack.c.l.b16 %v3490
      %v3564 = vunpack.c.h.b16 %v3490
      %v3565 = vunpack.c.l.b16 %v3491
      %v3566 = vunpack.c.h.b16 %v3491
      %v3567 = vunpack.c.l.b16 %v3492
      %v3568 = vunpack.c.h.b16 %v3492
      %v3569 = vunpack.c.l.b16 %v3493
      %v3570 = vunpack.c.h.b16 %v3493
      %v3571 = vunpack.c.l.b16 %v3494
      %v3572 = vunpack.c.h.b16 %v3494
      %v3573 = vunpack.c.l.b16 %v3495
      %v3574 = vunpack.c.h.b16 %v3495
      %v3575 = vunpack.c.l.b16 %v3496
      %v3576 = vunpack.c.h.b16 %v3496
      %v3577 = vunpack.c.l.b16 %v3497
      %v3578 = vunpack.c.h.b16 %v3497
      %v3579 = vunpack.c.l.b16 %v3498
      %v3580 = vunpack.c.h.b16 %v3498
      %v3581 = vunpack.c.l.b16 %v3499
      %v3582 = vunpack.c.h.b16 %v3499
      %v3583 = vunpack.c.l.b16 %v3500
      %v3584 = vunpack.c.h.b16 %v3500
      %v3585 = vunpack.c.l.b16 %v3501
      %v3586 = vunpack.c.h.b16 %v3501
      %v3587 = vunpack.c.l.b16 %v3502
      %v3588 = vunpack.c.h.b16 %v3502
      %v3589 = vunpack.c.l.b16 %v3503
      %v3590 = vunpack.c.h.b16 %v3503
      %v3591 = vunpack.c.l.b16 %v3504
      %v3592 = vunpack.c.h.b16 %v3504
      %v3593 = vunpack.c.l.b16 %v3505
      %v3594 = vunpack.c.h.b16 %v3505
      %v3595 = vunpack.c.l.b16 %v3506
      %v3596 = vunpack.c.h.b16 %v3506
      %v3597 = vunpack.c.l.b16 %v3507
      %v3598 = vunpack.c.h.b16 %v3507
      %v3599 = vunpack.c.l.b16 %v3508
      %v3600 = vunpack.c.h.b16 %v3508
      %v3601 = vunpack.c.l.b16 %v3509
      %v3602 = vunpack.c.h.b16 %v3509
      %v3603 = vunpack.c.l.b16 %v3510
      %v3604 = vunpack.c.h.b16 %v3510
      %v3605 = vunpack.c.l.b16 %v3511
      %v3606 = vunpack.c.h.b16 %v3511
      %v3607 = vunpack.c.l.b16 %v3512
      %v3608 = vunpack.c.h.b16 %v3512
      %v3609 = vpack.c.b16 %v3549, %v3545
      %v3610 = vpack.c.b16 %v3550, %v3546
      %v3611 = vpack.c.b16 %v3551, %v3547
      %v3612 = vpack.c.b16 %v3552, %v3548
      %v3613 = vpack.c.b16 %v3557, %v3553
      %v3614 = vpack.c.b16 %v3558, %v3554
      %v3615 = vpack.c.b16 %v3559, %v3555
      %v3616 = vpack.c.b16 %v3560, %v3556
      %v3617 = vpack.c.b16 %v3565, %v3561
      %v3618 = vpack.c.b16 %v3566, %v3562
      %v3619 = vpack.c.b16 %v3567, %v3563
      %v3620 = vpack.c.b16 %v3568, %v3564
      %v3621 = vpack.c.b16 %v3573, %v3569
      %v3622 = vpack.c.b16 %v3574, %v3570
      %v3623 = vpack.c.b16 %v3575, %v3571
      %v3624 = vpack.c.b16 %v3576, %v3572
      %v3625 = vpack.c.b16 %v3581, %v3577
      %v3626 = vpack.c.b16 %v3582, %v3578
      %v3627 = vpack.c.b16 %v3583, %v3579
      %v3628 = vpack.c.b16 %v3584, %v3580
      %v3629 = vpack.c.b16 %v3589, %v3585
      %v3630 = vpack.c.b16 %v3590, %v3586
      %v3631 = vpack.c.b16 %v3591, %v3587
      %v3632 = vpack.c.b16 %v3592, %v3588
      %v3633 = vpack.c.b16 %v3597, %v3593
      %v3634 = vpack.c.b16 %v3598, %v3594
      %v3635 = vpack.c.b16 %v3599, %v3595
      %v3636 = vpack.c.b16 %v3600, %v3596
      %v3637 = vpack.c.b16 %v3605, %v3601
      %v3638 = vpack.c.b16 %v3606, %v3602
      %v3639 = vpack.c.b16 %v3607, %v3603
      %v3640 = vpack.c.b16 %v3608, %v3604
      %3673 = vmatprep.subr.bf16.mxu0 %v3610
      %3674 = vmatpush1.bf16.msra.mxu0 %v3609
      %3675 = vmatprep.subr.bf16.mxu0 %v3614
      %3676 = vmatpush1.bf16.msra.mxu0 %v3613
      %3677 = vmatprep.subr.bf16.mxu0 %v3618
      %3678 = vmatpush1.bf16.msra.mxu0 %v3617
      %3679 = vmatprep.subr.bf16.mxu0 %v3622
      %3680 = vmatpush1.bf16.msra.mxu0 %v3621
      %3681 = vmatprep.subr.bf16.mxu0 %v3626
      %3682 = vmatpush1.bf16.msra.mxu0 %v3625
      %3683 = vmatprep.subr.bf16.mxu0 %v3630
      %3684 = vmatpush1.bf16.msra.mxu0 %v3629
      %3685 = vmatprep.subr.bf16.mxu0 %v3634
      %3686 = vmatpush1.bf16.msra.mxu0 %v3633
      %3687 = vmatprep.subr.bf16.mxu0 %v3638
      %3688 = vmatpush1.bf16.msra.mxu0 %v3637
      %3689 = vmatprep.subr.bf16.mxu0 0
      %3690 = vmatpush1.bf16.msra.mxu0 0
      %3691 = vmatprep.subr.bf16.mxu0 0
      %3692 = vmatpush1.bf16.msra.mxu0 0
      %3693 = vmatprep.subr.bf16.mxu0 0
      %3694 = vmatpush1.bf16.msra.mxu0 0
      %3695 = vmatprep.subr.bf16.mxu0 0
      %3696 = vmatpush1.bf16.msra.mxu0 0
      %3697 = vmatprep.subr.bf16.mxu0 0
      %3698 = vmatpush1.bf16.msra.mxu0 0
      %3699 = vmatprep.subr.bf16.mxu0 0
      %3700 = vmatpush1.bf16.msra.mxu0 0
      %3701 = vmatprep.subr.bf16.mxu0 0
      %3702 = vmatpush1.bf16.msra.mxu0 0
      %3703 = vmatprep.subr.bf16.mxu0 0
      %3704 = vmatpush1.bf16.msra.mxu0 0
      %3705 = vmatprep.mubr.bf16.mxu0 0
      %3706 = vmatmul.mubr.bf16.gmra.mrb[0].mxu0 %v3480
      %v3707 = vpop.f32.mrb[0].mxu0
      %v3708 = vadd.f32 0.0, %v3707
      %v3709 = vpop.f32.mrb[0].mxu0
      %v3710 = vadd.f32 0.0, %v3709
      %v3711 = vpop.f32.mrb[0].mxu0
      %v3712 = vpop.f32.mrb[0].mxu0
      %3713 = vdwg.mxu0
      %3714 = vmatprep.subr.bf16.mxu0 %v3612
      %3715 = vmatpush1.bf16.msra.mxu0 %v3611
      %3716 = vmatprep.subr.bf16.mxu0 %v3616
      %3717 = vmatpush1.bf16.msra.mxu0 %v3615
      %3718 = vmatprep.subr.bf16.mxu0 %v3620
      %3719 = vmatpush1.bf16.msra.mxu0 %v3619
      %3720 = vmatprep.subr.bf16.mxu0 %v3624
      %3721 = vmatpush1.bf16.msra.mxu0 %v3623
      %3722 = vmatprep.subr.bf16.mxu0 %v3628
      %3723 = vmatpush1.bf16.msra.mxu0 %v3627
      %3724 = vmatprep.subr.bf16.mxu0 %v3632
      %3725 = vmatpush1.bf16.msra.mxu0 %v3631
      %3726 = vmatprep.subr.bf16.mxu0 %v3636
      %3727 = vmatpush1.bf16.msra.mxu0 %v3635
      %3728 = vmatprep.subr.bf16.mxu0 %v3640
      %3729 = vmatpush1.bf16.msra.mxu0 %v3639
      %3730 = vmatprep.subr.bf16.mxu0 0
      %3731 = vmatpush1.bf16.msra.mxu0 0
      %3732 = vmatprep.subr.bf16.mxu0 0
      %3733 = vmatpush1.bf16.msra.mxu0 0
      %3734 = vmatprep.subr.bf16.mxu0 0
      %3735 = vmatpush1.bf16.msra.mxu0 0
      %3736 = vmatprep.subr.bf16.mxu0 0
      %3737 = vmatpush1.bf16.msra.mxu0 0
      %3738 = vmatprep.subr.bf16.mxu0 0
      %3739 = vmatpush1.bf16.msra.mxu0 0
      %3740 = vmatprep.subr.bf16.mxu0 0
      %3741 = vmatpush1.bf16.msra.mxu0 0
      %3742 = vmatprep.subr.bf16.mxu0 0
      %3743 = vmatpush1.bf16.msra.mxu0 0
      %3744 = vmatprep.subr.bf16.mxu0 0
      %3745 = vmatpush1.bf16.msra.mxu0 0
      %3746 = vmatprep.mubr.bf16.mxu0 0
      %3747 = vmatmul.mubr.bf16.gmra.mrb[0].mxu0 %v3480
      %v3748 = vpop.f32.mrb[0].mxu0
      %v3749 = vadd.f32 0.0, %v3748
      %v3750 = vpop.f32.mrb[0].mxu0
      %v3751 = vadd.f32 0.0, %v3750
      %v3752 = vpop.f32.mrb[0].mxu0
      %v3753 = vpop.f32.mrb[0].mxu0
      %3754 = vdwg.mxu0
      %v3755 = vadd.f32 %v3475, %v3708
      %v3756 = vadd.f32 %v3476, %v3710
      %v3757 = vadd.f32 %v3477, %v3749
      %v3758 = vadd.f32 %v3478, %v3751
      %v3759 = vxor.u32 %v3755, 2147483648
      %v3760 = vmul.f32 %v3759, 1.442695
      %v3761 = vpow.pop %v3760
      %v3762 = vadd.f32 %v3761, 1.0
      %v3763 = vrcp.pop %v3762
      %v3764 = vmul.f32 1.0, %v3763
      %v3765 = vxor.u32 %v3756, 2147483648
      %v3766 = vmul.f32 %v3765, 1.442695
      %v3767 = vpow.pop %v3766
      %v3768 = vadd.f32 %v3767, 1.0
      %v3769 = vrcp.pop %v3768
      %v3770 = vmul.f32 1.0, %v3769
      %v3771 = vtanh.pop %v3757
      %v3772 = vxor.u32 %v3758, 2147483648
      %v3773 = vmul.f32 %v3772, 1.442695
      %v3774 = vpow.pop %v3773
      %v3775 = vadd.f32 %v3774, 1.0
      %v3776 = vrcp.pop %v3775
      %v3777 = vmul.f32 1.0, %v3776
      %v3778 = vld [vmem:[#allocation3] sm:$0xff]
      %v3779 = vmul.f32 %v3770, %v3778
      %v3780 = vmul.f32 %v3764, %v3771
      %v3781 = vadd.f32 %v3779, %v3780
      %v3782 = vtanh.pop %v3781
      %v3783 = vmul.f32 %v3777, %v3782
      %3784 = vst [vmem:[#allocation3] sm:$0xff] %v3781
      %3785 = vst [vmem:[#allocation2] sm:$0xff] %v3783
      %s3786 = scalar_lea.vmem [#allocation5], %s3469
      %3787 = vst [vmem:[%s3786] sm:$0xff] %v3783
      %s3788 = smul.u32 %s19, 4294967293
      %s3789 = sadd.s32 %s3788, 9
      %s3790 = smul.u32 %s3789, 8
      %s3791 = sshra.s32 %s3790, 3
      %s3792 = sand.u32 %s3790, 7
      %s3793 = smul.u32 %s3791, 4
      %s3794 = smul.addr %s3793, 8
      %s3795 = scalar_lea.vmem [#allocation4], %s3794
      %v3796 = vld [vmem:[%s3795] sm:$0xff]
      %v3797 = vld [vmem:[%s3795 + $0x8] sm:$0xff]
      %v3798 = vld [vmem:[%s3795 + $0x10] sm:$0xff]
      %v3799 = vld [vmem:[%s3795 + $0x18] sm:$0xff]
      %v3800 = vld [vmem:[#allocation2] sm:$0xff]
      %v3801 = vpack.c.bf16 %v3800, %v3800
      %v3802 = vld [vmem:[%s305] sm:$0xff]
      %v3803 = vld [vmem:[%s305 + $0x8] sm:$0xff]
      %v3804 = vld [vmem:[%s305 + $0x10] sm:$0xff]
      %v3805 = vld [vmem:[%s305 + $0x18] sm:$0xff]
      %v3806 = vld [vmem:[%s305 + $0x20] sm:$0xff]
      %v3807 = vld [vmem:[%s305 + $0x28] sm:$0xff]
      %v3808 = vld [vmem:[%s305 + $0x30] sm:$0xff]
      %v3809 = vld [vmem:[%s305 + $0x38] sm:$0xff]
      %v3810 = vld [vmem:[%s305 + $0x40] sm:$0xff]
      %v3811 = vld [vmem:[%s305 + $0x48] sm:$0xff]
      %v3812 = vld [vmem:[%s305 + $0x50] sm:$0xff]
      %v3813 = vld [vmem:[%s305 + $0x58] sm:$0xff]
      %v3814 = vld [vmem:[%s305 + $0x60] sm:$0xff]
      %v3815 = vld [vmem:[%s305 + $0x68] sm:$0xff]
      %v3816 = vld [vmem:[%s305 + $0x70] sm:$0xff]
      %v3817 = vld [vmem:[%s305 + $0x78] sm:$0xff]
      %v3818 = vld [vmem:[%s305 + $0x80] sm:$0xff]
      %v3819 = vld [vmem:[%s305 + $0x88] sm:$0xff]
      %v3820 = vld [vmem:[%s305 + $0x90] sm:$0xff]
      %v3821 = vld [vmem:[%s305 + $0x98] sm:$0xff]
      %v3822 = vld [vmem:[%s305 + $0xa0] sm:$0xff]
      %v3823 = vld [vmem:[%s305 + $0xa8] sm:$0xff]
      %v3824 = vld [vmem:[%s305 + $0xb0] sm:$0xff]
      %v3825 = vld [vmem:[%s305 + $0xb8] sm:$0xff]
      %v3826 = vld [vmem:[%s305 + $0xc0] sm:$0xff]
      %v3827 = vld [vmem:[%s305 + $0xc8] sm:$0xff]
      %v3828 = vld [vmem:[%s305 + $0xd0] sm:$0xff]
      %v3829 = vld [vmem:[%s305 + $0xd8] sm:$0xff]
      %v3830 = vld [vmem:[%s305 + $0xe0] sm:$0xff]
      %v3831 = vld [vmem:[%s305 + $0xe8] sm:$0xff]
      %v3832 = vld [vmem:[%s305 + $0xf0] sm:$0xff]
      %v3833 = vld [vmem:[%s305 + $0xf8] sm:$0xff]
      %v3866 = vunpack.c.l.b16 %v3802
      %v3867 = vunpack.c.h.b16 %v3802
      %v3868 = vunpack.c.l.b16 %v3803
      %v3869 = vunpack.c.h.b16 %v3803
      %v3870 = vunpack.c.l.b16 %v3804
      %v3871 = vunpack.c.h.b16 %v3804
      %v3872 = vunpack.c.l.b16 %v3805
      %v3873 = vunpack.c.h.b16 %v3805
      %v3874 = vunpack.c.l.b16 %v3806
      %v3875 = vunpack.c.h.b16 %v3806
      %v3876 = vunpack.c.l.b16 %v3807
      %v3877 = vunpack.c.h.b16 %v3807
      %v3878 = vunpack.c.l.b16 %v3808
      %v3879 = vunpack.c.h.b16 %v3808
      %v3880 = vunpack.c.l.b16 %v3809
      %v3881 = vunpack.c.h.b16 %v3809
      %v3882 = vunpack.c.l.b16 %v3810
      %v3883 = vunpack.c.h.b16 %v3810
      %v3884 = vunpack.c.l.b16 %v3811
      %v3885 = vunpack.c.h.b16 %v3811
      %v3886 = vunpack.c.l.b16 %v3812
      %v3887 = vunpack.c.h.b16 %v3812
      %v3888 = vunpack.c.l.b16 %v3813
      %v3889 = vunpack.c.h.b16 %v3813
      %v3890 = vunpack.c.l.b16 %v3814
      %v3891 = vunpack.c.h.b16 %v3814
      %v3892 = vunpack.c.l.b16 %v3815
      %v3893 = vunpack.c.h.b16 %v3815
      %v3894 = vunpack.c.l.b16 %v3816
      %v3895 = vunpack.c.h.b16 %v3816
      %v3896 = vunpack.c.l.b16 %v3817
      %v3897 = vunpack.c.h.b16 %v3817
      %v3898 = vunpack.c.l.b16 %v3818
      %v3899 = vunpack.c.h.b16 %v3818
      %v3900 = vunpack.c.l.b16 %v3819
      %v3901 = vunpack.c.h.b16 %v3819
      %v3902 = vunpack.c.l.b16 %v3820
      %v3903 = vunpack.c.h.b16 %v3820
      %v3904 = vunpack.c.l.b16 %v3821
      %v3905 = vunpack.c.h.b16 %v3821
      %v3906 = vunpack.c.l.b16 %v3822
      %v3907 = vunpack.c.h.b16 %v3822
      %v3908 = vunpack.c.l.b16 %v3823
      %v3909 = vunpack.c.h.b16 %v3823
      %v3910 = vunpack.c.l.b16 %v3824
      %v3911 = vunpack.c.h.b16 %v3824
      %v3912 = vunpack.c.l.b16 %v3825
      %v3913 = vunpack.c.h.b16 %v3825
      %v3914 = vunpack.c.l.b16 %v3826
      %v3915 = vunpack.c.h.b16 %v3826
      %v3916 = vunpack.c.l.b16 %v3827
      %v3917 = vunpack.c.h.b16 %v3827
      %v3918 = vunpack.c.l.b16 %v3828
      %v3919 = vunpack.c.h.b16 %v3828
      %v3920 = vunpack.c.l.b16 %v3829
      %v3921 = vunpack.c.h.b16 %v3829
      %v3922 = vunpack.c.l.b16 %v3830
      %v3923 = vunpack.c.h.b16 %v3830
      %v3924 = vunpack.c.l.b16 %v3831
      %v3925 = vunpack.c.h.b16 %v3831
      %v3926 = vunpack.c.l.b16 %v3832
      %v3927 = vunpack.c.h.b16 %v3832
      %v3928 = vunpack.c.l.b16 %v3833
      %v3929 = vunpack.c.h.b16 %v3833
      %v3930 = vpack.c.b16 %v3870, %v3866
      %v3931 = vpack.c.b16 %v3871, %v3867
      %v3932 = vpack.c.b16 %v3872, %v3868
      %v3933 = vpack.c.b16 %v3873, %v3869
      %v3934 = vpack.c.b16 %v3878, %v3874
      %v3935 = vpack.c.b16 %v3879, %v3875
      %v3936 = vpack.c.b16 %v3880, %v3876
      %v3937 = vpack.c.b16 %v3881, %v3877
      %v3938 = vpack.c.b16 %v3886, %v3882
      %v3939 = vpack.c.b16 %v3887, %v3883
      %v3940 = vpack.c.b16 %v3888, %v3884
      %v3941 = vpack.c.b16 %v3889, %v3885
      %v3942 = vpack.c.b16 %v3894, %v3890
      %v3943 = vpack.c.b16 %v3895, %v3891
      %v3944 = vpack.c.b16 %v3896, %v3892
      %v3945 = vpack.c.b16 %v3897, %v3893
      %v3946 = vpack.c.b16 %v3902, %v3898
      %v3947 = vpack.c.b16 %v3903, %v3899
      %v3948 = vpack.c.b16 %v3904, %v3900
      %v3949 = vpack.c.b16 %v3905, %v3901
      %v3950 = vpack.c.b16 %v3910, %v3906
      %v3951 = vpack.c.b16 %v3911, %v3907
      %v3952 = vpack.c.b16 %v3912, %v3908
      %v3953 = vpack.c.b16 %v3913, %v3909
      %v3954 = vpack.c.b16 %v3918, %v3914
      %v3955 = vpack.c.b16 %v3919, %v3915
      %v3956 = vpack.c.b16 %v3920, %v3916
      %v3957 = vpack.c.b16 %v3921, %v3917
      %v3958 = vpack.c.b16 %v3926, %v3922
      %v3959 = vpack.c.b16 %v3927, %v3923
      %v3960 = vpack.c.b16 %v3928, %v3924
      %v3961 = vpack.c.b16 %v3929, %v3925
      %3994 = vmatprep.subr.bf16.mxu0 %v3931
      %3995 = vmatpush1.bf16.msra.mxu0 %v3930
      %3996 = vmatprep.subr.bf16.mxu0 %v3935
      %3997 = vmatpush1.bf16.msra.mxu0 %v3934
      %3998 = vmatprep.subr.bf16.mxu0 %v3939
      %3999 = vmatpush1.bf16.msra.mxu0 %v3938
      %4000 = vmatprep.subr.bf16.mxu0 %v3943
      %4001 = vmatpush1.bf16.msra.mxu0 %v3942
      %4002 = vmatprep.subr.bf16.mxu0 %v3947
      %4003 = vmatpush1.bf16.msra.mxu0 %v3946
      %4004 = vmatprep.subr.bf16.mxu0 %v3951
      %4005 = vmatpush1.bf16.msra.mxu0 %v3950
      %4006 = vmatprep.subr.bf16.mxu0 %v3955
      %4007 = vmatpush1.bf16.msra.mxu0 %v3954
      %4008 = vmatprep.subr.bf16.mxu0 %v3959
      %4009 = vmatpush1.bf16.msra.mxu0 %v3958
      %4010 = vmatprep.subr.bf16.mxu0 0
      %4011 = vmatpush1.bf16.msra.mxu0 0
      %4012 = vmatprep.subr.bf16.mxu0 0
      %4013 = vmatpush1.bf16.msra.mxu0 0
      %4014 = vmatprep.subr.bf16.mxu0 0
      %4015 = vmatpush1.bf16.msra.mxu0 0
      %4016 = vmatprep.subr.bf16.mxu0 0
      %4017 = vmatpush1.bf16.msra.mxu0 0
      %4018 = vmatprep.subr.bf16.mxu0 0
      %4019 = vmatpush1.bf16.msra.mxu0 0
      %4020 = vmatprep.subr.bf16.mxu0 0
      %4021 = vmatpush1.bf16.msra.mxu0 0
      %4022 = vmatprep.subr.bf16.mxu0 0
      %4023 = vmatpush1.bf16.msra.mxu0 0
      %4024 = vmatprep.subr.bf16.mxu0 0
      %4025 = vmatpush1.bf16.msra.mxu0 0
      %4026 = vmatprep.mubr.bf16.mxu0 0
      %4027 = vmatmul.mubr.bf16.gmra.mrb[0].mxu0 %v3801
      %v4028 = vpop.f32.mrb[0].mxu0
      %v4029 = vadd.f32 0.0, %v4028
      %v4030 = vpop.f32.mrb[0].mxu0
      %v4031 = vadd.f32 0.0, %v4030
      %v4032 = vpop.f32.mrb[0].mxu0
      %v4033 = vpop.f32.mrb[0].mxu0
      %4034 = vdwg.mxu0
      %4035 = vmatprep.subr.bf16.mxu0 %v3933
      %4036 = vmatpush1.bf16.msra.mxu0 %v3932
      %4037 = vmatprep.subr.bf16.mxu0 %v3937
      %4038 = vmatpush1.bf16.msra.mxu0 %v3936
      %4039 = vmatprep.subr.bf16.mxu0 %v3941
      %4040 = vmatpush1.bf16.msra.mxu0 %v3940
      %4041 = vmatprep.subr.bf16.mxu0 %v3945
      %4042 = vmatpush1.bf16.msra.mxu0 %v3944
      %4043 = vmatprep.subr.bf16.mxu0 %v3949
      %4044 = vmatpush1.bf16.msra.mxu0 %v3948
      %4045 = vmatprep.subr.bf16.mxu0 %v3953
      %4046 = vmatpush1.bf16.msra.mxu0 %v3952
      %4047 = vmatprep.subr.bf16.mxu0 %v3957
      %4048 = vmatpush1.bf16.msra.mxu0 %v3956
      %4049 = vmatprep.subr.bf16.mxu0 %v3961
      %4050 = vmatpush1.bf16.msra.mxu0 %v3960
      %4051 = vmatprep.subr.bf16.mxu0 0
      %4052 = vmatpush1.bf16.msra.mxu0 0
      %4053 = vmatprep.subr.bf16.mxu0 0
      %4054 = vmatpush1.bf16.msra.mxu0 0
      %4055 = vmatprep.subr.bf16.mxu0 0
      %4056 = vmatpush1.bf16.msra.mxu0 0
      %4057 = vmatprep.subr.bf16.mxu0 0
      %4058 = vmatpush1.bf16.msra.mxu0 0
      %4059 = vmatprep.subr.bf16.mxu0 0
      %4060 = vmatpush1.bf16.msra.mxu0 0
      %4061 = vmatprep.subr.bf16.mxu0 0
      %4062 = vmatpush1.bf16.msra.mxu0 0
      %4063 = vmatprep.subr.bf16.mxu0 0
      %4064 = vmatpush1.bf16.msra.mxu0 0
      %4065 = vmatprep.subr.bf16.mxu0 0
      %4066 = vmatpush1.bf16.msra.mxu0 0
      %4067 = vmatprep.mubr.bf16.mxu0 0
      %4068 = vmatmul.mubr.bf16.gmra.mrb[0].mxu0 %v3801
      %v4069 = vpop.f32.mrb[0].mxu0
      %v4070 = vadd.f32 0.0, %v4069
      %v4071 = vpop.f32.mrb[0].mxu0
      %v4072 = vadd.f32 0.0, %v4071
      %v4073 = vpop.f32.mrb[0].mxu0
      %v4074 = vpop.f32.mrb[0].mxu0
      %4075 = vdwg.mxu0
      %v4076 = vadd.f32 %v3796, %v4029
      %v4077 = vadd.f32 %v3797, %v4031
      %v4078 = vadd.f32 %v3798, %v4070
      %v4079 = vadd.f32 %v3799, %v4072
      %v4080 = vxor.u32 %v4076, 2147483648
      %v4081 = vmul.f32 %v4080, 1.442695
      %v4082 = vpow.pop %v4081
      %v4083 = vadd.f32 %v4082, 1.0
      %v4084 = vrcp.pop %v4083
      %v4085 = vmul.f32 1.0, %v4084
      %v4086 = vxor.u32 %v4077, 2147483648
      %v4087 = vmul.f32 %v4086, 1.442695
      %v4088 = vpow.pop %v4087
      %v4089 = vadd.f32 %v4088, 1.0
      %v4090 = vrcp.pop %v4089
      %v4091 = vmul.f32 1.0, %v4090
      %v4092 = vtanh.pop %v4078
      %v4093 = vxor.u32 %v4079, 2147483648
      %v4094 = vmul.f32 %v4093, 1.442695
      %v4095 = vpow.pop %v4094
      %v4096 = vadd.f32 %v4095, 1.0
      %v4097 = vrcp.pop %v4096
      %v4098 = vmul.f32 1.0, %v4097
      %v4099 = vld [vmem:[#allocation3] sm:$0xff]
      %v4100 = vmul.f32 %v4091, %v4099
      %v4101 = vmul.f32 %v4085, %v4092
      %v4102 = vadd.f32 %v4100, %v4101
      %v4103 = vtanh.pop %v4102
      %v4104 = vmul.f32 %v4098, %v4103
      %4105 = vst [vmem:[#allocation3] sm:$0xff] %v4102
      %4106 = vst [vmem:[#allocation2] sm:$0xff] %v4104
      %s4107 = scalar_lea.vmem [#allocation5], %s3790
      %4108 = vst [vmem:[%s4107] sm:$0xff] %v4104
      %s4109 = smul.u32 %s19, 4294967291
      %s4110 = sadd.s32 %s4109, 10
      %s4111 = smul.u32 %s4110, 8
      %s4112 = sshra.s32 %s4111, 3
      %s4113 = sand.u32 %s4111, 7
      %s4114 = smul.u32 %s4112, 4
      %s4115 = smul.addr %s4114, 8
      %s4116 = scalar_lea.vmem [#allocation4], %s4115
      %v4117 = vld [vmem:[%s4116] sm:$0xff]
      %v4118 = vld [vmem:[%s4116 + $0x8] sm:$0xff]
      %v4119 = vld [vmem:[%s4116 + $0x10] sm:$0xff]
      %v4120 = vld [vmem:[%s4116 + $0x18] sm:$0xff]
      %v4121 = vld [vmem:[#allocation2] sm:$0xff]
      %v4122 = vpack.c.bf16 %v4121, %v4121
      %v4123 = vld [vmem:[%s305] sm:$0xff]
      %v4124 = vld [vmem:[%s305 + $0x8] sm:$0xff]
      %v4125 = vld [vmem:[%s305 + $0x10] sm:$0xff]
      %v4126 = vld [vmem:[%s305 + $0x18] sm:$0xff]
      %v4127 = vld [vmem:[%s305 + $0x20] sm:$0xff]
      %v4128 = vld [vmem:[%s305 + $0x28] sm:$0xff]
      %v4129 = vld [vmem:[%s305 + $0x30] sm:$0xff]
      %v4130 = vld [vmem:[%s305 + $0x38] sm:$0xff]
      %v4131 = vld [vmem:[%s305 + $0x40] sm:$0xff]
      %v4132 = vld [vmem:[%s305 + $0x48] sm:$0xff]
      %v4133 = vld [vmem:[%s305 + $0x50] sm:$0xff]
      %v4134 = vld [vmem:[%s305 + $0x58] sm:$0xff]
      %v4135 = vld [vmem:[%s305 + $0x60] sm:$0xff]
      %v4136 = vld [vmem:[%s305 + $0x68] sm:$0xff]
      %v4137 = vld [vmem:[%s305 + $0x70] sm:$0xff]
      %v4138 = vld [vmem:[%s305 + $0x78] sm:$0xff]
      %v4139 = vld [vmem:[%s305 + $0x80] sm:$0xff]
      %v4140 = vld [vmem:[%s305 + $0x88] sm:$0xff]
      %v4141 = vld [vmem:[%s305 + $0x90] sm:$0xff]
      %v4142 = vld [vmem:[%s305 + $0x98] sm:$0xff]
      %v4143 = vld [vmem:[%s305 + $0xa0] sm:$0xff]
      %v4144 = vld [vmem:[%s305 + $0xa8] sm:$0xff]
      %v4145 = vld [vmem:[%s305 + $0xb0] sm:$0xff]
      %v4146 = vld [vmem:[%s305 + $0xb8] sm:$0xff]
      %v4147 = vld [vmem:[%s305 + $0xc0] sm:$0xff]
      %v4148 = vld [vmem:[%s305 + $0xc8] sm:$0xff]
      %v4149 = vld [vmem:[%s305 + $0xd0] sm:$0xff]
      %v4150 = vld [vmem:[%s305 + $0xd8] sm:$0xff]
      %v4151 = vld [vmem:[%s305 + $0xe0] sm:$0xff]
      %v4152 = vld [vmem:[%s305 + $0xe8] sm:$0xff]
      %v4153 = vld [vmem:[%s305 + $0xf0] sm:$0xff]
      %v4154 = vld [vmem:[%s305 + $0xf8] sm:$0xff]
      %v4187 = vunpack.c.l.b16 %v4123
      %v4188 = vunpack.c.h.b16 %v4123
      %v4189 = vunpack.c.l.b16 %v4124
      %v4190 = vunpack.c.h.b16 %v4124
      %v4191 = vunpack.c.l.b16 %v4125
      %v4192 = vunpack.c.h.b16 %v4125
      %v4193 = vunpack.c.l.b16 %v4126
      %v4194 = vunpack.c.h.b16 %v4126
      %v4195 = vunpack.c.l.b16 %v4127
      %v4196 = vunpack.c.h.b16 %v4127
      %v4197 = vunpack.c.l.b16 %v4128
      %v4198 = vunpack.c.h.b16 %v4128
      %v4199 = vunpack.c.l.b16 %v4129
      %v4200 = vunpack.c.h.b16 %v4129
      %v4201 = vunpack.c.l.b16 %v4130
      %v4202 = vunpack.c.h.b16 %v4130
      %v4203 = vunpack.c.l.b16 %v4131
      %v4204 = vunpack.c.h.b16 %v4131
      %v4205 = vunpack.c.l.b16 %v4132
      %v4206 = vunpack.c.h.b16 %v4132
      %v4207 = vunpack.c.l.b16 %v4133
      %v4208 = vunpack.c.h.b16 %v4133
      %v4209 = vunpack.c.l.b16 %v4134
      %v4210 = vunpack.c.h.b16 %v4134
      %v4211 = vunpack.c.l.b16 %v4135
      %v4212 = vunpack.c.h.b16 %v4135
      %v4213 = vunpack.c.l.b16 %v4136
      %v4214 = vunpack.c.h.b16 %v4136
      %v4215 = vunpack.c.l.b16 %v4137
      %v4216 = vunpack.c.h.b16 %v4137
      %v4217 = vunpack.c.l.b16 %v4138
      %v4218 = vunpack.c.h.b16 %v4138
      %v4219 = vunpack.c.l.b16 %v4139
      %v4220 = vunpack.c.h.b16 %v4139
      %v4221 = vunpack.c.l.b16 %v4140
      %v4222 = vunpack.c.h.b16 %v4140
      %v4223 = vunpack.c.l.b16 %v4141
      %v4224 = vunpack.c.h.b16 %v4141
      %v4225 = vunpack.c.l.b16 %v4142
      %v4226 = vunpack.c.h.b16 %v4142
      %v4227 = vunpack.c.l.b16 %v4143
      %v4228 = vunpack.c.h.b16 %v4143
      %v4229 = vunpack.c.l.b16 %v4144
      %v4230 = vunpack.c.h.b16 %v4144
      %v4231 = vunpack.c.l.b16 %v4145
      %v4232 = vunpack.c.h.b16 %v4145
      %v4233 = vunpack.c.l.b16 %v4146
      %v4234 = vunpack.c.h.b16 %v4146
      %v4235 = vunpack.c.l.b16 %v4147
      %v4236 = vunpack.c.h.b16 %v4147
      %v4237 = vunpack.c.l.b16 %v4148
      %v4238 = vunpack.c.h.b16 %v4148
      %v4239 = vunpack.c.l.b16 %v4149
      %v4240 = vunpack.c.h.b16 %v4149
      %v4241 = vunpack.c.l.b16 %v4150
      %v4242 = vunpack.c.h.b16 %v4150
      %v4243 = vunpack.c.l.b16 %v4151
      %v4244 = vunpack.c.h.b16 %v4151
      %v4245 = vunpack.c.l.b16 %v4152
      %v4246 = vunpack.c.h.b16 %v4152
      %v4247 = vunpack.c.l.b16 %v4153
      %v4248 = vunpack.c.h.b16 %v4153
      %v4249 = vunpack.c.l.b16 %v4154
      %v4250 = vunpack.c.h.b16 %v4154
      %v4251 = vpack.c.b16 %v4191, %v4187
      %v4252 = vpack.c.b16 %v4192, %v4188
      %v4253 = vpack.c.b16 %v4193, %v4189
      %v4254 = vpack.c.b16 %v4194, %v4190
      %v4255 = vpack.c.b16 %v4199, %v4195
      %v4256 = vpack.c.b16 %v4200, %v4196
      %v4257 = vpack.c.b16 %v4201, %v4197
      %v4258 = vpack.c.b16 %v4202, %v4198
      %v4259 = vpack.c.b16 %v4207, %v4203
      %v4260 = vpack.c.b16 %v4208, %v4204
      %v4261 = vpack.c.b16 %v4209, %v4205
      %v4262 = vpack.c.b16 %v4210, %v4206
      %v4263 = vpack.c.b16 %v4215, %v4211
      %v4264 = vpack.c.b16 %v4216, %v4212
      %v4265 = vpack.c.b16 %v4217, %v4213
      %v4266 = vpack.c.b16 %v4218, %v4214
      %v4267 = vpack.c.b16 %v4223, %v4219
      %v4268 = vpack.c.b16 %v4224, %v4220
      %v4269 = vpack.c.b16 %v4225, %v4221
      %v4270 = vpack.c.b16 %v4226, %v4222
      %v4271 = vpack.c.b16 %v4231, %v4227
      %v4272 = vpack.c.b16 %v4232, %v4228
      %v4273 = vpack.c.b16 %v4233, %v4229
      %v4274 = vpack.c.b16 %v4234, %v4230
      %v4275 = vpack.c.b16 %v4239, %v4235
      %v4276 = vpack.c.b16 %v4240, %v4236
      %v4277 = vpack.c.b16 %v4241, %v4237
      %v4278 = vpack.c.b16 %v4242, %v4238
      %v4279 = vpack.c.b16 %v4247, %v4243
      %v4280 = vpack.c.b16 %v4248, %v4244
      %v4281 = vpack.c.b16 %v4249, %v4245
      %v4282 = vpack.c.b16 %v4250, %v4246
      %4315 = vmatprep.subr.bf16.mxu0 %v4252
      %4316 = vmatpush1.bf16.msra.mxu0 %v4251
      %4317 = vmatprep.subr.bf16.mxu0 %v4256
      %4318 = vmatpush1.bf16.msra.mxu0 %v4255
      %4319 = vmatprep.subr.bf16.mxu0 %v4260
      %4320 = vmatpush1.bf16.msra.mxu0 %v4259
      %4321 = vmatprep.subr.bf16.mxu0 %v4264
      %4322 = vmatpush1.bf16.msra.mxu0 %v4263
      %4323 = vmatprep.subr.bf16.mxu0 %v4268
      %4324 = vmatpush1.bf16.msra.mxu0 %v4267
      %4325 = vmatprep.subr.bf16.mxu0 %v4272
      %4326 = vmatpush1.bf16.msra.mxu0 %v4271
      %4327 = vmatprep.subr.bf16.mxu0 %v4276
      %4328 = vmatpush1.bf16.msra.mxu0 %v4275
      %4329 = vmatprep.subr.bf16.mxu0 %v4280
      %4330 = vmatpush1.bf16.msra.mxu0 %v4279
      %4331 = vmatprep.subr.bf16.mxu0 0
      %4332 = vmatpush1.bf16.msra.mxu0 0
      %4333 = vmatprep.subr.bf16.mxu0 0
      %4334 = vmatpush1.bf16.msra.mxu0 0
      %4335 = vmatprep.subr.bf16.mxu0 0
      %4336 = vmatpush1.bf16.msra.mxu0 0
      %4337 = vmatprep.subr.bf16.mxu0 0
      %4338 = vmatpush1.bf16.msra.mxu0 0
      %4339 = vmatprep.subr.bf16.mxu0 0
      %4340 = vmatpush1.bf16.msra.mxu0 0
      %4341 = vmatprep.subr.bf16.mxu0 0
      %4342 = vmatpush1.bf16.msra.mxu0 0
      %4343 = vmatprep.subr.bf16.mxu0 0
      %4344 = vmatpush1.bf16.msra.mxu0 0
      %4345 = vmatprep.subr.bf16.mxu0 0
      %4346 = vmatpush1.bf16.msra.mxu0 0
      %4347 = vmatprep.mubr.bf16.mxu0 0
      %4348 = vmatmul.mubr.bf16.gmra.mrb[0].mxu0 %v4122
      %v4349 = vpop.f32.mrb[0].mxu0
      %v4350 = vadd.f32 0.0, %v4349
      %v4351 = vpop.f32.mrb[0].mxu0
      %v4352 = vadd.f32 0.0, %v4351
      %v4353 = vpop.f32.mrb[0].mxu0
      %v4354 = vpop.f32.mrb[0].mxu0
      %4355 = vdwg.mxu0
      %4356 = vmatprep.subr.bf16.mxu0 %v4254
      %4357 = vmatpush1.bf16.msra.mxu0 %v4253
      %4358 = vmatprep.subr.bf16.mxu0 %v4258
      %4359 = vmatpush1.bf16.msra.mxu0 %v4257
      %4360 = vmatprep.subr.bf16.mxu0 %v4262
      %4361 = vmatpush1.bf16.msra.mxu0 %v4261
      %4362 = vmatprep.subr.bf16.mxu0 %v4266
      %4363 = vmatpush1.bf16.msra.mxu0 %v4265
      %4364 = vmatprep.subr.bf16.mxu0 %v4270
      %4365 = vmatpush1.bf16.msra.mxu0 %v4269
      %4366 = vmatprep.subr.bf16.mxu0 %v4274
      %4367 = vmatpush1.bf16.msra.mxu0 %v4273
      %4368 = vmatprep.subr.bf16.mxu0 %v4278
      %4369 = vmatpush1.bf16.msra.mxu0 %v4277
      %4370 = vmatprep.subr.bf16.mxu0 %v4282
      %4371 = vmatpush1.bf16.msra.mxu0 %v4281
      %4372 = vmatprep.subr.bf16.mxu0 0
      %4373 = vmatpush1.bf16.msra.mxu0 0
      %4374 = vmatprep.subr.bf16.mxu0 0
      %4375 = vmatpush1.bf16.msra.mxu0 0
      %4376 = vmatprep.subr.bf16.mxu0 0
      %4377 = vmatpush1.bf16.msra.mxu0 0
      %4378 = vmatprep.subr.bf16.mxu0 0
      %4379 = vmatpush1.bf16.msra.mxu0 0
      %4380 = vmatprep.subr.bf16.mxu0 0
      %4381 = vmatpush1.bf16.msra.mxu0 0
      %4382 = vmatprep.subr.bf16.mxu0 0
      %4383 = vmatpush1.bf16.msra.mxu0 0
      %4384 = vmatprep.subr.bf16.mxu0 0
      %4385 = vmatpush1.bf16.msra.mxu0 0
      %4386 = vmatprep.subr.bf16.mxu0 0
      %4387 = vmatpush1.bf16.msra.mxu0 0
      %4388 = vmatprep.mubr.bf16.mxu0 0
      %4389 = vmatmul.mubr.bf16.gmra.mrb[0].mxu0 %v4122
      %v4390 = vpop.f32.mrb[0].mxu0
      %v4391 = vadd.f32 0.0, %v4390
      %v4392 = vpop.f32.mrb[0].mxu0
      %v4393 = vadd.f32 0.0, %v4392
      %v4394 = vpop.f32.mrb[0].mxu0
      %v4395 = vpop.f32.mrb[0].mxu0
      %4396 = vdwg.mxu0
      %v4397 = vadd.f32 %v4117, %v4350
      %v4398 = vadd.f32 %v4118, %v4352
      %v4399 = vadd.f32 %v4119, %v4391
      %v4400 = vadd.f32 %v4120, %v4393
      %v4401 = vxor.u32 %v4397, 2147483648
      %v4402 = vmul.f32 %v4401, 1.442695
      %v4403 = vpow.pop %v4402
      %v4404 = vadd.f32 %v4403, 1.0
      %v4405 = vrcp.pop %v4404
      %v4406 = vmul.f32 1.0, %v4405
      %v4407 = vxor.u32 %v4398, 2147483648
      %v4408 = vmul.f32 %v4407, 1.442695
      %v4409 = vpow.pop %v4408
      %v4410 = vadd.f32 %v4409, 1.0
      %v4411 = vrcp.pop %v4410
      %v4412 = vmul.f32 1.0, %v4411
      %v4413 = vtanh.pop %v4399
      %v4414 = vxor.u32 %v4400, 2147483648
      %v4415 = vmul.f32 %v4414, 1.442695
      %v4416 = vpow.pop %v4415
      %v4417 = vadd.f32 %v4416, 1.0
      %v4418 = vrcp.pop %v4417
      %v4419 = vmul.f32 1.0, %v4418
      %v4420 = vld [vmem:[#allocation3] sm:$0xff]
      %v4421 = vmul.f32 %v4412, %v4420
      %v4422 = vmul.f32 %v4406, %v4413
      %v4423 = vadd.f32 %v4421, %v4422
      %v4424 = vtanh.pop %v4423
      %v4425 = vmul.f32 %v4419, %v4424
      %4426 = vst [vmem:[#allocation3] sm:$0xff] %v4423
      %4427 = vst [vmem:[#allocation2] sm:$0xff] %v4425
      %s4428 = scalar_lea.vmem [#allocation5], %s4111
      %4429 = vst [vmem:[%s4428] sm:$0xff] %v4425
      %s4430 = smul.u32 %s19, 4294967289
      %s4431 = sadd.s32 %s4430, 11
      %s4432 = smul.u32 %s4431, 8
      %s4433 = sshra.s32 %s4432, 3
      %s4434 = sand.u32 %s4432, 7
      %s4435 = smul.u32 %s4433, 4
      %s4436 = smul.addr %s4435, 8
      %s4437 = scalar_lea.vmem [#allocation4], %s4436
      %v4438 = vld [vmem:[%s4437] sm:$0xff]
      %v4439 = vld [vmem:[%s4437 + $0x8] sm:$0xff]
      %v4440 = vld [vmem:[%s4437 + $0x10] sm:$0xff]
      %v4441 = vld [vmem:[%s4437 + $0x18] sm:$0xff]
      %v4442 = vld [vmem:[#allocation2] sm:$0xff]
      %v4443 = vpack.c.bf16 %v4442, %v4442
      %v4444 = vld [vmem:[%s305] sm:$0xff]
      %v4445 = vld [vmem:[%s305 + $0x8] sm:$0xff]
      %v4446 = vld [vmem:[%s305 + $0x10] sm:$0xff]
      %v4447 = vld [vmem:[%s305 + $0x18] sm:$0xff]
      %v4448 = vld [vmem:[%s305 + $0x20] sm:$0xff]
      %v4449 = vld [vmem:[%s305 + $0x28] sm:$0xff]
      %v4450 = vld [vmem:[%s305 + $0x30] sm:$0xff]
      %v4451 = vld [vmem:[%s305 + $0x38] sm:$0xff]
      %v4452 = vld [vmem:[%s305 + $0x40] sm:$0xff]
      %v4453 = vld [vmem:[%s305 + $0x48] sm:$0xff]
      %v4454 = vld [vmem:[%s305 + $0x50] sm:$0xff]
      %v4455 = vld [vmem:[%s305 + $0x58] sm:$0xff]
      %v4456 = vld [vmem:[%s305 + $0x60] sm:$0xff]
      %v4457 = vld [vmem:[%s305 + $0x68] sm:$0xff]
      %v4458 = vld [vmem:[%s305 + $0x70] sm:$0xff]
      %v4459 = vld [vmem:[%s305 + $0x78] sm:$0xff]
      %v4460 = vld [vmem:[%s305 + $0x80] sm:$0xff]
      %v4461 = vld [vmem:[%s305 + $0x88] sm:$0xff]
      %v4462 = vld [vmem:[%s305 + $0x90] sm:$0xff]
      %v4463 = vld [vmem:[%s305 + $0x98] sm:$0xff]
      %v4464 = vld [vmem:[%s305 + $0xa0] sm:$0xff]
      %v4465 = vld [vmem:[%s305 + $0xa8] sm:$0xff]
      %v4466 = vld [vmem:[%s305 + $0xb0] sm:$0xff]
      %v4467 = vld [vmem:[%s305 + $0xb8] sm:$0xff]
      %v4468 = vld [vmem:[%s305 + $0xc0] sm:$0xff]
      %v4469 = vld [vmem:[%s305 + $0xc8] sm:$0xff]
      %v4470 = vld [vmem:[%s305 + $0xd0] sm:$0xff]
      %v4471 = vld [vmem:[%s305 + $0xd8] sm:$0xff]
      %v4472 = vld [vmem:[%s305 + $0xe0] sm:$0xff]
      %v4473 = vld [vmem:[%s305 + $0xe8] sm:$0xff]
      %v4474 = vld [vmem:[%s305 + $0xf0] sm:$0xff]
      %v4475 = vld [vmem:[%s305 + $0xf8] sm:$0xff]
      %v4508 = vunpack.c.l.b16 %v4444
      %v4509 = vunpack.c.h.b16 %v4444
      %v4510 = vunpack.c.l.b16 %v4445
      %v4511 = vunpack.c.h.b16 %v4445
      %v4512 = vunpack.c.l.b16 %v4446
      %v4513 = vunpack.c.h.b16 %v4446
      %v4514 = vunpack.c.l.b16 %v4447
      %v4515 = vunpack.c.h.b16 %v4447
      %v4516 = vunpack.c.l.b16 %v4448
      %v4517 = vunpack.c.h.b16 %v4448
      %v4518 = vunpack.c.l.b16 %v4449
      %v4519 = vunpack.c.h.b16 %v4449
      %v4520 = vunpack.c.l.b16 %v4450
      %v4521 = vunpack.c.h.b16 %v4450
      %v4522 = vunpack.c.l.b16 %v4451
      %v4523 = vunpack.c.h.b16 %v4451
      %v4524 = vunpack.c.l.b16 %v4452
      %v4525 = vunpack.c.h.b16 %v4452
      %v4526 = vunpack.c.l.b16 %v4453
      %v4527 = vunpack.c.h.b16 %v4453
      %v4528 = vunpack.c.l.b16 %v4454
      %v4529 = vunpack.c.h.b16 %v4454
      %v4530 = vunpack.c.l.b16 %v4455
      %v4531 = vunpack.c.h.b16 %v4455
      %v4532 = vunpack.c.l.b16 %v4456
      %v4533 = vunpack.c.h.b16 %v4456
      %v4534 = vunpack.c.l.b16 %v4457
      %v4535 = vunpack.c.h.b16 %v4457
      %v4536 = vunpack.c.l.b16 %v4458
      %v4537 = vunpack.c.h.b16 %v4458
      %v4538 = vunpack.c.l.b16 %v4459
      %v4539 = vunpack.c.h.b16 %v4459
      %v4540 = vunpack.c.l.b16 %v4460
      %v4541 = vunpack.c.h.b16 %v4460
      %v4542 = vunpack.c.l.b16 %v4461
      %v4543 = vunpack.c.h.b16 %v4461
      %v4544 = vunpack.c.l.b16 %v4462
      %v4545 = vunpack.c.h.b16 %v4462
      %v4546 = vunpack.c.l.b16 %v4463
      %v4547 = vunpack.c.h.b16 %v4463
      %v4548 = vunpack.c.l.b16 %v4464
      %v4549 = vunpack.c.h.b16 %v4464
      %v4550 = vunpack.c.l.b16 %v4465
      %v4551 = vunpack.c.h.b16 %v4465
      %v4552 = vunpack.c.l.b16 %v4466
      %v4553 = vunpack.c.h.b16 %v4466
      %v4554 = vunpack.c.l.b16 %v4467
      %v4555 = vunpack.c.h.b16 %v4467
      %v4556 = vunpack.c.l.b16 %v4468
      %v4557 = vunpack.c.h.b16 %v4468
      %v4558 = vunpack.c.l.b16 %v4469
      %v4559 = vunpack.c.h.b16 %v4469
      %v4560 = vunpack.c.l.b16 %v4470
      %v4561 = vunpack.c.h.b16 %v4470
      %v4562 = vunpack.c.l.b16 %v4471
      %v4563 = vunpack.c.h.b16 %v4471
      %v4564 = vunpack.c.l.b16 %v4472
      %v4565 = vunpack.c.h.b16 %v4472
      %v4566 = vunpack.c.l.b16 %v4473
      %v4567 = vunpack.c.h.b16 %v4473
      %v4568 = vunpack.c.l.b16 %v4474
      %v4569 = vunpack.c.h.b16 %v4474
      %v4570 = vunpack.c.l.b16 %v4475
      %v4571 = vunpack.c.h.b16 %v4475
      %v4572 = vpack.c.b16 %v4512, %v4508
      %v4573 = vpack.c.b16 %v4513, %v4509
      %v4574 = vpack.c.b16 %v4514, %v4510
      %v4575 = vpack.c.b16 %v4515, %v4511
      %v4576 = vpack.c.b16 %v4520, %v4516
      %v4577 = vpack.c.b16 %v4521, %v4517
      %v4578 = vpack.c.b16 %v4522, %v4518
      %v4579 = vpack.c.b16 %v4523, %v4519
      %v4580 = vpack.c.b16 %v4528, %v4524
      %v4581 = vpack.c.b16 %v4529, %v4525
      %v4582 = vpack.c.b16 %v4530, %v4526
      %v4583 = vpack.c.b16 %v4531, %v4527
      %v4584 = vpack.c.b16 %v4536, %v4532
      %v4585 = vpack.c.b16 %v4537, %v4533
      %v4586 = vpack.c.b16 %v4538, %v4534
      %v4587 = vpack.c.b16 %v4539, %v4535
      %v4588 = vpack.c.b16 %v4544, %v4540
      %v4589 = vpack.c.b16 %v4545, %v4541
      %v4590 = vpack.c.b16 %v4546, %v4542
      %v4591 = vpack.c.b16 %v4547, %v4543
      %v4592 = vpack.c.b16 %v4552, %v4548
      %v4593 = vpack.c.b16 %v4553, %v4549
      %v4594 = vpack.c.b16 %v4554, %v4550
      %v4595 = vpack.c.b16 %v4555, %v4551
      %v4596 = vpack.c.b16 %v4560, %v4556
      %v4597 = vpack.c.b16 %v4561, %v4557
      %v4598 = vpack.c.b16 %v4562, %v4558
      %v4599 = vpack.c.b16 %v4563, %v4559
      %v4600 = vpack.c.b16 %v4568, %v4564
      %v4601 = vpack.c.b16 %v4569, %v4565
      %v4602 = vpack.c.b16 %v4570, %v4566
      %v4603 = vpack.c.b16 %v4571, %v4567
      %4636 = vmatprep.subr.bf16.mxu0 %v4573
      %4637 = vmatpush1.bf16.msra.mxu0 %v4572
      %4638 = vmatprep.subr.bf16.mxu0 %v4577
      %4639 = vmatpush1.bf16.msra.mxu0 %v4576
      %4640 = vmatprep.subr.bf16.mxu0 %v4581
      %4641 = vmatpush1.bf16.msra.mxu0 %v4580
      %4642 = vmatprep.subr.bf16.mxu0 %v4585
      %4643 = vmatpush1.bf16.msra.mxu0 %v4584
      %4644 = vmatprep.subr.bf16.mxu0 %v4589
      %4645 = vmatpush1.bf16.msra.mxu0 %v4588
      %4646 = vmatprep.subr.bf16.mxu0 %v4593
      %4647 = vmatpush1.bf16.msra.mxu0 %v4592
      %4648 = vmatprep.subr.bf16.mxu0 %v4597
      %4649 = vmatpush1.bf16.msra.mxu0 %v4596
      %4650 = vmatprep.subr.bf16.mxu0 %v4601
      %4651 = vmatpush1.bf16.msra.mxu0 %v4600
      %4652 = vmatprep.subr.bf16.mxu0 0
      %4653 = vmatpush1.bf16.msra.mxu0 0
      %4654 = vmatprep.subr.bf16.mxu0 0
      %4655 = vmatpush1.bf16.msra.mxu0 0
      %4656 = vmatprep.subr.bf16.mxu0 0
      %4657 = vmatpush1.bf16.msra.mxu0 0
      %4658 = vmatprep.subr.bf16.mxu0 0
      %4659 = vmatpush1.bf16.msra.mxu0 0
      %4660 = vmatprep.subr.bf16.mxu0 0
      %4661 = vmatpush1.bf16.msra.mxu0 0
      %4662 = vmatprep.subr.bf16.mxu0 0
      %4663 = vmatpush1.bf16.msra.mxu0 0
      %4664 = vmatprep.subr.bf16.mxu0 0
      %4665 = vmatpush1.bf16.msra.mxu0 0
      %4666 = vmatprep.subr.bf16.mxu0 0
      %4667 = vmatpush1.bf16.msra.mxu0 0
      %4668 = vmatprep.mubr.bf16.mxu0 0
      %4669 = vmatmul.mubr.bf16.gmra.mrb[0].mxu0 %v4443
      %v4670 = vpop.f32.mrb[0].mxu0
      %v4671 = vadd.f32 0.0, %v4670
      %v4672 = vpop.f32.mrb[0].mxu0
      %v4673 = vadd.f32 0.0, %v4672
      %v4674 = vpop.f32.mrb[0].mxu0
      %v4675 = vpop.f32.mrb[0].mxu0
      %4676 = vdwg.mxu0
      %4677 = vmatprep.subr.bf16.mxu0 %v4575
      %4678 = vmatpush1.bf16.msra.mxu0 %v4574
      %4679 = vmatprep.subr.bf16.mxu0 %v4579
      %4680 = vmatpush1.bf16.msra.mxu0 %v4578
      %4681 = vmatprep.subr.bf16.mxu0 %v4583
      %4682 = vmatpush1.bf16.msra.mxu0 %v4582
      %4683 = vmatprep.subr.bf16.mxu0 %v4587
      %4684 = vmatpush1.bf16.msra.mxu0 %v4586
      %4685 = vmatprep.subr.bf16.mxu0 %v4591
      %4686 = vmatpush1.bf16.msra.mxu0 %v4590
      %4687 = vmatprep.subr.bf16.mxu0 %v4595
      %4688 = vmatpush1.bf16.msra.mxu0 %v4594
      %4689 = vmatprep.subr.bf16.mxu0 %v4599
      %4690 = vmatpush1.bf16.msra.mxu0 %v4598
      %4691 = vmatprep.subr.bf16.mxu0 %v4603
      %4692 = vmatpush1.bf16.msra.mxu0 %v4602
      %4693 = vmatprep.subr.bf16.mxu0 0
      %4694 = vmatpush1.bf16.msra.mxu0 0
      %4695 = vmatprep.subr.bf16.mxu0 0
      %4696 = vmatpush1.bf16.msra.mxu0 0
      %4697 = vmatprep.subr.bf16.mxu0 0
      %4698 = vmatpush1.bf16.msra.mxu0 0
      %4699 = vmatprep.subr.bf16.mxu0 0
      %4700 = vmatpush1.bf16.msra.mxu0 0
      %4701 = vmatprep.subr.bf16.mxu0 0
      %4702 = vmatpush1.bf16.msra.mxu0 0
      %4703 = vmatprep.subr.bf16.mxu0 0
      %4704 = vmatpush1.bf16.msra.mxu0 0
      %4705 = vmatprep.subr.bf16.mxu0 0
      %4706 = vmatpush1.bf16.msra.mxu0 0
      %4707 = vmatprep.subr.bf16.mxu0 0
      %4708 = vmatpush1.bf16.msra.mxu0 0
      %4709 = vmatprep.mubr.bf16.mxu0 0
      %4710 = vmatmul.mubr.bf16.gmra.mrb[0].mxu0 %v4443
      %v4711 = vpop.f32.mrb[0].mxu0
      %v4712 = vadd.f32 0.0, %v4711
      %v4713 = vpop.f32.mrb[0].mxu0
      %v4714 = vadd.f32 0.0, %v4713
      %v4715 = vpop.f32.mrb[0].mxu0
      %v4716 = vpop.f32.mrb[0].mxu0
      %4717 = vdwg.mxu0
      %v4718 = vadd.f32 %v4438, %v4671
      %v4719 = vadd.f32 %v4439, %v4673
      %v4720 = vadd.f32 %v4440, %v4712
      %v4721 = vadd.f32 %v4441, %v4714
      %v4722 = vxor.u32 %v4718, 2147483648
      %v4723 = vmul.f32 %v4722, 1.442695
      %v4724 = vpow.pop %v4723
      %v4725 = vadd.f32 %v4724, 1.0
      %v4726 = vrcp.pop %v4725
      %v4727 = vmul.f32 1.0, %v4726
      %v4728 = vxor.u32 %v4719, 2147483648
      %v4729 = vmul.f32 %v4728, 1.442695
      %v4730 = vpow.pop %v4729
      %v4731 = vadd.f32 %v4730, 1.0
      %v4732 = vrcp.pop %v4731
      %v4733 = vmul.f32 1.0, %v4732
      %v4734 = vtanh.pop %v4720
      %v4735 = vxor.u32 %v4721, 2147483648
      %v4736 = vmul.f32 %v4735, 1.442695
      %v4737 = vpow.pop %v4736
      %v4738 = vadd.f32 %v4737, 1.0
      %v4739 = vrcp.pop %v4738
      %v4740 = vmul.f32 1.0, %v4739
      %v4741 = vld [vmem:[#allocation3] sm:$0xff]
      %v4742 = vmul.f32 %v4733, %v4741
      %v4743 = vmul.f32 %v4727, %v4734
      %v4744 = vadd.f32 %v4742, %v4743
      %v4745 = vtanh.pop %v4744
      %v4746 = vmul.f32 %v4740, %v4745
      %4747 = vst [vmem:[#allocation3] sm:$0xff] %v4744
      %4748 = vst [vmem:[#allocation2] sm:$0xff] %v4746
      %s4749 = scalar_lea.vmem [#allocation5], %s4432
      %4750 = vst [vmem:[%s4749] sm:$0xff] %v4746
      %s4751 = smul.u32 %s19, 4294967287
      %s4752 = sadd.s32 %s4751, 12
      %s4753 = smul.u32 %s4752, 8
      %s4754 = sshra.s32 %s4753, 3
      %s4755 = sand.u32 %s4753, 7
      %s4756 = smul.u32 %s4754, 4
      %s4757 = smul.addr %s4756, 8
      %s4758 = scalar_lea.vmem [#allocation4], %s4757
      %v4759 = vld [vmem:[%s4758] sm:$0xff]
      %v4760 = vld [vmem:[%s4758 + $0x8] sm:$0xff]
      %v4761 = vld [vmem:[%s4758 + $0x10] sm:$0xff]
      %v4762 = vld [vmem:[%s4758 + $0x18] sm:$0xff]
      %v4763 = vld [vmem:[#allocation2] sm:$0xff]
      %v4764 = vpack.c.bf16 %v4763, %v4763
      %v4765 = vld [vmem:[%s305] sm:$0xff]
      %v4766 = vld [vmem:[%s305 + $0x8] sm:$0xff]
      %v4767 = vld [vmem:[%s305 + $0x10] sm:$0xff]
      %v4768 = vld [vmem:[%s305 + $0x18] sm:$0xff]
      %v4769 = vld [vmem:[%s305 + $0x20] sm:$0xff]
      %v4770 = vld [vmem:[%s305 + $0x28] sm:$0xff]
      %v4771 = vld [vmem:[%s305 + $0x30] sm:$0xff]
      %v4772 = vld [vmem:[%s305 + $0x38] sm:$0xff]
      %v4773 = vld [vmem:[%s305 + $0x40] sm:$0xff]
      %v4774 = vld [vmem:[%s305 + $0x48] sm:$0xff]
      %v4775 = vld [vmem:[%s305 + $0x50] sm:$0xff]
      %v4776 = vld [vmem:[%s305 + $0x58] sm:$0xff]
      %v4777 = vld [vmem:[%s305 + $0x60] sm:$0xff]
      %v4778 = vld [vmem:[%s305 + $0x68] sm:$0xff]
      %v4779 = vld [vmem:[%s305 + $0x70] sm:$0xff]
      %v4780 = vld [vmem:[%s305 + $0x78] sm:$0xff]
      %v4781 = vld [vmem:[%s305 + $0x80] sm:$0xff]
      %v4782 = vld [vmem:[%s305 + $0x88] sm:$0xff]
      %v4783 = vld [vmem:[%s305 + $0x90] sm:$0xff]
      %v4784 = vld [vmem:[%s305 + $0x98] sm:$0xff]
      %v4785 = vld [vmem:[%s305 + $0xa0] sm:$0xff]
      %v4786 = vld [vmem:[%s305 + $0xa8] sm:$0xff]
      %v4787 = vld [vmem:[%s305 + $0xb0] sm:$0xff]
      %v4788 = vld [vmem:[%s305 + $0xb8] sm:$0xff]
      %v4789 = vld [vmem:[%s305 + $0xc0] sm:$0xff]
      %v4790 = vld [vmem:[%s305 + $0xc8] sm:$0xff]
      %v4791 = vld [vmem:[%s305 + $0xd0] sm:$0xff]
      %v4792 = vld [vmem:[%s305 + $0xd8] sm:$0xff]
      %v4793 = vld [vmem:[%s305 + $0xe0] sm:$0xff]
      %v4794 = vld [vmem:[%s305 + $0xe8] sm:$0xff]
      %v4795 = vld [vmem:[%s305 + $0xf0] sm:$0xff]
      %v4796 = vld [vmem:[%s305 + $0xf8] sm:$0xff]
      %v4829 = vunpack.c.l.b16 %v4765
      %v4830 = vunpack.c.h.b16 %v4765
      %v4831 = vunpack.c.l.b16 %v4766
      %v4832 = vunpack.c.h.b16 %v4766
      %v4833 = vunpack.c.l.b16 %v4767
      %v4834 = vunpack.c.h.b16 %v4767
      %v4835 = vunpack.c.l.b16 %v4768
      %v4836 = vunpack.c.h.b16 %v4768
      %v4837 = vunpack.c.l.b16 %v4769
      %v4838 = vunpack.c.h.b16 %v4769
      %v4839 = vunpack.c.l.b16 %v4770
      %v4840 = vunpack.c.h.b16 %v4770
      %v4841 = vunpack.c.l.b16 %v4771
      %v4842 = vunpack.c.h.b16 %v4771
      %v4843 = vunpack.c.l.b16 %v4772
      %v4844 = vunpack.c.h.b16 %v4772
      %v4845 = vunpack.c.l.b16 %v4773
      %v4846 = vunpack.c.h.b16 %v4773
      %v4847 = vunpack.c.l.b16 %v4774
      %v4848 = vunpack.c.h.b16 %v4774
      %v4849 = vunpack.c.l.b16 %v4775
      %v4850 = vunpack.c.h.b16 %v4775
      %v4851 = vunpack.c.l.b16 %v4776
      %v4852 = vunpack.c.h.b16 %v4776
      %v4853 = vunpack.c.l.b16 %v4777
      %v4854 = vunpack.c.h.b16 %v4777
      %v4855 = vunpack.c.l.b16 %v4778
      %v4856 = vunpack.c.h.b16 %v4778
      %v4857 = vunpack.c.l.b16 %v4779
      %v4858 = vunpack.c.h.b16 %v4779
      %v4859 = vunpack.c.l.b16 %v4780
      %v4860 = vunpack.c.h.b16 %v4780
      %v4861 = vunpack.c.l.b16 %v4781
      %v4862 = vunpack.c.h.b16 %v4781
      %v4863 = vunpack.c.l.b16 %v4782
      %v4864 = vunpack.c.h.b16 %v4782
      %v4865 = vunpack.c.l.b16 %v4783
      %v4866 = vunpack.c.h.b16 %v4783
      %v4867 = vunpack.c.l.b16 %v4784
      %v4868 = vunpack.c.h.b16 %v4784
      %v4869 = vunpack.c.l.b16 %v4785
      %v4870 = vunpack.c.h.b16 %v4785
      %v4871 = vunpack.c.l.b16 %v4786
      %v4872 = vunpack.c.h.b16 %v4786
      %v4873 = vunpack.c.l.b16 %v4787
      %v4874 = vunpack.c.h.b16 %v4787
      %v4875 = vunpack.c.l.b16 %v4788
      %v4876 = vunpack.c.h.b16 %v4788
      %v4877 = vunpack.c.l.b16 %v4789
      %v4878 = vunpack.c.h.b16 %v4789
      %v4879 = vunpack.c.l.b16 %v4790
      %v4880 = vunpack.c.h.b16 %v4790
      %v4881 = vunpack.c.l.b16 %v4791
      %v4882 = vunpack.c.h.b16 %v4791
      %v4883 = vunpack.c.l.b16 %v4792
      %v4884 = vunpack.c.h.b16 %v4792
      %v4885 = vunpack.c.l.b16 %v4793
      %v4886 = vunpack.c.h.b16 %v4793
      %v4887 = vunpack.c.l.b16 %v4794
      %v4888 = vunpack.c.h.b16 %v4794
      %v4889 = vunpack.c.l.b16 %v4795
      %v4890 = vunpack.c.h.b16 %v4795
      %v4891 = vunpack.c.l.b16 %v4796
      %v4892 = vunpack.c.h.b16 %v4796
      %v4893 = vpack.c.b16 %v4833, %v4829
      %v4894 = vpack.c.b16 %v4834, %v4830
      %v4895 = vpack.c.b16 %v4835, %v4831
      %v4896 = vpack.c.b16 %v4836, %v4832
      %v4897 = vpack.c.b16 %v4841, %v4837
      %v4898 = vpack.c.b16 %v4842, %v4838
      %v4899 = vpack.c.b16 %v4843, %v4839
      %v4900 = vpack.c.b16 %v4844, %v4840
      %v4901 = vpack.c.b16 %v4849, %v4845
      %v4902 = vpack.c.b16 %v4850, %v4846
      %v4903 = vpack.c.b16 %v4851, %v4847
      %v4904 = vpack.c.b16 %v4852, %v4848
      %v4905 = vpack.c.b16 %v4857, %v4853
      %v4906 = vpack.c.b16 %v4858, %v4854
      %v4907 = vpack.c.b16 %v4859, %v4855
      %v4908 = vpack.c.b16 %v4860, %v4856
      %v4909 = vpack.c.b16 %v4865, %v4861
      %v4910 = vpack.c.b16 %v4866, %v4862
      %v4911 = vpack.c.b16 %v4867, %v4863
      %v4912 = vpack.c.b16 %v4868, %v4864
      %v4913 = vpack.c.b16 %v4873, %v4869
      %v4914 = vpack.c.b16 %v4874, %v4870
      %v4915 = vpack.c.b16 %v4875, %v4871
      %v4916 = vpack.c.b16 %v4876, %v4872
      %v4917 = vpack.c.b16 %v4881, %v4877
      %v4918 = vpack.c.b16 %v4882, %v4878
      %v4919 = vpack.c.b16 %v4883, %v4879
      %v4920 = vpack.c.b16 %v4884, %v4880
      %v4921 = vpack.c.b16 %v4889, %v4885
      %v4922 = vpack.c.b16 %v4890, %v4886
      %v4923 = vpack.c.b16 %v4891, %v4887
      %v4924 = vpack.c.b16 %v4892, %v4888
      %4957 = vmatprep.subr.bf16.mxu0 %v4894
      %4958 = vmatpush1.bf16.msra.mxu0 %v4893
      %4959 = vmatprep.subr.bf16.mxu0 %v4898
      %4960 = vmatpush1.bf16.msra.mxu0 %v4897
      %4961 = vmatprep.subr.bf16.mxu0 %v4902
      %4962 = vmatpush1.bf16.msra.mxu0 %v4901
      %4963 = vmatprep.subr.bf16.mxu0 %v4906
      %4964 = vmatpush1.bf16.msra.mxu0 %v4905
      %4965 = vmatprep.subr.bf16.mxu0 %v4910
      %4966 = vmatpush1.bf16.msra.mxu0 %v4909
      %4967 = vmatprep.subr.bf16.mxu0 %v4914
      %4968 = vmatpush1.bf16.msra.mxu0 %v4913
      %4969 = vmatprep.subr.bf16.mxu0 %v4918
      %4970 = vmatpush1.bf16.msra.mxu0 %v4917
      %4971 = vmatprep.subr.bf16.mxu0 %v4922
      %4972 = vmatpush1.bf16.msra.mxu0 %v4921
      %4973 = vmatprep.subr.bf16.mxu0 0
      %4974 = vmatpush1.bf16.msra.mxu0 0
      %4975 = vmatprep.subr.bf16.mxu0 0
      %4976 = vmatpush1.bf16.msra.mxu0 0
      %4977 = vmatprep.subr.bf16.mxu0 0
      %4978 = vmatpush1.bf16.msra.mxu0 0
      %4979 = vmatprep.subr.bf16.mxu0 0
      %4980 = vmatpush1.bf16.msra.mxu0 0
      %4981 = vmatprep.subr.bf16.mxu0 0
      %4982 = vmatpush1.bf16.msra.mxu0 0
      %4983 = vmatprep.subr.bf16.mxu0 0
      %4984 = vmatpush1.bf16.msra.mxu0 0
      %4985 = vmatprep.subr.bf16.mxu0 0
      %4986 = vmatpush1.bf16.msra.mxu0 0
      %4987 = vmatprep.subr.bf16.mxu0 0
      %4988 = vmatpush1.bf16.msra.mxu0 0
      %4989 = vmatprep.mubr.bf16.mxu0 0
      %4990 = vmatmul.mubr.bf16.gmra.mrb[0].mxu0 %v4764
      %v4991 = vpop.f32.mrb[0].mxu0
      %v4992 = vadd.f32 0.0, %v4991
      %v4993 = vpop.f32.mrb[0].mxu0
      %v4994 = vadd.f32 0.0, %v4993
      %v4995 = vpop.f32.mrb[0].mxu0
      %v4996 = vpop.f32.mrb[0].mxu0
      %4997 = vdwg.mxu0
      %4998 = vmatprep.subr.bf16.mxu0 %v4896
      %4999 = vmatpush1.bf16.msra.mxu0 %v4895
      %5000 = vmatprep.subr.bf16.mxu0 %v4900
      %5001 = vmatpush1.bf16.msra.mxu0 %v4899
      %5002 = vmatprep.subr.bf16.mxu0 %v4904
      %5003 = vmatpush1.bf16.msra.mxu0 %v4903
      %5004 = vmatprep.subr.bf16.mxu0 %v4908
      %5005 = vmatpush1.bf16.msra.mxu0 %v4907
      %5006 = vmatprep.subr.bf16.mxu0 %v4912
      %5007 = vmatpush1.bf16.msra.mxu0 %v4911
      %5008 = vmatprep.subr.bf16.mxu0 %v4916
      %5009 = vmatpush1.bf16.msra.mxu0 %v4915
      %5010 = vmatprep.subr.bf16.mxu0 %v4920
      %5011 = vmatpush1.bf16.msra.mxu0 %v4919
      %5012 = vmatprep.subr.bf16.mxu0 %v4924
      %5013 = vmatpush1.bf16.msra.mxu0 %v4923
      %5014 = vmatprep.subr.bf16.mxu0 0
      %5015 = vmatpush1.bf16.msra.mxu0 0
      %5016 = vmatprep.subr.bf16.mxu0 0
      %5017 = vmatpush1.bf16.msra.mxu0 0
      %5018 = vmatprep.subr.bf16.mxu0 0
      %5019 = vmatpush1.bf16.msra.mxu0 0
      %5020 = vmatprep.subr.bf16.mxu0 0
      %5021 = vmatpush1.bf16.msra.mxu0 0
      %5022 = vmatprep.subr.bf16.mxu0 0
      %5023 = vmatpush1.bf16.msra.mxu0 0
      %5024 = vmatprep.subr.bf16.mxu0 0
      %5025 = vmatpush1.bf16.msra.mxu0 0
      %5026 = vmatprep.subr.bf16.mxu0 0
      %5027 = vmatpush1.bf16.msra.mxu0 0
      %5028 = vmatprep.subr.bf16.mxu0 0
      %5029 = vmatpush1.bf16.msra.mxu0 0
      %5030 = vmatprep.mubr.bf16.mxu0 0
      %5031 = vmatmul.mubr.bf16.gmra.mrb[0].mxu0 %v4764
      %v5032 = vpop.f32.mrb[0].mxu0
      %v5033 = vadd.f32 0.0, %v5032
      %v5034 = vpop.f32.mrb[0].mxu0
      %v5035 = vadd.f32 0.0, %v5034
      %v5036 = vpop.f32.mrb[0].mxu0
      %v5037 = vpop.f32.mrb[0].mxu0
      %5038 = vdwg.mxu0
      %v5039 = vadd.f32 %v4759, %v4992
      %v5040 = vadd.f32 %v4760, %v4994
      %v5041 = vadd.f32 %v4761, %v5033
      %v5042 = vadd.f32 %v4762, %v5035
      %v5043 = vxor.u32 %v5039, 2147483648
      %v5044 = vmul.f32 %v5043, 1.442695
      %v5045 = vpow.pop %v5044
      %v5046 = vadd.f32 %v5045, 1.0
      %v5047 = vrcp.pop %v5046
      %v5048 = vmul.f32 1.0, %v5047
      %v5049 = vxor.u32 %v5040, 2147483648
      %v5050 = vmul.f32 %v5049, 1.442695
      %v5051 = vpow.pop %v5050
      %v5052 = vadd.f32 %v5051, 1.0
      %v5053 = vrcp.pop %v5052
      %v5054 = vmul.f32 1.0, %v5053
      %v5055 = vtanh.pop %v5041
      %v5056 = vxor.u32 %v5042, 2147483648
      %v5057 = vmul.f32 %v5056, 1.442695
      %v5058 = vpow.pop %v5057
      %v5059 = vadd.f32 %v5058, 1.0
      %v5060 = vrcp.pop %v5059
      %v5061 = vmul.f32 1.0, %v5060
      %v5062 = vld [vmem:[#allocation3] sm:$0xff]
      %v5063 = vmul.f32 %v5054, %v5062
      %v5064 = vmul.f32 %v5048, %v5055
      %v5065 = vadd.f32 %v5063, %v5064
      %v5066 = vtanh.pop %v5065
      %v5067 = vmul.f32 %v5061, %v5066
      %5068 = vst [vmem:[#allocation3] sm:$0xff] %v5065
      %5069 = vst [vmem:[#allocation2] sm:$0xff] %v5067
      %s5070 = scalar_lea.vmem [#allocation5], %s4753
      %5071 = vst [vmem:[%s5070] sm:$0xff] %v5067
      %s5072 = smul.u32 %s19, 4294967285
      %s5073 = sadd.s32 %s5072, 13
      %s5074 = smul.u32 %s5073, 8
      %s5075 = sshra.s32 %s5074, 3
      %s5076 = sand.u32 %s5074, 7
      %s5077 = smul.u32 %s5075, 4
      %s5078 = smul.addr %s5077, 8
      %s5079 = scalar_lea.vmem [#allocation4], %s5078
      %v5080 = vld [vmem:[%s5079] sm:$0xff]
      %v5081 = vld [vmem:[%s5079 + $0x8] sm:$0xff]
      %v5082 = vld [vmem:[%s5079 + $0x10] sm:$0xff]
      %v5083 = vld [vmem:[%s5079 + $0x18] sm:$0xff]
      %v5084 = vld [vmem:[#allocation2] sm:$0xff]
      %v5085 = vpack.c.bf16 %v5084, %v5084
      %v5086 = vld [vmem:[%s305] sm:$0xff]
      %v5087 = vld [vmem:[%s305 + $0x8] sm:$0xff]
      %v5088 = vld [vmem:[%s305 + $0x10] sm:$0xff]
      %v5089 = vld [vmem:[%s305 + $0x18] sm:$0xff]
      %v5090 = vld [vmem:[%s305 + $0x20] sm:$0xff]
      %v5091 = vld [vmem:[%s305 + $0x28] sm:$0xff]
      %v5092 = vld [vmem:[%s305 + $0x30] sm:$0xff]
      %v5093 = vld [vmem:[%s305 + $0x38] sm:$0xff]
      %v5094 = vld [vmem:[%s305 + $0x40] sm:$0xff]
      %v5095 = vld [vmem:[%s305 + $0x48] sm:$0xff]
      %v5096 = vld [vmem:[%s305 + $0x50] sm:$0xff]
      %v5097 = vld [vmem:[%s305 + $0x58] sm:$0xff]
      %v5098 = vld [vmem:[%s305 + $0x60] sm:$0xff]
      %v5099 = vld [vmem:[%s305 + $0x68] sm:$0xff]
      %v5100 = vld [vmem:[%s305 + $0x70] sm:$0xff]
      %v5101 = vld [vmem:[%s305 + $0x78] sm:$0xff]
      %v5102 = vld [vmem:[%s305 + $0x80] sm:$0xff]
      %v5103 = vld [vmem:[%s305 + $0x88] sm:$0xff]
      %v5104 = vld [vmem:[%s305 + $0x90] sm:$0xff]
      %v5105 = vld [vmem:[%s305 + $0x98] sm:$0xff]
      %v5106 = vld [vmem:[%s305 + $0xa0] sm:$0xff]
      %v5107 = vld [vmem:[%s305 + $0xa8] sm:$0xff]
      %v5108 = vld [vmem:[%s305 + $0xb0] sm:$0xff]
      %v5109 = vld [vmem:[%s305 + $0xb8] sm:$0xff]
      %v5110 = vld [vmem:[%s305 + $0xc0] sm:$0xff]
      %v5111 = vld [vmem:[%s305 + $0xc8] sm:$0xff]
      %v5112 = vld [vmem:[%s305 + $0xd0] sm:$0xff]
      %v5113 = vld [vmem:[%s305 + $0xd8] sm:$0xff]
      %v5114 = vld [vmem:[%s305 + $0xe0] sm:$0xff]
      %v5115 = vld [vmem:[%s305 + $0xe8] sm:$0xff]
      %v5116 = vld [vmem:[%s305 + $0xf0] sm:$0xff]
      %v5117 = vld [vmem:[%s305 + $0xf8] sm:$0xff]
      %v5150 = vunpack.c.l.b16 %v5086
      %v5151 = vunpack.c.h.b16 %v5086
      %v5152 = vunpack.c.l.b16 %v5087
      %v5153 = vunpack.c.h.b16 %v5087
      %v5154 = vunpack.c.l.b16 %v5088
      %v5155 = vunpack.c.h.b16 %v5088
      %v5156 = vunpack.c.l.b16 %v5089
      %v5157 = vunpack.c.h.b16 %v5089
      %v5158 = vunpack.c.l.b16 %v5090
      %v5159 = vunpack.c.h.b16 %v5090
      %v5160 = vunpack.c.l.b16 %v5091
      %v5161 = vunpack.c.h.b16 %v5091
      %v5162 = vunpack.c.l.b16 %v5092
      %v5163 = vunpack.c.h.b16 %v5092
      %v5164 = vunpack.c.l.b16 %v5093
      %v5165 = vunpack.c.h.b16 %v5093
      %v5166 = vunpack.c.l.b16 %v5094
      %v5167 = vunpack.c.h.b16 %v5094
      %v5168 = vunpack.c.l.b16 %v5095
      %v5169 = vunpack.c.h.b16 %v5095
      %v5170 = vunpack.c.l.b16 %v5096
      %v5171 = vunpack.c.h.b16 %v5096
      %v5172 = vunpack.c.l.b16 %v5097
      %v5173 = vunpack.c.h.b16 %v5097
      %v5174 = vunpack.c.l.b16 %v5098
      %v5175 = vunpack.c.h.b16 %v5098
      %v5176 = vunpack.c.l.b16 %v5099
      %v5177 = vunpack.c.h.b16 %v5099
      %v5178 = vunpack.c.l.b16 %v5100
      %v5179 = vunpack.c.h.b16 %v5100
      %v5180 = vunpack.c.l.b16 %v5101
      %v5181 = vunpack.c.h.b16 %v5101
      %v5182 = vunpack.c.l.b16 %v5102
      %v5183 = vunpack.c.h.b16 %v5102
      %v5184 = vunpack.c.l.b16 %v5103
      %v5185 = vunpack.c.h.b16 %v5103
      %v5186 = vunpack.c.l.b16 %v5104
      %v5187 = vunpack.c.h.b16 %v5104
      %v5188 = vunpack.c.l.b16 %v5105
      %v5189 = vunpack.c.h.b16 %v5105
      %v5190 = vunpack.c.l.b16 %v5106
      %v5191 = vunpack.c.h.b16 %v5106
      %v5192 = vunpack.c.l.b16 %v5107
      %v5193 = vunpack.c.h.b16 %v5107
      %v5194 = vunpack.c.l.b16 %v5108
      %v5195 = vunpack.c.h.b16 %v5108
      %v5196 = vunpack.c.l.b16 %v5109
      %v5197 = vunpack.c.h.b16 %v5109
      %v5198 = vunpack.c.l.b16 %v5110
      %v5199 = vunpack.c.h.b16 %v5110
      %v5200 = vunpack.c.l.b16 %v5111
      %v5201 = vunpack.c.h.b16 %v5111
      %v5202 = vunpack.c.l.b16 %v5112
      %v5203 = vunpack.c.h.b16 %v5112
      %v5204 = vunpack.c.l.b16 %v5113
      %v5205 = vunpack.c.h.b16 %v5113
      %v5206 = vunpack.c.l.b16 %v5114
      %v5207 = vunpack.c.h.b16 %v5114
      %v5208 = vunpack.c.l.b16 %v5115
      %v5209 = vunpack.c.h.b16 %v5115
      %v5210 = vunpack.c.l.b16 %v5116
      %v5211 = vunpack.c.h.b16 %v5116
      %v5212 = vunpack.c.l.b16 %v5117
      %v5213 = vunpack.c.h.b16 %v5117
      %v5214 = vpack.c.b16 %v5154, %v5150
      %v5215 = vpack.c.b16 %v5155, %v5151
      %v5216 = vpack.c.b16 %v5156, %v5152
      %v5217 = vpack.c.b16 %v5157, %v5153
      %v5218 = vpack.c.b16 %v5162, %v5158
      %v5219 = vpack.c.b16 %v5163, %v5159
      %v5220 = vpack.c.b16 %v5164, %v5160
      %v5221 = vpack.c.b16 %v5165, %v5161
      %v5222 = vpack.c.b16 %v5170, %v5166
      %v5223 = vpack.c.b16 %v5171, %v5167
      %v5224 = vpack.c.b16 %v5172, %v5168
      %v5225 = vpack.c.b16 %v5173, %v5169
      %v5226 = vpack.c.b16 %v5178, %v5174
      %v5227 = vpack.c.b16 %v5179, %v5175
      %v5228 = vpack.c.b16 %v5180, %v5176
      %v5229 = vpack.c.b16 %v5181, %v5177
      %v5230 = vpack.c.b16 %v5186, %v5182
      %v5231 = vpack.c.b16 %v5187, %v5183
      %v5232 = vpack.c.b16 %v5188, %v5184
      %v5233 = vpack.c.b16 %v5189, %v5185
      %v5234 = vpack.c.b16 %v5194, %v5190
      %v5235 = vpack.c.b16 %v5195, %v5191
      %v5236 = vpack.c.b16 %v5196, %v5192
      %v5237 = vpack.c.b16 %v5197, %v5193
      %v5238 = vpack.c.b16 %v5202, %v5198
      %v5239 = vpack.c.b16 %v5203, %v5199
      %v5240 = vpack.c.b16 %v5204, %v5200
      %v5241 = vpack.c.b16 %v5205, %v5201
      %v5242 = vpack.c.b16 %v5210, %v5206
      %v5243 = vpack.c.b16 %v5211, %v5207
      %v5244 = vpack.c.b16 %v5212, %v5208
      %v5245 = vpack.c.b16 %v5213, %v5209
      %5278 = vmatprep.subr.bf16.mxu0 %v5215
      %5279 = vmatpush1.bf16.msra.mxu0 %v5214
      %5280 = vmatprep.subr.bf16.mxu0 %v5219
      %5281 = vmatpush1.bf16.msra.mxu0 %v5218
      %5282 = vmatprep.subr.bf16.mxu0 %v5223
      %5283 = vmatpush1.bf16.msra.mxu0 %v5222
      %5284 = vmatprep.subr.bf16.mxu0 %v5227
      %5285 = vmatpush1.bf16.msra.mxu0 %v5226
      %5286 = vmatprep.subr.bf16.mxu0 %v5231
      %5287 = vmatpush1.bf16.msra.mxu0 %v5230
      %5288 = vmatprep.subr.bf16.mxu0 %v5235
      %5289 = vmatpush1.bf16.msra.mxu0 %v5234
      %5290 = vmatprep.subr.bf16.mxu0 %v5239
      %5291 = vmatpush1.bf16.msra.mxu0 %v5238
      %5292 = vmatprep.subr.bf16.mxu0 %v5243
      %5293 = vmatpush1.bf16.msra.mxu0 %v5242
      %5294 = vmatprep.subr.bf16.mxu0 0
      %5295 = vmatpush1.bf16.msra.mxu0 0
      %5296 = vmatprep.subr.bf16.mxu0 0
      %5297 = vmatpush1.bf16.msra.mxu0 0
      %5298 = vmatprep.subr.bf16.mxu0 0
      %5299 = vmatpush1.bf16.msra.mxu0 0
      %5300 = vmatprep.subr.bf16.mxu0 0
      %5301 = vmatpush1.bf16.msra.mxu0 0
      %5302 = vmatprep.subr.bf16.mxu0 0
      %5303 = vmatpush1.bf16.msra.mxu0 0
      %5304 = vmatprep.subr.bf16.mxu0 0
      %5305 = vmatpush1.bf16.msra.mxu0 0
      %5306 = vmatprep.subr.bf16.mxu0 0
      %5307 = vmatpush1.bf16.msra.mxu0 0
      %5308 = vmatprep.subr.bf16.mxu0 0
      %5309 = vmatpush1.bf16.msra.mxu0 0
      %5310 = vmatprep.mubr.bf16.mxu0 0
      %5311 = vmatmul.mubr.bf16.gmra.mrb[0].mxu0 %v5085
      %v5312 = vpop.f32.mrb[0].mxu0
      %v5313 = vadd.f32 0.0, %v5312
      %v5314 = vpop.f32.mrb[0].mxu0
      %v5315 = vadd.f32 0.0, %v5314
      %v5316 = vpop.f32.mrb[0].mxu0
      %v5317 = vpop.f32.mrb[0].mxu0
      %5318 = vdwg.mxu0
      %5319 = vmatprep.subr.bf16.mxu0 %v5217
      %5320 = vmatpush1.bf16.msra.mxu0 %v5216
      %5321 = vmatprep.subr.bf16.mxu0 %v5221
      %5322 = vmatpush1.bf16.msra.mxu0 %v5220
      %5323 = vmatprep.subr.bf16.mxu0 %v5225
      %5324 = vmatpush1.bf16.msra.mxu0 %v5224
      %5325 = vmatprep.subr.bf16.mxu0 %v5229
      %5326 = vmatpush1.bf16.msra.mxu0 %v5228
      %5327 = vmatprep.subr.bf16.mxu0 %v5233
      %5328 = vmatpush1.bf16.msra.mxu0 %v5232
      %5329 = vmatprep.subr.bf16.mxu0 %v5237
      %5330 = vmatpush1.bf16.msra.mxu0 %v5236
      %5331 = vmatprep.subr.bf16.mxu0 %v5241
      %5332 = vmatpush1.bf16.msra.mxu0 %v5240
      %5333 = vmatprep.subr.bf16.mxu0 %v5245
      %5334 = vmatpush1.bf16.msra.mxu0 %v5244
      %5335 = vmatprep.subr.bf16.mxu0 0
      %5336 = vmatpush1.bf16.msra.mxu0 0
      %5337 = vmatprep.subr.bf16.mxu0 0
      %5338 = vmatpush1.bf16.msra.mxu0 0
      %5339 = vmatprep.subr.bf16.mxu0 0
      %5340 = vmatpush1.bf16.msra.mxu0 0
      %5341 = vmatprep.subr.bf16.mxu0 0
      %5342 = vmatpush1.bf16.msra.mxu0 0
      %5343 = vmatprep.subr.bf16.mxu0 0
      %5344 = vmatpush1.bf16.msra.mxu0 0
      %5345 = vmatprep.subr.bf16.mxu0 0
      %5346 = vmatpush1.bf16.msra.mxu0 0
      %5347 = vmatprep.subr.bf16.mxu0 0
      %5348 = vmatpush1.bf16.msra.mxu0 0
      %5349 = vmatprep.subr.bf16.mxu0 0
      %5350 = vmatpush1.bf16.msra.mxu0 0
      %5351 = vmatprep.mubr.bf16.mxu0 0
      %5352 = vmatmul.mubr.bf16.gmra.mrb[0].mxu0 %v5085
      %v5353 = vpop.f32.mrb[0].mxu0
      %v5354 = vadd.f32 0.0, %v5353
      %v5355 = vpop.f32.mrb[0].mxu0
      %v5356 = vadd.f32 0.0, %v5355
      %v5357 = vpop.f32.mrb[0].mxu0
      %v5358 = vpop.f32.mrb[0].mxu0
      %5359 = vdwg.mxu0
      %v5360 = vadd.f32 %v5080, %v5313
      %v5361 = vadd.f32 %v5081, %v5315
      %v5362 = vadd.f32 %v5082, %v5354
      %v5363 = vadd.f32 %v5083, %v5356
      %v5364 = vxor.u32 %v5360, 2147483648
      %v5365 = vmul.f32 %v5364, 1.442695
      %v5366 = vpow.pop %v5365
      %v5367 = vadd.f32 %v5366, 1.0
      %v5368 = vrcp.pop %v5367
      %v5369 = vmul.f32 1.0, %v5368
      %v5370 = vxor.u32 %v5361, 2147483648
      %v5371 = vmul.f32 %v5370, 1.442695
      %v5372 = vpow.pop %v5371
      %v5373 = vadd.f32 %v5372, 1.0
      %v5374 = vrcp.pop %v5373
      %v5375 = vmul.f32 1.0, %v5374
      %v5376 = vtanh.pop %v5362
      %v5377 = vxor.u32 %v5363, 2147483648
      %v5378 = vmul.f32 %v5377, 1.442695
      %v5379 = vpow.pop %v5378
      %v5380 = vadd.f32 %v5379, 1.0
      %v5381 = vrcp.pop %v5380
      %v5382 = vmul.f32 1.0, %v5381
      %v5383 = vld [vmem:[#allocation3] sm:$0xff]
      %v5384 = vmul.f32 %v5375, %v5383
      %v5385 = vmul.f32 %v5369, %v5376
      %v5386 = vadd.f32 %v5384, %v5385
      %v5387 = vtanh.pop %v5386
      %v5388 = vmul.f32 %v5382, %v5387
      %5389 = vst [vmem:[#allocation3] sm:$0xff] %v5386
      %5390 = vst [vmem:[#allocation2] sm:$0xff] %v5388
      %s5391 = scalar_lea.vmem [#allocation5], %s5074
      %5392 = vst [vmem:[%s5391] sm:$0xff] %v5388
      %s5393 = smul.u32 %s19, 4294967283
      %s5394 = sadd.s32 %s5393, 14
      %s5395 = smul.u32 %s5394, 8
      %s5396 = sshra.s32 %s5395, 3
      %s5397 = sand.u32 %s5395, 7
      %s5398 = smul.u32 %s5396, 4
      %s5399 = smul.addr %s5398, 8
      %s5400 = scalar_lea.vmem [#allocation4], %s5399
      %v5401 = vld [vmem:[%s5400] sm:$0xff]
      %v5402 = vld [vmem:[%s5400 + $0x8] sm:$0xff]
      %v5403 = vld [vmem:[%s5400 + $0x10] sm:$0xff]
      %v5404 = vld [vmem:[%s5400 + $0x18] sm:$0xff]
      %v5405 = vld [vmem:[#allocation2] sm:$0xff]
      %v5406 = vpack.c.bf16 %v5405, %v5405
      %v5407 = vld [vmem:[%s305] sm:$0xff]
      %v5408 = vld [vmem:[%s305 + $0x8] sm:$0xff]
      %v5409 = vld [vmem:[%s305 + $0x10] sm:$0xff]
      %v5410 = vld [vmem:[%s305 + $0x18] sm:$0xff]
      %v5411 = vld [vmem:[%s305 + $0x20] sm:$0xff]
      %v5412 = vld [vmem:[%s305 + $0x28] sm:$0xff]
      %v5413 = vld [vmem:[%s305 + $0x30] sm:$0xff]
      %v5414 = vld [vmem:[%s305 + $0x38] sm:$0xff]
      %v5415 = vld [vmem:[%s305 + $0x40] sm:$0xff]
      %v5416 = vld [vmem:[%s305 + $0x48] sm:$0xff]
      %v5417 = vld [vmem:[%s305 + $0x50] sm:$0xff]
      %v5418 = vld [vmem:[%s305 + $0x58] sm:$0xff]
      %v5419 = vld [vmem:[%s305 + $0x60] sm:$0xff]
      %v5420 = vld [vmem:[%s305 + $0x68] sm:$0xff]
      %v5421 = vld [vmem:[%s305 + $0x70] sm:$0xff]
      %v5422 = vld [vmem:[%s305 + $0x78] sm:$0xff]
      %v5423 = vld [vmem:[%s305 + $0x80] sm:$0xff]
      %v5424 = vld [vmem:[%s305 + $0x88] sm:$0xff]
      %v5425 = vld [vmem:[%s305 + $0x90] sm:$0xff]
      %v5426 = vld [vmem:[%s305 + $0x98] sm:$0xff]
      %v5427 = vld [vmem:[%s305 + $0xa0] sm:$0xff]
      %v5428 = vld [vmem:[%s305 + $0xa8] sm:$0xff]
      %v5429 = vld [vmem:[%s305 + $0xb0] sm:$0xff]
      %v5430 = vld [vmem:[%s305 + $0xb8] sm:$0xff]
      %v5431 = vld [vmem:[%s305 + $0xc0] sm:$0xff]
      %v5432 = vld [vmem:[%s305 + $0xc8] sm:$0xff]
      %v5433 = vld [vmem:[%s305 + $0xd0] sm:$0xff]
      %v5434 = vld [vmem:[%s305 + $0xd8] sm:$0xff]
      %v5435 = vld [vmem:[%s305 + $0xe0] sm:$0xff]
      %v5436 = vld [vmem:[%s305 + $0xe8] sm:$0xff]
      %v5437 = vld [vmem:[%s305 + $0xf0] sm:$0xff]
      %v5438 = vld [vmem:[%s305 + $0xf8] sm:$0xff]
      %v5471 = vunpack.c.l.b16 %v5407
      %v5472 = vunpack.c.h.b16 %v5407
      %v5473 = vunpack.c.l.b16 %v5408
      %v5474 = vunpack.c.h.b16 %v5408
      %v5475 = vunpack.c.l.b16 %v5409
      %v5476 = vunpack.c.h.b16 %v5409
      %v5477 = vunpack.c.l.b16 %v5410
      %v5478 = vunpack.c.h.b16 %v5410
      %v5479 = vunpack.c.l.b16 %v5411
      %v5480 = vunpack.c.h.b16 %v5411
      %v5481 = vunpack.c.l.b16 %v5412
      %v5482 = vunpack.c.h.b16 %v5412
      %v5483 = vunpack.c.l.b16 %v5413
      %v5484 = vunpack.c.h.b16 %v5413
      %v5485 = vunpack.c.l.b16 %v5414
      %v5486 = vunpack.c.h.b16 %v5414
      %v5487 = vunpack.c.l.b16 %v5415
      %v5488 = vunpack.c.h.b16 %v5415
      %v5489 = vunpack.c.l.b16 %v5416
      %v5490 = vunpack.c.h.b16 %v5416
      %v5491 = vunpack.c.l.b16 %v5417
      %v5492 = vunpack.c.h.b16 %v5417
      %v5493 = vunpack.c.l.b16 %v5418
      %v5494 = vunpack.c.h.b16 %v5418
      %v5495 = vunpack.c.l.b16 %v5419
      %v5496 = vunpack.c.h.b16 %v5419
      %v5497 = vunpack.c.l.b16 %v5420
      %v5498 = vunpack.c.h.b16 %v5420
      %v5499 = vunpack.c.l.b16 %v5421
      %v5500 = vunpack.c.h.b16 %v5421
      %v5501 = vunpack.c.l.b16 %v5422
      %v5502 = vunpack.c.h.b16 %v5422
      %v5503 = vunpack.c.l.b16 %v5423
      %v5504 = vunpack.c.h.b16 %v5423
      %v5505 = vunpack.c.l.b16 %v5424
      %v5506 = vunpack.c.h.b16 %v5424
      %v5507 = vunpack.c.l.b16 %v5425
      %v5508 = vunpack.c.h.b16 %v5425
      %v5509 = vunpack.c.l.b16 %v5426
      %v5510 = vunpack.c.h.b16 %v5426
      %v5511 = vunpack.c.l.b16 %v5427
      %v5512 = vunpack.c.h.b16 %v5427
      %v5513 = vunpack.c.l.b16 %v5428
      %v5514 = vunpack.c.h.b16 %v5428
      %v5515 = vunpack.c.l.b16 %v5429
      %v5516 = vunpack.c.h.b16 %v5429
      %v5517 = vunpack.c.l.b16 %v5430
      %v5518 = vunpack.c.h.b16 %v5430
      %v5519 = vunpack.c.l.b16 %v5431
      %v5520 = vunpack.c.h.b16 %v5431
      %v5521 = vunpack.c.l.b16 %v5432
      %v5522 = vunpack.c.h.b16 %v5432
      %v5523 = vunpack.c.l.b16 %v5433
      %v5524 = vunpack.c.h.b16 %v5433
      %v5525 = vunpack.c.l.b16 %v5434
      %v5526 = vunpack.c.h.b16 %v5434
      %v5527 = vunpack.c.l.b16 %v5435
      %v5528 = vunpack.c.h.b16 %v5435
      %v5529 = vunpack.c.l.b16 %v5436
      %v5530 = vunpack.c.h.b16 %v5436
      %v5531 = vunpack.c.l.b16 %v5437
      %v5532 = vunpack.c.h.b16 %v5437
      %v5533 = vunpack.c.l.b16 %v5438
      %v5534 = vunpack.c.h.b16 %v5438
      %v5535 = vpack.c.b16 %v5475, %v5471
      %v5536 = vpack.c.b16 %v5476, %v5472
      %v5537 = vpack.c.b16 %v5477, %v5473
      %v5538 = vpack.c.b16 %v5478, %v5474
      %v5539 = vpack.c.b16 %v5483, %v5479
      %v5540 = vpack.c.b16 %v5484, %v5480
      %v5541 = vpack.c.b16 %v5485, %v5481
      %v5542 = vpack.c.b16 %v5486, %v5482
      %v5543 = vpack.c.b16 %v5491, %v5487
      %v5544 = vpack.c.b16 %v5492, %v5488
      %v5545 = vpack.c.b16 %v5493, %v5489
      %v5546 = vpack.c.b16 %v5494, %v5490
      %v5547 = vpack.c.b16 %v5499, %v5495
      %v5548 = vpack.c.b16 %v5500, %v5496
      %v5549 = vpack.c.b16 %v5501, %v5497
      %v5550 = vpack.c.b16 %v5502, %v5498
      %v5551 = vpack.c.b16 %v5507, %v5503
      %v5552 = vpack.c.b16 %v5508, %v5504
      %v5553 = vpack.c.b16 %v5509, %v5505
      %v5554 = vpack.c.b16 %v5510, %v5506
      %v5555 = vpack.c.b16 %v5515, %v5511
      %v5556 = vpack.c.b16 %v5516, %v5512
      %v5557 = vpack.c.b16 %v5517, %v5513
      %v5558 = vpack.c.b16 %v5518, %v5514
      %v5559 = vpack.c.b16 %v5523, %v5519
      %v5560 = vpack.c.b16 %v5524, %v5520
      %v5561 = vpack.c.b16 %v5525, %v5521
      %v5562 = vpack.c.b16 %v5526, %v5522
      %v5563 = vpack.c.b16 %v5531, %v5527
      %v5564 = vpack.c.b16 %v5532, %v5528
      %v5565 = vpack.c.b16 %v5533, %v5529
      %v5566 = vpack.c.b16 %v5534, %v5530
      %5599 = vmatprep.subr.bf16.mxu0 %v5536
      %5600 = vmatpush1.bf16.msra.mxu0 %v5535
      %5601 = vmatprep.subr.bf16.mxu0 %v5540
      %5602 = vmatpush1.bf16.msra.mxu0 %v5539
      %5603 = vmatprep.subr.bf16.mxu0 %v5544
      %5604 = vmatpush1.bf16.msra.mxu0 %v5543
      %5605 = vmatprep.subr.bf16.mxu0 %v5548
      %5606 = vmatpush1.bf16.msra.mxu0 %v5547
      %5607 = vmatprep.subr.bf16.mxu0 %v5552
      %5608 = vmatpush1.bf16.msra.mxu0 %v5551
      %5609 = vmatprep.subr.bf16.mxu0 %v5556
      %5610 = vmatpush1.bf16.msra.mxu0 %v5555
      %5611 = vmatprep.subr.bf16.mxu0 %v5560
      %5612 = vmatpush1.bf16.msra.mxu0 %v5559
      %5613 = vmatprep.subr.bf16.mxu0 %v5564
      %5614 = vmatpush1.bf16.msra.mxu0 %v5563
      %5615 = vmatprep.subr.bf16.mxu0 0
      %5616 = vmatpush1.bf16.msra.mxu0 0
      %5617 = vmatprep.subr.bf16.mxu0 0
      %5618 = vmatpush1.bf16.msra.mxu0 0
      %5619 = vmatprep.subr.bf16.mxu0 0
      %5620 = vmatpush1.bf16.msra.mxu0 0
      %5621 = vmatprep.subr.bf16.mxu0 0
      %5622 = vmatpush1.bf16.msra.mxu0 0
      %5623 = vmatprep.subr.bf16.mxu0 0
      %5624 = vmatpush1.bf16.msra.mxu0 0
      %5625 = vmatprep.subr.bf16.mxu0 0
      %5626 = vmatpush1.bf16.msra.mxu0 0
      %5627 = vmatprep.subr.bf16.mxu0 0
      %5628 = vmatpush1.bf16.msra.mxu0 0
      %5629 = vmatprep.subr.bf16.mxu0 0
      %5630 = vmatpush1.bf16.msra.mxu0 0
      %5631 = vmatprep.mubr.bf16.mxu0 0
      %5632 = vmatmul.mubr.bf16.gmra.mrb[0].mxu0 %v5406
      %v5633 = vpop.f32.mrb[0].mxu0
      %v5634 = vadd.f32 0.0, %v5633
      %v5635 = vpop.f32.mrb[0].mxu0
      %v5636 = vadd.f32 0.0, %v5635
      %v5637 = vpop.f32.mrb[0].mxu0
      %v5638 = vpop.f32.mrb[0].mxu0
      %5639 = vdwg.mxu0
      %5640 = vmatprep.subr.bf16.mxu0 %v5538
      %5641 = vmatpush1.bf16.msra.mxu0 %v5537
      %5642 = vmatprep.subr.bf16.mxu0 %v5542
      %5643 = vmatpush1.bf16.msra.mxu0 %v5541
      %5644 = vmatprep.subr.bf16.mxu0 %v5546
      %5645 = vmatpush1.bf16.msra.mxu0 %v5545
      %5646 = vmatprep.subr.bf16.mxu0 %v5550
      %5647 = vmatpush1.bf16.msra.mxu0 %v5549
      %5648 = vmatprep.subr.bf16.mxu0 %v5554
      %5649 = vmatpush1.bf16.msra.mxu0 %v5553
      %5650 = vmatprep.subr.bf16.mxu0 %v5558
      %5651 = vmatpush1.bf16.msra.mxu0 %v5557
      %5652 = vmatprep.subr.bf16.mxu0 %v5562
      %5653 = vmatpush1.bf16.msra.mxu0 %v5561
      %5654 = vmatprep.subr.bf16.mxu0 %v5566
      %5655 = vmatpush1.bf16.msra.mxu0 %v5565
      %5656 = vmatprep.subr.bf16.mxu0 0
      %5657 = vmatpush1.bf16.msra.mxu0 0
      %5658 = vmatprep.subr.bf16.mxu0 0
      %5659 = vmatpush1.bf16.msra.mxu0 0
      %5660 = vmatprep.subr.bf16.mxu0 0
      %5661 = vmatpush1.bf16.msra.mxu0 0
      %5662 = vmatprep.subr.bf16.mxu0 0
      %5663 = vmatpush1.bf16.msra.mxu0 0
      %5664 = vmatprep.subr.bf16.mxu0 0
      %5665 = vmatpush1.bf16.msra.mxu0 0
      %5666 = vmatprep.subr.bf16.mxu0 0
      %5667 = vmatpush1.bf16.msra.mxu0 0
      %5668 = vmatprep.subr.bf16.mxu0 0
      %5669 = vmatpush1.bf16.msra.mxu0 0
      %5670 = vmatprep.subr.bf16.mxu0 0
      %5671 = vmatpush1.bf16.msra.mxu0 0
      %5672 = vmatprep.mubr.bf16.mxu0 0
      %5673 = vmatmul.mubr.bf16.gmra.mrb[0].mxu0 %v5406
      %v5674 = vpop.f32.mrb[0].mxu0
      %v5675 = vadd.f32 0.0, %v5674
      %v5676 = vpop.f32.mrb[0].mxu0
      %v5677 = vadd.f32 0.0, %v5676
      %v5678 = vpop.f32.mrb[0].mxu0
      %v5679 = vpop.f32.mrb[0].mxu0
      %5680 = vdwg.mxu0
      %v5681 = vadd.f32 %v5401, %v5634
      %v5682 = vadd.f32 %v5402, %v5636
      %v5683 = vadd.f32 %v5403, %v5675
      %v5684 = vadd.f32 %v5404, %v5677
      %v5685 = vxor.u32 %v5681, 2147483648
      %v5686 = vmul.f32 %v5685, 1.442695
      %v5687 = vpow.pop %v5686
      %v5688 = vadd.f32 %v5687, 1.0
      %v5689 = vrcp.pop %v5688
      %v5690 = vmul.f32 1.0, %v5689
      %v5691 = vxor.u32 %v5682, 2147483648
      %v5692 = vmul.f32 %v5691, 1.442695
      %v5693 = vpow.pop %v5692
      %v5694 = vadd.f32 %v5693, 1.0
      %v5695 = vrcp.pop %v5694
      %v5696 = vmul.f32 1.0, %v5695
      %v5697 = vtanh.pop %v5683
      %v5698 = vxor.u32 %v5684, 2147483648
      %v5699 = vmul.f32 %v5698, 1.442695
      %v5700 = vpow.pop %v5699
      %v5701 = vadd.f32 %v5700, 1.0
      %v5702 = vrcp.pop %v5701
      %v5703 = vmul.f32 1.0, %v5702
      %v5704 = vld [vmem:[#allocation3] sm:$0xff]
      %v5705 = vmul.f32 %v5696, %v5704
      %v5706 = vmul.f32 %v5690, %v5697
      %v5707 = vadd.f32 %v5705, %v5706
      %v5708 = vtanh.pop %v5707
      %v5709 = vmul.f32 %v5703, %v5708
      %5710 = vst [vmem:[#allocation3] sm:$0xff] %v5707
      %5711 = vst [vmem:[#allocation2] sm:$0xff] %v5709
      %s5712 = scalar_lea.vmem [#allocation5], %s5395
      %5713 = vst [vmem:[%s5712] sm:$0xff] %v5709
      %s5714 = smul.u32 %s19, 4294967281
      %s5715 = sadd.s32 %s5714, 15
      %s5716 = smul.u32 %s5715, 8
      %s5717 = sshra.s32 %s5716, 3
      %s5718 = sand.u32 %s5716, 7
      %s5719 = smul.u32 %s5717, 4
      %s5720 = smul.addr %s5719, 8
      %s5721 = scalar_lea.vmem [#allocation4], %s5720
      %v5722 = vld [vmem:[%s5721] sm:$0xff]
      %v5723 = vld [vmem:[%s5721 + $0x8] sm:$0xff]
      %v5724 = vld [vmem:[%s5721 + $0x10] sm:$0xff]
      %v5725 = vld [vmem:[%s5721 + $0x18] sm:$0xff]
      %v5726 = vld [vmem:[#allocation2] sm:$0xff]
      %v5727 = vpack.c.bf16 %v5726, %v5726
      %v5728 = vld [vmem:[%s305] sm:$0xff]
      %v5729 = vld [vmem:[%s305 + $0x8] sm:$0xff]
      %v5730 = vld [vmem:[%s305 + $0x10] sm:$0xff]
      %v5731 = vld [vmem:[%s305 + $0x18] sm:$0xff]
      %v5732 = vld [vmem:[%s305 + $0x20] sm:$0xff]
      %v5733 = vld [vmem:[%s305 + $0x28] sm:$0xff]
      %v5734 = vld [vmem:[%s305 + $0x30] sm:$0xff]
      %v5735 = vld [vmem:[%s305 + $0x38] sm:$0xff]
      %v5736 = vld [vmem:[%s305 + $0x40] sm:$0xff]
      %v5737 = vld [vmem:[%s305 + $0x48] sm:$0xff]
      %v5738 = vld [vmem:[%s305 + $0x50] sm:$0xff]
      %v5739 = vld [vmem:[%s305 + $0x58] sm:$0xff]
      %v5740 = vld [vmem:[%s305 + $0x60] sm:$0xff]
      %v5741 = vld [vmem:[%s305 + $0x68] sm:$0xff]
      %v5742 = vld [vmem:[%s305 + $0x70] sm:$0xff]
      %v5743 = vld [vmem:[%s305 + $0x78] sm:$0xff]
      %v5744 = vld [vmem:[%s305 + $0x80] sm:$0xff]
      %v5745 = vld [vmem:[%s305 + $0x88] sm:$0xff]
      %v5746 = vld [vmem:[%s305 + $0x90] sm:$0xff]
      %v5747 = vld [vmem:[%s305 + $0x98] sm:$0xff]
      %v5748 = vld [vmem:[%s305 + $0xa0] sm:$0xff]
      %v5749 = vld [vmem:[%s305 + $0xa8] sm:$0xff]
      %v5750 = vld [vmem:[%s305 + $0xb0] sm:$0xff]
      %v5751 = vld [vmem:[%s305 + $0xb8] sm:$0xff]
      %v5752 = vld [vmem:[%s305 + $0xc0] sm:$0xff]
      %v5753 = vld [vmem:[%s305 + $0xc8] sm:$0xff]
      %v5754 = vld [vmem:[%s305 + $0xd0] sm:$0xff]
      %v5755 = vld [vmem:[%s305 + $0xd8] sm:$0xff]
      %v5756 = vld [vmem:[%s305 + $0xe0] sm:$0xff]
      %v5757 = vld [vmem:[%s305 + $0xe8] sm:$0xff]
      %v5758 = vld [vmem:[%s305 + $0xf0] sm:$0xff]
      %v5759 = vld [vmem:[%s305 + $0xf8] sm:$0xff]
      %v5792 = vunpack.c.l.b16 %v5728
      %v5793 = vunpack.c.h.b16 %v5728
      %v5794 = vunpack.c.l.b16 %v5729
      %v5795 = vunpack.c.h.b16 %v5729
      %v5796 = vunpack.c.l.b16 %v5730
      %v5797 = vunpack.c.h.b16 %v5730
      %v5798 = vunpack.c.l.b16 %v5731
      %v5799 = vunpack.c.h.b16 %v5731
      %v5800 = vunpack.c.l.b16 %v5732
      %v5801 = vunpack.c.h.b16 %v5732
      %v5802 = vunpack.c.l.b16 %v5733
      %v5803 = vunpack.c.h.b16 %v5733
      %v5804 = vunpack.c.l.b16 %v5734
      %v5805 = vunpack.c.h.b16 %v5734
      %v5806 = vunpack.c.l.b16 %v5735
      %v5807 = vunpack.c.h.b16 %v5735
      %v5808 = vunpack.c.l.b16 %v5736
      %v5809 = vunpack.c.h.b16 %v5736
      %v5810 = vunpack.c.l.b16 %v5737
      %v5811 = vunpack.c.h.b16 %v5737
      %v5812 = vunpack.c.l.b16 %v5738
      %v5813 = vunpack.c.h.b16 %v5738
      %v5814 = vunpack.c.l.b16 %v5739
      %v5815 = vunpack.c.h.b16 %v5739
      %v5816 = vunpack.c.l.b16 %v5740
      %v5817 = vunpack.c.h.b16 %v5740
      %v5818 = vunpack.c.l.b16 %v5741
      %v5819 = vunpack.c.h.b16 %v5741
      %v5820 = vunpack.c.l.b16 %v5742
      %v5821 = vunpack.c.h.b16 %v5742
      %v5822 = vunpack.c.l.b16 %v5743
      %v5823 = vunpack.c.h.b16 %v5743
      %v5824 = vunpack.c.l.b16 %v5744
      %v5825 = vunpack.c.h.b16 %v5744
      %v5826 = vunpack.c.l.b16 %v5745
      %v5827 = vunpack.c.h.b16 %v5745
      %v5828 = vunpack.c.l.b16 %v5746
      %v5829 = vunpack.c.h.b16 %v5746
      %v5830 = vunpack.c.l.b16 %v5747
      %v5831 = vunpack.c.h.b16 %v5747
      %v5832 = vunpack.c.l.b16 %v5748
      %v5833 = vunpack.c.h.b16 %v5748
      %v5834 = vunpack.c.l.b16 %v5749
      %v5835 = vunpack.c.h.b16 %v5749
      %v5836 = vunpack.c.l.b16 %v5750
      %v5837 = vunpack.c.h.b16 %v5750
      %v5838 = vunpack.c.l.b16 %v5751
      %v5839 = vunpack.c.h.b16 %v5751
      %v5840 = vunpack.c.l.b16 %v5752
      %v5841 = vunpack.c.h.b16 %v5752
      %v5842 = vunpack.c.l.b16 %v5753
      %v5843 = vunpack.c.h.b16 %v5753
      %v5844 = vunpack.c.l.b16 %v5754
      %v5845 = vunpack.c.h.b16 %v5754
      %v5846 = vunpack.c.l.b16 %v5755
      %v5847 = vunpack.c.h.b16 %v5755
      %v5848 = vunpack.c.l.b16 %v5756
      %v5849 = vunpack.c.h.b16 %v5756
      %v5850 = vunpack.c.l.b16 %v5757
      %v5851 = vunpack.c.h.b16 %v5757
      %v5852 = vunpack.c.l.b16 %v5758
      %v5853 = vunpack.c.h.b16 %v5758
      %v5854 = vunpack.c.l.b16 %v5759
      %v5855 = vunpack.c.h.b16 %v5759
      %v5856 = vpack.c.b16 %v5796, %v5792
      %v5857 = vpack.c.b16 %v5797, %v5793
      %v5858 = vpack.c.b16 %v5798, %v5794
      %v5859 = vpack.c.b16 %v5799, %v5795
      %v5860 = vpack.c.b16 %v5804, %v5800
      %v5861 = vpack.c.b16 %v5805, %v5801
      %v5862 = vpack.c.b16 %v5806, %v5802
      %v5863 = vpack.c.b16 %v5807, %v5803
      %v5864 = vpack.c.b16 %v5812, %v5808
      %v5865 = vpack.c.b16 %v5813, %v5809
      %v5866 = vpack.c.b16 %v5814, %v5810
      %v5867 = vpack.c.b16 %v5815, %v5811
      %v5868 = vpack.c.b16 %v5820, %v5816
      %v5869 = vpack.c.b16 %v5821, %v5817
      %v5870 = vpack.c.b16 %v5822, %v5818
      %v5871 = vpack.c.b16 %v5823, %v5819
      %v5872 = vpack.c.b16 %v5828, %v5824
      %v5873 = vpack.c.b16 %v5829, %v5825
      %v5874 = vpack.c.b16 %v5830, %v5826
      %v5875 = vpack.c.b16 %v5831, %v5827
      %v5876 = vpack.c.b16 %v5836, %v5832
      %v5877 = vpack.c.b16 %v5837, %v5833
      %v5878 = vpack.c.b16 %v5838, %v5834
      %v5879 = vpack.c.b16 %v5839, %v5835
      %v5880 = vpack.c.b16 %v5844, %v5840
      %v5881 = vpack.c.b16 %v5845, %v5841
      %v5882 = vpack.c.b16 %v5846, %v5842
      %v5883 = vpack.c.b16 %v5847, %v5843
      %v5884 = vpack.c.b16 %v5852, %v5848
      %v5885 = vpack.c.b16 %v5853, %v5849
      %v5886 = vpack.c.b16 %v5854, %v5850
      %v5887 = vpack.c.b16 %v5855, %v5851
      %5920 = vmatprep.subr.bf16.mxu0 %v5857
      %5921 = vmatpush1.bf16.msra.mxu0 %v5856
      %5922 = vmatprep.subr.bf16.mxu0 %v5861
      %5923 = vmatpush1.bf16.msra.mxu0 %v5860
      %5924 = vmatprep.subr.bf16.mxu0 %v5865
      %5925 = vmatpush1.bf16.msra.mxu0 %v5864
      %5926 = vmatprep.subr.bf16.mxu0 %v5869
      %5927 = vmatpush1.bf16.msra.mxu0 %v5868
      %5928 = vmatprep.subr.bf16.mxu0 %v5873
      %5929 = vmatpush1.bf16.msra.mxu0 %v5872
      %5930 = vmatprep.subr.bf16.mxu0 %v5877
      %5931 = vmatpush1.bf16.msra.mxu0 %v5876
      %5932 = vmatprep.subr.bf16.mxu0 %v5881
      %5933 = vmatpush1.bf16.msra.mxu0 %v5880
      %5934 = vmatprep.subr.bf16.mxu0 %v5885
      %5935 = vmatpush1.bf16.msra.mxu0 %v5884
      %5936 = vmatprep.subr.bf16.mxu0 0
      %5937 = vmatpush1.bf16.msra.mxu0 0
      %5938 = vmatprep.subr.bf16.mxu0 0
      %5939 = vmatpush1.bf16.msra.mxu0 0
      %5940 = vmatprep.subr.bf16.mxu0 0
      %5941 = vmatpush1.bf16.msra.mxu0 0
      %5942 = vmatprep.subr.bf16.mxu0 0
      %5943 = vmatpush1.bf16.msra.mxu0 0
      %5944 = vmatprep.subr.bf16.mxu0 0
      %5945 = vmatpush1.bf16.msra.mxu0 0
      %5946 = vmatprep.subr.bf16.mxu0 0
      %5947 = vmatpush1.bf16.msra.mxu0 0
      %5948 = vmatprep.subr.bf16.mxu0 0
      %5949 = vmatpush1.bf16.msra.mxu0 0
      %5950 = vmatprep.subr.bf16.mxu0 0
      %5951 = vmatpush1.bf16.msra.mxu0 0
      %5952 = vmatprep.mubr.bf16.mxu0 0
      %5953 = vmatmul.mubr.bf16.gmra.mrb[0].mxu0 %v5727
      %v5954 = vpop.f32.mrb[0].mxu0
      %v5955 = vadd.f32 0.0, %v5954
      %v5956 = vpop.f32.mrb[0].mxu0
      %v5957 = vadd.f32 0.0, %v5956
      %v5958 = vpop.f32.mrb[0].mxu0
      %v5959 = vpop.f32.mrb[0].mxu0
      %5960 = vdwg.mxu0
      %5961 = vmatprep.subr.bf16.mxu0 %v5859
      %5962 = vmatpush1.bf16.msra.mxu0 %v5858
      %5963 = vmatprep.subr.bf16.mxu0 %v5863
      %5964 = vmatpush1.bf16.msra.mxu0 %v5862
      %5965 = vmatprep.subr.bf16.mxu0 %v5867
      %5966 = vmatpush1.bf16.msra.mxu0 %v5866
      %5967 = vmatprep.subr.bf16.mxu0 %v5871
      %5968 = vmatpush1.bf16.msra.mxu0 %v5870
      %5969 = vmatprep.subr.bf16.mxu0 %v5875
      %5970 = vmatpush1.bf16.msra.mxu0 %v5874
      %5971 = vmatprep.subr.bf16.mxu0 %v5879
      %5972 = vmatpush1.bf16.msra.mxu0 %v5878
      %5973 = vmatprep.subr.bf16.mxu0 %v5883
      %5974 = vmatpush1.bf16.msra.mxu0 %v5882
      %5975 = vmatprep.subr.bf16.mxu0 %v5887
      %5976 = vmatpush1.bf16.msra.mxu0 %v5886
      %5977 = vmatprep.subr.bf16.mxu0 0
      %5978 = vmatpush1.bf16.msra.mxu0 0
      %5979 = vmatprep.subr.bf16.mxu0 0
      %5980 = vmatpush1.bf16.msra.mxu0 0
      %5981 = vmatprep.subr.bf16.mxu0 0
      %5982 = vmatpush1.bf16.msra.mxu0 0
      %5983 = vmatprep.subr.bf16.mxu0 0
      %5984 = vmatpush1.bf16.msra.mxu0 0
      %5985 = vmatprep.subr.bf16.mxu0 0
      %5986 = vmatpush1.bf16.msra.mxu0 0
      %5987 = vmatprep.subr.bf16.mxu0 0
      %5988 = vmatpush1.bf16.msra.mxu0 0
      %5989 = vmatprep.subr.bf16.mxu0 0
      %5990 = vmatpush1.bf16.msra.mxu0 0
      %5991 = vmatprep.subr.bf16.mxu0 0
      %5992 = vmatpush1.bf16.msra.mxu0 0
      %5993 = vmatprep.mubr.bf16.mxu0 0
      %5994 = vmatmul.mubr.bf16.gmra.mrb[0].mxu0 %v5727
      %v5995 = vpop.f32.mrb[0].mxu0
      %v5996 = vadd.f32 0.0, %v5995
      %v5997 = vpop.f32.mrb[0].mxu0
      %v5998 = vadd.f32 0.0, %v5997
      %v5999 = vpop.f32.mrb[0].mxu0
      %v6000 = vpop.f32.mrb[0].mxu0
      %6001 = vdwg.mxu0
      %v6002 = vadd.f32 %v5722, %v5955
      %v6003 = vadd.f32 %v5723, %v5957
      %v6004 = vadd.f32 %v5724, %v5996
      %v6005 = vadd.f32 %v5725, %v5998
      %v6006 = vxor.u32 %v6002, 2147483648
      %v6007 = vmul.f32 %v6006, 1.442695
      %v6008 = vpow.pop %v6007
      %v6009 = vadd.f32 %v6008, 1.0
      %v6010 = vrcp.pop %v6009
      %v6011 = vmul.f32 1.0, %v6010
      %v6012 = vxor.u32 %v6003, 2147483648
      %v6013 = vmul.f32 %v6012, 1.442695
      %v6014 = vpow.pop %v6013
      %v6015 = vadd.f32 %v6014, 1.0
      %v6016 = vrcp.pop %v6015
      %v6017 = vmul.f32 1.0, %v6016
      %v6018 = vtanh.pop %v6004
      %v6019 = vxor.u32 %v6005, 2147483648
      %v6020 = vmul.f32 %v6019, 1.442695
      %v6021 = vpow.pop %v6020
      %v6022 = vadd.f32 %v6021, 1.0
      %v6023 = vrcp.pop %v6022
      %v6024 = vmul.f32 1.0, %v6023
      %v6025 = vld [vmem:[#allocation3] sm:$0xff]
      %v6026 = vmul.f32 %v6017, %v6025
      %v6027 = vmul.f32 %v6011, %v6018
      %v6028 = vadd.f32 %v6026, %v6027
      %v6029 = vtanh.pop %v6028
      %v6030 = vmul.f32 %v6024, %v6029
      %6031 = vst [vmem:[#allocation3] sm:$0xff] %v6028
      %6032 = vst [vmem:[#allocation2] sm:$0xff] %v6030
      %s6033 = scalar_lea.vmem [#allocation5], %s5716
      %6034 = vst [vmem:[%s6033] sm:$0xff] %v6030
      %v6035 = vld [vmem:[#allocation5] sm:$0xff]
      %v6036 = vld [vmem:[#allocation5 + $0x8] sm:$0xff]
      %v6037 = vld [vmem:[#allocation5 + $0x10] sm:$0xff]
      %v6038 = vld [vmem:[#allocation5 + $0x18] sm:$0xff]
      %v6039 = vld [vmem:[#allocation5 + $0x20] sm:$0xff]
      %v6040 = vld [vmem:[#allocation5 + $0x28] sm:$0xff]
      %v6041 = vld [vmem:[#allocation5 + $0x30] sm:$0xff]
      %v6042 = vld [vmem:[#allocation5 + $0x38] sm:$0xff]
      %v6043 = vld [vmem:[#allocation5 + $0x40] sm:$0xff]
      %v6044 = vld [vmem:[#allocation5 + $0x48] sm:$0xff]
      %v6045 = vld [vmem:[#allocation5 + $0x50] sm:$0xff]
      %v6046 = vld [vmem:[#allocation5 + $0x58] sm:$0xff]
      %v6047 = vld [vmem:[#allocation5 + $0x60] sm:$0xff]
      %v6048 = vld [vmem:[#allocation5 + $0x68] sm:$0xff]
      %v6049 = vld [vmem:[#allocation5 + $0x70] sm:$0xff]
      %v6050 = vld [vmem:[#allocation5 + $0x78] sm:$0xff]
      %v6051 = vpack.c.bf16 %v6036, %v6035
      %v6052 = vpack.c.bf16 %v6038, %v6037
      %v6053 = vpack.c.bf16 %v6040, %v6039
      %v6054 = vpack.c.bf16 %v6042, %v6041
      %v6055 = vpack.c.bf16 %v6044, %v6043
      %v6056 = vpack.c.bf16 %v6046, %v6045
      %v6057 = vpack.c.bf16 %v6048, %v6047
      %v6058 = vpack.c.bf16 %v6050, %v6049
      %v6067 = vunpack.c.l.b16 %v6051
      %v6068 = vunpack.c.h.b16 %v6051
      %v6069 = vunpack.c.l.b16 %v6052
      %v6070 = vunpack.c.h.b16 %v6052
      %v6071 = vunpack.c.l.b16 %v6053
      %v6072 = vunpack.c.h.b16 %v6053
      %v6073 = vunpack.c.l.b16 %v6054
      %v6074 = vunpack.c.h.b16 %v6054
      %v6075 = vunpack.c.l.b16 %v6055
      %v6076 = vunpack.c.h.b16 %v6055
      %v6077 = vunpack.c.l.b16 %v6056
      %v6078 = vunpack.c.h.b16 %v6056
      %v6079 = vunpack.c.l.b16 %v6057
      %v6080 = vunpack.c.h.b16 %v6057
      %v6081 = vunpack.c.l.b16 %v6058
      %v6082 = vunpack.c.h.b16 %v6058
      %v6083 = vpack.c.b16 %v6067, %v6067
      %v6084 = vpack.c.b16 %v6068, %v6068
      %v6085 = vpack.c.b16 %v6069, %v6069
      %v6086 = vpack.c.b16 %v6070, %v6070
      %v6087 = vpack.c.b16 %v6071, %v6071
      %v6088 = vpack.c.b16 %v6072, %v6072
      %v6089 = vpack.c.b16 %v6073, %v6073
      %v6090 = vpack.c.b16 %v6074, %v6074
      %v6091 = vpack.c.b16 %v6075, %v6075
      %v6092 = vpack.c.b16 %v6076, %v6076
      %v6093 = vpack.c.b16 %v6077, %v6077
      %v6094 = vpack.c.b16 %v6078, %v6078
      %v6095 = vpack.c.b16 %v6079, %v6079
      %v6096 = vpack.c.b16 %v6080, %v6080
      %v6097 = vpack.c.b16 %v6081, %v6081
      %v6098 = vpack.c.b16 %v6082, %v6082
      %6115 = vst [vmem:[%s322] sm:$0xf] %v6083
      %6116 = vst [vmem:[%s322 + $0x4] sm:$0xf] %v6084
      %6117 = vst [vmem:[%s322 + $0x8] sm:$0xf] %v6085
      %6118 = vst [vmem:[%s322 + $0xc] sm:$0xf] %v6086
      %6119 = vst [vmem:[%s322 + $0x10] sm:$0xf] %v6087
      %6120 = vst [vmem:[%s322 + $0x14] sm:$0xf] %v6088
      %6121 = vst [vmem:[%s322 + $0x18] sm:$0xf] %v6089
      %6122 = vst [vmem:[%s322 + $0x1c] sm:$0xf] %v6090
      %6123 = vst [vmem:[%s322 + $0x20] sm:$0xf] %v6091
      %6124 = vst [vmem:[%s322 + $0x24] sm:$0xf] %v6092
      %6125 = vst [vmem:[%s322 + $0x28] sm:$0xf] %v6093
      %6126 = vst [vmem:[%s322 + $0x2c] sm:$0xf] %v6094
      %6127 = vst [vmem:[%s322 + $0x30] sm:$0xf] %v6095
      %6128 = vst [vmem:[%s322 + $0x34] sm:$0xf] %v6096
      %6129 = vst [vmem:[%s322 + $0x38] sm:$0xf] %v6097
      %6130 = vst [vmem:[%s322 + $0x3c] sm:$0xf] %v6098
      %s6131 = smul.u32 %s20, 2
      %s6132 = ssub.s32 1, %s6131
      %s6133 = smul.u32 %s19, %s6132
      %s6134 = sadd.s32 %s20, %s6133
      %s6135 = smul.u32 16, %s6134
      %p6136 = scmp.lt.s32.totalorder %s19, 1
      %s6137 = scalar_select %p6136, %s19, 1
      %p6138 = scmp.lt.s32.totalorder %s6135, 31
      %s6139 = scalar_select %p6138, %s6135, 31
      %s6140 = smul.addr %s6137, 32
      %s6141 = sadd.s32 %s6139, %s6140
      %s6142 = smul.addr %s6141, 4
      %s6143 = scalar_lea.vmem %s4, %s6142
      // Predicated region
      $region41: #{bilstm_forward.2} parent=35 // pred_check
        %p6144 = pneg %p167
      $region42: #{bilstm_forward.2} parent=35 // pred_check_branch
        %6146 = sbr.rel (%p6144) target = $region44
      $region43: #{bilstm_forward.2} parent=35 // pred_region
        %s6147 = smul.u32 %s20, 2
        %s6148 = ssub.s32 1, %s6147
        %s6149 = smul.u32 %s19, %s6148
        %s6150 = sadd.s32 %s20, %s6149
        %s6151 = smul.u32 16, %s6150
      $region44: #{bilstm_forward.2} parent=35 // pred_fallthru
        _
    $region36: #{bilstm_forward.2} parent=5 // pred_fallthru
      _
    %p6152 = scmp.le.s32.totalorder 2, %s10
    // Predicated region
    $region45: #{bilstm_forward.2} parent=5 // pred_check
      %p6153 = pneg %p6152
    $region46: #{bilstm_forward.2} parent=5 // pred_check_branch
      %6155 = sbr.rel (%p6153) target = $region48
    $region47: #{bilstm_forward.2} parent=5 // pred_region
      %s6156 = ssub.s32 %s10, 2
      // Predicated region
      $region49: #{bilstm_forward.2} parent=47 // pred_check
        %p6157 = pneg %p173
      $region50: #{bilstm_forward.2} parent=47 // pred_check_branch
        %6159 = sbr.rel (%p6157) target = $region52
      $region51: #{bilstm_forward.2} parent=47 // pred_region
        %s6160 = smul.u32 %s22, 2
        %s6161 = ssub.s32 1, %s6160
        %s6162 = smul.u32 %s21, %s6161
        %s6163 = sadd.s32 %s22, %s6162
        %s6164 = smul.u32 16, %s6163
        %p6165 = scmp.lt.s32.totalorder %s21, 1
        %s6166 = scalar_select %p6165, %s21, 1
        %p6167 = scmp.lt.s32.totalorder %s6164, 31
        %s6168 = scalar_select %p6167, %s6164, 31
        %s6169 = smul.addr %s6166, 32
        %s6170 = sadd.s32 %s6168, %s6169
        %s6171 = smul.addr %s6170, 4
        %s6172 = scalar_lea.vmem %s4, %s6171
      $region52: #{bilstm_forward.2} parent=47 // pred_fallthru
        _
    $region48: #{bilstm_forward.2} parent=5 // pred_fallthru
      _
  $region6: #{bilstm_forward.2} parent=0 // loop_footer
    %s14 = sadd.s32 1, %s10
  $region7: #{bilstm_forward.2} parent=0 // loop_footer_branch
    %9 = sbr.rel target = $region3
  $region8: #{bilstm_forward.2} parent=0 // loop_exit
    _

</llo_original>
